<compile_context>
chip_gen: v7x
topology: tpu7x:2x2x1
jax: 0.10.0
libtpu: 0.0.40
codegen_flags: <defaults>
</compile_context>

<pallas_src>
import functools

import jax
import jax.numpy as jnp
from jax.experimental import pallas as pl
from jax.experimental.pallas import tpu as pltpu

LN_EPS = 1e-5      # nn.LayerNorm default
NORM_EPS = 1e-8    # normalize() eps in the reference module


@functools.lru_cache(maxsize=None)
def _vmem_limit_bytes():
  """Generation-specific scoped-VMEM budget (~75% of physical VMEM)."""
  try:
    cap = int(pltpu.get_tpu_info().vmem_capacity_bytes)
  except Exception:  # no TPU visible / older API: assume smallest (v7x, 64 MiB)
    cap = 64 * 1024 * 1024
  return max(32 * 1024 * 1024, min(int(cap * 3 // 4), 100 * 1024 * 1024))


def _tile(dim, target, quantum):
  """Largest block <= target that is a multiple of `quantum` and divides dim;
  falls back to the full dim (always a legal TPU block)."""
  if dim <= target:
    return dim
  t = (target // quantum) * quantum
  while t >= quantum:
    if dim % t == 0:
      return t
    t -= quantum
  return dim


# ----------------------------- in-kernel helpers ----------------------------

def _gelu_exact(x):
  # erf-based GELU (matches torch.nn.GELU() default) via the A&S 7.1.26
  # rational approximation of erf (max abs err ~1.5e-7).  Exact divide: the
  # approx reciprocal's ~1e-4 error would dominate the erf accuracy.
  p = 0.3275911
  a1, a2, a3, a4, a5 = (0.254829592, -0.284496736, 1.421413741,
                        -1.453152027, 1.061405429)
  z = x * 0.7071067811865476
  az = jnp.abs(z)
  t = 1.0 / (1.0 + p * az)
  poly = t * (a1 + t * (a2 + t * (a3 + t * (a4 + t * a5))))
  erf_abs = 1.0 - poly * jnp.exp(-az * az)
  erf = jnp.where(z >= 0, erf_abs, -erf_abs)
  return 0.5 * x * (1.0 + erf)


# ------------------------------- Pallas kernels -----------------------------

def _matmul_kernel(x_ref, w_ref, o_ref, acc_ref):
  @pl.when(pl.program_id(2) == 0)
  def _():
    acc_ref[...] = jnp.zeros_like(acc_ref)
  acc_ref[...] += jnp.dot(x_ref[...], w_ref[...],
                          preferred_element_type=jnp.float32)

  @pl.when(pl.program_id(2) == pl.num_programs(2) - 1)
  def _():
    o_ref[...] = acc_ref[...].astype(o_ref.dtype)


def _matmul_bias_kernel(x_ref, w_ref, b_ref, o_ref, acc_ref):
  @pl.when(pl.program_id(2) == 0)
  def _():
    acc_ref[...] = jnp.zeros_like(acc_ref)
  acc_ref[...] += jnp.dot(x_ref[...], w_ref[...],
                          preferred_element_type=jnp.float32)

  @pl.when(pl.program_id(2) == pl.num_programs(2) - 1)
  def _():
    o_ref[...] = (acc_ref[...] + b_ref[...]).astype(o_ref.dtype)


def _attn_kernel(g_ref, bt_ref, q_ref, k_ref, v_ref, o_ref, *,
                 heads, dh, eps_eff, k_off, v_off):
  # One (batch, query-tile) per grid step.
  #   split path   : q_ref (1,TQ,D), k_ref/v_ref (1,N,D), k_off = v_off = 0
  #   fallback path: q_ref (1,TQ,3D), k_ref/v_ref (1,N,3D), k_off=D, v_off=2D
  # The reference math  dots*scale -> normalize(eps) -> *g + b -> @V  is
  # algebraically rewritten as (scale folded into eps, affine pushed past @V):
  #   mu  = mean(dots);  var = mean(dots^2) - mu^2
  #   out = g * rsqrt(var + eps*dim) * (dots@V - mu*colsum(V)) + b*colsum(V)
  n = k_ref.shape[1]
  inv_n = 1.0 / n
  outs = []
  for h in range(heads):
    q = q_ref[0, :, h * dh:(h + 1) * dh]                       # (TQ, Dh) bf16
    k = k_ref[0, :, k_off + h * dh:k_off + (h + 1) * dh]       # (N,  Dh) bf16
    v = v_ref[0, :, v_off + h * dh:v_off + (h + 1) * dh]       # (N,  Dh) bf16
    # q @ k^T without materializing a transpose of k.
    dots = jax.lax.dot_general(
        q, k, (((1,), (1,)), ((), ())),
        preferred_element_type=jnp.float32)                    # (TQ, N) f32
    mu = jnp.sum(dots, axis=-1, keepdims=True) * inv_n         # (TQ, 1)
    sq = jnp.sum(dots * dots, axis=-1, keepdims=True) * inv_n  # (TQ, 1)
    var = jnp.maximum(sq - mu * mu, 0.0)
    r = jax.lax.rsqrt(var + eps_eff)                           # (TQ, 1)
    pv = jnp.dot(dots.astype(jnp.bfloat16), v,
                 preferred_element_type=jnp.float32)           # (TQ, Dh)
    colsum_v = jnp.sum(v.astype(jnp.float32), axis=0,
                       keepdims=True)                          # (1, Dh)
    out = (g_ref[h] * r) * (pv - mu * colsum_v) + bt_ref[h] * colsum_v
    outs.append(out.astype(o_ref.dtype))
  o_ref[0, :, :] = jnp.concatenate(outs, axis=-1)              # one dense store


def _attn_out_kernel(a_ref, w_ref, b_ref, lnw_ref, lnb_ref, res_ref,
                     o_ref, acc_ref):
  # Fused: attn_out @ W_out + b  ->  LayerNorm  ->  + residual.
  k = pl.program_id(1)

  @pl.when(k == 0)
  def _():
    acc_ref[...] = jnp.zeros_like(acc_ref)
  acc_ref[...] += jnp.dot(a_ref[...], w_ref[...],
                          preferred_element_type=jnp.float32)

  @pl.when(k == pl.num_programs(1) - 1)
  def _():
    h = acc_ref[...] + b_ref[...]
    mu = jnp.mean(h, axis=-1, keepdims=True)
    hc = h - mu
    var = jnp.mean(hc * hc, axis=-1, keepdims=True)
    ln = hc * (jax.lax.rsqrt(var + LN_EPS) * lnw_ref[...]) + lnb_ref[...]
    o_ref[...] = (ln + res_ref[...]).astype(o_ref.dtype)


def _ffn_kernel(x_ref, lnw_ref, lnb_ref, w1_ref, b1_ref, w2_ref, b2_ref,
                o_ref, lnx_ref, acc_ref):
  # Fused: LayerNorm(x) -> W1 + b1 -> GELU -> W2 -> (+ b2 + x residual).
  # The hidden (4*dim) axis is streamed along grid axis 1.
  j = pl.program_id(1)

  @pl.when(j == 0)
  def _():
    x = x_ref[...]                                   # f32 residual input
    mu = jnp.mean(x, axis=-1, keepdims=True)
    xc = x - mu
    var = jnp.mean(xc * xc, axis=-1, keepdims=True)
    lnx_ref[...] = (xc * (jax.lax.rsqrt(var + LN_EPS) * lnw_ref[...])
                    + lnb_ref[...]).astype(lnx_ref.dtype)
    acc_ref[...] = jnp.zeros_like(acc_ref)

  h = jnp.dot(lnx_ref[...], w1_ref[...],
              preferred_element_type=jnp.float32) + b1_ref[...]
  h = _gelu_exact(h)       # f32 for fidelity with torch; bf16 is a v6e/v7x opt
  acc_ref[...] += jnp.dot(h.astype(jnp.bfloat16), w2_ref[...],
                          preferred_element_type=jnp.float32)

  @pl.when(j == pl.num_programs(1) - 1)
  def _():
    o_ref[...] = (acc_ref[...] + b2_ref[...] + x_ref[...]).astype(o_ref.dtype)


# ------------------------------ kernel wrappers ------------------------------

def matmul(x, w, b=None, *, out_dtype=jnp.float32, tm=512, tn=512, tk=1024):
  m, kdim = x.shape
  n = w.shape[1]
  limit = _vmem_limit_bytes()
  budget = int(limit * 0.6)

  def est(tm_, tn_, tk_):
    tm_, tn_, tk_ = min(tm_, m), min(tn_, n), min(tk_, kdim)
    return (2 * tm_ * tk_ * 2 + 2 * tk_ * tn_ * 2      # x, w (bf16, dbl buf)
            + 2 * tm_ * tn_ * 4 + tm_ * tn_ * 4)       # out (dbl buf) + acc

  while est(tm, tn, tk) > budget and tk > 512:
    tk //= 2
  while est(tm, tn, tk) > budget and tn > 256:
    tn //= 2
  while est(tm, tn, tk) > budget and tm > 256:
    tm //= 2
  tm = _tile(m, tm, 8)
  tn = _tile(n, tn, 128)
  tk = _tile(kdim, tk, 128)

  grid = (m // tm, n // tn, kdim // tk)
  x_spec = pl.BlockSpec((tm, tk), lambda i, j, k: (i, k))
  w_spec = pl.BlockSpec((tk, tn), lambda i, j, k: (k, j))
  o_spec = pl.BlockSpec((tm, tn), lambda i, j, k: (i, j))
  scratch = [pltpu.VMEM((tm, tn), jnp.float32)]
  cp = pltpu.CompilerParams(
      dimension_semantics=("parallel", "parallel", "arbitrary"),
      vmem_limit_bytes=limit)
  if b is None:
    return pl.pallas_call(
        _matmul_kernel,
        out_shape=jax.ShapeDtypeStruct((m, n), out_dtype),
        grid_spec=pltpu.PrefetchScalarGridSpec(
            num_scalar_prefetch=0, grid=grid,
            in_specs=[x_spec, w_spec], out_specs=o_spec,
            scratch_shapes=scratch),
        compiler_params=cp)(x, w)
  b_spec = pl.BlockSpec((1, tn), lambda i, j, k: (0, j))
  return pl.pallas_call(
      _matmul_bias_kernel,
      out_shape=jax.ShapeDtypeStruct((m, n), out_dtype),
      grid_spec=pltpu.PrefetchScalarGridSpec(
          num_scalar_prefetch=0, grid=grid,
          in_specs=[x_spec, w_spec, b_spec], out_specs=o_spec,
          scratch_shapes=scratch),
      compiler_params=cp)(x, w, b.reshape(1, n))


def attention(qkv, gamma, beta, *, heads, dim, tq=512):
  b, n, three_d = qkv.shape
  assert three_d == 3 * dim and dim % heads == 0
  dh = dim // heads
  tq = _tile(n, tq, 8)
  grid = (b, n // tq)
  # normalize() is scale-invariant; the reference dim**-0.5 scale is folded
  # exactly into the eps:  eps_eff = eps / scale**2 = eps * dim.
  eps_eff = NORM_EPS * dim
  smem = pl.BlockSpec(memory_space=pltpu.MemorySpace.SMEM)

  if dim % 128 == 0:
    # Column-blocked q / K / V specs over the fused (B, N, 3D) projection:
    # the q tile only fetches the q columns, K/V each fetch their own D slab.
    q_spec = pl.BlockSpec((1, tq, dim), lambda bi, qi: (bi, qi, 0))
    k_spec = pl.BlockSpec((1, n, dim), lambda bi, qi: (bi, 0, 1))
    v_spec = pl.BlockSpec((1, n, dim), lambda bi, qi: (bi, 0, 2))
    k_off, v_off = 0, 0
  else:
    # Fallback for non-lane-aligned dims (toy configs): full 3D blocks.
    q_spec = pl.BlockSpec((1, tq, three_d), lambda bi, qi: (bi, qi, 0))
    k_spec = pl.BlockSpec((1, n, three_d), lambda bi, qi: (bi, 0, 0))
    v_spec = pl.BlockSpec((1, n, three_d), lambda bi, qi: (bi, 0, 0))
    k_off, v_off = dim, 2 * dim

  kernel = functools.partial(_attn_kernel, heads=heads, dh=dh,
                             eps_eff=eps_eff, k_off=k_off, v_off=v_off)
  return pl.pallas_call(
      kernel,
      out_shape=jax.ShapeDtypeStruct((b, n, dim), jnp.bfloat16),
      grid_spec=pltpu.PrefetchScalarGridSpec(
          num_scalar_prefetch=0, grid=grid,
          in_specs=[smem, smem, q_spec, k_spec, v_spec],
          out_specs=pl.BlockSpec((1, tq, dim), lambda bi, qi: (bi, qi, 0))),
      compiler_params=pltpu.CompilerParams(
          dimension_semantics=("parallel", "parallel"),
          vmem_limit_bytes=_vmem_limit_bytes()),
  )(gamma, beta, qkv, qkv, qkv)


def attn_out_ln_residual(a, w, b, lnw, lnb, res):
  m, d = res.shape
  kdim = a.shape[1]
  limit = _vmem_limit_bytes()
  budget = int(limit * 0.6)
  tm, tk = 1024, 512          # big tm => fewer W_out re-reads (HBM-bound on v5e/v6e)

  def est(tm_, tk_):
    tm_, tk_ = min(tm_, m), min(tk_, kdim)
    return (2 * tm_ * tk_ * 2 + 2 * tk_ * d * 2        # a, w (bf16, dbl buf)
            + 4 * tm_ * d * 4 + tm_ * d * 4)           # res+out (dbl buf) + acc

  while est(tm, tk) > budget and tk > 256:
    tk //= 2
  while est(tm, tk) > budget and tm > 256:
    tm //= 2
  tm = _tile(m, tm, 8)
  tk = _tile(kdim, tk, 128)

  grid = (m // tm, kdim // tk)
  return pl.pallas_call(
      _attn_out_kernel,
      out_shape=jax.ShapeDtypeStruct((m, d), jnp.float32),
      grid_spec=pltpu.PrefetchScalarGridSpec(
          num_scalar_prefetch=0, grid=grid,
          in_specs=[
              pl.BlockSpec((tm, tk), lambda i, k: (i, k)),
              pl.BlockSpec((tk, d), lambda i, k: (k, 0)),
              pl.BlockSpec((1, d), lambda i, k: (0, 0)),
              pl.BlockSpec((1, d), lambda i, k: (0, 0)),
              pl.BlockSpec((1, d), lambda i, k: (0, 0)),
              pl.BlockSpec((tm, d), lambda i, k: (i, 0)),
          ],
          out_specs=pl.BlockSpec((tm, d), lambda i, k: (i, 0)),
          scratch_shapes=[pltpu.VMEM((tm, d), jnp.float32)]),
      compiler_params=pltpu.CompilerParams(
          dimension_semantics=("parallel", "arbitrary"),
          vmem_limit_bytes=limit),
  )(a, w, b.reshape(1, d), lnw.reshape(1, d), lnb.reshape(1, d), res)


def ffn_prenorm_residual(x, lnw, lnb, w1, b1, w2, b2):
  m, d = x.shape
  hdim = w1.shape[1]
  limit = _vmem_limit_bytes()
  budget = int(limit * 0.6)
  tm, th = 1024, 1024         # weight traffic ~ (M/tm): keep tm big, shrink th first

  def est(tm_, th_):
    tm_, th_ = min(tm_, m), min(th_, hdim)
    return (2 * tm_ * d * 4                            # x blocks (f32, dbl buf)
            + 2 * (d * th_ + th_ * d) * 2              # w1/w2 tiles (bf16, dbl buf)
            + 2 * tm_ * d * 4                          # out blocks (f32, dbl buf)
            + tm_ * d * 4 + tm_ * d * 2                # acc f32 + lnx bf16 scratch
            + 2 * tm_ * th_ * 4)                       # GELU intermediates (rough)

  while est(tm, th) > budget and th > 512:
    th //= 2
  while est(tm, th) > budget and tm > 256:
    tm //= 2
  tm = _tile(m, tm, 8)
  th = _tile(hdim, th, 128)

  grid = (m // tm, hdim // th)
  return pl.pallas_call(
      _ffn_kernel,
      out_shape=jax.ShapeDtypeStruct((m, d), jnp.float32),
      grid_spec=pltpu.PrefetchScalarGridSpec(
          num_scalar_prefetch=0, grid=grid,
          in_specs=[
              pl.BlockSpec((tm, d), lambda i, j: (i, 0)),
              pl.BlockSpec((1, d), lambda i, j: (0, 0)),
              pl.BlockSpec((1, d), lambda i, j: (0, 0)),
              pl.BlockSpec((d, th), lambda i, j: (0, j)),
              pl.BlockSpec((1, th), lambda i, j: (0, j)),
              pl.BlockSpec((th, d), lambda i, j: (j, 0)),
              pl.BlockSpec((1, d), lambda i, j: (0, 0)),
          ],
          out_specs=pl.BlockSpec((tm, d), lambda i, j: (i, 0)),
          scratch_shapes=[pltpu.VMEM((tm, d), jnp.bfloat16),
                          pltpu.VMEM((tm, d), jnp.float32)]),
      compiler_params=pltpu.CompilerParams(
          dimension_semantics=("parallel", "arbitrary"),
          vmem_limit_bytes=limit),
  )(x, lnw.reshape(1, d), lnb.reshape(1, d), w1, b1.reshape(1, hdim),
    w2, b2.reshape(1, d))


# -------------------------------- model forward ------------------------------

def transformer_lm_forward(params, tokens, *, heads):
  b, n = tokens.shape
  dim = params["token_emb"].shape[1]
  m = b * n

  # embedding gather + positional add (plain-JAX glue)
  x = jnp.take(params["token_emb"], tokens, axis=0)              # (B, N, D) f32
  x = x + params["pos_emb"][:n][None, :, :]
  x2 = x.reshape(m, dim)

  for layer in params["layers"]:
    # ---- Residual(PostNorm(Attention)) : x = LN(Attn(x)) + x ----
    qkv = matmul(x2.astype(jnp.bfloat16), layer["w_qkv"],
                 out_dtype=jnp.bfloat16)                         # (M, 3D) bf16
    attn = attention(qkv.reshape(b, n, 3 * dim),
                     layer["norm_g"], layer["norm_b"],
                     heads=heads, dim=dim)                       # (B, N, D) bf16
    x2 = attn_out_ln_residual(attn.reshape(m, dim), layer["w_out"],
                              layer["b_out"], layer["ln1_w"], layer["ln1_b"],
                              x2)                                # (M, D) f32

    # ---- Residual(PreNorm(FeedForward)) : x = FF(LN(x)) + x ----
    x2 = ffn_prenorm_residual(x2, layer["ln2_w"], layer["ln2_b"],
                              layer["w_ff1"], layer["b_ff1"],
                              layer["w_ff2"], layer["b_ff2"])    # (M, D) f32

  # logits: pad vocab to a multiple of 128 so tiling never falls back to one
  # enormous (tm, vocab) block, then slice back.
  w_log, b_log = params["w_logits"], params["b_logits"]
  vocab = w_log.shape[1]
  vpad = (-vocab) % 128
  if vpad:
    w_log = jnp.pad(w_log, ((0, 0), (0, vpad)))
    b_log = jnp.pad(b_log, ((0, vpad),))
  logits = matmul(x2.astype(jnp.bfloat16), w_log, b_log,
                  out_dtype=jnp.float32, tm=512, tn=1024, tk=2048)
  if vpad:
    logits = logits[:, :vocab]
  return logits.reshape(b, n, vocab)


# -------------------------------- parameter init -----------------------------

def init_params(key, *, num_tokens, dim, depth, max_seq_len, heads):
  keys = jax.random.split(key, 4 + depth)
  f32, bf16 = jnp.float32, jnp.bfloat16
  params = {
      "token_emb": 0.02 * jax.random.normal(keys[0], (num_tokens, dim), f32),
      "pos_emb": 0.02 * jax.random.normal(keys[1], (max_seq_len, dim), f32),
      "w_logits": (0.02 * jax.random.normal(keys[2], (dim, num_tokens), f32)
                   ).astype(bf16),
      "b_logits": jnp.zeros((num_tokens,), f32),
      "layers": [],
  }
  for l in range(depth):
    lk = jax.random.split(keys[4 + l], 4)
    params["layers"].append({
        "w_qkv": (0.02 * jax.random.normal(lk[0], (dim, 3 * dim), f32)
                  ).astype(bf16),
        "w_out": (0.02 * jax.random.normal(lk[1], (dim, dim), f32)
                  ).astype(bf16),
        "b_out": jnp.zeros((dim,), f32),
        "norm_g": jnp.ones((heads,), f32),     # nn.Parameter ones(1,H,1,1)
        "norm_b": jnp.zeros((heads,), f32),    # nn.Parameter zeros(1,H,1,1)
        "ln1_w": jnp.ones((dim,), f32), "ln1_b": jnp.zeros((dim,), f32),
        "w_ff1": (0.02 * jax.random.normal(lk[2], (dim, 4 * dim), f32)
                  ).astype(bf16),
        "b_ff1": jnp.zeros((4 * dim,), f32),
        "w_ff2": (0.02 * jax.random.normal(lk[3], (4 * dim, dim), f32)
                  ).astype(bf16),
        "b_ff2": jnp.zeros((dim,), f32),
        "ln2_w": jnp.ones((dim,), f32), "ln2_b": jnp.zeros((dim,), f32),
    })
  return params


# ------------------------------------ main ------------------------------------

if __name__ == "__main__":
  B, N = 2, 8
  NUM_TOKENS, DIM, DEPTH, MAX_SEQ_LEN, HEADS = 256, 128, 2, 16, 4

  key = jax.random.PRNGKey(0)
  pkey, tkey = jax.random.split(key)
  params = init_params(pkey, num_tokens=NUM_TOKENS, dim=DIM, depth=DEPTH,
                       max_seq_len=MAX_SEQ_LEN, heads=HEADS)
  tokens = jax.random.randint(tkey, (B, N), 0, NUM_TOKENS, dtype=jnp.int32)

  fwd = jax.jit(functools.partial(transformer_lm_forward, heads=HEADS))
  logits = fwd(params, tokens)
  logits = jax.block_until_ready(logits)

  assert logits.shape == (B, N, NUM_TOKENS), logits.shape
  assert bool(jnp.all(jnp.isfinite(logits)))
  print("KERNEL_OK")
</pallas_src>

<mosaic_0001>
module attributes {stable_mosaic.version = 11 : i64} {
  func.func @_attn_out_kernel(%arg0: i32, %arg1: i32, %arg2: memref<16x128xbf16, #tpu.memory_space<vmem>>, %arg3: memref<128x128xbf16, #tpu.memory_space<vmem>>, %arg4: memref<1x128xf32, #tpu.memory_space<vmem>>, %arg5: memref<1x128xf32, #tpu.memory_space<vmem>>, %arg6: memref<1x128xf32, #tpu.memory_space<vmem>>, %arg7: memref<16x128xf32, #tpu.memory_space<vmem>>, %arg8: memref<16x128xf32, #tpu.memory_space<vmem>>, %arg9: memref<16x128xf32, #tpu.memory_space<vmem>>) attributes {dimension_semantics = [#tpu.dimension_semantics<parallel>, #tpu.dimension_semantics<arbitrary>], iteration_bounds = array<i64: 1, 1>, scalar_prefetch = 0 : i64, scratch_operands = 1 : i64, tpu.core_type = #tpu.core_type<tc>, window_params = [{transform_indices = @transform_0, window_bounds = array<i64: 16, 128>}, {transform_indices = @transform_1, window_bounds = array<i64: 128, 128>}, {pipeline_mode = #tpu.pipeline_mode<synchronous>, transform_indices = @transform_2, window_bounds = array<i64: 1, 128>}, {pipeline_mode = #tpu.pipeline_mode<synchronous>, transform_indices = @transform_3, window_bounds = array<i64: 1, 128>}, {pipeline_mode = #tpu.pipeline_mode<synchronous>, transform_indices = @transform_4, window_bounds = array<i64: 1, 128>}, {transform_indices = @transform_5, window_bounds = array<i64: 16, 128>}, {transform_indices = @transform_6, window_bounds = array<i64: 16, 128>}]} {
    %c0_i32 = arith.constant 0 : i32
    %0 = arith.cmpi eq, %arg1, %c0_i32 : i32
    %1 = arith.extui %0 : i1 to i32
    %c0_i32_0 = arith.constant 0 : i32
    %2 = arith.cmpi ne, %1, %c0_i32_0 : i32
    scf.if %2 {
      %cst_10 = arith.constant 0.000000e+00 : f32
      %12 = vector.broadcast %cst_10 : f32 to vector<16x128xf32>
      %c0_11 = arith.constant 0 : index
      %c0_12 = arith.constant 0 : index
      %13 = vector.load %arg9[%c0_11, %c0_12] : memref<16x128xf32, #tpu.memory_space<vmem>>, vector<16x128xf32>
      tpu.vector_store %arg9[%c0_11, %c0_12], %12 {strides = array<i32>} : memref<16x128xf32, #tpu.memory_space<vmem>>, vector<16x128xf32>,
    } else {
    }
    %c0 = arith.constant 0 : index
    %c0_1 = arith.constant 0 : index
    %3 = vector.load %arg9[%c0, %c0_1] : memref<16x128xf32, #tpu.memory_space<vmem>>, vector<16x128xf32>
    %c0_2 = arith.constant 0 : index
    %c0_3 = arith.constant 0 : index
    %4 = vector.load %arg2[%c0_2, %c0_3] : memref<16x128xbf16, #tpu.memory_space<vmem>>, vector<16x128xbf16>
    %c0_4 = arith.constant 0 : index
    %c0_5 = arith.constant 0 : index
    %5 = vector.load %arg3[%c0_4, %c0_5] : memref<128x128xbf16, #tpu.memory_space<vmem>>, vector<128x128xbf16>
    %cst = arith.constant dense<0.000000e+00> : vector<16x128xf32>
    %6 = tpu.matmul %4, %5, %cst {dimension_numbers = #tpu.dot_dimension_numbers<[1], [0], [0], [1], [0, 0, 1, 1], [], []>} : vector<16x128xbf16>, vector<128x128xbf16>, vector<16x128xf32> -> vector<16x128xf32>
    %7 = arith.addf %3, %6 : vector<16x128xf32>
    %c0_6 = arith.constant 0 : index
    %c0_7 = arith.constant 0 : index
    %8 = vector.load %arg9[%c0_6, %c0_7] : memref<16x128xf32, #tpu.memory_space<vmem>>, vector<16x128xf32>
    tpu.vector_store %arg9[%c0_6, %c0_7], %7 {strides = array<i32>} : memref<16x128xf32, #tpu.memory_space<vmem>>, vector<16x128xf32>,
    %c0_i32_8 = arith.constant 0 : i32
    %9 = arith.cmpi eq, %arg1, %c0_i32_8 : i32
    %10 = arith.extui %9 : i1 to i32
    %c0_i32_9 = arith.constant 0 : i32
    %11 = arith.cmpi ne, %10, %c0_i32_9 : i32
    scf.if %11 {
      %c0_10 = arith.constant 0 : index
      %c0_11 = arith.constant 0 : index
      %12 = vector.load %arg9[%c0_10, %c0_11] : memref<16x128xf32, #tpu.memory_space<vmem>>, vector<16x128xf32>
      %c0_12 = arith.constant 0 : index
      %c0_13 = arith.constant 0 : index
      %13 = vector.load %arg4[%c0_12, %c0_13] : memref<1x128xf32, #tpu.memory_space<vmem>>, vector<1x128xf32>
      %14 = vector.broadcast %13 : vector<1x128xf32> to vector<16x128xf32>
      %15 = arith.addf %12, %14 : vector<16x128xf32>
      %cst_14 = arith.constant dense<0.000000e+00> : vector<16xf32>
      %16 = vector.multi_reduction <add>, %15, %cst_14 [1] : vector<16x128xf32> to vector<16xf32>
      %17 = vector.shape_cast %16 : vector<16xf32> to vector<16x1xf32>
      %cst_15 = arith.constant 1.280000e+02 : f32
      %18 = vector.broadcast %cst_15 : f32 to vector<16x1xf32>
      %19 = arith.divf %17, %18 : vector<16x1xf32>
      %20 = vector.broadcast %19 : vector<16x1xf32> to vector<16x128xf32>
      %21 = arith.subf %15, %20 : vector<16x128xf32>
      %22 = arith.mulf %21, %21 : vector<16x128xf32>
      %cst_16 = arith.constant dense<0.000000e+00> : vector<16xf32>
      %23 = vector.multi_reduction <add>, %22, %cst_16 [1] : vector<16x128xf32> to vector<16xf32>
      %24 = vector.shape_cast %23 : vector<16xf32> to vector<16x1xf32>
      %cst_17 = arith.constant 1.280000e+02 : f32
      %25 = vector.broadcast %cst_17 : f32 to vector<16x1xf32>
      %26 = arith.divf %24, %25 : vector<16x1xf32>
      %cst_18 = arith.constant 9.99999974E-6 : f32
      %27 = vector.broadcast %cst_18 : f32 to vector<16x1xf32>
      %28 = arith.addf %26, %27 : vector<16x1xf32>
      %29 = math.rsqrt %28 : vector<16x1xf32>
      %c0_19 = arith.constant 0 : index
      %c0_20 = arith.constant 0 : index
      %30 = vector.load %arg5[%c0_19, %c0_20] : memref<1x128xf32, #tpu.memory_space<vmem>>, vector<1x128xf32>
      %31 = vector.broadcast %29 : vector<16x1xf32> to vector<16x128xf32>
      %32 = vector.broadcast %30 : vector<1x128xf32> to vector<16x128xf32>
      %33 = arith.mulf %31, %32 : vector<16x128xf32>
      %34 = arith.mulf %21, %33 : vector<16x128xf32>
      %c0_21 = arith.constant 0 : index
      %c0_22 = arith.constant 0 : index
      %35 = vector.load %arg6[%c0_21, %c0_22] : memref<1x128xf32, #tpu.memory_space<vmem>>, vector<1x128xf32>
      %36 = vector.broadcast %35 : vector<1x128xf32> to vector<16x128xf32>
      %37 = arith.addf %34, %36 : vector<16x128xf32>
      %c0_23 = arith.constant 0 : index
      %c0_24 = arith.constant 0 : index
      %38 = vector.load %arg7[%c0_23, %c0_24] : memref<16x128xf32, #tpu.memory_space<vmem>>, vector<16x128xf32>
      %39 = arith.addf %37, %38 : vector<16x128xf32>
      %c0_25 = arith.constant 0 : index
      %c0_26 = arith.constant 0 : index
      %40 = vector.load %arg8[%c0_25, %c0_26] : memref<16x128xf32, #tpu.memory_space<vmem>>, vector<16x128xf32>
      tpu.vector_store %arg8[%c0_25, %c0_26], %39 {strides = array<i32>} : memref<16x128xf32, #tpu.memory_space<vmem>>, vector<16x128xf32>,
    } else {
    }
    return
  }
  func.func @transform_0(%arg0: i32, %arg1: i32) -> (i32, i32) {
    %c0_i32 = arith.constant 0 : i32
    return %arg0, %arg1 : i32, i32
  }
  func.func @transform_1(%arg0: i32, %arg1: i32) -> (i32, i32) {
    %c0_i32 = arith.constant 0 : i32
    %c0_i32_0 = arith.constant 0 : i32
    return %arg1, %c0_i32 : i32, i32
  }
  func.func @transform_2(%arg0: i32, %arg1: i32) -> (i32, i32) {
    %c0_i32 = arith.constant 0 : i32
    %c0_i32_0 = arith.constant 0 : i32
    %c0_i32_1 = arith.constant 0 : i32
    return %c0_i32, %c0_i32_0 : i32, i32
  }
  func.func @transform_3(%arg0: i32, %arg1: i32) -> (i32, i32) {
    %c0_i32 = arith.constant 0 : i32
    %c0_i32_0 = arith.constant 0 : i32
    %c0_i32_1 = arith.constant 0 : i32
    return %c0_i32, %c0_i32_0 : i32, i32
  }
  func.func @transform_4(%arg0: i32, %arg1: i32) -> (i32, i32) {
    %c0_i32 = arith.constant 0 : i32
    %c0_i32_0 = arith.constant 0 : i32
    %c0_i32_1 = arith.constant 0 : i32
    return %c0_i32, %c0_i32_0 : i32, i32
  }
  func.func @transform_5(%arg0: i32, %arg1: i32) -> (i32, i32) {
    %c0_i32 = arith.constant 0 : i32
    %c0_i32_0 = arith.constant 0 : i32
    return %arg0, %c0_i32 : i32, i32
  }
  func.func @transform_6(%arg0: i32, %arg1: i32) -> (i32, i32) {
    %c0_i32 = arith.constant 0 : i32
    %c0_i32_0 = arith.constant 0 : i32
    return %arg0, %c0_i32 : i32, i32
  }
}

module attributes {stable_mosaic.version = 11 : i64} {
  func.func @_matmul_kernel(%arg0: i32, %arg1: i32, %arg2: i32, %arg3: memref<16x128xbf16, #tpu.memory_space<vmem>>, %arg4: memref<128x384xbf16, #tpu.memory_space<vmem>>, %arg5: memref<16x384xbf16, #tpu.memory_space<vmem>>, %arg6: memref<16x384xf32, #tpu.memory_space<vmem>>) attributes {dimension_semantics = [#tpu.dimension_semantics<parallel>, #tpu.dimension_semantics<parallel>, #tpu.dimension_semantics<arbitrary>], iteration_bounds = array<i64: 1, 1, 1>, scalar_prefetch = 0 : i64, scratch_operands = 1 : i64, tpu.core_type = #tpu.core_type<tc>, window_params = [{transform_indices = @transform_0, window_bounds = array<i64: 16, 128>}, {transform_indices = @transform_1, window_bounds = array<i64: 128, 384>}, {transform_indices = @transform_2, window_bounds = array<i64: 16, 384>}]} {
    %c0_i32 = arith.constant 0 : i32
    %0 = arith.cmpi eq, %arg2, %c0_i32 : i32
    %1 = arith.extui %0 : i1 to i32
    %c0_i32_0 = arith.constant 0 : i32
    %2 = arith.cmpi ne, %1, %c0_i32_0 : i32
    scf.if %2 {
      %cst_10 = arith.constant 0.000000e+00 : f32
      %12 = vector.broadcast %cst_10 : f32 to vector<16x384xf32>
      %c0_11 = arith.constant 0 : index
      %c0_12 = arith.constant 0 : index
      %13 = vector.load %arg6[%c0_11, %c0_12] : memref<16x384xf32, #tpu.memory_space<vmem>>, vector<16x384xf32>
      tpu.vector_store %arg6[%c0_11, %c0_12], %12 {strides = array<i32>} : memref<16x384xf32, #tpu.memory_space<vmem>>, vector<16x384xf32>,
    } else {
    }
    %c0 = arith.constant 0 : index
    %c0_1 = arith.constant 0 : index
    %3 = vector.load %arg6[%c0, %c0_1] : memref<16x384xf32, #tpu.memory_space<vmem>>, vector<16x384xf32>
    %c0_2 = arith.constant 0 : index
    %c0_3 = arith.constant 0 : index
    %4 = vector.load %arg3[%c0_2, %c0_3] : memref<16x128xbf16, #tpu.memory_space<vmem>>, vector<16x128xbf16>
    %c0_4 = arith.constant 0 : index
    %c0_5 = arith.constant 0 : index
    %5 = vector.load %arg4[%c0_4, %c0_5] : memref<128x384xbf16, #tpu.memory_space<vmem>>, vector<128x384xbf16>
    %cst = arith.constant dense<0.000000e+00> : vector<16x384xf32>
    %6 = tpu.matmul %4, %5, %cst {dimension_numbers = #tpu.dot_dimension_numbers<[1], [0], [0], [1], [0, 0, 1, 1], [], []>} : vector<16x128xbf16>, vector<128x384xbf16>, vector<16x384xf32> -> vector<16x384xf32>
    %7 = arith.addf %3, %6 : vector<16x384xf32>
    %c0_6 = arith.constant 0 : index
    %c0_7 = arith.constant 0 : index
    %8 = vector.load %arg6[%c0_6, %c0_7] : memref<16x384xf32, #tpu.memory_space<vmem>>, vector<16x384xf32>
    tpu.vector_store %arg6[%c0_6, %c0_7], %7 {strides = array<i32>} : memref<16x384xf32, #tpu.memory_space<vmem>>, vector<16x384xf32>,
    %c0_i32_8 = arith.constant 0 : i32
    %9 = arith.cmpi eq, %arg2, %c0_i32_8 : i32
    %10 = arith.extui %9 : i1 to i32
    %c0_i32_9 = arith.constant 0 : i32
    %11 = arith.cmpi ne, %10, %c0_i32_9 : i32
    scf.if %11 {
      %c0_10 = arith.constant 0 : index
      %c0_11 = arith.constant 0 : index
      %12 = vector.load %arg6[%c0_10, %c0_11] : memref<16x384xf32, #tpu.memory_space<vmem>>, vector<16x384xf32>
      %13 = arith.truncf %12 : vector<16x384xf32> to vector<16x384xbf16>
      %c0_12 = arith.constant 0 : index
      %c0_13 = arith.constant 0 : index
      %14 = vector.load %arg5[%c0_12, %c0_13] : memref<16x384xbf16, #tpu.memory_space<vmem>>, vector<16x384xbf16>
      tpu.vector_store %arg5[%c0_12, %c0_13], %13 {strides = array<i32>} : memref<16x384xbf16, #tpu.memory_space<vmem>>, vector<16x384xbf16>,
    } else {
    }
    return
  }
  func.func @transform_0(%arg0: i32, %arg1: i32, %arg2: i32) -> (i32, i32) {
    %c0_i32 = arith.constant 0 : i32
    return %arg0, %arg2 : i32, i32
  }
  func.func @transform_1(%arg0: i32, %arg1: i32, %arg2: i32) -> (i32, i32) {
    %c0_i32 = arith.constant 0 : i32
    return %arg2, %arg1 : i32, i32
  }
  func.func @transform_2(%arg0: i32, %arg1: i32, %arg2: i32) -> (i32, i32) {
    %c0_i32 = arith.constant 0 : i32
    return %arg0, %arg1 : i32, i32
  }
}

module attributes {stable_mosaic.version = 11 : i64} {
  func.func @_ffn_kernel(%arg0: i32, %arg1: i32, %arg2: memref<16x128xf32, #tpu.memory_space<vmem>>, %arg3: memref<1x128xf32, #tpu.memory_space<vmem>>, %arg4: memref<1x128xf32, #tpu.memory_space<vmem>>, %arg5: memref<128x512xbf16, #tpu.memory_space<vmem>>, %arg6: memref<1x512xf32, #tpu.memory_space<vmem>>, %arg7: memref<512x128xbf16, #tpu.memory_space<vmem>>, %arg8: memref<1x128xf32, #tpu.memory_space<vmem>>, %arg9: memref<16x128xf32, #tpu.memory_space<vmem>>, %arg10: memref<16x128xbf16, #tpu.memory_space<vmem>>, %arg11: memref<16x128xf32, #tpu.memory_space<vmem>>) attributes {dimension_semantics = [#tpu.dimension_semantics<parallel>, #tpu.dimension_semantics<arbitrary>], iteration_bounds = array<i64: 1, 1>, scalar_prefetch = 0 : i64, scratch_operands = 2 : i64, tpu.core_type = #tpu.core_type<tc>, window_params = [{transform_indices = @transform_0, window_bounds = array<i64: 16, 128>}, {pipeline_mode = #tpu.pipeline_mode<synchronous>, transform_indices = @transform_1, window_bounds = array<i64: 1, 128>}, {pipeline_mode = #tpu.pipeline_mode<synchronous>, transform_indices = @transform_2, window_bounds = array<i64: 1, 128>}, {transform_indices = @transform_3, window_bounds = array<i64: 128, 512>}, {transform_indices = @transform_4, window_bounds = array<i64: 1, 512>}, {transform_indices = @transform_5, window_bounds = array<i64: 512, 128>}, {pipeline_mode = #tpu.pipeline_mode<synchronous>, transform_indices = @transform_6, window_bounds = array<i64: 1, 128>}, {transform_indices = @transform_7, window_bounds = array<i64: 16, 128>}]} {
    %c0_i32 = arith.constant 0 : i32
    %0 = arith.cmpi eq, %arg1, %c0_i32 : i32
    %1 = arith.extui %0 : i1 to i32
    %c0_i32_0 = arith.constant 0 : i32
    %2 = arith.cmpi ne, %1, %c0_i32_0 : i32
    scf.if %2 {
      %c0_30 = arith.constant 0 : index
      %c0_31 = arith.constant 0 : index
      %58 = vector.load %arg2[%c0_30, %c0_31] : memref<16x128xf32, #tpu.memory_space<vmem>>, vector<16x128xf32>
      %cst_32 = arith.constant dense<0.000000e+00> : vector<16xf32>
      %59 = vector.multi_reduction <add>, %58, %cst_32 [1] : vector<16x128xf32> to vector<16xf32>
      %60 = vector.shape_cast %59 : vector<16xf32> to vector<16x1xf32>
      %cst_33 = arith.constant 1.280000e+02 : f32
      %61 = vector.broadcast %cst_33 : f32 to vector<16x1xf32>
      %62 = arith.divf %60, %61 : vector<16x1xf32>
      %63 = vector.broadcast %62 : vector<16x1xf32> to vector<16x128xf32>
      %64 = arith.subf %58, %63 : vector<16x128xf32>
      %65 = arith.mulf %64, %64 : vector<16x128xf32>
      %cst_34 = arith.constant dense<0.000000e+00> : vector<16xf32>
      %66 = vector.multi_reduction <add>, %65, %cst_34 [1] : vector<16x128xf32> to vector<16xf32>
      %67 = vector.shape_cast %66 : vector<16xf32> to vector<16x1xf32>
      %cst_35 = arith.constant 1.280000e+02 : f32
      %68 = vector.broadcast %cst_35 : f32 to vector<16x1xf32>
      %69 = arith.divf %67, %68 : vector<16x1xf32>
      %cst_36 = arith.constant 9.99999974E-6 : f32
      %70 = vector.broadcast %cst_36 : f32 to vector<16x1xf32>
      %71 = arith.addf %69, %70 : vector<16x1xf32>
      %72 = math.rsqrt %71 : vector<16x1xf32>
      %c0_37 = arith.constant 0 : index
      %c0_38 = arith.constant 0 : index
      %73 = vector.load %arg3[%c0_37, %c0_38] : memref<1x128xf32, #tpu.memory_space<vmem>>, vector<1x128xf32>
      %74 = vector.broadcast %72 : vector<16x1xf32> to vector<16x128xf32>
      %75 = vector.broadcast %73 : vector<1x128xf32> to vector<16x128xf32>
      %76 = arith.mulf %74, %75 : vector<16x128xf32>
      %77 = arith.mulf %64, %76 : vector<16x128xf32>
      %c0_39 = arith.constant 0 : index
      %c0_40 = arith.constant 0 : index
      %78 = vector.load %arg4[%c0_39, %c0_40] : memref<1x128xf32, #tpu.memory_space<vmem>>, vector<1x128xf32>
      %79 = vector.broadcast %78 : vector<1x128xf32> to vector<16x128xf32>
      %80 = arith.addf %77, %79 : vector<16x128xf32>
      %81 = arith.truncf %80 : vector<16x128xf32> to vector<16x128xbf16>
      %c0_41 = arith.constant 0 : index
      %c0_42 = arith.constant 0 : index
      %82 = vector.load %arg10[%c0_41, %c0_42] : memref<16x128xbf16, #tpu.memory_space<vmem>>, vector<16x128xbf16>
      tpu.vector_store %arg10[%c0_41, %c0_42], %81 {strides = array<i32>} : memref<16x128xbf16, #tpu.memory_space<vmem>>, vector<16x128xbf16>,
      %cst_43 = arith.constant 0.000000e+00 : f32
      %83 = vector.broadcast %cst_43 : f32 to vector<16x128xf32>
      %c0_44 = arith.constant 0 : index
      %c0_45 = arith.constant 0 : index
      %84 = vector.load %arg11[%c0_44, %c0_45] : memref<16x128xf32, #tpu.memory_space<vmem>>, vector<16x128xf32>
      tpu.vector_store %arg11[%c0_44, %c0_45], %83 {strides = array<i32>} : memref<16x128xf32, #tpu.memory_space<vmem>>, vector<16x128xf32>,
    } else {
    }
    %c0 = arith.constant 0 : index
    %c0_1 = arith.constant 0 : index
    %3 = vector.load %arg10[%c0, %c0_1] : memref<16x128xbf16, #tpu.memory_space<vmem>>, vector<16x128xbf16>
    %c0_2 = arith.constant 0 : index
    %c0_3 = arith.constant 0 : index
    %4 = vector.load %arg5[%c0_2, %c0_3] : memref<128x512xbf16, #tpu.memory_space<vmem>>, vector<128x512xbf16>
    %cst = arith.constant dense<0.000000e+00> : vector<16x512xf32>
    %5 = tpu.matmul %3, %4, %cst {dimension_numbers = #tpu.dot_dimension_numbers<[1], [0], [0], [1], [0, 0, 1, 1], [], []>} : vector<16x128xbf16>, vector<128x512xbf16>, vector<16x512xf32> -> vector<16x512xf32>
    %c0_4 = arith.constant 0 : index
    %c0_5 = arith.constant 0 : index
    %6 = vector.load %arg6[%c0_4, %c0_5] : memref<1x512xf32, #tpu.memory_space<vmem>>, vector<1x512xf32>
    %7 = vector.broadcast %6 : vector<1x512xf32> to vector<16x512xf32>
    %8 = arith.addf %5, %7 : vector<16x512xf32>
    %cst_6 = arith.constant 0.707106769 : f32
    %9 = vector.broadcast %cst_6 : f32 to vector<16x512xf32>
    %10 = arith.mulf %8, %9 : vector<16x512xf32>
    %11 = math.absf %10 : vector<16x512xf32>
    %cst_7 = arith.constant 0.327591091 : f32
    %12 = vector.broadcast %cst_7 : f32 to vector<16x512xf32>
    %13 = arith.mulf %12, %11 : vector<16x512xf32>
    %cst_8 = arith.constant 1.000000e+00 : f32
    %14 = vector.broadcast %cst_8 : f32 to vector<16x512xf32>
    %15 = arith.addf %14, %13 : vector<16x512xf32>
    %cst_9 = arith.constant 1.000000e+00 : f32
    %16 = vector.broadcast %cst_9 : f32 to vector<16x512xf32>
    %17 = arith.divf %16, %15 : vector<16x512xf32>
    %cst_10 = arith.constant 1.06140542 : f32
    %18 = vector.broadcast %cst_10 : f32 to vector<16x512xf32>
    %19 = arith.mulf %17, %18 : vector<16x512xf32>
    %cst_11 = arith.constant -1.45315206 : f32
    %20 = vector.broadcast %cst_11 : f32 to vector<16x512xf32>
    %21 = arith.addf %20, %19 : vector<16x512xf32>
    %22 = arith.mulf %17, %21 : vector<16x512xf32>
    %cst_12 = arith.constant 1.42141378 : f32
    %23 = vector.broadcast %cst_12 : f32 to vector<16x512xf32>
    %24 = arith.addf %23, %22 : vector<16x512xf32>
    %25 = arith.mulf %17, %24 : vector<16x512xf32>
    %cst_13 = arith.constant -0.284496725 : f32
    %26 = vector.broadcast %cst_13 : f32 to vector<16x512xf32>
    %27 = arith.addf %26, %25 : vector<16x512xf32>
    %28 = arith.mulf %17, %27 : vector<16x512xf32>
    %cst_14 = arith.constant 0.254829586 : f32
    %29 = vector.broadcast %cst_14 : f32 to vector<16x512xf32>
    %30 = arith.addf %29, %28 : vector<16x512xf32>
    %31 = arith.mulf %17, %30 : vector<16x512xf32>
    %cst_15 = arith.constant 0.000000e+00 : f32
    %32 = vector.broadcast %cst_15 : f32 to vector<16x512xf32>
    %33 = arith.subf %32, %11 : vector<16x512xf32>
    %34 = arith.mulf %33, %11 : vector<16x512xf32>
    %35 = math.exp %34 : vector<16x512xf32>
    %36 = arith.mulf %31, %35 : vector<16x512xf32>
    %cst_16 = arith.constant 1.000000e+00 : f32
    %37 = vector.broadcast %cst_16 : f32 to vector<16x512xf32>
    %38 = arith.subf %37, %36 : vector<16x512xf32>
    %cst_17 = arith.constant 0.000000e+00 : f32
    %39 = vector.broadcast %cst_17 : f32 to vector<16x512xf32>
    %40 = arith.cmpf oge, %10, %39 : vector<16x512xf32>
    %cst_18 = arith.constant 0.000000e+00 : f32
    %41 = vector.broadcast %cst_18 : f32 to vector<16x512xf32>
    %42 = arith.subf %41, %38 : vector<16x512xf32>
    %43 = arith.select %40, %38, %42 : vector<16x512xi1>, vector<16x512xf32>
    %cst_19 = arith.constant 5.000000e-01 : f32
    %44 = vector.broadcast %cst_19 : f32 to vector<16x512xf32>
    %45 = arith.mulf %44, %8 : vector<16x512xf32>
    %cst_20 = arith.constant 1.000000e+00 : f32
    %46 = vector.broadcast %cst_20 : f32 to vector<16x512xf32>
    %47 = arith.addf %46, %43 : vector<16x512xf32>
    %48 = arith.mulf %45, %47 : vector<16x512xf32>
    %c0_21 = arith.constant 0 : index
    %c0_22 = arith.constant 0 : index
    %49 = vector.load %arg11[%c0_21, %c0_22] : memref<16x128xf32, #tpu.memory_space<vmem>>, vector<16x128xf32>
    %50 = arith.truncf %48 : vector<16x512xf32> to vector<16x512xbf16>
    %c0_23 = arith.constant 0 : index
    %c0_24 = arith.constant 0 : index
    %51 = vector.load %arg7[%c0_23, %c0_24] : memref<512x128xbf16, #tpu.memory_space<vmem>>, vector<512x128xbf16>
    %cst_25 = arith.constant dense<0.000000e+00> : vector<16x128xf32>
    %52 = tpu.matmul %50, %51, %cst_25 {dimension_numbers = #tpu.dot_dimension_numbers<[1], [0], [0], [1], [0, 0, 1, 1], [], []>} : vector<16x512xbf16>, vector<512x128xbf16>, vector<16x128xf32> -> vector<16x128xf32>
    %53 = arith.addf %49, %52 : vector<16x128xf32>
    %c0_26 = arith.constant 0 : index
    %c0_27 = arith.constant 0 : index
    %54 = vector.load %arg11[%c0_26, %c0_27] : memref<16x128xf32, #tpu.memory_space<vmem>>, vector<16x128xf32>
    tpu.vector_store %arg11[%c0_26, %c0_27], %53 {strides = array<i32>} : memref<16x128xf32, #tpu.memory_space<vmem>>, vector<16x128xf32>,
    %c0_i32_28 = arith.constant 0 : i32
    %55 = arith.cmpi eq, %arg1, %c0_i32_28 : i32
    %56 = arith.extui %55 : i1 to i32
    %c0_i32_29 = arith.constant 0 : i32
    %57 = arith.cmpi ne, %56, %c0_i32_29 : i32
    scf.if %57 {
      %c0_30 = arith.constant 0 : index
      %c0_31 = arith.constant 0 : index
      %58 = vector.load %arg11[%c0_30, %c0_31] : memref<16x128xf32, #tpu.memory_space<vmem>>, vector<16x128xf32>
      %c0_32 = arith.constant 0 : index
      %c0_33 = arith.constant 0 : index
      %59 = vector.load %arg8[%c0_32, %c0_33] : memref<1x128xf32, #tpu.memory_space<vmem>>, vector<1x128xf32>
      %60 = vector.broadcast %59 : vector<1x128xf32> to vector<16x128xf32>
      %61 = arith.addf %58, %60 : vector<16x128xf32>
      %c0_34 = arith.constant 0 : index
      %c0_35 = arith.constant 0 : index
      %62 = vector.load %arg2[%c0_34, %c0_35] : memref<16x128xf32, #tpu.memory_space<vmem>>, vector<16x128xf32>
      %63 = arith.addf %61, %62 : vector<16x128xf32>
      %c0_36 = arith.constant 0 : index
      %c0_37 = arith.constant 0 : index
      %64 = vector.load %arg9[%c0_36, %c0_37] : memref<16x128xf32, #tpu.memory_space<vmem>>, vector<16x128xf32>
      tpu.vector_store %arg9[%c0_36, %c0_37], %63 {strides = array<i32>} : memref<16x128xf32, #tpu.memory_space<vmem>>, vector<16x128xf32>,
    } else {
    }
    return
  }
  func.func @transform_0(%arg0: i32, %arg1: i32) -> (i32, i32) {
    %c0_i32 = arith.constant 0 : i32
    %c0_i32_0 = arith.constant 0 : i32
    return %arg0, %c0_i32 : i32, i32
  }
  func.func @transform_1(%arg0: i32, %arg1: i32) -> (i32, i32) {
    %c0_i32 = arith.constant 0 : i32
    %c0_i32_0 = arith.constant 0 : i32
    %c0_i32_1 = arith.constant 0 : i32
    return %c0_i32, %c0_i32_0 : i32, i32
  }
  func.func @transform_2(%arg0: i32, %arg1: i32) -> (i32, i32) {
    %c0_i32 = arith.constant 0 : i32
    %c0_i32_0 = arith.constant 0 : i32
    %c0_i32_1 = arith.constant 0 : i32
    return %c0_i32, %c0_i32_0 : i32, i32
  }
  func.func @transform_3(%arg0: i32, %arg1: i32) -> (i32, i32) {
    %c0_i32 = arith.constant 0 : i32
    %c0_i32_0 = arith.constant 0 : i32
    return %c0_i32, %arg1 : i32, i32
  }
  func.func @transform_4(%arg0: i32, %arg1: i32) -> (i32, i32) {
    %c0_i32 = arith.constant 0 : i32
    %c0_i32_0 = arith.constant 0 : i32
    return %c0_i32, %arg1 : i32, i32
  }
  func.func @transform_5(%arg0: i32, %arg1: i32) -> (i32, i32) {
    %c0_i32 = arith.constant 0 : i32
    %c0_i32_0 = arith.constant 0 : i32
    return %arg1, %c0_i32 : i32, i32
  }
  func.func @transform_6(%arg0: i32, %arg1: i32) -> (i32, i32) {
    %c0_i32 = arith.constant 0 : i32
    %c0_i32_0 = arith.constant 0 : i32
    %c0_i32_1 = arith.constant 0 : i32
    return %c0_i32, %c0_i32_0 : i32, i32
  }
  func.func @transform_7(%arg0: i32, %arg1: i32) -> (i32, i32) {
    %c0_i32 = arith.constant 0 : i32
    %c0_i32_0 = arith.constant 0 : i32
    return %arg0, %c0_i32 : i32, i32
  }
}

module attributes {stable_mosaic.version = 11 : i64} {
  func.func @_attn_kernel(%arg0: i32, %arg1: i32, %arg2: memref<4xf32, #tpu.memory_space<smem>>, %arg3: memref<4xf32, #tpu.memory_space<smem>>, %arg4: memref<1x8x128xbf16, #tpu.memory_space<vmem>>, %arg5: memref<1x8x128xbf16, #tpu.memory_space<vmem>>, %arg6: memref<1x8x128xbf16, #tpu.memory_space<vmem>>, %arg7: memref<1x8x128xbf16, #tpu.memory_space<vmem>>) attributes {dimension_semantics = [#tpu.dimension_semantics<parallel>, #tpu.dimension_semantics<parallel>], iteration_bounds = array<i64: 2, 1>, scalar_prefetch = 0 : i64, scratch_operands = 0 : i64, tpu.core_type = #tpu.core_type<tc>, window_params = [{transform_indices = @transform_0, window_bounds = array<i64: 4>}, {transform_indices = @transform_1, window_bounds = array<i64: 4>}, {transform_indices = @transform_2, window_bounds = array<i64: 1, 8, 128>}, {transform_indices = @transform_3, window_bounds = array<i64: 1, 8, 128>}, {transform_indices = @transform_4, window_bounds = array<i64: 1, 8, 128>}, {transform_indices = @transform_5, window_bounds = array<i64: 1, 8, 128>}]} {
    %c0 = arith.constant 0 : index
    %c0_0 = arith.constant 0 : index
    %c0_1 = arith.constant 0 : index
    %0 = vector.load %arg4[%c0, %c0_0, %c0_1] : memref<1x8x128xbf16, #tpu.memory_space<vmem>>, vector<1x8x32xbf16>
    %1 = vector.shape_cast %0 : vector<1x8x32xbf16> to vector<8x32xbf16>
    %c0_2 = arith.constant 0 : index
    %c0_3 = arith.constant 0 : index
    %c0_4 = arith.constant 0 : index
    %2 = vector.load %arg5[%c0_2, %c0_3, %c0_4] : memref<1x8x128xbf16, #tpu.memory_space<vmem>>, vector<1x8x32xbf16>
    %3 = vector.shape_cast %2 : vector<1x8x32xbf16> to vector<8x32xbf16>
    %c0_5 = arith.constant 0 : index
    %c0_6 = arith.constant 0 : index
    %c0_7 = arith.constant 0 : index
    %4 = vector.load %arg6[%c0_5, %c0_6, %c0_7] : memref<1x8x128xbf16, #tpu.memory_space<vmem>>, vector<1x8x32xbf16>
    %5 = vector.shape_cast %4 : vector<1x8x32xbf16> to vector<8x32xbf16>
    %cst = arith.constant dense<0.000000e+00> : vector<8x8xf32>
    %6 = tpu.matmul %1, %3, %cst {dimension_numbers = #tpu.dot_dimension_numbers<[1], [1], [0], [0], [0, 0, 1, 0], [], []>} : vector<8x32xbf16>, vector<8x32xbf16>, vector<8x8xf32> -> vector<8x8xf32>
    %cst_8 = arith.constant dense<0.000000e+00> : vector<8xf32>
    %7 = vector.multi_reduction <add>, %6, %cst_8 [1] : vector<8x8xf32> to vector<8xf32>
    %8 = vector.shape_cast %7 : vector<8xf32> to vector<8x1xf32>
    %cst_9 = arith.constant 1.250000e-01 : f32
    %9 = vector.broadcast %cst_9 : f32 to vector<8x1xf32>
    %10 = arith.mulf %8, %9 : vector<8x1xf32>
    %11 = arith.mulf %6, %6 : vector<8x8xf32>
    %cst_10 = arith.constant dense<0.000000e+00> : vector<8xf32>
    %12 = vector.multi_reduction <add>, %11, %cst_10 [1] : vector<8x8xf32> to vector<8xf32>
    %13 = vector.shape_cast %12 : vector<8xf32> to vector<8x1xf32>
    %cst_11 = arith.constant 1.250000e-01 : f32
    %14 = vector.broadcast %cst_11 : f32 to vector<8x1xf32>
    %15 = arith.mulf %13, %14 : vector<8x1xf32>
    %16 = arith.mulf %10, %10 : vector<8x1xf32>
    %17 = arith.subf %15, %16 : vector<8x1xf32>
    %cst_12 = arith.constant 0.000000e+00 : f32
    %18 = vector.broadcast %cst_12 : f32 to vector<8x1xf32>
    %19 = arith.maximumf %17, %18 : vector<8x1xf32>
    %cst_13 = arith.constant 1.280000e-06 : f32
    %20 = vector.broadcast %cst_13 : f32 to vector<8x1xf32>
    %21 = arith.addf %19, %20 : vector<8x1xf32>
    %22 = math.rsqrt %21 : vector<8x1xf32>
    %23 = arith.truncf %6 : vector<8x8xf32> to vector<8x8xbf16>
    %cst_14 = arith.constant dense<0.000000e+00> : vector<8x32xf32>
    %24 = tpu.matmul %23, %5, %cst_14 {dimension_numbers = #tpu.dot_dimension_numbers<[1], [0], [0], [1], [0, 0, 1, 1], [], []>} : vector<8x8xbf16>, vector<8x32xbf16>, vector<8x32xf32> -> vector<8x32xf32>
    %25 = arith.extf %5 : vector<8x32xbf16> to vector<8x32xf32>
    %cst_15 = arith.constant dense<0.000000e+00> : vector<32xf32>
    %26 = vector.multi_reduction <add>, %25, %cst_15 [0] : vector<8x32xf32> to vector<32xf32>
    %27 = vector.shape_cast %26 : vector<32xf32> to vector<1x32xf32>
    %c0_16 = arith.constant 0 : index
    %28 = memref.load %arg2[%c0_16] : memref<4xf32, #tpu.memory_space<smem>>
    %29 = vector.broadcast %28 : f32 to vector<8x1xf32>
    %30 = arith.mulf %29, %22 : vector<8x1xf32>
    %31 = vector.broadcast %10 : vector<8x1xf32> to vector<8x32xf32>
    %32 = vector.broadcast %27 : vector<1x32xf32> to vector<8x32xf32>
    %33 = arith.mulf %31, %32 : vector<8x32xf32>
    %34 = arith.subf %24, %33 : vector<8x32xf32>
    %35 = vector.broadcast %30 : vector<8x1xf32> to vector<8x32xf32>
    %36 = arith.mulf %35, %34 : vector<8x32xf32>
    %c0_17 = arith.constant 0 : index
    %37 = memref.load %arg3[%c0_17] : memref<4xf32, #tpu.memory_space<smem>>
    %38 = vector.broadcast %37 : f32 to vector<1x32xf32>
    %39 = arith.mulf %38, %27 : vector<1x32xf32>
    %40 = vector.broadcast %39 : vector<1x32xf32> to vector<8x32xf32>
    %41 = arith.addf %36, %40 : vector<8x32xf32>
    %42 = arith.truncf %41 : vector<8x32xf32> to vector<8x32xbf16>
    %c0_18 = arith.constant 0 : index
    %c0_19 = arith.constant 0 : index
    %c32 = arith.constant 32 : index
    %43 = vector.load %arg4[%c0_18, %c0_19, %c32] : memref<1x8x128xbf16, #tpu.memory_space<vmem>>, vector<1x8x32xbf16>
    %44 = vector.shape_cast %43 : vector<1x8x32xbf16> to vector<8x32xbf16>
    %c0_20 = arith.constant 0 : index
    %c0_21 = arith.constant 0 : index
    %c32_22 = arith.constant 32 : index
    %45 = vector.load %arg5[%c0_20, %c0_21, %c32_22] : memref<1x8x128xbf16, #tpu.memory_space<vmem>>, vector<1x8x32xbf16>
    %46 = vector.shape_cast %45 : vector<1x8x32xbf16> to vector<8x32xbf16>
    %c0_23 = arith.constant 0 : index
    %c0_24 = arith.constant 0 : index
    %c32_25 = arith.constant 32 : index
    %47 = vector.load %arg6[%c0_23, %c0_24, %c32_25] : memref<1x8x128xbf16, #tpu.memory_space<vmem>>, vector<1x8x32xbf16>
    %48 = vector.shape_cast %47 : vector<1x8x32xbf16> to vector<8x32xbf16>
    %cst_26 = arith.constant dense<0.000000e+00> : vector<8x8xf32>
    %49 = tpu.matmul %44, %46, %cst_26 {dimension_numbers = #tpu.dot_dimension_numbers<[1], [1], [0], [0], [0, 0, 1, 0], [], []>} : vector<8x32xbf16>, vector<8x32xbf16>, vector<8x8xf32> -> vector<8x8xf32>
    %cst_27 = arith.constant dense<0.000000e+00> : vector<8xf32>
    %50 = vector.multi_reduction <add>, %49, %cst_27 [1] : vector<8x8xf32> to vector<8xf32>
    %51 = vector.shape_cast %50 : vector<8xf32> to vector<8x1xf32>
    %cst_28 = arith.constant 1.250000e-01 : f32
    %52 = vector.broadcast %cst_28 : f32 to vector<8x1xf32>
    %53 = arith.mulf %51, %52 : vector<8x1xf32>
    %54 = arith.mulf %49, %49 : vector<8x8xf32>
    %cst_29 = arith.constant dense<0.000000e+00> : vector<8xf32>
    %55 = vector.multi_reduction <add>, %54, %cst_29 [1] : vector<8x8xf32> to vector<8xf32>
    %56 = vector.shape_cast %55 : vector<8xf32> to vector<8x1xf32>
    %cst_30 = arith.constant 1.250000e-01 : f32
    %57 = vector.broadcast %cst_30 : f32 to vector<8x1xf32>
    %58 = arith.mulf %56, %57 : vector<8x1xf32>
    %59 = arith.mulf %53, %53 : vector<8x1xf32>
    %60 = arith.subf %58, %59 : vector<8x1xf32>
    %cst_31 = arith.constant 0.000000e+00 : f32
    %61 = vector.broadcast %cst_31 : f32 to vector<8x1xf32>
    %62 = arith.maximumf %60, %61 : vector<8x1xf32>
    %cst_32 = arith.constant 1.280000e-06 : f32
    %63 = vector.broadcast %cst_32 : f32 to vector<8x1xf32>
    %64 = arith.addf %62, %63 : vector<8x1xf32>
    %65 = math.rsqrt %64 : vector<8x1xf32>
    %66 = arith.truncf %49 : vector<8x8xf32> to vector<8x8xbf16>
    %cst_33 = arith.constant dense<0.000000e+00> : vector<8x32xf32>
    %67 = tpu.matmul %66, %48, %cst_33 {dimension_numbers = #tpu.dot_dimension_numbers<[1], [0], [0], [1], [0, 0, 1, 1], [], []>} : vector<8x8xbf16>, vector<8x32xbf16>, vector<8x32xf32> -> vector<8x32xf32>
    %68 = arith.extf %48 : vector<8x32xbf16> to vector<8x32xf32>
    %cst_34 = arith.constant dense<0.000000e+00> : vector<32xf32>
    %69 = vector.multi_reduction <add>, %68, %cst_34 [0] : vector<8x32xf32> to vector<32xf32>
    %70 = vector.shape_cast %69 : vector<32xf32> to vector<1x32xf32>
    %c1 = arith.constant 1 : index
    %71 = memref.load %arg2[%c1] : memref<4xf32, #tpu.memory_space<smem>>
    %72 = vector.broadcast %71 : f32 to vector<8x1xf32>
    %73 = arith.mulf %72, %65 : vector<8x1xf32>
    %74 = vector.broadcast %53 : vector<8x1xf32> to vector<8x32xf32>
    %75 = vector.broadcast %70 : vector<1x32xf32> to vector<8x32xf32>
    %76 = arith.mulf %74, %75 : vector<8x32xf32>
    %77 = arith.subf %67, %76 : vector<8x32xf32>
    %78 = vector.broadcast %73 : vector<8x1xf32> to vector<8x32xf32>
    %79 = arith.mulf %78, %77 : vector<8x32xf32>
    %c1_35 = arith.constant 1 : index
    %80 = memref.load %arg3[%c1_35] : memref<4xf32, #tpu.memory_space<smem>>
    %81 = vector.broadcast %80 : f32 to vector<1x32xf32>
    %82 = arith.mulf %81, %70 : vector<1x32xf32>
    %83 = vector.broadcast %82 : vector<1x32xf32> to vector<8x32xf32>
    %84 = arith.addf %79, %83 : vector<8x32xf32>
    %85 = arith.truncf %84 : vector<8x32xf32> to vector<8x32xbf16>
    %c0_36 = arith.constant 0 : index
    %c0_37 = arith.constant 0 : index
    %c64 = arith.constant 64 : index
    %86 = vector.load %arg4[%c0_36, %c0_37, %c64] : memref<1x8x128xbf16, #tpu.memory_space<vmem>>, vector<1x8x32xbf16>
    %87 = vector.shape_cast %86 : vector<1x8x32xbf16> to vector<8x32xbf16>
    %c0_38 = arith.constant 0 : index
    %c0_39 = arith.constant 0 : index
    %c64_40 = arith.constant 64 : index
    %88 = vector.load %arg5[%c0_38, %c0_39, %c64_40] : memref<1x8x128xbf16, #tpu.memory_space<vmem>>, vector<1x8x32xbf16>
    %89 = vector.shape_cast %88 : vector<1x8x32xbf16> to vector<8x32xbf16>
    %c0_41 = arith.constant 0 : index
    %c0_42 = arith.constant 0 : index
    %c64_43 = arith.constant 64 : index
    %90 = vector.load %arg6[%c0_41, %c0_42, %c64_43] : memref<1x8x128xbf16, #tpu.memory_space<vmem>>, vector<1x8x32xbf16>
    %91 = vector.shape_cast %90 : vector<1x8x32xbf16> to vector<8x32xbf16>
    %cst_44 = arith.constant dense<0.000000e+00> : vector<8x8xf32>
    %92 = tpu.matmul %87, %89, %cst_44 {dimension_numbers = #tpu.dot_dimension_numbers<[1], [1], [0], [0], [0, 0, 1, 0], [], []>} : vector<8x32xbf16>, vector<8x32xbf16>, vector<8x8xf32> -> vector<8x8xf32>
    %cst_45 = arith.constant dense<0.000000e+00> : vector<8xf32>
    %93 = vector.multi_reduction <add>, %92, %cst_45 [1] : vector<8x8xf32> to vector<8xf32>
    %94 = vector.shape_cast %93 : vector<8xf32> to vector<8x1xf32>
    %cst_46 = arith.constant 1.250000e-01 : f32
    %95 = vector.broadcast %cst_46 : f32 to vector<8x1xf32>
    %96 = arith.mulf %94, %95 : vector<8x1xf32>
    %97 = arith.mulf %92, %92 : vector<8x8xf32>
    %cst_47 = arith.constant dense<0.000000e+00> : vector<8xf32>
    %98 = vector.multi_reduction <add>, %97, %cst_47 [1] : vector<8x8xf32> to vector<8xf32>
    %99 = vector.shape_cast %98 : vector<8xf32> to vector<8x1xf32>
    %cst_48 = arith.constant 1.250000e-01 : f32
    %100 = vector.broadcast %cst_48 : f32 to vector<8x1xf32>
    %101 = arith.mulf %99, %100 : vector<8x1xf32>
    %102 = arith.mulf %96, %96 : vector<8x1xf32>
    %103 = arith.subf %101, %102 : vector<8x1xf32>
    %cst_49 = arith.constant 0.000000e+00 : f32
    %104 = vector.broadcast %cst_49 : f32 to vector<8x1xf32>
    %105 = arith.maximumf %103, %104 : vector<8x1xf32>
    %cst_50 = arith.constant 1.280000e-06 : f32
    %106 = vector.broadcast %cst_50 : f32 to vector<8x1xf32>
    %107 = arith.addf %105, %106 : vector<8x1xf32>
    %108 = math.rsqrt %107 : vector<8x1xf32>
    %109 = arith.truncf %92 : vector<8x8xf32> to vector<8x8xbf16>
    %cst_51 = arith.constant dense<0.000000e+00> : vector<8x32xf32>
    %110 = tpu.matmul %109, %91, %cst_51 {dimension_numbers = #tpu.dot_dimension_numbers<[1], [0], [0], [1], [0, 0, 1, 1], [], []>} : vector<8x8xbf16>, vector<8x32xbf16>, vector<8x32xf32> -> vector<8x32xf32>
    %111 = arith.extf %91 : vector<8x32xbf16> to vector<8x32xf32>
    %cst_52 = arith.constant dense<0.000000e+00> : vector<32xf32>
    %112 = vector.multi_reduction <add>, %111, %cst_52 [0] : vector<8x32xf32> to vector<32xf32>
    %113 = vector.shape_cast %112 : vector<32xf32> to vector<1x32xf32>
    %c2 = arith.constant 2 : index
    %114 = memref.load %arg2[%c2] : memref<4xf32, #tpu.memory_space<smem>>
    %115 = vector.broadcast %114 : f32 to vector<8x1xf32>
    %116 = arith.mulf %115, %108 : vector<8x1xf32>
    %117 = vector.broadcast %96 : vector<8x1xf32> to vector<8x32xf32>
    %118 = vector.broadcast %113 : vector<1x32xf32> to vector<8x32xf32>
    %119 = arith.mulf %117, %118 : vector<8x32xf32>
    %120 = arith.subf %110, %119 : vector<8x32xf32>
    %121 = vector.broadcast %116 : vector<8x1xf32> to vector<8x32xf32>
    %122 = arith.mulf %121, %120 : vector<8x32xf32>
    %c2_53 = arith.constant 2 : index
    %123 = memref.load %arg3[%c2_53] : memref<4xf32, #tpu.memory_space<smem>>
    %124 = vector.broadcast %123 : f32 to vector<1x32xf32>
    %125 = arith.mulf %124, %113 : vector<1x32xf32>
    %126 = vector.broadcast %125 : vector<1x32xf32> to vector<8x32xf32>
    %127 = arith.addf %122, %126 : vector<8x32xf32>
    %128 = arith.truncf %127 : vector<8x32xf32> to vector<8x32xbf16>
    %c0_54 = arith.constant 0 : index
    %c0_55 = arith.constant 0 : index
    %c96 = arith.constant 96 : index
    %129 = vector.load %arg4[%c0_54, %c0_55, %c96] : memref<1x8x128xbf16, #tpu.memory_space<vmem>>, vector<1x8x32xbf16>
    %130 = vector.shape_cast %129 : vector<1x8x32xbf16> to vector<8x32xbf16>
    %c0_56 = arith.constant 0 : index
    %c0_57 = arith.constant 0 : index
    %c96_58 = arith.constant 96 : index
    %131 = vector.load %arg5[%c0_56, %c0_57, %c96_58] : memref<1x8x128xbf16, #tpu.memory_space<vmem>>, vector<1x8x32xbf16>
    %132 = vector.shape_cast %131 : vector<1x8x32xbf16> to vector<8x32xbf16>
    %c0_59 = arith.constant 0 : index
    %c0_60 = arith.constant 0 : index
    %c96_61 = arith.constant 96 : index
    %133 = vector.load %arg6[%c0_59, %c0_60, %c96_61] : memref<1x8x128xbf16, #tpu.memory_space<vmem>>, vector<1x8x32xbf16>
    %134 = vector.shape_cast %133 : vector<1x8x32xbf16> to vector<8x32xbf16>
    %cst_62 = arith.constant dense<0.000000e+00> : vector<8x8xf32>
    %135 = tpu.matmul %130, %132, %cst_62 {dimension_numbers = #tpu.dot_dimension_numbers<[1], [1], [0], [0], [0, 0, 1, 0], [], []>} : vector<8x32xbf16>, vector<8x32xbf16>, vector<8x8xf32> -> vector<8x8xf32>
    %cst_63 = arith.constant dense<0.000000e+00> : vector<8xf32>
    %136 = vector.multi_reduction <add>, %135, %cst_63 [1] : vector<8x8xf32> to vector<8xf32>
    %137 = vector.shape_cast %136 : vector<8xf32> to vector<8x1xf32>
    %cst_64 = arith.constant 1.250000e-01 : f32
    %138 = vector.broadcast %cst_64 : f32 to vector<8x1xf32>
    %139 = arith.mulf %137, %138 : vector<8x1xf32>
    %140 = arith.mulf %135, %135 : vector<8x8xf32>
    %cst_65 = arith.constant dense<0.000000e+00> : vector<8xf32>
    %141 = vector.multi_reduction <add>, %140, %cst_65 [1] : vector<8x8xf32> to vector<8xf32>
    %142 = vector.shape_cast %141 : vector<8xf32> to vector<8x1xf32>
    %cst_66 = arith.constant 1.250000e-01 : f32
    %143 = vector.broadcast %cst_66 : f32 to vector<8x1xf32>
    %144 = arith.mulf %142, %143 : vector<8x1xf32>
    %145 = arith.mulf %139, %139 : vector<8x1xf32>
    %146 = arith.subf %144, %145 : vector<8x1xf32>
    %cst_67 = arith.constant 0.000000e+00 : f32
    %147 = vector.broadcast %cst_67 : f32 to vector<8x1xf32>
    %148 = arith.maximumf %146, %147 : vector<8x1xf32>
    %cst_68 = arith.constant 1.280000e-06 : f32
    %149 = vector.broadcast %cst_68 : f32 to vector<8x1xf32>
    %150 = arith.addf %148, %149 : vector<8x1xf32>
    %151 = math.rsqrt %150 : vector<8x1xf32>
    %152 = arith.truncf %135 : vector<8x8xf32> to vector<8x8xbf16>
    %cst_69 = arith.constant dense<0.000000e+00> : vector<8x32xf32>
    %153 = tpu.matmul %152, %134, %cst_69 {dimension_numbers = #tpu.dot_dimension_numbers<[1], [0], [0], [1], [0, 0, 1, 1], [], []>} : vector<8x8xbf16>, vector<8x32xbf16>, vector<8x32xf32> -> vector<8x32xf32>
    %154 = arith.extf %134 : vector<8x32xbf16> to vector<8x32xf32>
    %cst_70 = arith.constant dense<0.000000e+00> : vector<32xf32>
    %155 = vector.multi_reduction <add>, %154, %cst_70 [0] : vector<8x32xf32> to vector<32xf32>
    %156 = vector.shape_cast %155 : vector<32xf32> to vector<1x32xf32>
    %c3 = arith.constant 3 : index
    %157 = memref.load %arg2[%c3] : memref<4xf32, #tpu.memory_space<smem>>
    %158 = vector.broadcast %157 : f32 to vector<8x1xf32>
    %159 = arith.mulf %158, %151 : vector<8x1xf32>
    %160 = vector.broadcast %139 : vector<8x1xf32> to vector<8x32xf32>
    %161 = vector.broadcast %156 : vector<1x32xf32> to vector<8x32xf32>
    %162 = arith.mulf %160, %161 : vector<8x32xf32>
    %163 = arith.subf %153, %162 : vector<8x32xf32>
    %164 = vector.broadcast %159 : vector<8x1xf32> to vector<8x32xf32>
    %165 = arith.mulf %164, %163 : vector<8x32xf32>
    %c3_71 = arith.constant 3 : index
    %166 = memref.load %arg3[%c3_71] : memref<4xf32, #tpu.memory_space<smem>>
    %167 = vector.broadcast %166 : f32 to vector<1x32xf32>
    %168 = arith.mulf %167, %156 : vector<1x32xf32>
    %169 = vector.broadcast %168 : vector<1x32xf32> to vector<8x32xf32>
    %170 = arith.addf %165, %169 : vector<8x32xf32>
    %171 = arith.truncf %170 : vector<8x32xf32> to vector<8x32xbf16>
    %172 = tpu.concatenate %42, %85, %128, %171 in 1 : vector<8x32xbf16>, vector<8x32xbf16>, vector<8x32xbf16>, vector<8x32xbf16> -> vector<8x128xbf16>
    %c0_72 = arith.constant 0 : index
    %c0_73 = arith.constant 0 : index
    %c0_74 = arith.constant 0 : index
    %173 = vector.load %arg7[%c0_72, %c0_73, %c0_74] : memref<1x8x128xbf16, #tpu.memory_space<vmem>>, vector<1x8x128xbf16>
    %174 = vector.shape_cast %173 : vector<1x8x128xbf16> to vector<8x128xbf16>
    %175 = vector.shape_cast %172 : vector<8x128xbf16> to vector<1x8x128xbf16>
    tpu.vector_store %arg7[%c0_72, %c0_73, %c0_74], %175 {strides = array<i32>} : memref<1x8x128xbf16, #tpu.memory_space<vmem>>, vector<1x8x128xbf16>,
    return
  }
  func.func @transform_0(%arg0: i32, %arg1: i32) -> i32 {
    %c0_i32 = arith.constant 0 : i32
    %c0_i32_0 = arith.constant 0 : i32
    return %c0_i32 : i32
  }
  func.func @transform_1(%arg0: i32, %arg1: i32) -> i32 {
    %c0_i32 = arith.constant 0 : i32
    %c0_i32_0 = arith.constant 0 : i32
    return %c0_i32 : i32
  }
  func.func @transform_2(%arg0: i32, %arg1: i32) -> (i32, i32, i32) {
    %c0_i32 = arith.constant 0 : i32
    %c0_i32_0 = arith.constant 0 : i32
    return %arg0, %arg1, %c0_i32 : i32, i32, i32
  }
  func.func @transform_3(%arg0: i32, %arg1: i32) -> (i32, i32, i32) {
    %c0_i32 = arith.constant 0 : i32
    %c1_i32 = arith.constant 1 : i32
    %c0_i32_0 = arith.constant 0 : i32
    return %arg0, %c0_i32, %c1_i32 : i32, i32, i32
  }
  func.func @transform_4(%arg0: i32, %arg1: i32) -> (i32, i32, i32) {
    %c0_i32 = arith.constant 0 : i32
    %c2_i32 = arith.constant 2 : i32
    %c0_i32_0 = arith.constant 0 : i32
    return %arg0, %c0_i32, %c2_i32 : i32, i32, i32
  }
  func.func @transform_5(%arg0: i32, %arg1: i32) -> (i32, i32, i32) {
    %c0_i32 = arith.constant 0 : i32
    %c0_i32_0 = arith.constant 0 : i32
    return %arg0, %arg1, %c0_i32 : i32, i32, i32
  }
}

module attributes {stable_mosaic.version = 11 : i64} {
  func.func @_attn_out_kernel(%arg0: i32, %arg1: i32, %arg2: memref<16x128xbf16, #tpu.memory_space<vmem>>, %arg3: memref<128x128xbf16, #tpu.memory_space<vmem>>, %arg4: memref<1x128xf32, #tpu.memory_space<vmem>>, %arg5: memref<1x128xf32, #tpu.memory_space<vmem>>, %arg6: memref<1x128xf32, #tpu.memory_space<vmem>>, %arg7: memref<16x128xf32, #tpu.memory_space<vmem>>, %arg8: memref<16x128xf32, #tpu.memory_space<vmem>>, %arg9: memref<16x128xf32, #tpu.memory_space<vmem>>) attributes {dimension_semantics = [#tpu.dimension_semantics<parallel>, #tpu.dimension_semantics<arbitrary>], iteration_bounds = array<i64: 1, 1>, scalar_prefetch = 0 : i64, scratch_operands = 1 : i64, tpu.core_type = #tpu.core_type<tc>, window_params = [{transform_indices = @transform_0, window_bounds = array<i64: 16, 128>}, {transform_indices = @transform_1, window_bounds = array<i64: 128, 128>}, {pipeline_mode = #tpu.pipeline_mode<synchronous>, transform_indices = @transform_2, window_bounds = array<i64: 1, 128>}, {pipeline_mode = #tpu.pipeline_mode<synchronous>, transform_indices = @transform_3, window_bounds = array<i64: 1, 128>}, {pipeline_mode = #tpu.pipeline_mode<synchronous>, transform_indices = @transform_4, window_bounds = array<i64: 1, 128>}, {transform_indices = @transform_5, window_bounds = array<i64: 16, 128>}, {transform_indices = @transform_6, window_bounds = array<i64: 16, 128>}]} {
    %c0_i32 = arith.constant 0 : i32
    %0 = arith.cmpi eq, %arg1, %c0_i32 : i32
    %1 = arith.extui %0 : i1 to i32
    %c0_i32_0 = arith.constant 0 : i32
    %2 = arith.cmpi ne, %1, %c0_i32_0 : i32
    scf.if %2 {
      %cst_10 = arith.constant 0.000000e+00 : f32
      %12 = vector.broadcast %cst_10 : f32 to vector<16x128xf32>
      %c0_11 = arith.constant 0 : index
      %c0_12 = arith.constant 0 : index
      %13 = vector.load %arg9[%c0_11, %c0_12] : memref<16x128xf32, #tpu.memory_space<vmem>>, vector<16x128xf32>
      tpu.vector_store %arg9[%c0_11, %c0_12], %12 {strides = array<i32>} : memref<16x128xf32, #tpu.memory_space<vmem>>, vector<16x128xf32>,
    } else {
    }
    %c0 = arith.constant 0 : index
    %c0_1 = arith.constant 0 : index
    %3 = vector.load %arg9[%c0, %c0_1] : memref<16x128xf32, #tpu.memory_space<vmem>>, vector<16x128xf32>
    %c0_2 = arith.constant 0 : index
    %c0_3 = arith.constant 0 : index
    %4 = vector.load %arg2[%c0_2, %c0_3] : memref<16x128xbf16, #tpu.memory_space<vmem>>, vector<16x128xbf16>
    %c0_4 = arith.constant 0 : index
    %c0_5 = arith.constant 0 : index
    %5 = vector.load %arg3[%c0_4, %c0_5] : memref<128x128xbf16, #tpu.memory_space<vmem>>, vector<128x128xbf16>
    %cst = arith.constant dense<0.000000e+00> : vector<16x128xf32>
    %6 = tpu.matmul %4, %5, %cst {dimension_numbers = #tpu.dot_dimension_numbers<[1], [0], [0], [1], [0, 0, 1, 1], [], []>} : vector<16x128xbf16>, vector<128x128xbf16>, vector<16x128xf32> -> vector<16x128xf32>
    %7 = arith.addf %3, %6 : vector<16x128xf32>
    %c0_6 = arith.constant 0 : index
    %c0_7 = arith.constant 0 : index
    %8 = vector.load %arg9[%c0_6, %c0_7] : memref<16x128xf32, #tpu.memory_space<vmem>>, vector<16x128xf32>
    tpu.vector_store %arg9[%c0_6, %c0_7], %7 {strides = array<i32>} : memref<16x128xf32, #tpu.memory_space<vmem>>, vector<16x128xf32>,
    %c0_i32_8 = arith.constant 0 : i32
    %9 = arith.cmpi eq, %arg1, %c0_i32_8 : i32
    %10 = arith.extui %9 : i1 to i32
    %c0_i32_9 = arith.constant 0 : i32
    %11 = arith.cmpi ne, %10, %c0_i32_9 : i32
    scf.if %11 {
      %c0_10 = arith.constant 0 : index
      %c0_11 = arith.constant 0 : index
      %12 = vector.load %arg9[%c0_10, %c0_11] : memref<16x128xf32, #tpu.memory_space<vmem>>, vector<16x128xf32>
      %c0_12 = arith.constant 0 : index
      %c0_13 = arith.constant 0 : index
      %13 = vector.load %arg4[%c0_12, %c0_13] : memref<1x128xf32, #tpu.memory_space<vmem>>, vector<1x128xf32>
      %14 = vector.broadcast %13 : vector<1x128xf32> to vector<16x128xf32>
      %15 = arith.addf %12, %14 : vector<16x128xf32>
      %cst_14 = arith.constant dense<0.000000e+00> : vector<16xf32>
      %16 = vector.multi_reduction <add>, %15, %cst_14 [1] : vector<16x128xf32> to vector<16xf32>
      %17 = vector.shape_cast %16 : vector<16xf32> to vector<16x1xf32>
      %cst_15 = arith.constant 1.280000e+02 : f32
      %18 = vector.broadcast %cst_15 : f32 to vector<16x1xf32>
      %19 = arith.divf %17, %18 : vector<16x1xf32>
      %20 = vector.broadcast %19 : vector<16x1xf32> to vector<16x128xf32>
      %21 = arith.subf %15, %20 : vector<16x128xf32>
      %22 = arith.mulf %21, %21 : vector<16x128xf32>
      %cst_16 = arith.constant dense<0.000000e+00> : vector<16xf32>
      %23 = vector.multi_reduction <add>, %22, %cst_16 [1] : vector<16x128xf32> to vector<16xf32>
      %24 = vector.shape_cast %23 : vector<16xf32> to vector<16x1xf32>
      %cst_17 = arith.constant 1.280000e+02 : f32
      %25 = vector.broadcast %cst_17 : f32 to vector<16x1xf32>
      %26 = arith.divf %24, %25 : vector<16x1xf32>
      %cst_18 = arith.constant 9.99999974E-6 : f32
      %27 = vector.broadcast %cst_18 : f32 to vector<16x1xf32>
      %28 = arith.addf %26, %27 : vector<16x1xf32>
      %29 = math.rsqrt %28 : vector<16x1xf32>
      %c0_19 = arith.constant 0 : index
      %c0_20 = arith.constant 0 : index
      %30 = vector.load %arg5[%c0_19, %c0_20] : memref<1x128xf32, #tpu.memory_space<vmem>>, vector<1x128xf32>
      %31 = vector.broadcast %29 : vector<16x1xf32> to vector<16x128xf32>
      %32 = vector.broadcast %30 : vector<1x128xf32> to vector<16x128xf32>
      %33 = arith.mulf %31, %32 : vector<16x128xf32>
      %34 = arith.mulf %21, %33 : vector<16x128xf32>
      %c0_21 = arith.constant 0 : index
      %c0_22 = arith.constant 0 : index
      %35 = vector.load %arg6[%c0_21, %c0_22] : memref<1x128xf32, #tpu.memory_space<vmem>>, vector<1x128xf32>
      %36 = vector.broadcast %35 : vector<1x128xf32> to vector<16x128xf32>
      %37 = arith.addf %34, %36 : vector<16x128xf32>
      %c0_23 = arith.constant 0 : index
      %c0_24 = arith.constant 0 : index
      %38 = vector.load %arg7[%c0_23, %c0_24] : memref<16x128xf32, #tpu.memory_space<vmem>>, vector<16x128xf32>
      %39 = arith.addf %37, %38 : vector<16x128xf32>
      %c0_25 = arith.constant 0 : index
      %c0_26 = arith.constant 0 : index
      %40 = vector.load %arg8[%c0_25, %c0_26] : memref<16x128xf32, #tpu.memory_space<vmem>>, vector<16x128xf32>
      tpu.vector_store %arg8[%c0_25, %c0_26], %39 {strides = array<i32>} : memref<16x128xf32, #tpu.memory_space<vmem>>, vector<16x128xf32>,
    } else {
    }
    return
  }
  func.func @transform_0(%arg0: i32, %arg1: i32) -> (i32, i32) {
    %c0_i32 = arith.constant 0 : i32
    return %arg0, %arg1 : i32, i32
  }
  func.func @transform_1(%arg0: i32, %arg1: i32) -> (i32, i32) {
    %c0_i32 = arith.constant 0 : i32
    %c0_i32_0 = arith.constant 0 : i32
    return %arg1, %c0_i32 : i32, i32
  }
  func.func @transform_2(%arg0: i32, %arg1: i32) -> (i32, i32) {
    %c0_i32 = arith.constant 0 : i32
    %c0_i32_0 = arith.constant 0 : i32
    %c0_i32_1 = arith.constant 0 : i32
    return %c0_i32, %c0_i32_0 : i32, i32
  }
  func.func @transform_3(%arg0: i32, %arg1: i32) -> (i32, i32) {
    %c0_i32 = arith.constant 0 : i32
    %c0_i32_0 = arith.constant 0 : i32
    %c0_i32_1 = arith.constant 0 : i32
    return %c0_i32, %c0_i32_0 : i32, i32
  }
  func.func @transform_4(%arg0: i32, %arg1: i32) -> (i32, i32) {
    %c0_i32 = arith.constant 0 : i32
    %c0_i32_0 = arith.constant 0 : i32
    %c0_i32_1 = arith.constant 0 : i32
    return %c0_i32, %c0_i32_0 : i32, i32
  }
  func.func @transform_5(%arg0: i32, %arg1: i32) -> (i32, i32) {
    %c0_i32 = arith.constant 0 : i32
    %c0_i32_0 = arith.constant 0 : i32
    return %arg0, %c0_i32 : i32, i32
  }
  func.func @transform_6(%arg0: i32, %arg1: i32) -> (i32, i32) {
    %c0_i32 = arith.constant 0 : i32
    %c0_i32_0 = arith.constant 0 : i32
    return %arg0, %c0_i32 : i32, i32
  }
}

module attributes {stable_mosaic.version = 11 : i64} {
  func.func @_attn_kernel(%arg0: i32, %arg1: i32, %arg2: memref<4xf32, #tpu.memory_space<smem>>, %arg3: memref<4xf32, #tpu.memory_space<smem>>, %arg4: memref<1x8x128xbf16, #tpu.memory_space<vmem>>, %arg5: memref<1x8x128xbf16, #tpu.memory_space<vmem>>, %arg6: memref<1x8x128xbf16, #tpu.memory_space<vmem>>, %arg7: memref<1x8x128xbf16, #tpu.memory_space<vmem>>) attributes {dimension_semantics = [#tpu.dimension_semantics<parallel>, #tpu.dimension_semantics<parallel>], iteration_bounds = array<i64: 2, 1>, scalar_prefetch = 0 : i64, scratch_operands = 0 : i64, tpu.core_type = #tpu.core_type<tc>, window_params = [{transform_indices = @transform_0, window_bounds = array<i64: 4>}, {transform_indices = @transform_1, window_bounds = array<i64: 4>}, {transform_indices = @transform_2, window_bounds = array<i64: 1, 8, 128>}, {transform_indices = @transform_3, window_bounds = array<i64: 1, 8, 128>}, {transform_indices = @transform_4, window_bounds = array<i64: 1, 8, 128>}, {transform_indices = @transform_5, window_bounds = array<i64: 1, 8, 128>}]} {
    %c0 = arith.constant 0 : index
    %c0_0 = arith.constant 0 : index
    %c0_1 = arith.constant 0 : index
    %0 = vector.load %arg4[%c0, %c0_0, %c0_1] : memref<1x8x128xbf16, #tpu.memory_space<vmem>>, vector<1x8x32xbf16>
    %1 = vector.shape_cast %0 : vector<1x8x32xbf16> to vector<8x32xbf16>
    %c0_2 = arith.constant 0 : index
    %c0_3 = arith.constant 0 : index
    %c0_4 = arith.constant 0 : index
    %2 = vector.load %arg5[%c0_2, %c0_3, %c0_4] : memref<1x8x128xbf16, #tpu.memory_space<vmem>>, vector<1x8x32xbf16>
    %3 = vector.shape_cast %2 : vector<1x8x32xbf16> to vector<8x32xbf16>
    %c0_5 = arith.constant 0 : index
    %c0_6 = arith.constant 0 : index
    %c0_7 = arith.constant 0 : index
    %4 = vector.load %arg6[%c0_5, %c0_6, %c0_7] : memref<1x8x128xbf16, #tpu.memory_space<vmem>>, vector<1x8x32xbf16>
    %5 = vector.shape_cast %4 : vector<1x8x32xbf16> to vector<8x32xbf16>
    %cst = arith.constant dense<0.000000e+00> : vector<8x8xf32>
    %6 = tpu.matmul %1, %3, %cst {dimension_numbers = #tpu.dot_dimension_numbers<[1], [1], [0], [0], [0, 0, 1, 0], [], []>} : vector<8x32xbf16>, vector<8x32xbf16>, vector<8x8xf32> -> vector<8x8xf32>
    %cst_8 = arith.constant dense<0.000000e+00> : vector<8xf32>
    %7 = vector.multi_reduction <add>, %6, %cst_8 [1] : vector<8x8xf32> to vector<8xf32>
    %8 = vector.shape_cast %7 : vector<8xf32> to vector<8x1xf32>
    %cst_9 = arith.constant 1.250000e-01 : f32
    %9 = vector.broadcast %cst_9 : f32 to vector<8x1xf32>
    %10 = arith.mulf %8, %9 : vector<8x1xf32>
    %11 = arith.mulf %6, %6 : vector<8x8xf32>
    %cst_10 = arith.constant dense<0.000000e+00> : vector<8xf32>
    %12 = vector.multi_reduction <add>, %11, %cst_10 [1] : vector<8x8xf32> to vector<8xf32>
    %13 = vector.shape_cast %12 : vector<8xf32> to vector<8x1xf32>
    %cst_11 = arith.constant 1.250000e-01 : f32
    %14 = vector.broadcast %cst_11 : f32 to vector<8x1xf32>
    %15 = arith.mulf %13, %14 : vector<8x1xf32>
    %16 = arith.mulf %10, %10 : vector<8x1xf32>
    %17 = arith.subf %15, %16 : vector<8x1xf32>
    %cst_12 = arith.constant 0.000000e+00 : f32
    %18 = vector.broadcast %cst_12 : f32 to vector<8x1xf32>
    %19 = arith.maximumf %17, %18 : vector<8x1xf32>
    %cst_13 = arith.constant 1.280000e-06 : f32
    %20 = vector.broadcast %cst_13 : f32 to vector<8x1xf32>
    %21 = arith.addf %19, %20 : vector<8x1xf32>
    %22 = math.rsqrt %21 : vector<8x1xf32>
    %23 = arith.truncf %6 : vector<8x8xf32> to vector<8x8xbf16>
    %cst_14 = arith.constant dense<0.000000e+00> : vector<8x32xf32>
    %24 = tpu.matmul %23, %5, %cst_14 {dimension_numbers = #tpu.dot_dimension_numbers<[1], [0], [0], [1], [0, 0, 1, 1], [], []>} : vector<8x8xbf16>, vector<8x32xbf16>, vector<8x32xf32> -> vector<8x32xf32>
    %25 = arith.extf %5 : vector<8x32xbf16> to vector<8x32xf32>
    %cst_15 = arith.constant dense<0.000000e+00> : vector<32xf32>
    %26 = vector.multi_reduction <add>, %25, %cst_15 [0] : vector<8x32xf32> to vector<32xf32>
    %27 = vector.shape_cast %26 : vector<32xf32> to vector<1x32xf32>
    %c0_16 = arith.constant 0 : index
    %28 = memref.load %arg2[%c0_16] : memref<4xf32, #tpu.memory_space<smem>>
    %29 = vector.broadcast %28 : f32 to vector<8x1xf32>
    %30 = arith.mulf %29, %22 : vector<8x1xf32>
    %31 = vector.broadcast %10 : vector<8x1xf32> to vector<8x32xf32>
    %32 = vector.broadcast %27 : vector<1x32xf32> to vector<8x32xf32>
    %33 = arith.mulf %31, %32 : vector<8x32xf32>
    %34 = arith.subf %24, %33 : vector<8x32xf32>
    %35 = vector.broadcast %30 : vector<8x1xf32> to vector<8x32xf32>
    %36 = arith.mulf %35, %34 : vector<8x32xf32>
    %c0_17 = arith.constant 0 : index
    %37 = memref.load %arg3[%c0_17] : memref<4xf32, #tpu.memory_space<smem>>
    %38 = vector.broadcast %37 : f32 to vector<1x32xf32>
    %39 = arith.mulf %38, %27 : vector<1x32xf32>
    %40 = vector.broadcast %39 : vector<1x32xf32> to vector<8x32xf32>
    %41 = arith.addf %36, %40 : vector<8x32xf32>
    %42 = arith.truncf %41 : vector<8x32xf32> to vector<8x32xbf16>
    %c0_18 = arith.constant 0 : index
    %c0_19 = arith.constant 0 : index
    %c32 = arith.constant 32 : index
    %43 = vector.load %arg4[%c0_18, %c0_19, %c32] : memref<1x8x128xbf16, #tpu.memory_space<vmem>>, vector<1x8x32xbf16>
    %44 = vector.shape_cast %43 : vector<1x8x32xbf16> to vector<8x32xbf16>
    %c0_20 = arith.constant 0 : index
    %c0_21 = arith.constant 0 : index
    %c32_22 = arith.constant 32 : index
    %45 = vector.load %arg5[%c0_20, %c0_21, %c32_22] : memref<1x8x128xbf16, #tpu.memory_space<vmem>>, vector<1x8x32xbf16>
    %46 = vector.shape_cast %45 : vector<1x8x32xbf16> to vector<8x32xbf16>
    %c0_23 = arith.constant 0 : index
    %c0_24 = arith.constant 0 : index
    %c32_25 = arith.constant 32 : index
    %47 = vector.load %arg6[%c0_23, %c0_24, %c32_25] : memref<1x8x128xbf16, #tpu.memory_space<vmem>>, vector<1x8x32xbf16>
    %48 = vector.shape_cast %47 : vector<1x8x32xbf16> to vector<8x32xbf16>
    %cst_26 = arith.constant dense<0.000000e+00> : vector<8x8xf32>
    %49 = tpu.matmul %44, %46, %cst_26 {dimension_numbers = #tpu.dot_dimension_numbers<[1], [1], [0], [0], [0, 0, 1, 0], [], []>} : vector<8x32xbf16>, vector<8x32xbf16>, vector<8x8xf32> -> vector<8x8xf32>
    %cst_27 = arith.constant dense<0.000000e+00> : vector<8xf32>
    %50 = vector.multi_reduction <add>, %49, %cst_27 [1] : vector<8x8xf32> to vector<8xf32>
    %51 = vector.shape_cast %50 : vector<8xf32> to vector<8x1xf32>
    %cst_28 = arith.constant 1.250000e-01 : f32
    %52 = vector.broadcast %cst_28 : f32 to vector<8x1xf32>
    %53 = arith.mulf %51, %52 : vector<8x1xf32>
    %54 = arith.mulf %49, %49 : vector<8x8xf32>
    %cst_29 = arith.constant dense<0.000000e+00> : vector<8xf32>
    %55 = vector.multi_reduction <add>, %54, %cst_29 [1] : vector<8x8xf32> to vector<8xf32>
    %56 = vector.shape_cast %55 : vector<8xf32> to vector<8x1xf32>
    %cst_30 = arith.constant 1.250000e-01 : f32
    %57 = vector.broadcast %cst_30 : f32 to vector<8x1xf32>
    %58 = arith.mulf %56, %57 : vector<8x1xf32>
    %59 = arith.mulf %53, %53 : vector<8x1xf32>
    %60 = arith.subf %58, %59 : vector<8x1xf32>
    %cst_31 = arith.constant 0.000000e+00 : f32
    %61 = vector.broadcast %cst_31 : f32 to vector<8x1xf32>
    %62 = arith.maximumf %60, %61 : vector<8x1xf32>
    %cst_32 = arith.constant 1.280000e-06 : f32
    %63 = vector.broadcast %cst_32 : f32 to vector<8x1xf32>
    %64 = arith.addf %62, %63 : vector<8x1xf32>
    %65 = math.rsqrt %64 : vector<8x1xf32>
    %66 = arith.truncf %49 : vector<8x8xf32> to vector<8x8xbf16>
    %cst_33 = arith.constant dense<0.000000e+00> : vector<8x32xf32>
    %67 = tpu.matmul %66, %48, %cst_33 {dimension_numbers = #tpu.dot_dimension_numbers<[1], [0], [0], [1], [0, 0, 1, 1], [], []>} : vector<8x8xbf16>, vector<8x32xbf16>, vector<8x32xf32> -> vector<8x32xf32>
    %68 = arith.extf %48 : vector<8x32xbf16> to vector<8x32xf32>
    %cst_34 = arith.constant dense<0.000000e+00> : vector<32xf32>
    %69 = vector.multi_reduction <add>, %68, %cst_34 [0] : vector<8x32xf32> to vector<32xf32>
    %70 = vector.shape_cast %69 : vector<32xf32> to vector<1x32xf32>
    %c1 = arith.constant 1 : index
    %71 = memref.load %arg2[%c1] : memref<4xf32, #tpu.memory_space<smem>>
    %72 = vector.broadcast %71 : f32 to vector<8x1xf32>
    %73 = arith.mulf %72, %65 : vector<8x1xf32>
    %74 = vector.broadcast %53 : vector<8x1xf32> to vector<8x32xf32>
    %75 = vector.broadcast %70 : vector<1x32xf32> to vector<8x32xf32>
    %76 = arith.mulf %74, %75 : vector<8x32xf32>
    %77 = arith.subf %67, %76 : vector<8x32xf32>
    %78 = vector.broadcast %73 : vector<8x1xf32> to vector<8x32xf32>
    %79 = arith.mulf %78, %77 : vector<8x32xf32>
    %c1_35 = arith.constant 1 : index
    %80 = memref.load %arg3[%c1_35] : memref<4xf32, #tpu.memory_space<smem>>
    %81 = vector.broadcast %80 : f32 to vector<1x32xf32>
    %82 = arith.mulf %81, %70 : vector<1x32xf32>
    %83 = vector.broadcast %82 : vector<1x32xf32> to vector<8x32xf32>
    %84 = arith.addf %79, %83 : vector<8x32xf32>
    %85 = arith.truncf %84 : vector<8x32xf32> to vector<8x32xbf16>
    %c0_36 = arith.constant 0 : index
    %c0_37 = arith.constant 0 : index
    %c64 = arith.constant 64 : index
    %86 = vector.load %arg4[%c0_36, %c0_37, %c64] : memref<1x8x128xbf16, #tpu.memory_space<vmem>>, vector<1x8x32xbf16>
    %87 = vector.shape_cast %86 : vector<1x8x32xbf16> to vector<8x32xbf16>
    %c0_38 = arith.constant 0 : index
    %c0_39 = arith.constant 0 : index
    %c64_40 = arith.constant 64 : index
    %88 = vector.load %arg5[%c0_38, %c0_39, %c64_40] : memref<1x8x128xbf16, #tpu.memory_space<vmem>>, vector<1x8x32xbf16>
    %89 = vector.shape_cast %88 : vector<1x8x32xbf16> to vector<8x32xbf16>
    %c0_41 = arith.constant 0 : index
    %c0_42 = arith.constant 0 : index
    %c64_43 = arith.constant 64 : index
    %90 = vector.load %arg6[%c0_41, %c0_42, %c64_43] : memref<1x8x128xbf16, #tpu.memory_space<vmem>>, vector<1x8x32xbf16>
    %91 = vector.shape_cast %90 : vector<1x8x32xbf16> to vector<8x32xbf16>
    %cst_44 = arith.constant dense<0.000000e+00> : vector<8x8xf32>
    %92 = tpu.matmul %87, %89, %cst_44 {dimension_numbers = #tpu.dot_dimension_numbers<[1], [1], [0], [0], [0, 0, 1, 0], [], []>} : vector<8x32xbf16>, vector<8x32xbf16>, vector<8x8xf32> -> vector<8x8xf32>
    %cst_45 = arith.constant dense<0.000000e+00> : vector<8xf32>
    %93 = vector.multi_reduction <add>, %92, %cst_45 [1] : vector<8x8xf32> to vector<8xf32>
    %94 = vector.shape_cast %93 : vector<8xf32> to vector<8x1xf32>
    %cst_46 = arith.constant 1.250000e-01 : f32
    %95 = vector.broadcast %cst_46 : f32 to vector<8x1xf32>
    %96 = arith.mulf %94, %95 : vector<8x1xf32>
    %97 = arith.mulf %92, %92 : vector<8x8xf32>
    %cst_47 = arith.constant dense<0.000000e+00> : vector<8xf32>
    %98 = vector.multi_reduction <add>, %97, %cst_47 [1] : vector<8x8xf32> to vector<8xf32>
    %99 = vector.shape_cast %98 : vector<8xf32> to vector<8x1xf32>
    %cst_48 = arith.constant 1.250000e-01 : f32
    %100 = vector.broadcast %cst_48 : f32 to vector<8x1xf32>
    %101 = arith.mulf %99, %100 : vector<8x1xf32>
    %102 = arith.mulf %96, %96 : vector<8x1xf32>
    %103 = arith.subf %101, %102 : vector<8x1xf32>
    %cst_49 = arith.constant 0.000000e+00 : f32
    %104 = vector.broadcast %cst_49 : f32 to vector<8x1xf32>
    %105 = arith.maximumf %103, %104 : vector<8x1xf32>
    %cst_50 = arith.constant 1.280000e-06 : f32
    %106 = vector.broadcast %cst_50 : f32 to vector<8x1xf32>
    %107 = arith.addf %105, %106 : vector<8x1xf32>
    %108 = math.rsqrt %107 : vector<8x1xf32>
    %109 = arith.truncf %92 : vector<8x8xf32> to vector<8x8xbf16>
    %cst_51 = arith.constant dense<0.000000e+00> : vector<8x32xf32>
    %110 = tpu.matmul %109, %91, %cst_51 {dimension_numbers = #tpu.dot_dimension_numbers<[1], [0], [0], [1], [0, 0, 1, 1], [], []>} : vector<8x8xbf16>, vector<8x32xbf16>, vector<8x32xf32> -> vector<8x32xf32>
    %111 = arith.extf %91 : vector<8x32xbf16> to vector<8x32xf32>
    %cst_52 = arith.constant dense<0.000000e+00> : vector<32xf32>
    %112 = vector.multi_reduction <add>, %111, %cst_52 [0] : vector<8x32xf32> to vector<32xf32>
    %113 = vector.shape_cast %112 : vector<32xf32> to vector<1x32xf32>
    %c2 = arith.constant 2 : index
    %114 = memref.load %arg2[%c2] : memref<4xf32, #tpu.memory_space<smem>>
    %115 = vector.broadcast %114 : f32 to vector<8x1xf32>
    %116 = arith.mulf %115, %108 : vector<8x1xf32>
    %117 = vector.broadcast %96 : vector<8x1xf32> to vector<8x32xf32>
    %118 = vector.broadcast %113 : vector<1x32xf32> to vector<8x32xf32>
    %119 = arith.mulf %117, %118 : vector<8x32xf32>
    %120 = arith.subf %110, %119 : vector<8x32xf32>
    %121 = vector.broadcast %116 : vector<8x1xf32> to vector<8x32xf32>
    %122 = arith.mulf %121, %120 : vector<8x32xf32>
    %c2_53 = arith.constant 2 : index
    %123 = memref.load %arg3[%c2_53] : memref<4xf32, #tpu.memory_space<smem>>
    %124 = vector.broadcast %123 : f32 to vector<1x32xf32>
    %125 = arith.mulf %124, %113 : vector<1x32xf32>
    %126 = vector.broadcast %125 : vector<1x32xf32> to vector<8x32xf32>
    %127 = arith.addf %122, %126 : vector<8x32xf32>
    %128 = arith.truncf %127 : vector<8x32xf32> to vector<8x32xbf16>
    %c0_54 = arith.constant 0 : index
    %c0_55 = arith.constant 0 : index
    %c96 = arith.constant 96 : index
    %129 = vector.load %arg4[%c0_54, %c0_55, %c96] : memref<1x8x128xbf16, #tpu.memory_space<vmem>>, vector<1x8x32xbf16>
    %130 = vector.shape_cast %129 : vector<1x8x32xbf16> to vector<8x32xbf16>
    %c0_56 = arith.constant 0 : index
    %c0_57 = arith.constant 0 : index
    %c96_58 = arith.constant 96 : index
    %131 = vector.load %arg5[%c0_56, %c0_57, %c96_58] : memref<1x8x128xbf16, #tpu.memory_space<vmem>>, vector<1x8x32xbf16>
    %132 = vector.shape_cast %131 : vector<1x8x32xbf16> to vector<8x32xbf16>
    %c0_59 = arith.constant 0 : index
    %c0_60 = arith.constant 0 : index
    %c96_61 = arith.constant 96 : index
    %133 = vector.load %arg6[%c0_59, %c0_60, %c96_61] : memref<1x8x128xbf16, #tpu.memory_space<vmem>>, vector<1x8x32xbf16>
    %134 = vector.shape_cast %133 : vector<1x8x32xbf16> to vector<8x32xbf16>
    %cst_62 = arith.constant dense<0.000000e+00> : vector<8x8xf32>
    %135 = tpu.matmul %130, %132, %cst_62 {dimension_numbers = #tpu.dot_dimension_numbers<[1], [1], [0], [0], [0, 0, 1, 0], [], []>} : vector<8x32xbf16>, vector<8x32xbf16>, vector<8x8xf32> -> vector<8x8xf32>
    %cst_63 = arith.constant dense<0.000000e+00> : vector<8xf32>
    %136 = vector.multi_reduction <add>, %135, %cst_63 [1] : vector<8x8xf32> to vector<8xf32>
    %137 = vector.shape_cast %136 : vector<8xf32> to vector<8x1xf32>
    %cst_64 = arith.constant 1.250000e-01 : f32
    %138 = vector.broadcast %cst_64 : f32 to vector<8x1xf32>
    %139 = arith.mulf %137, %138 : vector<8x1xf32>
    %140 = arith.mulf %135, %135 : vector<8x8xf32>
    %cst_65 = arith.constant dense<0.000000e+00> : vector<8xf32>
    %141 = vector.multi_reduction <add>, %140, %cst_65 [1] : vector<8x8xf32> to vector<8xf32>
    %142 = vector.shape_cast %141 : vector<8xf32> to vector<8x1xf32>
    %cst_66 = arith.constant 1.250000e-01 : f32
    %143 = vector.broadcast %cst_66 : f32 to vector<8x1xf32>
    %144 = arith.mulf %142, %143 : vector<8x1xf32>
    %145 = arith.mulf %139, %139 : vector<8x1xf32>
    %146 = arith.subf %144, %145 : vector<8x1xf32>
    %cst_67 = arith.constant 0.000000e+00 : f32
    %147 = vector.broadcast %cst_67 : f32 to vector<8x1xf32>
    %148 = arith.maximumf %146, %147 : vector<8x1xf32>
    %cst_68 = arith.constant 1.280000e-06 : f32
    %149 = vector.broadcast %cst_68 : f32 to vector<8x1xf32>
    %150 = arith.addf %148, %149 : vector<8x1xf32>
    %151 = math.rsqrt %150 : vector<8x1xf32>
    %152 = arith.truncf %135 : vector<8x8xf32> to vector<8x8xbf16>
    %cst_69 = arith.constant dense<0.000000e+00> : vector<8x32xf32>
    %153 = tpu.matmul %152, %134, %cst_69 {dimension_numbers = #tpu.dot_dimension_numbers<[1], [0], [0], [1], [0, 0, 1, 1], [], []>} : vector<8x8xbf16>, vector<8x32xbf16>, vector<8x32xf32> -> vector<8x32xf32>
    %154 = arith.extf %134 : vector<8x32xbf16> to vector<8x32xf32>
    %cst_70 = arith.constant dense<0.000000e+00> : vector<32xf32>
    %155 = vector.multi_reduction <add>, %154, %cst_70 [0] : vector<8x32xf32> to vector<32xf32>
    %156 = vector.shape_cast %155 : vector<32xf32> to vector<1x32xf32>
    %c3 = arith.constant 3 : index
    %157 = memref.load %arg2[%c3] : memref<4xf32, #tpu.memory_space<smem>>
    %158 = vector.broadcast %157 : f32 to vector<8x1xf32>
    %159 = arith.mulf %158, %151 : vector<8x1xf32>
    %160 = vector.broadcast %139 : vector<8x1xf32> to vector<8x32xf32>
    %161 = vector.broadcast %156 : vector<1x32xf32> to vector<8x32xf32>
    %162 = arith.mulf %160, %161 : vector<8x32xf32>
    %163 = arith.subf %153, %162 : vector<8x32xf32>
    %164 = vector.broadcast %159 : vector<8x1xf32> to vector<8x32xf32>
    %165 = arith.mulf %164, %163 : vector<8x32xf32>
    %c3_71 = arith.constant 3 : index
    %166 = memref.load %arg3[%c3_71] : memref<4xf32, #tpu.memory_space<smem>>
    %167 = vector.broadcast %166 : f32 to vector<1x32xf32>
    %168 = arith.mulf %167, %156 : vector<1x32xf32>
    %169 = vector.broadcast %168 : vector<1x32xf32> to vector<8x32xf32>
    %170 = arith.addf %165, %169 : vector<8x32xf32>
    %171 = arith.truncf %170 : vector<8x32xf32> to vector<8x32xbf16>
    %172 = tpu.concatenate %42, %85, %128, %171 in 1 : vector<8x32xbf16>, vector<8x32xbf16>, vector<8x32xbf16>, vector<8x32xbf16> -> vector<8x128xbf16>
    %c0_72 = arith.constant 0 : index
    %c0_73 = arith.constant 0 : index
    %c0_74 = arith.constant 0 : index
    %173 = vector.load %arg7[%c0_72, %c0_73, %c0_74] : memref<1x8x128xbf16, #tpu.memory_space<vmem>>, vector<1x8x128xbf16>
    %174 = vector.shape_cast %173 : vector<1x8x128xbf16> to vector<8x128xbf16>
    %175 = vector.shape_cast %172 : vector<8x128xbf16> to vector<1x8x128xbf16>
    tpu.vector_store %arg7[%c0_72, %c0_73, %c0_74], %175 {strides = array<i32>} : memref<1x8x128xbf16, #tpu.memory_space<vmem>>, vector<1x8x128xbf16>,
    return
  }
  func.func @transform_0(%arg0: i32, %arg1: i32) -> i32 {
    %c0_i32 = arith.constant 0 : i32
    %c0_i32_0 = arith.constant 0 : i32
    return %c0_i32 : i32
  }
  func.func @transform_1(%arg0: i32, %arg1: i32) -> i32 {
    %c0_i32 = arith.constant 0 : i32
    %c0_i32_0 = arith.constant 0 : i32
    return %c0_i32 : i32
  }
  func.func @transform_2(%arg0: i32, %arg1: i32) -> (i32, i32, i32) {
    %c0_i32 = arith.constant 0 : i32
    %c0_i32_0 = arith.constant 0 : i32
    return %arg0, %arg1, %c0_i32 : i32, i32, i32
  }
  func.func @transform_3(%arg0: i32, %arg1: i32) -> (i32, i32, i32) {
    %c0_i32 = arith.constant 0 : i32
    %c1_i32 = arith.constant 1 : i32
    %c0_i32_0 = arith.constant 0 : i32
    return %arg0, %c0_i32, %c1_i32 : i32, i32, i32
  }
  func.func @transform_4(%arg0: i32, %arg1: i32) -> (i32, i32, i32) {
    %c0_i32 = arith.constant 0 : i32
    %c2_i32 = arith.constant 2 : i32
    %c0_i32_0 = arith.constant 0 : i32
    return %arg0, %c0_i32, %c2_i32 : i32, i32, i32
  }
  func.func @transform_5(%arg0: i32, %arg1: i32) -> (i32, i32, i32) {
    %c0_i32 = arith.constant 0 : i32
    %c0_i32_0 = arith.constant 0 : i32
    return %arg0, %arg1, %c0_i32 : i32, i32, i32
  }
}

module attributes {stable_mosaic.version = 11 : i64} {
  func.func @_matmul_bias_kernel(%arg0: i32, %arg1: i32, %arg2: i32, %arg3: memref<16x128xbf16, #tpu.memory_space<vmem>>, %arg4: memref<128x256xbf16, #tpu.memory_space<vmem>>, %arg5: memref<1x256xf32, #tpu.memory_space<vmem>>, %arg6: memref<16x256xf32, #tpu.memory_space<vmem>>, %arg7: memref<16x256xf32, #tpu.memory_space<vmem>>) attributes {dimension_semantics = [#tpu.dimension_semantics<parallel>, #tpu.dimension_semantics<parallel>, #tpu.dimension_semantics<arbitrary>], iteration_bounds = array<i64: 1, 1, 1>, scalar_prefetch = 0 : i64, scratch_operands = 1 : i64, tpu.core_type = #tpu.core_type<tc>, window_params = [{transform_indices = @transform_0, window_bounds = array<i64: 16, 128>}, {transform_indices = @transform_1, window_bounds = array<i64: 128, 256>}, {transform_indices = @transform_2, window_bounds = array<i64: 1, 256>}, {transform_indices = @transform_3, window_bounds = array<i64: 16, 256>}]} {
    %c0_i32 = arith.constant 0 : i32
    %0 = arith.cmpi eq, %arg2, %c0_i32 : i32
    %1 = arith.extui %0 : i1 to i32
    %c0_i32_0 = arith.constant 0 : i32
    %2 = arith.cmpi ne, %1, %c0_i32_0 : i32
    scf.if %2 {
      %cst_10 = arith.constant 0.000000e+00 : f32
      %12 = vector.broadcast %cst_10 : f32 to vector<16x256xf32>
      %c0_11 = arith.constant 0 : index
      %c0_12 = arith.constant 0 : index
      %13 = vector.load %arg7[%c0_11, %c0_12] : memref<16x256xf32, #tpu.memory_space<vmem>>, vector<16x256xf32>
      tpu.vector_store %arg7[%c0_11, %c0_12], %12 {strides = array<i32>} : memref<16x256xf32, #tpu.memory_space<vmem>>, vector<16x256xf32>,
    } else {
    }
    %c0 = arith.constant 0 : index
    %c0_1 = arith.constant 0 : index
    %3 = vector.load %arg7[%c0, %c0_1] : memref<16x256xf32, #tpu.memory_space<vmem>>, vector<16x256xf32>
    %c0_2 = arith.constant 0 : index
    %c0_3 = arith.constant 0 : index
    %4 = vector.load %arg3[%c0_2, %c0_3] : memref<16x128xbf16, #tpu.memory_space<vmem>>, vector<16x128xbf16>
    %c0_4 = arith.constant 0 : index
    %c0_5 = arith.constant 0 : index
    %5 = vector.load %arg4[%c0_4, %c0_5] : memref<128x256xbf16, #tpu.memory_space<vmem>>, vector<128x256xbf16>
    %cst = arith.constant dense<0.000000e+00> : vector<16x256xf32>
    %6 = tpu.matmul %4, %5, %cst {dimension_numbers = #tpu.dot_dimension_numbers<[1], [0], [0], [1], [0, 0, 1, 1], [], []>} : vector<16x128xbf16>, vector<128x256xbf16>, vector<16x256xf32> -> vector<16x256xf32>
    %7 = arith.addf %3, %6 : vector<16x256xf32>
    %c0_6 = arith.constant 0 : index
    %c0_7 = arith.constant 0 : index
    %8 = vector.load %arg7[%c0_6, %c0_7] : memref<16x256xf32, #tpu.memory_space<vmem>>, vector<16x256xf32>
    tpu.vector_store %arg7[%c0_6, %c0_7], %7 {strides = array<i32>} : memref<16x256xf32, #tpu.memory_space<vmem>>, vector<16x256xf32>,
    %c0_i32_8 = arith.constant 0 : i32
    %9 = arith.cmpi eq, %arg2, %c0_i32_8 : i32
    %10 = arith.extui %9 : i1 to i32
    %c0_i32_9 = arith.constant 0 : i32
    %11 = arith.cmpi ne, %10, %c0_i32_9 : i32
    scf.if %11 {
      %c0_10 = arith.constant 0 : index
      %c0_11 = arith.constant 0 : index
      %12 = vector.load %arg7[%c0_10, %c0_11] : memref<16x256xf32, #tpu.memory_space<vmem>>, vector<16x256xf32>
      %c0_12 = arith.constant 0 : index
      %c0_13 = arith.constant 0 : index
      %13 = vector.load %arg5[%c0_12, %c0_13] : memref<1x256xf32, #tpu.memory_space<vmem>>, vector<1x256xf32>
      %14 = vector.broadcast %13 : vector<1x256xf32> to vector<16x256xf32>
      %15 = arith.addf %12, %14 : vector<16x256xf32>
      %c0_14 = arith.constant 0 : index
      %c0_15 = arith.constant 0 : index
      %16 = vector.load %arg6[%c0_14, %c0_15] : memref<16x256xf32, #tpu.memory_space<vmem>>, vector<16x256xf32>
      tpu.vector_store %arg6[%c0_14, %c0_15], %15 {strides = array<i32>} : memref<16x256xf32, #tpu.memory_space<vmem>>, vector<16x256xf32>,
    } else {
    }
    return
  }
  func.func @transform_0(%arg0: i32, %arg1: i32, %arg2: i32) -> (i32, i32) {
    %c0_i32 = arith.constant 0 : i32
    return %arg0, %arg2 : i32, i32
  }
  func.func @transform_1(%arg0: i32, %arg1: i32, %arg2: i32) -> (i32, i32) {
    %c0_i32 = arith.constant 0 : i32
    return %arg2, %arg1 : i32, i32
  }
  func.func @transform_2(%arg0: i32, %arg1: i32, %arg2: i32) -> (i32, i32) {
    %c0_i32 = arith.constant 0 : i32
    %c0_i32_0 = arith.constant 0 : i32
    return %c0_i32, %arg1 : i32, i32
  }
  func.func @transform_3(%arg0: i32, %arg1: i32, %arg2: i32) -> (i32, i32) {
    %c0_i32 = arith.constant 0 : i32
    return %arg0, %arg1 : i32, i32
  }
}

module attributes {stable_mosaic.version = 11 : i64} {
  func.func @_ffn_kernel(%arg0: i32, %arg1: i32, %arg2: memref<16x128xf32, #tpu.memory_space<vmem>>, %arg3: memref<1x128xf32, #tpu.memory_space<vmem>>, %arg4: memref<1x128xf32, #tpu.memory_space<vmem>>, %arg5: memref<128x512xbf16, #tpu.memory_space<vmem>>, %arg6: memref<1x512xf32, #tpu.memory_space<vmem>>, %arg7: memref<512x128xbf16, #tpu.memory_space<vmem>>, %arg8: memref<1x128xf32, #tpu.memory_space<vmem>>, %arg9: memref<16x128xf32, #tpu.memory_space<vmem>>, %arg10: memref<16x128xbf16, #tpu.memory_space<vmem>>, %arg11: memref<16x128xf32, #tpu.memory_space<vmem>>) attributes {dimension_semantics = [#tpu.dimension_semantics<parallel>, #tpu.dimension_semantics<arbitrary>], iteration_bounds = array<i64: 1, 1>, scalar_prefetch = 0 : i64, scratch_operands = 2 : i64, tpu.core_type = #tpu.core_type<tc>, window_params = [{transform_indices = @transform_0, window_bounds = array<i64: 16, 128>}, {pipeline_mode = #tpu.pipeline_mode<synchronous>, transform_indices = @transform_1, window_bounds = array<i64: 1, 128>}, {pipeline_mode = #tpu.pipeline_mode<synchronous>, transform_indices = @transform_2, window_bounds = array<i64: 1, 128>}, {transform_indices = @transform_3, window_bounds = array<i64: 128, 512>}, {transform_indices = @transform_4, window_bounds = array<i64: 1, 512>}, {transform_indices = @transform_5, window_bounds = array<i64: 512, 128>}, {pipeline_mode = #tpu.pipeline_mode<synchronous>, transform_indices = @transform_6, window_bounds = array<i64: 1, 128>}, {transform_indices = @transform_7, window_bounds = array<i64: 16, 128>}]} {
    %c0_i32 = arith.constant 0 : i32
    %0 = arith.cmpi eq, %arg1, %c0_i32 : i32
    %1 = arith.extui %0 : i1 to i32
    %c0_i32_0 = arith.constant 0 : i32
    %2 = arith.cmpi ne, %1, %c0_i32_0 : i32
    scf.if %2 {
      %c0_30 = arith.constant 0 : index
      %c0_31 = arith.constant 0 : index
      %58 = vector.load %arg2[%c0_30, %c0_31] : memref<16x128xf32, #tpu.memory_space<vmem>>, vector<16x128xf32>
      %cst_32 = arith.constant dense<0.000000e+00> : vector<16xf32>
      %59 = vector.multi_reduction <add>, %58, %cst_32 [1] : vector<16x128xf32> to vector<16xf32>
      %60 = vector.shape_cast %59 : vector<16xf32> to vector<16x1xf32>
      %cst_33 = arith.constant 1.280000e+02 : f32
      %61 = vector.broadcast %cst_33 : f32 to vector<16x1xf32>
      %62 = arith.divf %60, %61 : vector<16x1xf32>
      %63 = vector.broadcast %62 : vector<16x1xf32> to vector<16x128xf32>
      %64 = arith.subf %58, %63 : vector<16x128xf32>
      %65 = arith.mulf %64, %64 : vector<16x128xf32>
      %cst_34 = arith.constant dense<0.000000e+00> : vector<16xf32>
      %66 = vector.multi_reduction <add>, %65, %cst_34 [1] : vector<16x128xf32> to vector<16xf32>
      %67 = vector.shape_cast %66 : vector<16xf32> to vector<16x1xf32>
      %cst_35 = arith.constant 1.280000e+02 : f32
      %68 = vector.broadcast %cst_35 : f32 to vector<16x1xf32>
      %69 = arith.divf %67, %68 : vector<16x1xf32>
      %cst_36 = arith.constant 9.99999974E-6 : f32
      %70 = vector.broadcast %cst_36 : f32 to vector<16x1xf32>
      %71 = arith.addf %69, %70 : vector<16x1xf32>
      %72 = math.rsqrt %71 : vector<16x1xf32>
      %c0_37 = arith.constant 0 : index
      %c0_38 = arith.constant 0 : index
      %73 = vector.load %arg3[%c0_37, %c0_38] : memref<1x128xf32, #tpu.memory_space<vmem>>, vector<1x128xf32>
      %74 = vector.broadcast %72 : vector<16x1xf32> to vector<16x128xf32>
      %75 = vector.broadcast %73 : vector<1x128xf32> to vector<16x128xf32>
      %76 = arith.mulf %74, %75 : vector<16x128xf32>
      %77 = arith.mulf %64, %76 : vector<16x128xf32>
      %c0_39 = arith.constant 0 : index
      %c0_40 = arith.constant 0 : index
      %78 = vector.load %arg4[%c0_39, %c0_40] : memref<1x128xf32, #tpu.memory_space<vmem>>, vector<1x128xf32>
      %79 = vector.broadcast %78 : vector<1x128xf32> to vector<16x128xf32>
      %80 = arith.addf %77, %79 : vector<16x128xf32>
      %81 = arith.truncf %80 : vector<16x128xf32> to vector<16x128xbf16>
      %c0_41 = arith.constant 0 : index
      %c0_42 = arith.constant 0 : index
      %82 = vector.load %arg10[%c0_41, %c0_42] : memref<16x128xbf16, #tpu.memory_space<vmem>>, vector<16x128xbf16>
      tpu.vector_store %arg10[%c0_41, %c0_42], %81 {strides = array<i32>} : memref<16x128xbf16, #tpu.memory_space<vmem>>, vector<16x128xbf16>,
      %cst_43 = arith.constant 0.000000e+00 : f32
      %83 = vector.broadcast %cst_43 : f32 to vector<16x128xf32>
      %c0_44 = arith.constant 0 : index
      %c0_45 = arith.constant 0 : index
      %84 = vector.load %arg11[%c0_44, %c0_45] : memref<16x128xf32, #tpu.memory_space<vmem>>, vector<16x128xf32>
      tpu.vector_store %arg11[%c0_44, %c0_45], %83 {strides = array<i32>} : memref<16x128xf32, #tpu.memory_space<vmem>>, vector<16x128xf32>,
    } else {
    }
    %c0 = arith.constant 0 : index
    %c0_1 = arith.constant 0 : index
    %3 = vector.load %arg10[%c0, %c0_1] : memref<16x128xbf16, #tpu.memory_space<vmem>>, vector<16x128xbf16>
    %c0_2 = arith.constant 0 : index
    %c0_3 = arith.constant 0 : index
    %4 = vector.load %arg5[%c0_2, %c0_3] : memref<128x512xbf16, #tpu.memory_space<vmem>>, vector<128x512xbf16>
    %cst = arith.constant dense<0.000000e+00> : vector<16x512xf32>
    %5 = tpu.matmul %3, %4, %cst {dimension_numbers = #tpu.dot_dimension_numbers<[1], [0], [0], [1], [0, 0, 1, 1], [], []>} : vector<16x128xbf16>, vector<128x512xbf16>, vector<16x512xf32> -> vector<16x512xf32>
    %c0_4 = arith.constant 0 : index
    %c0_5 = arith.constant 0 : index
    %6 = vector.load %arg6[%c0_4, %c0_5] : memref<1x512xf32, #tpu.memory_space<vmem>>, vector<1x512xf32>
    %7 = vector.broadcast %6 : vector<1x512xf32> to vector<16x512xf32>
    %8 = arith.addf %5, %7 : vector<16x512xf32>
    %cst_6 = arith.constant 0.707106769 : f32
    %9 = vector.broadcast %cst_6 : f32 to vector<16x512xf32>
    %10 = arith.mulf %8, %9 : vector<16x512xf32>
    %11 = math.absf %10 : vector<16x512xf32>
    %cst_7 = arith.constant 0.327591091 : f32
    %12 = vector.broadcast %cst_7 : f32 to vector<16x512xf32>
    %13 = arith.mulf %12, %11 : vector<16x512xf32>
    %cst_8 = arith.constant 1.000000e+00 : f32
    %14 = vector.broadcast %cst_8 : f32 to vector<16x512xf32>
    %15 = arith.addf %14, %13 : vector<16x512xf32>
    %cst_9 = arith.constant 1.000000e+00 : f32
    %16 = vector.broadcast %cst_9 : f32 to vector<16x512xf32>
    %17 = arith.divf %16, %15 : vector<16x512xf32>
    %cst_10 = arith.constant 1.06140542 : f32
    %18 = vector.broadcast %cst_10 : f32 to vector<16x512xf32>
    %19 = arith.mulf %17, %18 : vector<16x512xf32>
    %cst_11 = arith.constant -1.45315206 : f32
    %20 = vector.broadcast %cst_11 : f32 to vector<16x512xf32>
    %21 = arith.addf %20, %19 : vector<16x512xf32>
    %22 = arith.mulf %17, %21 : vector<16x512xf32>
    %cst_12 = arith.constant 1.42141378 : f32
    %23 = vector.broadcast %cst_12 : f32 to vector<16x512xf32>
    %24 = arith.addf %23, %22 : vector<16x512xf32>
    %25 = arith.mulf %17, %24 : vector<16x512xf32>
    %cst_13 = arith.constant -0.284496725 : f32
    %26 = vector.broadcast %cst_13 : f32 to vector<16x512xf32>
    %27 = arith.addf %26, %25 : vector<16x512xf32>
    %28 = arith.mulf %17, %27 : vector<16x512xf32>
    %cst_14 = arith.constant 0.254829586 : f32
    %29 = vector.broadcast %cst_14 : f32 to vector<16x512xf32>
    %30 = arith.addf %29, %28 : vector<16x512xf32>
    %31 = arith.mulf %17, %30 : vector<16x512xf32>
    %cst_15 = arith.constant 0.000000e+00 : f32
    %32 = vector.broadcast %cst_15 : f32 to vector<16x512xf32>
    %33 = arith.subf %32, %11 : vector<16x512xf32>
    %34 = arith.mulf %33, %11 : vector<16x512xf32>
    %35 = math.exp %34 : vector<16x512xf32>
    %36 = arith.mulf %31, %35 : vector<16x512xf32>
    %cst_16 = arith.constant 1.000000e+00 : f32
    %37 = vector.broadcast %cst_16 : f32 to vector<16x512xf32>
    %38 = arith.subf %37, %36 : vector<16x512xf32>
    %cst_17 = arith.constant 0.000000e+00 : f32
    %39 = vector.broadcast %cst_17 : f32 to vector<16x512xf32>
    %40 = arith.cmpf oge, %10, %39 : vector<16x512xf32>
    %cst_18 = arith.constant 0.000000e+00 : f32
    %41 = vector.broadcast %cst_18 : f32 to vector<16x512xf32>
    %42 = arith.subf %41, %38 : vector<16x512xf32>
    %43 = arith.select %40, %38, %42 : vector<16x512xi1>, vector<16x512xf32>
    %cst_19 = arith.constant 5.000000e-01 : f32
    %44 = vector.broadcast %cst_19 : f32 to vector<16x512xf32>
    %45 = arith.mulf %44, %8 : vector<16x512xf32>
    %cst_20 = arith.constant 1.000000e+00 : f32
    %46 = vector.broadcast %cst_20 : f32 to vector<16x512xf32>
    %47 = arith.addf %46, %43 : vector<16x512xf32>
    %48 = arith.mulf %45, %47 : vector<16x512xf32>
    %c0_21 = arith.constant 0 : index
    %c0_22 = arith.constant 0 : index
    %49 = vector.load %arg11[%c0_21, %c0_22] : memref<16x128xf32, #tpu.memory_space<vmem>>, vector<16x128xf32>
    %50 = arith.truncf %48 : vector<16x512xf32> to vector<16x512xbf16>
    %c0_23 = arith.constant 0 : index
    %c0_24 = arith.constant 0 : index
    %51 = vector.load %arg7[%c0_23, %c0_24] : memref<512x128xbf16, #tpu.memory_space<vmem>>, vector<512x128xbf16>
    %cst_25 = arith.constant dense<0.000000e+00> : vector<16x128xf32>
    %52 = tpu.matmul %50, %51, %cst_25 {dimension_numbers = #tpu.dot_dimension_numbers<[1], [0], [0], [1], [0, 0, 1, 1], [], []>} : vector<16x512xbf16>, vector<512x128xbf16>, vector<16x128xf32> -> vector<16x128xf32>
    %53 = arith.addf %49, %52 : vector<16x128xf32>
    %c0_26 = arith.constant 0 : index
    %c0_27 = arith.constant 0 : index
    %54 = vector.load %arg11[%c0_26, %c0_27] : memref<16x128xf32, #tpu.memory_space<vmem>>, vector<16x128xf32>
    tpu.vector_store %arg11[%c0_26, %c0_27], %53 {strides = array<i32>} : memref<16x128xf32, #tpu.memory_space<vmem>>, vector<16x128xf32>,
    %c0_i32_28 = arith.constant 0 : i32
    %55 = arith.cmpi eq, %arg1, %c0_i32_28 : i32
    %56 = arith.extui %55 : i1 to i32
    %c0_i32_29 = arith.constant 0 : i32
    %57 = arith.cmpi ne, %56, %c0_i32_29 : i32
    scf.if %57 {
      %c0_30 = arith.constant 0 : index
      %c0_31 = arith.constant 0 : index
      %58 = vector.load %arg11[%c0_30, %c0_31] : memref<16x128xf32, #tpu.memory_space<vmem>>, vector<16x128xf32>
      %c0_32 = arith.constant 0 : index
      %c0_33 = arith.constant 0 : index
      %59 = vector.load %arg8[%c0_32, %c0_33] : memref<1x128xf32, #tpu.memory_space<vmem>>, vector<1x128xf32>
      %60 = vector.broadcast %59 : vector<1x128xf32> to vector<16x128xf32>
      %61 = arith.addf %58, %60 : vector<16x128xf32>
      %c0_34 = arith.constant 0 : index
      %c0_35 = arith.constant 0 : index
      %62 = vector.load %arg2[%c0_34, %c0_35] : memref<16x128xf32, #tpu.memory_space<vmem>>, vector<16x128xf32>
      %63 = arith.addf %61, %62 : vector<16x128xf32>
      %c0_36 = arith.constant 0 : index
      %c0_37 = arith.constant 0 : index
      %64 = vector.load %arg9[%c0_36, %c0_37] : memref<16x128xf32, #tpu.memory_space<vmem>>, vector<16x128xf32>
      tpu.vector_store %arg9[%c0_36, %c0_37], %63 {strides = array<i32>} : memref<16x128xf32, #tpu.memory_space<vmem>>, vector<16x128xf32>,
    } else {
    }
    return
  }
  func.func @transform_0(%arg0: i32, %arg1: i32) -> (i32, i32) {
    %c0_i32 = arith.constant 0 : i32
    %c0_i32_0 = arith.constant 0 : i32
    return %arg0, %c0_i32 : i32, i32
  }
  func.func @transform_1(%arg0: i32, %arg1: i32) -> (i32, i32) {
    %c0_i32 = arith.constant 0 : i32
    %c0_i32_0 = arith.constant 0 : i32
    %c0_i32_1 = arith.constant 0 : i32
    return %c0_i32, %c0_i32_0 : i32, i32
  }
  func.func @transform_2(%arg0: i32, %arg1: i32) -> (i32, i32) {
    %c0_i32 = arith.constant 0 : i32
    %c0_i32_0 = arith.constant 0 : i32
    %c0_i32_1 = arith.constant 0 : i32
    return %c0_i32, %c0_i32_0 : i32, i32
  }
  func.func @transform_3(%arg0: i32, %arg1: i32) -> (i32, i32) {
    %c0_i32 = arith.constant 0 : i32
    %c0_i32_0 = arith.constant 0 : i32
    return %c0_i32, %arg1 : i32, i32
  }
  func.func @transform_4(%arg0: i32, %arg1: i32) -> (i32, i32) {
    %c0_i32 = arith.constant 0 : i32
    %c0_i32_0 = arith.constant 0 : i32
    return %c0_i32, %arg1 : i32, i32
  }
  func.func @transform_5(%arg0: i32, %arg1: i32) -> (i32, i32) {
    %c0_i32 = arith.constant 0 : i32
    %c0_i32_0 = arith.constant 0 : i32
    return %arg1, %c0_i32 : i32, i32
  }
  func.func @transform_6(%arg0: i32, %arg1: i32) -> (i32, i32) {
    %c0_i32 = arith.constant 0 : i32
    %c0_i32_0 = arith.constant 0 : i32
    %c0_i32_1 = arith.constant 0 : i32
    return %c0_i32, %c0_i32_0 : i32, i32
  }
  func.func @transform_7(%arg0: i32, %arg1: i32) -> (i32, i32) {
    %c0_i32 = arith.constant 0 : i32
    %c0_i32_0 = arith.constant 0 : i32
    return %arg0, %c0_i32 : i32, i32
  }
}

</mosaic_0001>

<llo_original>
// kernel: transformer_lm_forward.11
$region0: #{transformer_lm_forward.11}
  #allocation0 [shape = 'u32[]', space=smem, size = 0x4, offset = 0x4, fixed_abs, tag = 'smem constant byte address 0x4 - core index']
  #allocation1 [shape = 'u32[144,128]{1,0:T(1,128)}', space=vmem, size = 0x12000, scoped, tag = 'internal scratch']
  #allocation2 [shape = 'f32[16,128]{1,0:T(8,128)}', space=vmem, size = 0x2000, scoped, tag = 'scratch operand']
  %s0 = inlined_call_operand.vmem [shape: bf16[16,128], index: 0, kind: input, shape index: {}]
  %s1 = inlined_call_operand.vmem [shape: bf16[128,128], index: 1, kind: input, shape index: {}]
  %s2 = inlined_call_operand.hbm [shape: f32[1,128], index: 2, kind: input, shape index: {}]
  %s3 = inlined_call_operand.hbm [shape: f32[1,128], index: 3, kind: input, shape index: {}]
  %s4 = inlined_call_operand.hbm [shape: f32[1,128], index: 4, kind: input, shape index: {}]
  %s5 = inlined_call_operand.vmem [shape: f32[16,128], index: 5, kind: input, shape index: {}]
  %s6 = inlined_call_operand.vmem [shape: f32[16,128], index: 6, kind: output, shape index: {}]
  %s7 = sld [smem:[#allocation0]]
  $region54: #{transformer_lm_forward.11} parent=0
    _
  %s9 = ssub.s32 1, %s7
  %s10 = scalar_select 0, %s9, %s7
  $region1: #{transformer_lm_forward.11} parent=0
    #allocation3 [shape = 'u8[512]{0}', space=vmem, size = 0x400, scoped, tag = 'input window, operand 2, single buffered']
    #allocation4 [shape = 's32[1]{0}', space=sflag, size = 0x4, scoped, tag = 'scoped memory for transformer_lm_forward.11']
    #allocation5 [shape = 'u8[512]{0}', space=vmem, size = 0x400, scoped, tag = 'input window, operand 3, single buffered']
    #allocation6 [shape = 's32[1]{0}', space=sflag, size = 0x4, scoped, tag = 'scoped memory for transformer_lm_forward.11']
    #allocation7 [shape = 'u8[512]{0}', space=vmem, size = 0x400, scoped, tag = 'input window, operand 4, single buffered']
    %11 = vsyncpa [#allocation4], 0
    %12 = vsyncpa [#allocation6], 0
    // Predicated region
    $region2: #{transformer_lm_forward.11} parent=1 // pred_check
      _
    $region3: #{transformer_lm_forward.11} parent=1 // pred_check_branch
      %14 = sbr.rel (0) target = $region5
    $region4: #{transformer_lm_forward.11} parent=1 // pred_region
      _
    $region5: #{transformer_lm_forward.11} parent=1 // pred_fallthru
      _
    // Predicated region
    $region6: #{transformer_lm_forward.11} parent=1 // pred_check
      _
    $region7: #{transformer_lm_forward.11} parent=1 // pred_check_branch
      %16 = sbr.rel (0) target = $region9
    $region8: #{transformer_lm_forward.11} parent=1 // pred_region
      _
    $region9: #{transformer_lm_forward.11} parent=1 // pred_fallthru
      _
    // Predicated region
    $region10: #{transformer_lm_forward.11} parent=1 // pred_check
      _
    $region11: #{transformer_lm_forward.11} parent=1 // pred_check_branch
      %18 = sbr.rel (0) target = $region13
    $region12: #{transformer_lm_forward.11} parent=1 // pred_region
      %s20 = ssub.s32 16, 16
      %21 = vsyncadd [#allocation4], %s20
      %s23 = sshll.u32 [#allocation3], 4
      %s24 = int_to_ptr.vmem [resolvable:$true] %s23
      %26 = dma.hbm_to_vmem [thread:$0]  %s2, 16, %s24, [#allocation4]
    $region13: #{transformer_lm_forward.11} parent=1 // pred_fallthru
      _
    // Predicated region
    $region14: #{transformer_lm_forward.11} parent=1 // pred_check
      _
    $region15: #{transformer_lm_forward.11} parent=1 // pred_check_branch
      %28 = sbr.rel (0) target = $region17
    $region16: #{transformer_lm_forward.11} parent=1 // pred_region
      %s30 = ssub.s32 16, 16
      %31 = vsyncadd [#allocation6], %s30
      %s33 = sshll.u32 [#allocation5], 4
      %s34 = int_to_ptr.vmem [resolvable:$true] %s33
      %36 = dma.hbm_to_vmem [thread:$0]  %s3, 16, %s34, [#allocation6]
    $region17: #{transformer_lm_forward.11} parent=1 // pred_fallthru
      _
    // Predicated region
    $region18: #{transformer_lm_forward.11} parent=1 // pred_check
      _
    $region19: #{transformer_lm_forward.11} parent=1 // pred_check_branch
      %38 = sbr.rel (0) target = $region21
    $region20: #{transformer_lm_forward.11} parent=1 // pred_region
      %s40 = ssub.s32 16, 16
      %41 = vsyncadd [#allocation6], %s40
      %s43 = sshll.u32 [#allocation7], 4
      %s44 = int_to_ptr.vmem [resolvable:$true] %s43
      %46 = dma.hbm_to_vmem [thread:$0]  %s4, 16, %s44, [#allocation6]
    $region21: #{transformer_lm_forward.11} parent=1 // pred_fallthru
      _
    // Predicated region
    $region22: #{transformer_lm_forward.11} parent=1 // pred_check
      _
    $region23: #{transformer_lm_forward.11} parent=1 // pred_check_branch
      %48 = sbr.rel (0) target = $region25
    $region24: #{transformer_lm_forward.11} parent=1 // pred_region
      _
    $region25: #{transformer_lm_forward.11} parent=1 // pred_fallthru
      _
    // Predicated region
    $region26: #{transformer_lm_forward.11} parent=1 // pred_check
      _
    $region27: #{transformer_lm_forward.11} parent=1 // pred_check_branch
      %50 = sbr.rel (0) target = $region29
    $region28: #{transformer_lm_forward.11} parent=1 // pred_region
      %51 = dma.done [#allocation4], 16
    $region29: #{transformer_lm_forward.11} parent=1 // pred_fallthru
      _
    // Predicated region
    $region30: #{transformer_lm_forward.11} parent=1 // pred_check
      _
    $region31: #{transformer_lm_forward.11} parent=1 // pred_check_branch
      %53 = sbr.rel (0) target = $region33
    $region32: #{transformer_lm_forward.11} parent=1 // pred_region
      %54 = dma.done [#allocation6], 16
    $region33: #{transformer_lm_forward.11} parent=1 // pred_fallthru
      _
    // Predicated region
    $region34: #{transformer_lm_forward.11} parent=1 // pred_check
      _
    $region35: #{transformer_lm_forward.11} parent=1 // pred_check_branch
      %56 = sbr.rel (0) target = $region37
    $region36: #{transformer_lm_forward.11} parent=1 // pred_region
      %57 = dma.done [#allocation6], 16
    $region37: #{transformer_lm_forward.11} parent=1 // pred_fallthru
      _
    %p59 = scmp.eq.s32.totalorder 0, 0
    // Predicated region
    $region38: #{transformer_lm_forward.11} parent=1 // pred_check
      %p60 = pneg %p59
    $region39: #{transformer_lm_forward.11} parent=1 // pred_check_branch
      %62 = sbr.rel (%p60) target = $region41
    $region40: #{transformer_lm_forward.11} parent=1 // pred_region
      %63 = vst [vmem:[#allocation2] sm:$0xff] 0.0
      %64 = vst [vmem:[#allocation2 + $0x8] sm:$0xff] 0.0
    $region41: #{transformer_lm_forward.11} parent=1 // pred_fallthru
      _
    %v65 = vld [vmem:[#allocation2] sm:$0xff]
    %v66 = vld [vmem:[#allocation2 + $0x8] sm:$0xff]
    %v67 = vld [vmem:[%s0] sm:$0xf]
    %v68 = vld [vmem:[%s0 + $0x4] sm:$0xf]
    %v69 = vld [vmem:[%s1] sm:$0xf]
    %v70 = vld [vmem:[%s1 + $0x4] sm:$0xf]
    %v71 = vld [vmem:[%s1 + $0x8] sm:$0xf]
    %v72 = vld [vmem:[%s1 + $0xc] sm:$0xf]
    %v73 = vld [vmem:[%s1 + $0x10] sm:$0xf]
    %v74 = vld [vmem:[%s1 + $0x14] sm:$0xf]
    %v75 = vld [vmem:[%s1 + $0x18] sm:$0xf]
    %v76 = vld [vmem:[%s1 + $0x1c] sm:$0xf]
    %v77 = vld [vmem:[%s1 + $0x20] sm:$0xf]
    %v78 = vld [vmem:[%s1 + $0x24] sm:$0xf]
    %v79 = vld [vmem:[%s1 + $0x28] sm:$0xf]
    %v80 = vld [vmem:[%s1 + $0x2c] sm:$0xf]
    %v81 = vld [vmem:[%s1 + $0x30] sm:$0xf]
    %v82 = vld [vmem:[%s1 + $0x34] sm:$0xf]
    %v83 = vld [vmem:[%s1 + $0x38] sm:$0xf]
    %v84 = vld [vmem:[%s1 + $0x3c] sm:$0xf]
    %v87 = vunpack.c.l.b16 %v67
    %v88 = vunpack.c.l.b16 %v68
    %v89 = vpack.c.b16 %v88, %v87
    %v107 = vunpack.c.l.b16 %v69
    %v108 = vunpack.c.l.b16 %v70
    %v109 = vunpack.c.l.b16 %v71
    %v110 = vunpack.c.l.b16 %v72
    %v111 = vunpack.c.l.b16 %v73
    %v112 = vunpack.c.l.b16 %v74
    %v113 = vunpack.c.l.b16 %v75
    %v114 = vunpack.c.l.b16 %v76
    %v115 = vunpack.c.l.b16 %v77
    %v116 = vunpack.c.l.b16 %v78
    %v117 = vunpack.c.l.b16 %v79
    %v118 = vunpack.c.l.b16 %v80
    %v119 = vunpack.c.l.b16 %v81
    %v120 = vunpack.c.l.b16 %v82
    %v121 = vunpack.c.l.b16 %v83
    %v122 = vunpack.c.l.b16 %v84
    %v123 = vpack.c.b16 %v108, %v107
    %v124 = vpack.c.b16 %v110, %v109
    %v125 = vpack.c.b16 %v112, %v111
    %v126 = vpack.c.b16 %v114, %v113
    %v127 = vpack.c.b16 %v116, %v115
    %v128 = vpack.c.b16 %v118, %v117
    %v129 = vpack.c.b16 %v120, %v119
    %v130 = vpack.c.b16 %v122, %v121
    %139 = vmatprep.subr.bf16.mxu0 0
    %140 = vmatpush1.bf16.msra.mxu0 %v123
    %141 = vmatprep.subr.bf16.mxu0 0
    %142 = vmatpush1.bf16.msra.mxu0 %v124
    %143 = vmatprep.subr.bf16.mxu0 0
    %144 = vmatpush1.bf16.msra.mxu0 %v125
    %145 = vmatprep.subr.bf16.mxu0 0
    %146 = vmatpush1.bf16.msra.mxu0 %v126
    %147 = vmatprep.subr.bf16.mxu0 0
    %148 = vmatpush1.bf16.msra.mxu0 %v127
    %149 = vmatprep.subr.bf16.mxu0 0
    %150 = vmatpush1.bf16.msra.mxu0 %v128
    %151 = vmatprep.subr.bf16.mxu0 0
    %152 = vmatpush1.bf16.msra.mxu0 %v129
    %153 = vmatprep.subr.bf16.mxu0 0
    %154 = vmatpush1.bf16.msra.mxu0 %v130
    %155 = vmatprep.subr.bf16.mxu0 0
    %156 = vmatpush1.bf16.msra.mxu0 0
    %157 = vmatprep.subr.bf16.mxu0 0
    %158 = vmatpush1.bf16.msra.mxu0 0
    %159 = vmatprep.subr.bf16.mxu0 0
    %160 = vmatpush1.bf16.msra.mxu0 0
    %161 = vmatprep.subr.bf16.mxu0 0
    %162 = vmatpush1.bf16.msra.mxu0 0
    %163 = vmatprep.subr.bf16.mxu0 0
    %164 = vmatpush1.bf16.msra.mxu0 0
    %165 = vmatprep.subr.bf16.mxu0 0
    %166 = vmatpush1.bf16.msra.mxu0 0
    %167 = vmatprep.subr.bf16.mxu0 0
    %168 = vmatpush1.bf16.msra.mxu0 0
    %169 = vmatprep.subr.bf16.mxu0 0
    %170 = vmatpush1.bf16.msra.mxu0 0
    %171 = vmatprep.mubr.bf16.mxu0 0
    %172 = vmatmul.mubr.bf16.gmra.mrb[0].mxu0 %v89
    %v173 = vpop.f32.mrb[0].mxu0
    %v174 = vadd.f32 0.0, %v173
    %v175 = vpop.f32.mrb[0].mxu0
    %v176 = vpop.f32.mrb[0].mxu0
    %v177 = vadd.f32 0.0, %v176
    %v178 = vpop.f32.mrb[0].mxu0
    %179 = vdwg.mxu0
    %v180 = vadd.f32 %v65, %v174
    %v181 = vadd.f32 %v66, %v177
    %182 = vst [vmem:[#allocation2] sm:$0xff] %v180
    %183 = vst [vmem:[#allocation2 + $0x8] sm:$0xff] %v181
    // Predicated region
    $region42: #{transformer_lm_forward.11} parent=1 // pred_check
      %p184 = pneg %p59
    $region43: #{transformer_lm_forward.11} parent=1 // pred_check_branch
      %186 = sbr.rel (%p184) target = $region45
    $region44: #{transformer_lm_forward.11} parent=1 // pred_region
      %v187 = vld [vmem:[#allocation2] sm:$0xff]
      %v188 = vld [vmem:[#allocation2 + $0x8] sm:$0xff]
      %v189 = vld [vmem:[#allocation3] sm:$0x1]
      %v191 = vlaneseq
      %v192 = vshrl.u32 %v191, 7
      %v193 = vsub.s32 0, %v192
      %v194 = vrot.slane %v189, %v193
      %v196 = vadd.f32 %v187, %v194
      %v197 = vadd.f32 %v188, %v194
      %198 = vadd.xlane.f32.xlu0 %v196
      %v199 = vpop.xlane.xlu0 %198
      %200 = vadd.xlane.f32.xlu0 %v197
      %v201 = vpop.xlane.xlu0 %200
      %v202 = vrcp.pop 128.0
      %v203 = vmul.f32 %v199, %v202
      %v204 = vmul.f32 %v201, %v202
      %v205 = vsub.f32 %v196, %v203
      %v206 = vsub.f32 %v197, %v204
      %v207 = vmul.f32 %v205, %v205
      %v208 = vmul.f32 %v206, %v206
      %209 = vadd.xlane.f32.xlu0 %v207
      %v210 = vpop.xlane.xlu0 %209
      %211 = vadd.xlane.f32.xlu0 %v208
      %v212 = vpop.xlane.xlu0 %211
      %v213 = vmul.f32 %v210, %v202
      %v214 = vmul.f32 %v212, %v202
      %v215 = vadd.f32 %v213, 1e-05
      %v216 = vadd.f32 %v214, 1e-05
      %v217 = vrsqrt.pop %v215
      %v218 = vrsqrt.pop %v216
      %v219 = vld [vmem:[#allocation5] sm:$0x1]
      %v221 = vlaneseq
      %v222 = vshrl.u32 %v221, 7
      %v223 = vsub.s32 0, %v222
      %v224 = vrot.slane %v219, %v223
      %v226 = vmul.f32 %v217, %v224
      %v227 = vmul.f32 %v218, %v224
      %v228 = vmul.f32 %v205, %v226
      %v229 = vmul.f32 %v206, %v227
      %v230 = vld [vmem:[#allocation7] sm:$0x1]
      %v232 = vlaneseq
      %v233 = vshrl.u32 %v232, 7
      %v234 = vsub.s32 0, %v233
      %v235 = vrot.slane %v230, %v234
      %v237 = vadd.f32 %v228, %v235
      %v238 = vadd.f32 %v229, %v235
      %v239 = vld [vmem:[%s5] sm:$0xff]
      %v240 = vld [vmem:[%s5 + $0x8] sm:$0xff]
      %v241 = vadd.f32 %v237, %v239
      %v242 = vadd.f32 %v238, %v240
      %243 = vst [vmem:[%s6] sm:$0xff] %v241
      %244 = vst [vmem:[%s6 + $0x8] sm:$0xff] %v242
    $region45: #{transformer_lm_forward.11} parent=1 // pred_fallthru
      _
    // Predicated region
    $region46: #{transformer_lm_forward.11} parent=1 // pred_check
      _
    $region47: #{transformer_lm_forward.11} parent=1 // pred_check_branch
      %246 = sbr.rel (0) target = $region49
    $region48: #{transformer_lm_forward.11} parent=1 // pred_region
      _
    $region49: #{transformer_lm_forward.11} parent=1 // pred_fallthru
      _
    // Predicated region
    $region50: #{transformer_lm_forward.11} parent=1 // pred_check
      _
    $region51: #{transformer_lm_forward.11} parent=1 // pred_check_branch
      %248 = sbr.rel (0) target = $region53
    $region52: #{transformer_lm_forward.11} parent=1 // pred_region
      _
    $region53: #{transformer_lm_forward.11} parent=1 // pred_fallthru
      _
    %249 = vsyncpa [#allocation4], 1
    %250 = vsyncpa [#allocation6], 1

// kernel: transformer_lm_forward.9
$region0: #{transformer_lm_forward.9}
  #allocation0 [shape = 'u32[]', space=smem, size = 0x4, offset = 0x4, fixed_abs, tag = 'smem constant byte address 0x4 - core index']
  #allocation1 [shape = 'u32[144,128]{1,0:T(1,128)}', space=vmem, size = 0x12000, scoped, tag = 'internal scratch']
  #allocation2 [shape = 'f32[16,384]{1,0:T(8,128)}', space=vmem, size = 0x6000, scoped, tag = 'scratch operand']
  %s0 = inlined_call_operand.vmem [shape: bf16[16,128], index: 0, kind: input, shape index: {}]
  %s1 = inlined_call_operand.vmem [shape: bf16[128,384], index: 1, kind: input, shape index: {}]
  %s2 = inlined_call_operand.vmem [shape: bf16[16,384], index: 2, kind: output, shape index: {}]
  %s3 = sld [smem:[#allocation0]]
  $region26: #{transformer_lm_forward.9} parent=0
    _
  %s5 = ssub.s32 1, %s3
  %s6 = scalar_select 0, %s5, %s3
  // Predicated region
  $region2: #{transformer_lm_forward.9} parent=0 // pred_check
    _
  $region3: #{transformer_lm_forward.9} parent=0 // pred_check_branch
    %8 = sbr.rel (0) target = $region5
  $region4: #{transformer_lm_forward.9} parent=0 // pred_region
    _
  $region5: #{transformer_lm_forward.9} parent=0 // pred_fallthru
    _
  // Predicated region
  $region6: #{transformer_lm_forward.9} parent=0 // pred_check
    _
  $region7: #{transformer_lm_forward.9} parent=0 // pred_check_branch
    %10 = sbr.rel (0) target = $region9
  $region8: #{transformer_lm_forward.9} parent=0 // pred_region
    _
  $region9: #{transformer_lm_forward.9} parent=0 // pred_fallthru
    _
  %p12 = scmp.eq.s32.totalorder 0, 0
  // Predicated region
  $region10: #{transformer_lm_forward.9} parent=0 // pred_check
    %p13 = pneg %p12
  $region11: #{transformer_lm_forward.9} parent=0 // pred_check_branch
    %15 = sbr.rel (%p13) target = $region13
  $region12: #{transformer_lm_forward.9} parent=0 // pred_region
    %16 = vst [vmem:[#allocation2] sm:$0xff] 0.0
    %17 = vst [vmem:[#allocation2 + $0x8] sm:$0xff] 0.0
    %18 = vst [vmem:[#allocation2 + $0x10] sm:$0xff] 0.0
    %19 = vst [vmem:[#allocation2 + $0x18] sm:$0xff] 0.0
    %20 = vst [vmem:[#allocation2 + $0x20] sm:$0xff] 0.0
    %21 = vst [vmem:[#allocation2 + $0x28] sm:$0xff] 0.0
  $region13: #{transformer_lm_forward.9} parent=0 // pred_fallthru
    _
  %v22 = vld [vmem:[#allocation2] sm:$0xff]
  %v23 = vld [vmem:[#allocation2 + $0x8] sm:$0xff]
  %v24 = vld [vmem:[#allocation2 + $0x10] sm:$0xff]
  %v25 = vld [vmem:[#allocation2 + $0x18] sm:$0xff]
  %v26 = vld [vmem:[#allocation2 + $0x20] sm:$0xff]
  %v27 = vld [vmem:[#allocation2 + $0x28] sm:$0xff]
  %v28 = vld [vmem:[%s0] sm:$0xf]
  %v29 = vld [vmem:[%s0 + $0x4] sm:$0xf]
  %v30 = vld [vmem:[%s1] sm:$0xff]
  %v31 = vld [vmem:[%s1 + $0x8] sm:$0xf]
  %v32 = vld [vmem:[%s1 + $0xc] sm:$0xff]
  %v33 = vld [vmem:[%s1 + $0x14] sm:$0xf]
  %v34 = vld [vmem:[%s1 + $0x18] sm:$0xff]
  %v35 = vld [vmem:[%s1 + $0x20] sm:$0xf]
  %v36 = vld [vmem:[%s1 + $0x24] sm:$0xff]
  %v37 = vld [vmem:[%s1 + $0x2c] sm:$0xf]
  %v38 = vld [vmem:[%s1 + $0x30] sm:$0xff]
  %v39 = vld [vmem:[%s1 + $0x38] sm:$0xf]
  %v40 = vld [vmem:[%s1 + $0x3c] sm:$0xff]
  %v41 = vld [vmem:[%s1 + $0x44] sm:$0xf]
  %v42 = vld [vmem:[%s1 + $0x48] sm:$0xff]
  %v43 = vld [vmem:[%s1 + $0x50] sm:$0xf]
  %v44 = vld [vmem:[%s1 + $0x54] sm:$0xff]
  %v45 = vld [vmem:[%s1 + $0x5c] sm:$0xf]
  %v46 = vld [vmem:[%s1 + $0x60] sm:$0xff]
  %v47 = vld [vmem:[%s1 + $0x68] sm:$0xf]
  %v48 = vld [vmem:[%s1 + $0x6c] sm:$0xff]
  %v49 = vld [vmem:[%s1 + $0x74] sm:$0xf]
  %v50 = vld [vmem:[%s1 + $0x78] sm:$0xff]
  %v51 = vld [vmem:[%s1 + $0x80] sm:$0xf]
  %v52 = vld [vmem:[%s1 + $0x84] sm:$0xff]
  %v53 = vld [vmem:[%s1 + $0x8c] sm:$0xf]
  %v54 = vld [vmem:[%s1 + $0x90] sm:$0xff]
  %v55 = vld [vmem:[%s1 + $0x98] sm:$0xf]
  %v56 = vld [vmem:[%s1 + $0x9c] sm:$0xff]
  %v57 = vld [vmem:[%s1 + $0xa4] sm:$0xf]
  %v58 = vld [vmem:[%s1 + $0xa8] sm:$0xff]
  %v59 = vld [vmem:[%s1 + $0xb0] sm:$0xf]
  %v60 = vld [vmem:[%s1 + $0xb4] sm:$0xff]
  %v61 = vld [vmem:[%s1 + $0xbc] sm:$0xf]
  %v64 = vunpack.c.l.b16 %v28
  %v65 = vunpack.c.l.b16 %v29
  %v66 = vpack.c.b16 %v65, %v64
  %v100 = vunpack.c.l.b16 %v30
  %v101 = vunpack.c.h.b16 %v30
  %v102 = vunpack.c.l.b16 %v31
  %v103 = vunpack.c.l.b16 %v32
  %v104 = vunpack.c.h.b16 %v32
  %v105 = vunpack.c.l.b16 %v33
  %v106 = vunpack.c.l.b16 %v34
  %v107 = vunpack.c.h.b16 %v34
  %v108 = vunpack.c.l.b16 %v35
  %v109 = vunpack.c.l.b16 %v36
  %v110 = vunpack.c.h.b16 %v36
  %v111 = vunpack.c.l.b16 %v37
  %v112 = vunpack.c.l.b16 %v38
  %v113 = vunpack.c.h.b16 %v38
  %v114 = vunpack.c.l.b16 %v39
  %v115 = vunpack.c.l.b16 %v40
  %v116 = vunpack.c.h.b16 %v40
  %v117 = vunpack.c.l.b16 %v41
  %v118 = vunpack.c.l.b16 %v42
  %v119 = vunpack.c.h.b16 %v42
  %v120 = vunpack.c.l.b16 %v43
  %v121 = vunpack.c.l.b16 %v44
  %v122 = vunpack.c.h.b16 %v44
  %v123 = vunpack.c.l.b16 %v45
  %v124 = vunpack.c.l.b16 %v46
  %v125 = vunpack.c.h.b16 %v46
  %v126 = vunpack.c.l.b16 %v47
  %v127 = vunpack.c.l.b16 %v48
  %v128 = vunpack.c.h.b16 %v48
  %v129 = vunpack.c.l.b16 %v49
  %v130 = vunpack.c.l.b16 %v50
  %v131 = vunpack.c.h.b16 %v50
  %v132 = vunpack.c.l.b16 %v51
  %v133 = vunpack.c.l.b16 %v52
  %v134 = vunpack.c.h.b16 %v52
  %v135 = vunpack.c.l.b16 %v53
  %v136 = vunpack.c.l.b16 %v54
  %v137 = vunpack.c.h.b16 %v54
  %v138 = vunpack.c.l.b16 %v55
  %v139 = vunpack.c.l.b16 %v56
  %v140 = vunpack.c.h.b16 %v56
  %v141 = vunpack.c.l.b16 %v57
  %v142 = vunpack.c.l.b16 %v58
  %v143 = vunpack.c.h.b16 %v58
  %v144 = vunpack.c.l.b16 %v59
  %v145 = vunpack.c.l.b16 %v60
  %v146 = vunpack.c.h.b16 %v60
  %v147 = vunpack.c.l.b16 %v61
  %v148 = vpack.c.b16 %v103, %v100
  %v149 = vpack.c.b16 %v104, %v101
  %v150 = vpack.c.b16 %v105, %v102
  %v151 = vpack.c.b16 %v109, %v106
  %v152 = vpack.c.b16 %v110, %v107
  %v153 = vpack.c.b16 %v111, %v108
  %v154 = vpack.c.b16 %v115, %v112
  %v155 = vpack.c.b16 %v116, %v113
  %v156 = vpack.c.b16 %v117, %v114
  %v157 = vpack.c.b16 %v121, %v118
  %v158 = vpack.c.b16 %v122, %v119
  %v159 = vpack.c.b16 %v123, %v120
  %v160 = vpack.c.b16 %v127, %v124
  %v161 = vpack.c.b16 %v128, %v125
  %v162 = vpack.c.b16 %v129, %v126
  %v163 = vpack.c.b16 %v133, %v130
  %v164 = vpack.c.b16 %v134, %v131
  %v165 = vpack.c.b16 %v135, %v132
  %v166 = vpack.c.b16 %v139, %v136
  %v167 = vpack.c.b16 %v140, %v137
  %v168 = vpack.c.b16 %v141, %v138
  %v169 = vpack.c.b16 %v145, %v142
  %v170 = vpack.c.b16 %v146, %v143
  %v171 = vpack.c.b16 %v147, %v144
  %196 = vmatprep.subr.bf16.mxu0 %v149
  %197 = vmatpush1.bf16.msra.mxu0 %v148
  %198 = vmatprep.subr.bf16.mxu0 %v152
  %199 = vmatpush1.bf16.msra.mxu0 %v151
  %200 = vmatprep.subr.bf16.mxu0 %v155
  %201 = vmatpush1.bf16.msra.mxu0 %v154
  %202 = vmatprep.subr.bf16.mxu0 %v158
  %203 = vmatpush1.bf16.msra.mxu0 %v157
  %204 = vmatprep.subr.bf16.mxu0 %v161
  %205 = vmatpush1.bf16.msra.mxu0 %v160
  %206 = vmatprep.subr.bf16.mxu0 %v164
  %207 = vmatpush1.bf16.msra.mxu0 %v163
  %208 = vmatprep.subr.bf16.mxu0 %v167
  %209 = vmatpush1.bf16.msra.mxu0 %v166
  %210 = vmatprep.subr.bf16.mxu0 %v170
  %211 = vmatpush1.bf16.msra.mxu0 %v169
  %212 = vmatprep.subr.bf16.mxu0 0
  %213 = vmatpush1.bf16.msra.mxu0 0
  %214 = vmatprep.subr.bf16.mxu0 0
  %215 = vmatpush1.bf16.msra.mxu0 0
  %216 = vmatprep.subr.bf16.mxu0 0
  %217 = vmatpush1.bf16.msra.mxu0 0
  %218 = vmatprep.subr.bf16.mxu0 0
  %219 = vmatpush1.bf16.msra.mxu0 0
  %220 = vmatprep.subr.bf16.mxu0 0
  %221 = vmatpush1.bf16.msra.mxu0 0
  %222 = vmatprep.subr.bf16.mxu0 0
  %223 = vmatpush1.bf16.msra.mxu0 0
  %224 = vmatprep.subr.bf16.mxu0 0
  %225 = vmatpush1.bf16.msra.mxu0 0
  %226 = vmatprep.subr.bf16.mxu0 0
  %227 = vmatpush1.bf16.msra.mxu0 0
  %228 = vmatprep.mubr.bf16.mxu0 0
  %229 = vmatmul.mubr.bf16.gmra.mrb[0].mxu0 %v66
  %v230 = vpop.f32.mrb[0].mxu0
  %v231 = vadd.f32 0.0, %v230
  %v232 = vpop.f32.mrb[0].mxu0
  %v233 = vadd.f32 0.0, %v232
  %v234 = vpop.f32.mrb[0].mxu0
  %v235 = vadd.f32 0.0, %v234
  %v236 = vpop.f32.mrb[0].mxu0
  %v237 = vadd.f32 0.0, %v236
  %238 = vdwg.mxu0
  %239 = vmatprep.subr.bf16.mxu0 0
  %240 = vmatpush1.bf16.msra.mxu0 %v150
  %241 = vmatprep.subr.bf16.mxu0 0
  %242 = vmatpush1.bf16.msra.mxu0 %v153
  %243 = vmatprep.subr.bf16.mxu0 0
  %244 = vmatpush1.bf16.msra.mxu0 %v156
  %245 = vmatprep.subr.bf16.mxu0 0
  %246 = vmatpush1.bf16.msra.mxu0 %v159
  %247 = vmatprep.subr.bf16.mxu0 0
  %248 = vmatpush1.bf16.msra.mxu0 %v162
  %249 = vmatprep.subr.bf16.mxu0 0
  %250 = vmatpush1.bf16.msra.mxu0 %v165
  %251 = vmatprep.subr.bf16.mxu0 0
  %252 = vmatpush1.bf16.msra.mxu0 %v168
  %253 = vmatprep.subr.bf16.mxu0 0
  %254 = vmatpush1.bf16.msra.mxu0 %v171
  %255 = vmatprep.subr.bf16.mxu0 0
  %256 = vmatpush1.bf16.msra.mxu0 0
  %257 = vmatprep.subr.bf16.mxu0 0
  %258 = vmatpush1.bf16.msra.mxu0 0
  %259 = vmatprep.subr.bf16.mxu0 0
  %260 = vmatpush1.bf16.msra.mxu0 0
  %261 = vmatprep.subr.bf16.mxu0 0
  %262 = vmatpush1.bf16.msra.mxu0 0
  %263 = vmatprep.subr.bf16.mxu0 0
  %264 = vmatpush1.bf16.msra.mxu0 0
  %265 = vmatprep.subr.bf16.mxu0 0
  %266 = vmatpush1.bf16.msra.mxu0 0
  %267 = vmatprep.subr.bf16.mxu0 0
  %268 = vmatpush1.bf16.msra.mxu0 0
  %269 = vmatprep.subr.bf16.mxu0 0
  %270 = vmatpush1.bf16.msra.mxu0 0
  %271 = vmatprep.mubr.bf16.mxu0 0
  %272 = vmatmul.mubr.bf16.gmra.mrb[0].mxu0 %v66
  %v273 = vpop.f32.mrb[0].mxu0
  %v274 = vadd.f32 0.0, %v273
  %v275 = vpop.f32.mrb[0].mxu0
  %v276 = vpop.f32.mrb[0].mxu0
  %v277 = vadd.f32 0.0, %v276
  %v278 = vpop.f32.mrb[0].mxu0
  %279 = vdwg.mxu0
  %v280 = vadd.f32 %v22, %v231
  %v281 = vadd.f32 %v23, %v233
  %v282 = vadd.f32 %v24, %v274
  %v283 = vadd.f32 %v25, %v235
  %v284 = vadd.f32 %v26, %v237
  %v285 = vadd.f32 %v27, %v277
  %286 = vst [vmem:[#allocation2] sm:$0xff] %v280
  %287 = vst [vmem:[#allocation2 + $0x8] sm:$0xff] %v281
  %288 = vst [vmem:[#allocation2 + $0x10] sm:$0xff] %v282
  %289 = vst [vmem:[#allocation2 + $0x18] sm:$0xff] %v283
  %290 = vst [vmem:[#allocation2 + $0x20] sm:$0xff] %v284
  %291 = vst [vmem:[#allocation2 + $0x28] sm:$0xff] %v285
  // Predicated region
  $region14: #{transformer_lm_forward.9} parent=0 // pred_check
    %p292 = pneg %p12
  $region15: #{transformer_lm_forward.9} parent=0 // pred_check_branch
    %294 = sbr.rel (%p292) target = $region17
  $region16: #{transformer_lm_forward.9} parent=0 // pred_region
    %v295 = vld [vmem:[#allocation2] sm:$0xff]
    %v296 = vld [vmem:[#allocation2 + $0x8] sm:$0xff]
    %v297 = vld [vmem:[#allocation2 + $0x10] sm:$0xff]
    %v298 = vld [vmem:[#allocation2 + $0x18] sm:$0xff]
    %v299 = vld [vmem:[#allocation2 + $0x20] sm:$0xff]
    %v300 = vld [vmem:[#allocation2 + $0x28] sm:$0xff]
    %v301 = vpack.c.bf16 %v298, %v295
    %v302 = vpack.c.bf16 %v299, %v296
    %v303 = vpack.c.bf16 %v300, %v297
    %v307 = vunpack.c.l.b16 %v301
    %v308 = vunpack.c.l.b16 %v302
    %v309 = vunpack.c.l.b16 %v303
    %v310 = vunpack.c.h.b16 %v301
    %v311 = vunpack.c.h.b16 %v302
    %v312 = vunpack.c.h.b16 %v303
    %v313 = vpack.c.b16 %v308, %v307
    %v314 = vpack.c.b16 %v309, %v309
    %v315 = vpack.c.b16 %v311, %v310
    %v316 = vpack.c.b16 %v312, %v312
    %321 = vst [vmem:[%s2] sm:$0xff] %v313
    %322 = vst [vmem:[%s2 + $0x8] sm:$0xf] %v314
    %323 = vst [vmem:[%s2 + $0xc] sm:$0xff] %v315
    %324 = vst [vmem:[%s2 + $0x14] sm:$0xf] %v316
  $region17: #{transformer_lm_forward.9} parent=0 // pred_fallthru
    _
  // Predicated region
  $region18: #{transformer_lm_forward.9} parent=0 // pred_check
    _
  $region19: #{transformer_lm_forward.9} parent=0 // pred_check_branch
    %326 = sbr.rel (0) target = $region21
  $region20: #{transformer_lm_forward.9} parent=0 // pred_region
    _
  $region21: #{transformer_lm_forward.9} parent=0 // pred_fallthru
    _
  // Predicated region
  $region22: #{transformer_lm_forward.9} parent=0 // pred_check
    _
  $region23: #{transformer_lm_forward.9} parent=0 // pred_check_branch
    %328 = sbr.rel (0) target = $region25
  $region24: #{transformer_lm_forward.9} parent=0 // pred_region
    _
  $region25: #{transformer_lm_forward.9} parent=0 // pred_fallthru
    _

// kernel: transformer_lm_forward.10
$region0: #{transformer_lm_forward.10}
  #allocation0 [shape = 'u32[]', space=smem, size = 0x4, offset = 0x4, fixed_abs, tag = 'smem constant byte address 0x4 - core index']
  #allocation1 [shape = 'u32[144,128]{1,0:T(1,128)}', space=vmem, size = 0x12000, scoped, tag = 'internal scratch']
  %s0 = inlined_call_operand.vmem [shape: f32[4], index: 0, kind: input, shape index: {}]
  %s1 = inlined_call_operand.hbm [shape: f32[4], index: 1, kind: input, shape index: {}]
  %s2 = inlined_call_operand.vmem [shape: bf16[2,8,384], index: 2, kind: input, shape index: {}, may-alias: {2,3,4}]
  %s3 = inlined_call_operand.vmem [shape: bf16[2,8,384], index: 3, kind: input, shape index: {}, may-alias: {2,3,4}]
  %s4 = inlined_call_operand.vmem [shape: bf16[2,8,384], index: 4, kind: input, shape index: {}, may-alias: {2,3,4}]
  %s5 = inlined_call_operand.vmem [shape: bf16[2,8,128], index: 5, kind: output, shape index: {}]
  %s6 = sld [smem:[#allocation0]]
  $region61: #{transformer_lm_forward.10} parent=0
    _
  %s8 = ssub.s32 1, %s6
  %s9 = scalar_select 0, %s8, %s6
  $region1: #{transformer_lm_forward.10} parent=0
    #allocation2 [shape = 'u8[512]{0}', space=smem, size = 0x200, scoped, tag = 'input window, operand 0, single buffered']
    #allocation3 [shape = 's32[2]{0}', space=sflag, size = 0x8, scoped, tag = 'scoped memory for transformer_lm_forward.10']
    #allocation4 [shape = 's32[2]{0}', space=sflag, size = 0x8, scoped, tag = 'scoped memory for transformer_lm_forward.10']
    #allocation5 [shape = 'u8[512]{0}', space=smem, size = 0x200, scoped, tag = 'input window, operand 1, single buffered']
    %10 = vsyncpa [#allocation4], 0
    %11 = vsyncpa [#allocation3], 0
    loop: start=0, step=1, limit=4
    $region2: #{transformer_lm_forward.10} parent=1 // loop_pre_header
      _
    $region3: #{transformer_lm_forward.10} parent=1 // loop_header
      %s13 = sphi 0, %s17
      %p14 = scmp.ge.s32.totalorder %s13, 4
      %s20 = sphi 0, %s32
      %s21 = sphi 0, %s28
      %s22 = sphi 0, %s20
      %s23 = sphi 0, %s21
      %s24 = sphi 0, %s22
      %s25 = sphi 0, %s23
      %s33 = sphi 0, %s33
      %s35 = sphi 0, %s33
      %s36 = sphi 0, %s35
      %s50 = sphi 0, %s36
      %s54 = sphi 0, %s54
      %s56 = sphi 0, %s54
      %s57 = sphi 0, %s56
      %s71 = sphi 0, %s57
      %s79 = sphi 0, %s81
      %s82 = sphi 0, %s79
      %s83 = sphi 0, %s82
      %s99 = sphi 0, %s83
      %s105 = sphi 0, %s107
      %s108 = sphi 0, %s105
      %s109 = sphi 0, %s108
      %s125 = sphi 0, %s109
      %s131 = sphi 0, %s133
      %s134 = sphi 0, %s131
      %s135 = sphi 0, %s134
      %s151 = sphi 0, %s135
      %s159 = sphi 0, %s161
      %s162 = sphi 0, %s159
      %s163 = sphi 0, %s162
      %s179 = sphi 0, %s163
    $region4: #{transformer_lm_forward.10} parent=1 // loop_header_branch
      %16 = sbr.rel (%p14) target = $region8
    $region5: #{transformer_lm_forward.10} parent=1 // loop_body
      %s18 = ssub.s32 %s13, 1
      %s19 = ssub.s32 %s13, 2
      %s26 = sadd.s32 1, %s21
      %p27 = scmp.ge.s32.totalorder %s26, 1
      %s28 = scalar_select %p27, 0, %s26
      %s29 = sadd.s32 1, %s20
      %s30 = scalar_select %p27, %s29, %s20
      %p31 = scmp.ge.s32.totalorder %s30, 2
      %s32 = scalar_select %p31, 0, %s30
      %s34 = sadd.s32 %s33, 1
      %p37 = scmp.eq.s32.totalorder %s13, 1
      %p38 = scmp.ne.s32.totalorder %s33, %s35
      %p39 = scmp.eq.s32.totalorder %s13, 0
      %p40 = por %p38, %p39
      %p41 = scmp.ne.s32.totalorder %s33, %s35
      %p42 = scmp.eq.s32.totalorder %s18, 1
      %p43 = por %p41, %p42
      %p44 = scmp.ne.s32.totalorder %s35, %s36
      %p45 = scmp.eq.s32.totalorder %s18, 0
      %p46 = por %p44, %p45
      %p47 = scmp.ne.s32.totalorder %s35, %s36
      %p48 = scmp.eq.s32.totalorder %s19, 1
      %p49 = por %p47, %p48
      %p51 = scmp.ne.s32.totalorder %s36, %s50
      %p52 = scmp.eq.s32.totalorder %s19, 0
      %p53 = por %p51, %p52
      %s55 = sadd.s32 %s54, 1
      %p58 = scmp.eq.s32.totalorder %s13, 1
      %p59 = scmp.ne.s32.totalorder %s54, %s56
      %p60 = scmp.eq.s32.totalorder %s13, 0
      %p61 = por %p59, %p60
      %p62 = scmp.ne.s32.totalorder %s54, %s56
      %p63 = scmp.eq.s32.totalorder %s18, 1
      %p64 = por %p62, %p63
      %p65 = scmp.ne.s32.totalorder %s56, %s57
      %p66 = scmp.eq.s32.totalorder %s18, 0
      %p67 = por %p65, %p66
      %p68 = scmp.ne.s32.totalorder %s56, %s57
      %p69 = scmp.eq.s32.totalorder %s19, 1
      %p70 = por %p68, %p69
      %p72 = scmp.ne.s32.totalorder %s57, %s71
      %p73 = scmp.eq.s32.totalorder %s19, 0
      %p74 = por %p72, %p73
      %s75 = ssub.s32 %s20, %s32
      %s76 = ssub.s32 %s21, %s28
      %s77 = sor.u32 %s75, %s76
      %p78 = scmp.eq.s32.totalorder %s77, 0
      %s80 = sadd.s32 %s79, 1
      %s81 = scalar_select %p78, %s79, %s80
      %p84 = pneg %p78
      %p85 = scmp.eq.s32.totalorder %s13, 1
      %p86 = por %p84, %p85
      %p87 = scmp.ne.s32.totalorder %s79, %s82
      %p88 = scmp.eq.s32.totalorder %s13, 0
      %p89 = por %p87, %p88
      %p90 = scmp.ne.s32.totalorder %s79, %s82
      %p91 = scmp.eq.s32.totalorder %s18, 1
      %p92 = por %p90, %p91
      %p93 = scmp.ne.s32.totalorder %s82, %s83
      %p94 = scmp.eq.s32.totalorder %s18, 0
      %p95 = por %p93, %p94
      %p96 = scmp.ne.s32.totalorder %s82, %s83
      %p97 = scmp.eq.s32.totalorder %s19, 1
      %p98 = por %p96, %p97
      %p100 = scmp.ne.s32.totalorder %s83, %s99
      %p101 = scmp.eq.s32.totalorder %s19, 0
      %p102 = por %p100, %p101
      %s103 = ssub.s32 %s20, %s32
      %p104 = scmp.eq.s32.totalorder %s103, 0
      %s106 = sadd.s32 %s105, 1
      %s107 = scalar_select %p104, %s105, %s106
      %p110 = pneg %p104
      %p111 = scmp.eq.s32.totalorder %s13, 1
      %p112 = por %p110, %p111
      %p113 = scmp.ne.s32.totalorder %s105, %s108
      %p114 = scmp.eq.s32.totalorder %s13, 0
      %p115 = por %p113, %p114
      %p116 = scmp.ne.s32.totalorder %s105, %s108
      %p117 = scmp.eq.s32.totalorder %s18, 1
      %p118 = por %p116, %p117
      %p119 = scmp.ne.s32.totalorder %s108, %s109
      %p120 = scmp.eq.s32.totalorder %s18, 0
      %p121 = por %p119, %p120
      %p122 = scmp.ne.s32.totalorder %s108, %s109
      %p123 = scmp.eq.s32.totalorder %s19, 1
      %p124 = por %p122, %p123
      %p126 = scmp.ne.s32.totalorder %s109, %s125
      %p127 = scmp.eq.s32.totalorder %s19, 0
      %p128 = por %p126, %p127
      %s129 = ssub.s32 %s20, %s32
      %p130 = scmp.eq.s32.totalorder %s129, 0
      %s132 = sadd.s32 %s131, 1
      %s133 = scalar_select %p130, %s131, %s132
      %p136 = pneg %p130
      %p137 = scmp.eq.s32.totalorder %s13, 1
      %p138 = por %p136, %p137
      %p139 = scmp.ne.s32.totalorder %s131, %s134
      %p140 = scmp.eq.s32.totalorder %s13, 0
      %p141 = por %p139, %p140
      %p142 = scmp.ne.s32.totalorder %s131, %s134
      %p143 = scmp.eq.s32.totalorder %s18, 1
      %p144 = por %p142, %p143
      %p145 = scmp.ne.s32.totalorder %s134, %s135
      %p146 = scmp.eq.s32.totalorder %s18, 0
      %p147 = por %p145, %p146
      %p148 = scmp.ne.s32.totalorder %s134, %s135
      %p149 = scmp.eq.s32.totalorder %s19, 1
      %p150 = por %p148, %p149
      %p152 = scmp.ne.s32.totalorder %s135, %s151
      %p153 = scmp.eq.s32.totalorder %s19, 0
      %p154 = por %p152, %p153
      %s155 = ssub.s32 %s20, %s32
      %s156 = ssub.s32 %s21, %s28
      %s157 = sor.u32 %s155, %s156
      %p158 = scmp.eq.s32.totalorder %s157, 0
      %s160 = sadd.s32 %s159, 1
      %s161 = scalar_select %p158, %s159, %s160
      %p164 = pneg %p158
      %p165 = scmp.eq.s32.totalorder %s13, 1
      %p166 = por %p164, %p165
      %p167 = scmp.ne.s32.totalorder %s159, %s162
      %p168 = scmp.eq.s32.totalorder %s13, 0
      %p169 = por %p167, %p168
      %p170 = scmp.ne.s32.totalorder %s159, %s162
      %p171 = scmp.eq.s32.totalorder %s18, 1
      %p172 = por %p170, %p171
      %p173 = scmp.ne.s32.totalorder %s162, %s163
      %p174 = scmp.eq.s32.totalorder %s18, 0
      %p175 = por %p173, %p174
      %p176 = scmp.ne.s32.totalorder %s162, %s163
      %p177 = scmp.eq.s32.totalorder %s19, 1
      %p178 = por %p176, %p177
      %p180 = scmp.ne.s32.totalorder %s163, %s179
      %p181 = scmp.eq.s32.totalorder %s19, 0
      %p182 = por %p180, %p181
      %p183 = scmp.le.s32.totalorder 1, %s13
      %p184 = scmp.lt.s32.totalorder %s13, 3
      %p185 = pnand %p183, %p184
      %p186 = pneg %p185
      // Predicated region
      $region9: #{transformer_lm_forward.10} parent=5 // pred_check
        _
      $region10: #{transformer_lm_forward.10} parent=5 // pred_check_branch
        %188 = sbr.rel (%p185) target = $region12
      $region11: #{transformer_lm_forward.10} parent=5 // pred_region
        %s189 = ssub.s32 %s13, 1
        // Predicated region
        $region13: #{transformer_lm_forward.10} parent=11 // pred_check
          %p190 = pneg %p46
        $region14: #{transformer_lm_forward.10} parent=11 // pred_check_branch
          %192 = sbr.rel (%p190) target = $region16
        $region15: #{transformer_lm_forward.10} parent=11 // pred_region
          %s194 = ssub.s32 16, 16
          %195 = vsyncadd [#allocation4], %s194
          %s197 = sshll.u32 %s0, 4
          %s198 = int_to_ptr.vmem [resolvable:$true] %s197
          %200 = dma.vmem_to_smem %s198, 16, [#allocation2], [#allocation4]
        $region16: #{transformer_lm_forward.10} parent=11 // pred_fallthru
          _
        // Predicated region
        $region17: #{transformer_lm_forward.10} parent=11 // pred_check
          %p201 = pneg %p67
        $region18: #{transformer_lm_forward.10} parent=11 // pred_check_branch
          %203 = sbr.rel (%p201) target = $region20
        $region19: #{transformer_lm_forward.10} parent=11 // pred_region
          %s205 = ssub.s32 16, 16
          %206 = vsyncadd [#allocation3], %s205
          %209 = dma.hbm_to_smem %s1, 16, [#allocation5], [#allocation3]
        $region20: #{transformer_lm_forward.10} parent=11 // pred_fallthru
          _
      $region12: #{transformer_lm_forward.10} parent=5 // pred_fallthru
        _
      %p210 = scmp.lt.s32.totalorder %s13, 2
      // Predicated region
      $region21: #{transformer_lm_forward.10} parent=5 // pred_check
        %p211 = pneg %p210
      $region22: #{transformer_lm_forward.10} parent=5 // pred_check_branch
        %213 = sbr.rel (%p211) target = $region24
      $region23: #{transformer_lm_forward.10} parent=5 // pred_region
        // Predicated region
        $region25: #{transformer_lm_forward.10} parent=23 // pred_check
          %p214 = pneg %p89
        $region26: #{transformer_lm_forward.10} parent=23 // pred_check_branch
          %216 = sbr.rel (%p214) target = $region28
        $region27: #{transformer_lm_forward.10} parent=23 // pred_region
          %p217 = scmp.lt.s32.totalorder %s20, 1
          %s218 = scalar_select %p217, %s20, 1
          %p219 = scmp.lt.s32.totalorder %s21, 0
          %s220 = scalar_select %p219, %s21, 0
          %s221 = smul.addr %s220, 3
          %s222 = smul.addr %s218, 3
          %s223 = sadd.s32 %s221, %s222
          %s224 = smul.addr %s223, 4
          %s225 = scalar_lea.vmem %s2, %s224
        $region28: #{transformer_lm_forward.10} parent=23 // pred_fallthru
          _
        // Predicated region
        $region29: #{transformer_lm_forward.10} parent=23 // pred_check
          %p226 = pneg %p115
        $region30: #{transformer_lm_forward.10} parent=23 // pred_check_branch
          %228 = sbr.rel (%p226) target = $region32
        $region31: #{transformer_lm_forward.10} parent=23 // pred_region
          %p229 = scmp.lt.s32.totalorder %s20, 1
          %s230 = scalar_select %p229, %s20, 1
          %s231 = smul.addr %s230, 3
          %s232 = sadd.s32 1, %s231
          %s233 = smul.addr %s232, 4
          %s234 = scalar_lea.vmem %s3, %s233
        $region32: #{transformer_lm_forward.10} parent=23 // pred_fallthru
          _
        // Predicated region
        $region33: #{transformer_lm_forward.10} parent=23 // pred_check
          %p235 = pneg %p141
        $region34: #{transformer_lm_forward.10} parent=23 // pred_check_branch
          %237 = sbr.rel (%p235) target = $region36
        $region35: #{transformer_lm_forward.10} parent=23 // pred_region
          %p238 = scmp.lt.s32.totalorder %s20, 1
          %s239 = scalar_select %p238, %s20, 1
          %s240 = smul.addr %s239, 3
          %s241 = sadd.s32 2, %s240
          %s242 = smul.addr %s241, 4
          %s243 = scalar_lea.vmem %s4, %s242
        $region36: #{transformer_lm_forward.10} parent=23 // pred_fallthru
          _
      $region24: #{transformer_lm_forward.10} parent=5 // pred_fallthru
        _
      %p244 = scmp.le.s32.totalorder 1, %s13
      %p245 = scmp.lt.s32.totalorder %s13, 3
      %p246 = pnand %p244, %p245
      %p247 = pneg %p246
      // Predicated region
      $region37: #{transformer_lm_forward.10} parent=5 // pred_check
        _
      $region38: #{transformer_lm_forward.10} parent=5 // pred_check_branch
        %249 = sbr.rel (%p246) target = $region40
      $region39: #{transformer_lm_forward.10} parent=5 // pred_region
        %s250 = ssub.s32 %s13, 1
        // Predicated region
        $region41: #{transformer_lm_forward.10} parent=39 // pred_check
          %p251 = pneg %p46
        $region42: #{transformer_lm_forward.10} parent=39 // pred_check_branch
          %253 = sbr.rel (%p251) target = $region44
        $region43: #{transformer_lm_forward.10} parent=39 // pred_region
          %254 = dma.done [#allocation4], 16
        $region44: #{transformer_lm_forward.10} parent=39 // pred_fallthru
          _
        // Predicated region
        $region45: #{transformer_lm_forward.10} parent=39 // pred_check
          %p255 = pneg %p67
        $region46: #{transformer_lm_forward.10} parent=39 // pred_check_branch
          %257 = sbr.rel (%p255) target = $region48
        $region47: #{transformer_lm_forward.10} parent=39 // pred_region
          %258 = dma.done [#allocation3], 16
        $region48: #{transformer_lm_forward.10} parent=39 // pred_fallthru
          _
        %259 = sfence
        %p260 = pneg %p46
        %p261 = pneg %p43
        %p262 = pneg %p67
        %p263 = pneg %p64
        %p264 = scmp.lt.s32.totalorder %s22, 1
        %s265 = scalar_select %p264, %s22, 1
        %p266 = scmp.lt.s32.totalorder %s23, 0
        %s267 = scalar_select %p266, %s23, 0
        %s268 = smul.addr %s267, 3
        %s269 = smul.addr %s265, 3
        %s270 = sadd.s32 %s268, %s269
        %s271 = smul.addr %s270, 4
        %s272 = scalar_lea.vmem %s2, %s271
        %p273 = pneg %p95
        %p274 = pneg %p92
        %p275 = scmp.lt.s32.totalorder %s22, 1
        %s276 = scalar_select %p275, %s22, 1
        %s277 = smul.addr %s276, 3
        %s278 = sadd.s32 1, %s277
        %s279 = smul.addr %s278, 4
        %s280 = scalar_lea.vmem %s3, %s279
        %p281 = pneg %p121
        %p282 = pneg %p118
        %p283 = scmp.lt.s32.totalorder %s22, 1
        %s284 = scalar_select %p283, %s22, 1
        %s285 = smul.addr %s284, 3
        %s286 = sadd.s32 2, %s285
        %s287 = smul.addr %s286, 4
        %s288 = scalar_lea.vmem %s4, %s287
        %p289 = pneg %p147
        %p290 = pneg %p144
        %p291 = pneg %p175
        %p292 = pneg %p172
        %p293 = scmp.lt.s32.totalorder %s22, 1
        %s294 = scalar_select %p293, %s22, 1
        %p295 = scmp.lt.s32.totalorder %s23, 0
        %s296 = scalar_select %p295, %s23, 0
        %s297 = sadd.s32 %s296, %s294
        %s298 = smul.addr %s297, 4
        %s299 = scalar_lea.vmem %s5, %s298
        %p300 = scmp.lt.s32.totalorder %s22, 1
        %s301 = scalar_select %p300, %s22, 1
        %p302 = scmp.lt.s32.totalorder %s23, 0
        %s303 = scalar_select %p302, %s23, 0
        %s304 = smul.addr %s303, 3
        %s305 = smul.addr %s301, 3
        %s306 = sadd.s32 %s304, %s305
        %s307 = smul.addr %s306, 4
        %s308 = scalar_lea.vmem %s2, %s307
        %p309 = scmp.lt.s32.totalorder %s22, 1
        %s310 = scalar_select %p309, %s22, 1
        %s311 = smul.addr %s310, 3
        %s312 = sadd.s32 1, %s311
        %s313 = smul.addr %s312, 4
        %s314 = scalar_lea.vmem %s3, %s313
        %p315 = scmp.lt.s32.totalorder %s22, 1
        %s316 = scalar_select %p315, %s22, 1
        %s317 = smul.addr %s316, 3
        %s318 = sadd.s32 2, %s317
        %s319 = smul.addr %s318, 4
        %s320 = scalar_lea.vmem %s4, %s319
        %p321 = scmp.lt.s32.totalorder %s22, 1
        %s322 = scalar_select %p321, %s22, 1
        %p323 = scmp.lt.s32.totalorder %s23, 0
        %s324 = scalar_select %p323, %s23, 0
        %s325 = sadd.s32 %s324, %s322
        %s326 = smul.addr %s325, 4
        %s327 = scalar_lea.vmem %s5, %s326
        %v329 = vld [vmem:[%s308] sm:$0xf]
        %v330 = vld [vmem:[%s314] sm:$0xf]
        %v331 = vld [vmem:[%s320] sm:$0xf]
        %vm332 = vcmask 261120
        %v334 = vsel %vm332, %v329, 0
        %v337 = vsel %vm332, %v330, 0
        %339 = vmatprep.subr.bf16.mxu0 0
        %340 = vmatpush1.bf16.xpose.msra.mxu0 %v337
        %341 = vmatprep.subr.bf16.mxu0 0
        %342 = vmatpush1.bf16.xpose.msra.mxu0 0
        %343 = vmatprep.subr.bf16.mxu0 0
        %344 = vmatpush1.bf16.xpose.msra.mxu0 0
        %345 = vmatprep.subr.bf16.mxu0 0
        %346 = vmatpush1.bf16.xpose.msra.mxu0 0
        %347 = vmatprep.subr.bf16.mxu0 0
        %348 = vmatpush1.bf16.xpose.msra.mxu0 0
        %349 = vmatprep.subr.bf16.mxu0 0
        %350 = vmatpush1.bf16.xpose.msra.mxu0 0
        %351 = vmatprep.subr.bf16.mxu0 0
        %352 = vmatpush1.bf16.xpose.msra.mxu0 0
        %353 = vmatprep.subr.bf16.mxu0 0
        %354 = vmatpush1.bf16.xpose.msra.mxu0 0
        %355 = vmatprep.subr.bf16.mxu0 0
        %356 = vmatpush1.bf16.xpose.msra.mxu0 0
        %357 = vmatprep.subr.bf16.mxu0 0
        %358 = vmatpush1.bf16.xpose.msra.mxu0 0
        %359 = vmatprep.subr.bf16.mxu0 0
        %360 = vmatpush1.bf16.xpose.msra.mxu0 0
        %361 = vmatprep.subr.bf16.mxu0 0
        %362 = vmatpush1.bf16.xpose.msra.mxu0 0
        %363 = vmatprep.subr.bf16.mxu0 0
        %364 = vmatpush1.bf16.xpose.msra.mxu0 0
        %365 = vmatprep.subr.bf16.mxu0 0
        %366 = vmatpush1.bf16.xpose.msra.mxu0 0
        %367 = vmatprep.subr.bf16.mxu0 0
        %368 = vmatpush1.bf16.xpose.msra.mxu0 0
        %369 = vmatprep.subr.bf16.mxu0 0
        %370 = vmatpush1.bf16.xpose.msra.mxu0 0
        %371 = vmatprep.mubr.bf16.mxu0 0
        %372 = vmatmul.mubr.bf16.gmra.mrb[0].mxu0 %v334
        %v373 = vpop.f32.mrb[0].mxu0
        %v374 = vadd.f32 0.0, %v373
        %v375 = vpop.f32.mrb[0].mxu0
        %v376 = vpop.f32.mrb[0].mxu0
        %v377 = vpop.f32.mrb[0].mxu0
        %378 = vdwg.mxu0
        %vm379 = vcmask 64512
        %v380 = vsel %vm379, %v374, 0.0
        %381 = vadd.xlane.f32.xlu0 %v380
        %v382 = vpop.xlane.xlu0 %381
        %v383 = vmul.f32 %v382, 0.125
        %v384 = vmul.f32 %v374, %v374
        %v385 = vsel %vm379, %v384, 0.0
        %386 = vadd.xlane.f32.xlu0 %v385
        %v387 = vpop.xlane.xlu0 %386
        %v388 = vmul.f32 %v387, 0.125
        %v389 = vmul.f32 %v383, %v383
        %v390 = vsub.f32 %v388, %v389
        %v391 = vmax.f32 %v390, 0.0
        %v392 = vadd.f32 %v391, 1.28e-06
        %v393 = vrsqrt.pop %v392
        %v394 = vpack.c.bf16 %v374, %v374
        %v396 = vsel %vm379, %v394, 0
        %vm398 = vcmask 1043456
        %v400 = vsel %vm398, %v331, 0
        %402 = vmatprep.subr.bf16.mxu0 0
        %403 = vmatpush1.bf16.msra.mxu0 %v400
        %404 = vmatprep.subr.bf16.mxu0 0
        %405 = vmatpush1.bf16.msra.mxu0 0
        %406 = vmatprep.subr.bf16.mxu0 0
        %407 = vmatpush1.bf16.msra.mxu0 0
        %408 = vmatprep.subr.bf16.mxu0 0
        %409 = vmatpush1.bf16.msra.mxu0 0
        %410 = vmatprep.subr.bf16.mxu0 0
        %411 = vmatpush1.bf16.msra.mxu0 0
        %412 = vmatprep.subr.bf16.mxu0 0
        %413 = vmatpush1.bf16.msra.mxu0 0
        %414 = vmatprep.subr.bf16.mxu0 0
        %415 = vmatpush1.bf16.msra.mxu0 0
        %416 = vmatprep.subr.bf16.mxu0 0
        %417 = vmatpush1.bf16.msra.mxu0 0
        %418 = vmatprep.subr.bf16.mxu0 0
        %419 = vmatpush1.bf16.msra.mxu0 0
        %420 = vmatprep.subr.bf16.mxu0 0
        %421 = vmatpush1.bf16.msra.mxu0 0
        %422 = vmatprep.subr.bf16.mxu0 0
        %423 = vmatpush1.bf16.msra.mxu0 0
        %424 = vmatprep.subr.bf16.mxu0 0
        %425 = vmatpush1.bf16.msra.mxu0 0
        %426 = vmatprep.subr.bf16.mxu0 0
        %427 = vmatpush1.bf16.msra.mxu0 0
        %428 = vmatprep.subr.bf16.mxu0 0
        %429 = vmatpush1.bf16.msra.mxu0 0
        %430 = vmatprep.subr.bf16.mxu0 0
        %431 = vmatpush1.bf16.msra.mxu0 0
        %432 = vmatprep.subr.bf16.mxu0 0
        %433 = vmatpush1.bf16.msra.mxu0 0
        %434 = vmatprep.mubr.bf16.mxu0 0
        %435 = vmatmul.mubr.bf16.gmra.mrb[0].mxu0 %v396
        %v436 = vpop.f32.mrb[0].mxu0
        %v437 = vadd.f32 0.0, %v436
        %v438 = vpop.f32.mrb[0].mxu0
        %v439 = vpop.f32.mrb[0].mxu0
        %v440 = vpop.f32.mrb[0].mxu0
        %441 = vdwg.mxu0
        %v442 = vunpack.c.l.bf16 %v331
        %v443 = vsel %vm332, %v442, 0.0
        %v444 = vrot.slane %v443, 4
        %v445 = vadd.f32 %v443, %v444
        %v446 = vrot.slane %v445, 2
        %v447 = vadd.f32 %v445, %v446
        %v448 = vrot.slane %v447, 1
        %v449 = vadd.f32 %v447, %v448
        %s450 = sld [smem:[#allocation2]]
        %v451 = vstv %s450
        %v452 = vmul.f32 %v451, %v393
        %v453 = vmul.f32 %v383, %v449
        %v454 = vsub.f32 %v437, %v453
        %v455 = vmul.f32 %v452, %v454
        %s456 = sld [smem:[#allocation5]]
        %v457 = vstv %s456
        %v458 = vmul.f32 %v457, %v449
        %v459 = vadd.f32 %v455, %v458
        %v460 = vpack.c.bf16 %v459, %v459
        %v462 = vunpack.c.l.b16 %v329
        %v463 = vpack.c.b16 %v462, %v462
        %464 = vrot.lane.b32.xlu0 %v463, 96
        %v465 = vpop.permute.xlu0 %464
        %v467 = vunpack.c.l.b16 %v330
        %v468 = vpack.c.b16 %v467, %v467
        %469 = vrot.lane.b32.xlu0 %v468, 96
        %v470 = vpop.permute.xlu0 %469
        %v472 = vsel %vm332, %v465, 0
        %v475 = vsel %vm332, %v470, 0
        %477 = vmatprep.subr.bf16.mxu0 0
        %478 = vmatpush1.bf16.xpose.msra.mxu0 %v475
        %479 = vmatprep.subr.bf16.mxu0 0
        %480 = vmatpush1.bf16.xpose.msra.mxu0 0
        %481 = vmatprep.subr.bf16.mxu0 0
        %482 = vmatpush1.bf16.xpose.msra.mxu0 0
        %483 = vmatprep.subr.bf16.mxu0 0
        %484 = vmatpush1.bf16.xpose.msra.mxu0 0
        %485 = vmatprep.subr.bf16.mxu0 0
        %486 = vmatpush1.bf16.xpose.msra.mxu0 0
        %487 = vmatprep.subr.bf16.mxu0 0
        %488 = vmatpush1.bf16.xpose.msra.mxu0 0
        %489 = vmatprep.subr.bf16.mxu0 0
        %490 = vmatpush1.bf16.xpose.msra.mxu0 0
        %491 = vmatprep.subr.bf16.mxu0 0
        %492 = vmatpush1.bf16.xpose.msra.mxu0 0
        %493 = vmatprep.subr.bf16.mxu0 0
        %494 = vmatpush1.bf16.xpose.msra.mxu0 0
        %495 = vmatprep.subr.bf16.mxu0 0
        %496 = vmatpush1.bf16.xpose.msra.mxu0 0
        %497 = vmatprep.subr.bf16.mxu0 0
        %498 = vmatpush1.bf16.xpose.msra.mxu0 0
        %499 = vmatprep.subr.bf16.mxu0 0
        %500 = vmatpush1.bf16.xpose.msra.mxu0 0
        %501 = vmatprep.subr.bf16.mxu0 0
        %502 = vmatpush1.bf16.xpose.msra.mxu0 0
        %503 = vmatprep.subr.bf16.mxu0 0
        %504 = vmatpush1.bf16.xpose.msra.mxu0 0
        %505 = vmatprep.subr.bf16.mxu0 0
        %506 = vmatpush1.bf16.xpose.msra.mxu0 0
        %507 = vmatprep.subr.bf16.mxu0 0
        %508 = vmatpush1.bf16.xpose.msra.mxu0 0
        %509 = vmatprep.mubr.bf16.mxu0 0
        %510 = vmatmul.mubr.bf16.gmra.mrb[0].mxu0 %v472
        %v511 = vpop.f32.mrb[0].mxu0
        %v512 = vadd.f32 0.0, %v511
        %v513 = vpop.f32.mrb[0].mxu0
        %v514 = vpop.f32.mrb[0].mxu0
        %v515 = vpop.f32.mrb[0].mxu0
        %516 = vdwg.mxu0
        %v517 = vsel %vm379, %v512, 0.0
        %518 = vadd.xlane.f32.xlu0 %v517
        %v519 = vpop.xlane.xlu0 %518
        %v520 = vmul.f32 %v519, 0.125
        %v521 = vmul.f32 %v512, %v512
        %v522 = vsel %vm379, %v521, 0.0
        %523 = vadd.xlane.f32.xlu0 %v522
        %v524 = vpop.xlane.xlu0 %523
        %v525 = vmul.f32 %v524, 0.125
        %v526 = vmul.f32 %v520, %v520
        %v527 = vsub.f32 %v525, %v526
        %v528 = vmax.f32 %v527, 0.0
        %v529 = vadd.f32 %v528, 1.28e-06
        %v530 = vrsqrt.pop %v529
        %v531 = vpack.c.bf16 %v512, %v512
        %v533 = vunpack.c.l.b16 %v331
        %v534 = vpack.c.b16 %v533, %v533
        %535 = vrot.lane.b32.xlu0 %v534, 96
        %v536 = vpop.permute.xlu0 %535
        %v538 = vsel %vm379, %v531, 0
        %v541 = vsel %vm398, %v536, 0
        %543 = vmatprep.subr.bf16.mxu0 0
        %544 = vmatpush1.bf16.msra.mxu0 %v541
        %545 = vmatprep.subr.bf16.mxu0 0
        %546 = vmatpush1.bf16.msra.mxu0 0
        %547 = vmatprep.subr.bf16.mxu0 0
        %548 = vmatpush1.bf16.msra.mxu0 0
        %549 = vmatprep.subr.bf16.mxu0 0
        %550 = vmatpush1.bf16.msra.mxu0 0
        %551 = vmatprep.subr.bf16.mxu0 0
        %552 = vmatpush1.bf16.msra.mxu0 0
        %553 = vmatprep.subr.bf16.mxu0 0
        %554 = vmatpush1.bf16.msra.mxu0 0
        %555 = vmatprep.subr.bf16.mxu0 0
        %556 = vmatpush1.bf16.msra.mxu0 0
        %557 = vmatprep.subr.bf16.mxu0 0
        %558 = vmatpush1.bf16.msra.mxu0 0
        %559 = vmatprep.subr.bf16.mxu0 0
        %560 = vmatpush1.bf16.msra.mxu0 0
        %561 = vmatprep.subr.bf16.mxu0 0
        %562 = vmatpush1.bf16.msra.mxu0 0
        %563 = vmatprep.subr.bf16.mxu0 0
        %564 = vmatpush1.bf16.msra.mxu0 0
        %565 = vmatprep.subr.bf16.mxu0 0
        %566 = vmatpush1.bf16.msra.mxu0 0
        %567 = vmatprep.subr.bf16.mxu0 0
        %568 = vmatpush1.bf16.msra.mxu0 0
        %569 = vmatprep.subr.bf16.mxu0 0
        %570 = vmatpush1.bf16.msra.mxu0 0
        %571 = vmatprep.subr.bf16.mxu0 0
        %572 = vmatpush1.bf16.msra.mxu0 0
        %573 = vmatprep.subr.bf16.mxu0 0
        %574 = vmatpush1.bf16.msra.mxu0 0
        %575 = vmatprep.mubr.bf16.mxu0 0
        %576 = vmatmul.mubr.bf16.gmra.mrb[0].mxu0 %v538
        %v577 = vpop.f32.mrb[0].mxu0
        %v578 = vadd.f32 0.0, %v577
        %v579 = vpop.f32.mrb[0].mxu0
        %v580 = vpop.f32.mrb[0].mxu0
        %v581 = vpop.f32.mrb[0].mxu0
        %582 = vdwg.mxu0
        %vm583 = vcmask 523520
        %v584 = vsel %vm583, %v442, 0.0
        %v585 = vrot.slane %v584, 4
        %v586 = vadd.f32 %v584, %v585
        %v587 = vrot.slane %v586, 2
        %v588 = vadd.f32 %v586, %v587
        %v589 = vrot.slane %v588, 1
        %v590 = vadd.f32 %v588, %v589
        %s591 = sld [smem:[#allocation2 + $0x1]]
        %v592 = vstv %s591
        %v593 = vmul.f32 %v592, %v530
        %v594 = vmul.f32 %v520, %v590
        %596 = vrot.lane.b32.xlu0 %v594, 96
        %v597 = vpop.permute.xlu0 %596
        %v599 = vsub.f32 %v578, %v597
        %v600 = vmul.f32 %v593, %v599
        %s601 = sld [smem:[#allocation5 + $0x1]]
        %v602 = vstv %s601
        %v603 = vmul.f32 %v602, %v590
        %605 = vrot.lane.b32.xlu0 %v603, 96
        %v606 = vpop.permute.xlu0 %605
        %v608 = vadd.f32 %v600, %v606
        %v609 = vpack.c.bf16 %v608, %v608
        %610 = vrot.lane.b32.xlu0 %v463, 64
        %v611 = vpop.permute.xlu0 %610
        %612 = vrot.lane.b32.xlu0 %v468, 64
        %v613 = vpop.permute.xlu0 %612
        %v615 = vsel %vm332, %v611, 0
        %v618 = vsel %vm332, %v613, 0
        %620 = vmatprep.subr.bf16.mxu0 0
        %621 = vmatpush1.bf16.xpose.msra.mxu0 %v618
        %622 = vmatprep.subr.bf16.mxu0 0
        %623 = vmatpush1.bf16.xpose.msra.mxu0 0
        %624 = vmatprep.subr.bf16.mxu0 0
        %625 = vmatpush1.bf16.xpose.msra.mxu0 0
        %626 = vmatprep.subr.bf16.mxu0 0
        %627 = vmatpush1.bf16.xpose.msra.mxu0 0
        %628 = vmatprep.subr.bf16.mxu0 0
        %629 = vmatpush1.bf16.xpose.msra.mxu0 0
        %630 = vmatprep.subr.bf16.mxu0 0
        %631 = vmatpush1.bf16.xpose.msra.mxu0 0
        %632 = vmatprep.subr.bf16.mxu0 0
        %633 = vmatpush1.bf16.xpose.msra.mxu0 0
        %634 = vmatprep.subr.bf16.mxu0 0
        %635 = vmatpush1.bf16.xpose.msra.mxu0 0
        %636 = vmatprep.subr.bf16.mxu0 0
        %637 = vmatpush1.bf16.xpose.msra.mxu0 0
        %638 = vmatprep.subr.bf16.mxu0 0
        %639 = vmatpush1.bf16.xpose.msra.mxu0 0
        %640 = vmatprep.subr.bf16.mxu0 0
        %641 = vmatpush1.bf16.xpose.msra.mxu0 0
        %642 = vmatprep.subr.bf16.mxu0 0
        %643 = vmatpush1.bf16.xpose.msra.mxu0 0
        %644 = vmatprep.subr.bf16.mxu0 0
        %645 = vmatpush1.bf16.xpose.msra.mxu0 0
        %646 = vmatprep.subr.bf16.mxu0 0
        %647 = vmatpush1.bf16.xpose.msra.mxu0 0
        %648 = vmatprep.subr.bf16.mxu0 0
        %649 = vmatpush1.bf16.xpose.msra.mxu0 0
        %650 = vmatprep.subr.bf16.mxu0 0
        %651 = vmatpush1.bf16.xpose.msra.mxu0 0
        %652 = vmatprep.mubr.bf16.mxu0 0
        %653 = vmatmul.mubr.bf16.gmra.mrb[0].mxu0 %v615
        %v654 = vpop.f32.mrb[0].mxu0
        %v655 = vadd.f32 0.0, %v654
        %v656 = vpop.f32.mrb[0].mxu0
        %v657 = vpop.f32.mrb[0].mxu0
        %v658 = vpop.f32.mrb[0].mxu0
        %659 = vdwg.mxu0
        %v660 = vsel %vm379, %v655, 0.0
        %661 = vadd.xlane.f32.xlu0 %v660
        %v662 = vpop.xlane.xlu0 %661
        %v663 = vmul.f32 %v662, 0.125
        %v664 = vmul.f32 %v655, %v655
        %v665 = vsel %vm379, %v664, 0.0
        %666 = vadd.xlane.f32.xlu0 %v665
        %v667 = vpop.xlane.xlu0 %666
        %v668 = vmul.f32 %v667, 0.125
        %v669 = vmul.f32 %v663, %v663
        %v670 = vsub.f32 %v668, %v669
        %v671 = vmax.f32 %v670, 0.0
        %v672 = vadd.f32 %v671, 1.28e-06
        %v673 = vrsqrt.pop %v672
        %v674 = vpack.c.bf16 %v655, %v655
        %675 = vrot.lane.b32.xlu0 %v534, 64
        %v676 = vpop.permute.xlu0 %675
        %v678 = vsel %vm379, %v674, 0
        %v681 = vsel %vm398, %v676, 0
        %683 = vmatprep.subr.bf16.mxu0 0
        %684 = vmatpush1.bf16.msra.mxu0 %v681
        %685 = vmatprep.subr.bf16.mxu0 0
        %686 = vmatpush1.bf16.msra.mxu0 0
        %687 = vmatprep.subr.bf16.mxu0 0
        %688 = vmatpush1.bf16.msra.mxu0 0
        %689 = vmatprep.subr.bf16.mxu0 0
        %690 = vmatpush1.bf16.msra.mxu0 0
        %691 = vmatprep.subr.bf16.mxu0 0
        %692 = vmatpush1.bf16.msra.mxu0 0
        %693 = vmatprep.subr.bf16.mxu0 0
        %694 = vmatpush1.bf16.msra.mxu0 0
        %695 = vmatprep.subr.bf16.mxu0 0
        %696 = vmatpush1.bf16.msra.mxu0 0
        %697 = vmatprep.subr.bf16.mxu0 0
        %698 = vmatpush1.bf16.msra.mxu0 0
        %699 = vmatprep.subr.bf16.mxu0 0
        %700 = vmatpush1.bf16.msra.mxu0 0
        %701 = vmatprep.subr.bf16.mxu0 0
        %702 = vmatpush1.bf16.msra.mxu0 0
        %703 = vmatprep.subr.bf16.mxu0 0
        %704 = vmatpush1.bf16.msra.mxu0 0
        %705 = vmatprep.subr.bf16.mxu0 0
        %706 = vmatpush1.bf16.msra.mxu0 0
        %707 = vmatprep.subr.bf16.mxu0 0
        %708 = vmatpush1.bf16.msra.mxu0 0
        %709 = vmatprep.subr.bf16.mxu0 0
        %710 = vmatpush1.bf16.msra.mxu0 0
        %711 = vmatprep.subr.bf16.mxu0 0
        %712 = vmatpush1.bf16.msra.mxu0 0
        %713 = vmatprep.subr.bf16.mxu0 0
        %714 = vmatpush1.bf16.msra.mxu0 0
        %715 = vmatprep.mubr.bf16.mxu0 0
        %716 = vmatmul.mubr.bf16.gmra.mrb[0].mxu0 %v678
        %v717 = vpop.f32.mrb[0].mxu0
        %v718 = vadd.f32 0.0, %v717
        %v719 = vpop.f32.mrb[0].mxu0
        %v720 = vpop.f32.mrb[0].mxu0
        %v721 = vpop.f32.mrb[0].mxu0
        %722 = vdwg.mxu0
        %vm723 = vcmask 785920
        %v724 = vsel %vm723, %v442, 0.0
        %v725 = vrot.slane %v724, 4
        %v726 = vadd.f32 %v724, %v725
        %v727 = vrot.slane %v726, 2
        %v728 = vadd.f32 %v726, %v727
        %v729 = vrot.slane %v728, 1
        %v730 = vadd.f32 %v728, %v729
        %s731 = sld [smem:[#allocation2 + $0x2]]
        %v732 = vstv %s731
        %v733 = vmul.f32 %v732, %v673
        %v734 = vmul.f32 %v663, %v730
        %736 = vrot.lane.b32.xlu0 %v734, 64
        %v737 = vpop.permute.xlu0 %736
        %v739 = vsub.f32 %v718, %v737
        %v740 = vmul.f32 %v733, %v739
        %s741 = sld [smem:[#allocation5 + $0x2]]
        %v742 = vstv %s741
        %v743 = vmul.f32 %v742, %v730
        %745 = vrot.lane.b32.xlu0 %v743, 64
        %v746 = vpop.permute.xlu0 %745
        %v748 = vadd.f32 %v740, %v746
        %v749 = vpack.c.bf16 %v748, %v748
        %750 = vrot.lane.b32.xlu0 %v463, 32
        %v751 = vpop.permute.xlu0 %750
        %752 = vrot.lane.b32.xlu0 %v468, 32
        %v753 = vpop.permute.xlu0 %752
        %v755 = vsel %vm332, %v751, 0
        %v758 = vsel %vm332, %v753, 0
        %760 = vmatprep.subr.bf16.mxu0 0
        %761 = vmatpush1.bf16.xpose.msra.mxu0 %v758
        %762 = vmatprep.subr.bf16.mxu0 0
        %763 = vmatpush1.bf16.xpose.msra.mxu0 0
        %764 = vmatprep.subr.bf16.mxu0 0
        %765 = vmatpush1.bf16.xpose.msra.mxu0 0
        %766 = vmatprep.subr.bf16.mxu0 0
        %767 = vmatpush1.bf16.xpose.msra.mxu0 0
        %768 = vmatprep.subr.bf16.mxu0 0
        %769 = vmatpush1.bf16.xpose.msra.mxu0 0
        %770 = vmatprep.subr.bf16.mxu0 0
        %771 = vmatpush1.bf16.xpose.msra.mxu0 0
        %772 = vmatprep.subr.bf16.mxu0 0
        %773 = vmatpush1.bf16.xpose.msra.mxu0 0
        %774 = vmatprep.subr.bf16.mxu0 0
        %775 = vmatpush1.bf16.xpose.msra.mxu0 0
        %776 = vmatprep.subr.bf16.mxu0 0
        %777 = vmatpush1.bf16.xpose.msra.mxu0 0
        %778 = vmatprep.subr.bf16.mxu0 0
        %779 = vmatpush1.bf16.xpose.msra.mxu0 0
        %780 = vmatprep.subr.bf16.mxu0 0
        %781 = vmatpush1.bf16.xpose.msra.mxu0 0
        %782 = vmatprep.subr.bf16.mxu0 0
        %783 = vmatpush1.bf16.xpose.msra.mxu0 0
        %784 = vmatprep.subr.bf16.mxu0 0
        %785 = vmatpush1.bf16.xpose.msra.mxu0 0
        %786 = vmatprep.subr.bf16.mxu0 0
        %787 = vmatpush1.bf16.xpose.msra.mxu0 0
        %788 = vmatprep.subr.bf16.mxu0 0
        %789 = vmatpush1.bf16.xpose.msra.mxu0 0
        %790 = vmatprep.subr.bf16.mxu0 0
        %791 = vmatpush1.bf16.xpose.msra.mxu0 0
        %792 = vmatprep.mubr.bf16.mxu0 0
        %793 = vmatmul.mubr.bf16.gmra.mrb[0].mxu0 %v755
        %v794 = vpop.f32.mrb[0].mxu0
        %v795 = vadd.f32 0.0, %v794
        %v796 = vpop.f32.mrb[0].mxu0
        %v797 = vpop.f32.mrb[0].mxu0
        %v798 = vpop.f32.mrb[0].mxu0
        %799 = vdwg.mxu0
        %v800 = vsel %vm379, %v795, 0.0
        %801 = vadd.xlane.f32.xlu0 %v800
        %v802 = vpop.xlane.xlu0 %801
        %v803 = vmul.f32 %v802, 0.125
        %v804 = vmul.f32 %v795, %v795
        %v805 = vsel %vm379, %v804, 0.0
        %806 = vadd.xlane.f32.xlu0 %v805
        %v807 = vpop.xlane.xlu0 %806
        %v808 = vmul.f32 %v807, 0.125
        %v809 = vmul.f32 %v803, %v803
        %v810 = vsub.f32 %v808, %v809
        %v811 = vmax.f32 %v810, 0.0
        %v812 = vadd.f32 %v811, 1.28e-06
        %v813 = vrsqrt.pop %v812
        %v814 = vpack.c.bf16 %v795, %v795
        %815 = vrot.lane.b32.xlu0 %v534, 32
        %v816 = vpop.permute.xlu0 %815
        %v818 = vsel %vm379, %v814, 0
        %v821 = vsel %vm398, %v816, 0
        %823 = vmatprep.subr.bf16.mxu0 0
        %824 = vmatpush1.bf16.msra.mxu0 %v821
        %825 = vmatprep.subr.bf16.mxu0 0
        %826 = vmatpush1.bf16.msra.mxu0 0
        %827 = vmatprep.subr.bf16.mxu0 0
        %828 = vmatpush1.bf16.msra.mxu0 0
        %829 = vmatprep.subr.bf16.mxu0 0
        %830 = vmatpush1.bf16.msra.mxu0 0
        %831 = vmatprep.subr.bf16.mxu0 0
        %832 = vmatpush1.bf16.msra.mxu0 0
        %833 = vmatprep.subr.bf16.mxu0 0
        %834 = vmatpush1.bf16.msra.mxu0 0
        %835 = vmatprep.subr.bf16.mxu0 0
        %836 = vmatpush1.bf16.msra.mxu0 0
        %837 = vmatprep.subr.bf16.mxu0 0
        %838 = vmatpush1.bf16.msra.mxu0 0
        %839 = vmatprep.subr.bf16.mxu0 0
        %840 = vmatpush1.bf16.msra.mxu0 0
        %841 = vmatprep.subr.bf16.mxu0 0
        %842 = vmatpush1.bf16.msra.mxu0 0
        %843 = vmatprep.subr.bf16.mxu0 0
        %844 = vmatpush1.bf16.msra.mxu0 0
        %845 = vmatprep.subr.bf16.mxu0 0
        %846 = vmatpush1.bf16.msra.mxu0 0
        %847 = vmatprep.subr.bf16.mxu0 0
        %848 = vmatpush1.bf16.msra.mxu0 0
        %849 = vmatprep.subr.bf16.mxu0 0
        %850 = vmatpush1.bf16.msra.mxu0 0
        %851 = vmatprep.subr.bf16.mxu0 0
        %852 = vmatpush1.bf16.msra.mxu0 0
        %853 = vmatprep.subr.bf16.mxu0 0
        %854 = vmatpush1.bf16.msra.mxu0 0
        %855 = vmatprep.mubr.bf16.mxu0 0
        %856 = vmatmul.mubr.bf16.gmra.mrb[0].mxu0 %v818
        %v857 = vpop.f32.mrb[0].mxu0
        %v858 = vadd.f32 0.0, %v857
        %v859 = vpop.f32.mrb[0].mxu0
        %v860 = vpop.f32.mrb[0].mxu0
        %v861 = vpop.f32.mrb[0].mxu0
        %862 = vdwg.mxu0
        %vm863 = vcmask 1048320
        %v864 = vsel %vm863, %v442, 0.0
        %v865 = vrot.slane %v864, 4
        %v866 = vadd.f32 %v864, %v865
        %v867 = vrot.slane %v866, 2
        %v868 = vadd.f32 %v866, %v867
        %v869 = vrot.slane %v868, 1
        %v870 = vadd.f32 %v868, %v869
        %s871 = sld [smem:[#allocation2 + $0x3]]
        %v872 = vstv %s871
        %v873 = vmul.f32 %v872, %v813
        %v874 = vmul.f32 %v803, %v870
        %876 = vrot.lane.b32.xlu0 %v874, 32
        %v877 = vpop.permute.xlu0 %876
        %v879 = vsub.f32 %v858, %v877
        %v880 = vmul.f32 %v873, %v879
        %s881 = sld [smem:[#allocation5 + $0x3]]
        %v882 = vstv %s881
        %v883 = vmul.f32 %v882, %v870
        %885 = vrot.lane.b32.xlu0 %v883, 32
        %v886 = vpop.permute.xlu0 %885
        %v888 = vadd.f32 %v880, %v886
        %v889 = vpack.c.bf16 %v888, %v888
        %891 = vrot.lane.b32.xlu0 %v609, 32
        %v892 = vpop.permute.xlu0 %891
        %894 = vrot.lane.b32.xlu0 %v749, 64
        %v895 = vpop.permute.xlu0 %894
        %897 = vrot.lane.b32.xlu0 %v889, 96
        %v898 = vpop.permute.xlu0 %897
        %v901 = vsel %vm332, %v460, %v892
        %vm902 = vcmask 523264
        %v904 = vsel %vm902, %v901, %v895
        %vm905 = vcmask 785408
        %v907 = vsel %vm905, %v904, %v898
        %909 = vst [vmem:[%s327] sm:$0xf] %v907
        %p910 = scmp.lt.s32.totalorder %s22, 1
        %s911 = scalar_select %p910, %s22, 1
        %p912 = scmp.lt.s32.totalorder %s23, 0
        %s913 = scalar_select %p912, %s23, 0
        %s914 = sadd.s32 %s913, %s911
        %s915 = smul.addr %s914, 4
        %s916 = scalar_lea.vmem %s5, %s915
        // Predicated region
        $region49: #{transformer_lm_forward.10} parent=39 // pred_check
          %p917 = pneg %p172
        $region50: #{transformer_lm_forward.10} parent=39 // pred_check_branch
          %919 = sbr.rel (%p917) target = $region52
        $region51: #{transformer_lm_forward.10} parent=39 // pred_region
          _
        $region52: #{transformer_lm_forward.10} parent=39 // pred_fallthru
          _
      $region40: #{transformer_lm_forward.10} parent=5 // pred_fallthru
        _
      %p920 = scmp.le.s32.totalorder 2, %s13
      // Predicated region
      $region53: #{transformer_lm_forward.10} parent=5 // pred_check
        %p921 = pneg %p920
      $region54: #{transformer_lm_forward.10} parent=5 // pred_check_branch
        %923 = sbr.rel (%p921) target = $region56
      $region55: #{transformer_lm_forward.10} parent=5 // pred_region
        %s924 = ssub.s32 %s13, 2
        // Predicated region
        $region57: #{transformer_lm_forward.10} parent=55 // pred_check
          %p925 = pneg %p178
        $region58: #{transformer_lm_forward.10} parent=55 // pred_check_branch
          %927 = sbr.rel (%p925) target = $region60
        $region59: #{transformer_lm_forward.10} parent=55 // pred_region
          %p928 = scmp.lt.s32.totalorder %s24, 1
          %s929 = scalar_select %p928, %s24, 1
          %p930 = scmp.lt.s32.totalorder %s25, 0
          %s931 = scalar_select %p930, %s25, 0
          %s932 = sadd.s32 %s931, %s929
          %s933 = smul.addr %s932, 4
          %s934 = scalar_lea.vmem %s5, %s933
        $region60: #{transformer_lm_forward.10} parent=55 // pred_fallthru
          _
      $region56: #{transformer_lm_forward.10} parent=5 // pred_fallthru
        _
    $region6: #{transformer_lm_forward.10} parent=1 // loop_footer
      %s17 = sadd.s32 1, %s13
    $region7: #{transformer_lm_forward.10} parent=1 // loop_footer_branch
      %12 = sbr.rel target = $region3
    $region8: #{transformer_lm_forward.10} parent=1 // loop_exit
      _
    %935 = vsyncpa [#allocation3], 1
    %s936 = scalar_lea.sflag [#allocation3], 1
    %937 = vsyncpa %s936, 1
    %938 = vsyncpa [#allocation4], 1
    %s939 = scalar_lea.sflag [#allocation4], 1
    %940 = vsyncpa %s939, 1

// kernel: transformer_lm_forward.12
$region0: #{transformer_lm_forward.12}
  #allocation0 [shape = 'u32[]', space=smem, size = 0x4, offset = 0x4, fixed_abs, tag = 'smem constant byte address 0x4 - core index']
  #allocation1 [shape = 'u32[144,128]{1,0:T(1,128)}', space=vmem, size = 0x12000, scoped, tag = 'internal scratch']
  #allocation2 [shape = 'bf16[16,128]{1,0:T(16,128)(2,1)}', space=vmem, size = 0x1000, scoped, tag = 'scratch operand']
  #allocation3 [shape = 'f32[16,128]{1,0:T(8,128)}', space=vmem, size = 0x2000, scoped, tag = 'scratch operand']
  %s0 = inlined_call_operand.vmem [shape: f32[16,128], index: 0, kind: input, shape index: {}]
  %s1 = inlined_call_operand.hbm [shape: f32[1,128], index: 1, kind: input, shape index: {}]
  %s2 = inlined_call_operand.hbm [shape: f32[1,128], index: 2, kind: input, shape index: {}]
  %s3 = inlined_call_operand.vmem [shape: bf16[128,512], index: 3, kind: input, shape index: {}]
  %s4 = inlined_call_operand.hbm [shape: f32[1,512], index: 4, kind: input, shape index: {}]
  %s5 = inlined_call_operand.vmem [shape: bf16[512,128], index: 5, kind: input, shape index: {}]
  %s6 = inlined_call_operand.hbm [shape: f32[1,128], index: 6, kind: input, shape index: {}]
  %s7 = inlined_call_operand.vmem [shape: f32[16,128], index: 7, kind: output, shape index: {}]
  %s8 = sld [smem:[#allocation0]]
  $region62: #{transformer_lm_forward.12} parent=0
    _
  %s10 = ssub.s32 1, %s8
  %s11 = scalar_select 0, %s10, %s8
  $region1: #{transformer_lm_forward.12} parent=0
    #allocation4 [shape = 'u8[512]{0}', space=vmem, size = 0x400, scoped, tag = 'input window, operand 1, single buffered']
    #allocation5 [shape = 's32[1]{0}', space=sflag, size = 0x4, scoped, tag = 'scoped memory for transformer_lm_forward.12']
    #allocation6 [shape = 'u8[512]{0}', space=vmem, size = 0x400, scoped, tag = 'input window, operand 2, single buffered']
    #allocation7 [shape = 's32[1]{0}', space=sflag, size = 0x4, scoped, tag = 'scoped memory for transformer_lm_forward.12']
    #allocation8 [shape = 'u8[2048]{0}', space=vmem, size = 0x800, scoped, tag = 'input window, operand 4, single buffered']
    #allocation9 [shape = 'u8[512]{0}', space=vmem, size = 0x400, scoped, tag = 'input window, operand 6, single buffered']
    #allocation10 [shape = 's32[1]{0}', space=sflag, size = 0x4, scoped, tag = 'scoped memory for transformer_lm_forward.12']
    %12 = vsyncpa [#allocation5], 0
    %13 = vsyncpa [#allocation7], 0
    %14 = vsyncpa [#allocation10], 0
    // Predicated region
    $region2: #{transformer_lm_forward.12} parent=1 // pred_check
      _
    $region3: #{transformer_lm_forward.12} parent=1 // pred_check_branch
      %16 = sbr.rel (0) target = $region5
    $region4: #{transformer_lm_forward.12} parent=1 // pred_region
      _
    $region5: #{transformer_lm_forward.12} parent=1 // pred_fallthru
      _
    // Predicated region
    $region6: #{transformer_lm_forward.12} parent=1 // pred_check
      _
    $region7: #{transformer_lm_forward.12} parent=1 // pred_check_branch
      %18 = sbr.rel (0) target = $region9
    $region8: #{transformer_lm_forward.12} parent=1 // pred_region
      %s20 = ssub.s32 16, 16
      %21 = vsyncadd [#allocation5], %s20
      %s23 = sshll.u32 [#allocation4], 4
      %s24 = int_to_ptr.vmem [resolvable:$true] %s23
      %26 = dma.hbm_to_vmem [thread:$0]  %s1, 16, %s24, [#allocation5]
    $region9: #{transformer_lm_forward.12} parent=1 // pred_fallthru
      _
    // Predicated region
    $region10: #{transformer_lm_forward.12} parent=1 // pred_check
      _
    $region11: #{transformer_lm_forward.12} parent=1 // pred_check_branch
      %28 = sbr.rel (0) target = $region13
    $region12: #{transformer_lm_forward.12} parent=1 // pred_region
      %s30 = ssub.s32 16, 16
      %31 = vsyncadd [#allocation7], %s30
      %s33 = sshll.u32 [#allocation6], 4
      %s34 = int_to_ptr.vmem [resolvable:$true] %s33
      %36 = dma.hbm_to_vmem [thread:$0]  %s2, 16, %s34, [#allocation7]
    $region13: #{transformer_lm_forward.12} parent=1 // pred_fallthru
      _
    // Predicated region
    $region14: #{transformer_lm_forward.12} parent=1 // pred_check
      _
    $region15: #{transformer_lm_forward.12} parent=1 // pred_check_branch
      %38 = sbr.rel (0) target = $region17
    $region16: #{transformer_lm_forward.12} parent=1 // pred_region
      _
    $region17: #{transformer_lm_forward.12} parent=1 // pred_fallthru
      _
    // Predicated region
    $region18: #{transformer_lm_forward.12} parent=1 // pred_check
      _
    $region19: #{transformer_lm_forward.12} parent=1 // pred_check_branch
      %40 = sbr.rel (0) target = $region21
    $region20: #{transformer_lm_forward.12} parent=1 // pred_region
      %s42 = ssub.s32 64, 64
      %43 = vsyncadd [#allocation7], %s42
      %s45 = sshll.u32 [#allocation8], 4
      %s46 = int_to_ptr.vmem [resolvable:$true] %s45
      %48 = dma.hbm_to_vmem [thread:$0]  %s4, 64, %s46, [#allocation7]
    $region21: #{transformer_lm_forward.12} parent=1 // pred_fallthru
      _
    // Predicated region
    $region22: #{transformer_lm_forward.12} parent=1 // pred_check
      _
    $region23: #{transformer_lm_forward.12} parent=1 // pred_check_branch
      %50 = sbr.rel (0) target = $region25
    $region24: #{transformer_lm_forward.12} parent=1 // pred_region
      _
    $region25: #{transformer_lm_forward.12} parent=1 // pred_fallthru
      _
    // Predicated region
    $region26: #{transformer_lm_forward.12} parent=1 // pred_check
      _
    $region27: #{transformer_lm_forward.12} parent=1 // pred_check_branch
      %52 = sbr.rel (0) target = $region29
    $region28: #{transformer_lm_forward.12} parent=1 // pred_region
      %s54 = ssub.s32 16, 16
      %55 = vsyncadd [#allocation10], %s54
      %s57 = sshll.u32 [#allocation9], 4
      %s58 = int_to_ptr.vmem [resolvable:$true] %s57
      %60 = dma.hbm_to_vmem [thread:$0]  %s6, 16, %s58, [#allocation10]
    $region29: #{transformer_lm_forward.12} parent=1 // pred_fallthru
      _
    // Predicated region
    $region30: #{transformer_lm_forward.12} parent=1 // pred_check
      _
    $region31: #{transformer_lm_forward.12} parent=1 // pred_check_branch
      %62 = sbr.rel (0) target = $region33
    $region32: #{transformer_lm_forward.12} parent=1 // pred_region
      %63 = dma.done [#allocation5], 16
    $region33: #{transformer_lm_forward.12} parent=1 // pred_fallthru
      _
    // Predicated region
    $region34: #{transformer_lm_forward.12} parent=1 // pred_check
      _
    $region35: #{transformer_lm_forward.12} parent=1 // pred_check_branch
      %65 = sbr.rel (0) target = $region37
    $region36: #{transformer_lm_forward.12} parent=1 // pred_region
      %66 = dma.done [#allocation7], 16
    $region37: #{transformer_lm_forward.12} parent=1 // pred_fallthru
      _
    // Predicated region
    $region38: #{transformer_lm_forward.12} parent=1 // pred_check
      _
    $region39: #{transformer_lm_forward.12} parent=1 // pred_check_branch
      %68 = sbr.rel (0) target = $region41
    $region40: #{transformer_lm_forward.12} parent=1 // pred_region
      %69 = dma.done [#allocation7], 64
    $region41: #{transformer_lm_forward.12} parent=1 // pred_fallthru
      _
    // Predicated region
    $region42: #{transformer_lm_forward.12} parent=1 // pred_check
      _
    $region43: #{transformer_lm_forward.12} parent=1 // pred_check_branch
      %71 = sbr.rel (0) target = $region45
    $region44: #{transformer_lm_forward.12} parent=1 // pred_region
      %72 = dma.done [#allocation10], 16
    $region45: #{transformer_lm_forward.12} parent=1 // pred_fallthru
      _
    %p74 = scmp.eq.s32.totalorder 0, 0
    // Predicated region
    $region46: #{transformer_lm_forward.12} parent=1 // pred_check
      %p75 = pneg %p74
    $region47: #{transformer_lm_forward.12} parent=1 // pred_check_branch
      %77 = sbr.rel (%p75) target = $region49
    $region48: #{transformer_lm_forward.12} parent=1 // pred_region
      %v78 = vld [vmem:[%s0] sm:$0xff]
      %v79 = vld [vmem:[%s0 + $0x8] sm:$0xff]
      %80 = vadd.xlane.f32.xlu0 %v78
      %v81 = vpop.xlane.xlu0 %80
      %82 = vadd.xlane.f32.xlu0 %v79
      %v83 = vpop.xlane.xlu0 %82
      %v84 = vrcp.pop 128.0
      %v85 = vmul.f32 %v81, %v84
      %v86 = vmul.f32 %v83, %v84
      %v87 = vsub.f32 %v78, %v85
      %v88 = vsub.f32 %v79, %v86
      %v89 = vmul.f32 %v87, %v87
      %v90 = vmul.f32 %v88, %v88
      %91 = vadd.xlane.f32.xlu0 %v89
      %v92 = vpop.xlane.xlu0 %91
      %93 = vadd.xlane.f32.xlu0 %v90
      %v94 = vpop.xlane.xlu0 %93
      %v95 = vmul.f32 %v92, %v84
      %v96 = vmul.f32 %v94, %v84
      %v97 = vadd.f32 %v95, 1e-05
      %v98 = vadd.f32 %v96, 1e-05
      %v99 = vrsqrt.pop %v97
      %v100 = vrsqrt.pop %v98
      %v101 = vld [vmem:[#allocation4] sm:$0x1]
      %v103 = vlaneseq
      %v104 = vshrl.u32 %v103, 7
      %v105 = vsub.s32 0, %v104
      %v106 = vrot.slane %v101, %v105
      %v108 = vmul.f32 %v99, %v106
      %v109 = vmul.f32 %v100, %v106
      %v110 = vmul.f32 %v87, %v108
      %v111 = vmul.f32 %v88, %v109
      %v112 = vld [vmem:[#allocation6] sm:$0x1]
      %v114 = vlaneseq
      %v115 = vshrl.u32 %v114, 7
      %v116 = vsub.s32 0, %v115
      %v117 = vrot.slane %v112, %v116
      %v119 = vadd.f32 %v110, %v117
      %v120 = vadd.f32 %v111, %v117
      %v121 = vpack.c.bf16 %v120, %v119
      %122 = vst [vmem:[#allocation2] sm:$0xff] %v121
      %123 = vst [vmem:[#allocation3] sm:$0xff] 0.0
      %124 = vst [vmem:[#allocation3 + $0x8] sm:$0xff] 0.0
    $region49: #{transformer_lm_forward.12} parent=1 // pred_fallthru
      _
    %v125 = vld [vmem:[#allocation2] sm:$0xff]
    %v126 = vld [vmem:[%s3] sm:$0xff]
    %v127 = vld [vmem:[%s3 + $0x8] sm:$0xff]
    %v128 = vld [vmem:[%s3 + $0x10] sm:$0xff]
    %v129 = vld [vmem:[%s3 + $0x18] sm:$0xff]
    %v130 = vld [vmem:[%s3 + $0x20] sm:$0xff]
    %v131 = vld [vmem:[%s3 + $0x28] sm:$0xff]
    %v132 = vld [vmem:[%s3 + $0x30] sm:$0xff]
    %v133 = vld [vmem:[%s3 + $0x38] sm:$0xff]
    %v134 = vld [vmem:[%s3 + $0x40] sm:$0xff]
    %v135 = vld [vmem:[%s3 + $0x48] sm:$0xff]
    %v136 = vld [vmem:[%s3 + $0x50] sm:$0xff]
    %v137 = vld [vmem:[%s3 + $0x58] sm:$0xff]
    %v138 = vld [vmem:[%s3 + $0x60] sm:$0xff]
    %v139 = vld [vmem:[%s3 + $0x68] sm:$0xff]
    %v140 = vld [vmem:[%s3 + $0x70] sm:$0xff]
    %v141 = vld [vmem:[%s3 + $0x78] sm:$0xff]
    %v142 = vld [vmem:[%s3 + $0x80] sm:$0xff]
    %v143 = vld [vmem:[%s3 + $0x88] sm:$0xff]
    %v144 = vld [vmem:[%s3 + $0x90] sm:$0xff]
    %v145 = vld [vmem:[%s3 + $0x98] sm:$0xff]
    %v146 = vld [vmem:[%s3 + $0xa0] sm:$0xff]
    %v147 = vld [vmem:[%s3 + $0xa8] sm:$0xff]
    %v148 = vld [vmem:[%s3 + $0xb0] sm:$0xff]
    %v149 = vld [vmem:[%s3 + $0xb8] sm:$0xff]
    %v150 = vld [vmem:[%s3 + $0xc0] sm:$0xff]
    %v151 = vld [vmem:[%s3 + $0xc8] sm:$0xff]
    %v152 = vld [vmem:[%s3 + $0xd0] sm:$0xff]
    %v153 = vld [vmem:[%s3 + $0xd8] sm:$0xff]
    %v154 = vld [vmem:[%s3 + $0xe0] sm:$0xff]
    %v155 = vld [vmem:[%s3 + $0xe8] sm:$0xff]
    %v156 = vld [vmem:[%s3 + $0xf0] sm:$0xff]
    %v157 = vld [vmem:[%s3 + $0xf8] sm:$0xff]
    %v158 = vld [vmem:[#allocation8] sm:$0xf]
    %v160 = vlaneseq
    %v161 = vshrl.u32 %v160, 7
    %v162 = vsub.s32 0, %v161
    %v163 = vrot.slane %v158, %v162
    %v164 = vlaneseq
    %v165 = vshrl.u32 %v164, 7
    %v166 = vsub.s32 1, %v165
    %v167 = vrot.slane %v158, %v166
    %v168 = vlaneseq
    %v169 = vshrl.u32 %v168, 7
    %v170 = vsub.s32 2, %v169
    %v171 = vrot.slane %v158, %v170
    %v172 = vlaneseq
    %v173 = vshrl.u32 %v172, 7
    %v174 = vsub.s32 3, %v173
    %v175 = vrot.slane %v158, %v174
    %v212 = vunpack.c.l.b16 %v126
    %v213 = vunpack.c.h.b16 %v126
    %v214 = vunpack.c.l.b16 %v127
    %v215 = vunpack.c.h.b16 %v127
    %v216 = vunpack.c.l.b16 %v128
    %v217 = vunpack.c.h.b16 %v128
    %v218 = vunpack.c.l.b16 %v129
    %v219 = vunpack.c.h.b16 %v129
    %v220 = vunpack.c.l.b16 %v130
    %v221 = vunpack.c.h.b16 %v130
    %v222 = vunpack.c.l.b16 %v131
    %v223 = vunpack.c.h.b16 %v131
    %v224 = vunpack.c.l.b16 %v132
    %v225 = vunpack.c.h.b16 %v132
    %v226 = vunpack.c.l.b16 %v133
    %v227 = vunpack.c.h.b16 %v133
    %v228 = vunpack.c.l.b16 %v134
    %v229 = vunpack.c.h.b16 %v134
    %v230 = vunpack.c.l.b16 %v135
    %v231 = vunpack.c.h.b16 %v135
    %v232 = vunpack.c.l.b16 %v136
    %v233 = vunpack.c.h.b16 %v136
    %v234 = vunpack.c.l.b16 %v137
    %v235 = vunpack.c.h.b16 %v137
    %v236 = vunpack.c.l.b16 %v138
    %v237 = vunpack.c.h.b16 %v138
    %v238 = vunpack.c.l.b16 %v139
    %v239 = vunpack.c.h.b16 %v139
    %v240 = vunpack.c.l.b16 %v140
    %v241 = vunpack.c.h.b16 %v140
    %v242 = vunpack.c.l.b16 %v141
    %v243 = vunpack.c.h.b16 %v141
    %v244 = vunpack.c.l.b16 %v142
    %v245 = vunpack.c.h.b16 %v142
    %v246 = vunpack.c.l.b16 %v143
    %v247 = vunpack.c.h.b16 %v143
    %v248 = vunpack.c.l.b16 %v144
    %v249 = vunpack.c.h.b16 %v144
    %v250 = vunpack.c.l.b16 %v145
    %v251 = vunpack.c.h.b16 %v145
    %v252 = vunpack.c.l.b16 %v146
    %v253 = vunpack.c.h.b16 %v146
    %v254 = vunpack.c.l.b16 %v147
    %v255 = vunpack.c.h.b16 %v147
    %v256 = vunpack.c.l.b16 %v148
    %v257 = vunpack.c.h.b16 %v148
    %v258 = vunpack.c.l.b16 %v149
    %v259 = vunpack.c.h.b16 %v149
    %v260 = vunpack.c.l.b16 %v150
    %v261 = vunpack.c.h.b16 %v150
    %v262 = vunpack.c.l.b16 %v151
    %v263 = vunpack.c.h.b16 %v151
    %v264 = vunpack.c.l.b16 %v152
    %v265 = vunpack.c.h.b16 %v152
    %v266 = vunpack.c.l.b16 %v153
    %v267 = vunpack.c.h.b16 %v153
    %v268 = vunpack.c.l.b16 %v154
    %v269 = vunpack.c.h.b16 %v154
    %v270 = vunpack.c.l.b16 %v155
    %v271 = vunpack.c.h.b16 %v155
    %v272 = vunpack.c.l.b16 %v156
    %v273 = vunpack.c.h.b16 %v156
    %v274 = vunpack.c.l.b16 %v157
    %v275 = vunpack.c.h.b16 %v157
    %v276 = vpack.c.b16 %v216, %v212
    %v277 = vpack.c.b16 %v217, %v213
    %v278 = vpack.c.b16 %v218, %v214
    %v279 = vpack.c.b16 %v219, %v215
    %v280 = vpack.c.b16 %v224, %v220
    %v281 = vpack.c.b16 %v225, %v221
    %v282 = vpack.c.b16 %v226, %v222
    %v283 = vpack.c.b16 %v227, %v223
    %v284 = vpack.c.b16 %v232, %v228
    %v285 = vpack.c.b16 %v233, %v229
    %v286 = vpack.c.b16 %v234, %v230
    %v287 = vpack.c.b16 %v235, %v231
    %v288 = vpack.c.b16 %v240, %v236
    %v289 = vpack.c.b16 %v241, %v237
    %v290 = vpack.c.b16 %v242, %v238
    %v291 = vpack.c.b16 %v243, %v239
    %v292 = vpack.c.b16 %v248, %v244
    %v293 = vpack.c.b16 %v249, %v245
    %v294 = vpack.c.b16 %v250, %v246
    %v295 = vpack.c.b16 %v251, %v247
    %v296 = vpack.c.b16 %v256, %v252
    %v297 = vpack.c.b16 %v257, %v253
    %v298 = vpack.c.b16 %v258, %v254
    %v299 = vpack.c.b16 %v259, %v255
    %v300 = vpack.c.b16 %v264, %v260
    %v301 = vpack.c.b16 %v265, %v261
    %v302 = vpack.c.b16 %v266, %v262
    %v303 = vpack.c.b16 %v267, %v263
    %v304 = vpack.c.b16 %v272, %v268
    %v305 = vpack.c.b16 %v273, %v269
    %v306 = vpack.c.b16 %v274, %v270
    %v307 = vpack.c.b16 %v275, %v271
    %340 = vmatprep.subr.bf16.mxu0 %v277
    %341 = vmatpush1.bf16.msra.mxu0 %v276
    %342 = vmatprep.subr.bf16.mxu0 %v281
    %343 = vmatpush1.bf16.msra.mxu0 %v280
    %344 = vmatprep.subr.bf16.mxu0 %v285
    %345 = vmatpush1.bf16.msra.mxu0 %v284
    %346 = vmatprep.subr.bf16.mxu0 %v289
    %347 = vmatpush1.bf16.msra.mxu0 %v288
    %348 = vmatprep.subr.bf16.mxu0 %v293
    %349 = vmatpush1.bf16.msra.mxu0 %v292
    %350 = vmatprep.subr.bf16.mxu0 %v297
    %351 = vmatpush1.bf16.msra.mxu0 %v296
    %352 = vmatprep.subr.bf16.mxu0 %v301
    %353 = vmatpush1.bf16.msra.mxu0 %v300
    %354 = vmatprep.subr.bf16.mxu0 %v305
    %355 = vmatpush1.bf16.msra.mxu0 %v304
    %356 = vmatprep.subr.bf16.mxu0 0
    %357 = vmatpush1.bf16.msra.mxu0 0
    %358 = vmatprep.subr.bf16.mxu0 0
    %359 = vmatpush1.bf16.msra.mxu0 0
    %360 = vmatprep.subr.bf16.mxu0 0
    %361 = vmatpush1.bf16.msra.mxu0 0
    %362 = vmatprep.subr.bf16.mxu0 0
    %363 = vmatpush1.bf16.msra.mxu0 0
    %364 = vmatprep.subr.bf16.mxu0 0
    %365 = vmatpush1.bf16.msra.mxu0 0
    %366 = vmatprep.subr.bf16.mxu0 0
    %367 = vmatpush1.bf16.msra.mxu0 0
    %368 = vmatprep.subr.bf16.mxu0 0
    %369 = vmatpush1.bf16.msra.mxu0 0
    %370 = vmatprep.subr.bf16.mxu0 0
    %371 = vmatpush1.bf16.msra.mxu0 0
    %372 = vmatprep.mubr.bf16.mxu0 0
    %373 = vmatmul.mubr.bf16.gmra.mrb[0].mxu0 %v125
    %v374 = vpop.f32.mrb[0].mxu0
    %v375 = vadd.f32 %v163, %v374
    %v376 = vpop.f32.mrb[0].mxu0
    %v377 = vadd.f32 %v167, %v376
    %v378 = vpop.f32.mrb[0].mxu0
    %v379 = vadd.f32 %v163, %v378
    %v380 = vpop.f32.mrb[0].mxu0
    %v381 = vadd.f32 %v167, %v380
    %382 = vdwg.mxu0
    %383 = vmatprep.subr.bf16.mxu0 %v279
    %384 = vmatpush1.bf16.msra.mxu0 %v278
    %385 = vmatprep.subr.bf16.mxu0 %v283
    %386 = vmatpush1.bf16.msra.mxu0 %v282
    %387 = vmatprep.subr.bf16.mxu0 %v287
    %388 = vmatpush1.bf16.msra.mxu0 %v286
    %389 = vmatprep.subr.bf16.mxu0 %v291
    %390 = vmatpush1.bf16.msra.mxu0 %v290
    %391 = vmatprep.subr.bf16.mxu0 %v295
    %392 = vmatpush1.bf16.msra.mxu0 %v294
    %393 = vmatprep.subr.bf16.mxu0 %v299
    %394 = vmatpush1.bf16.msra.mxu0 %v298
    %395 = vmatprep.subr.bf16.mxu0 %v303
    %396 = vmatpush1.bf16.msra.mxu0 %v302
    %397 = vmatprep.subr.bf16.mxu0 %v307
    %398 = vmatpush1.bf16.msra.mxu0 %v306
    %399 = vmatprep.subr.bf16.mxu0 0
    %400 = vmatpush1.bf16.msra.mxu0 0
    %401 = vmatprep.subr.bf16.mxu0 0
    %402 = vmatpush1.bf16.msra.mxu0 0
    %403 = vmatprep.subr.bf16.mxu0 0
    %404 = vmatpush1.bf16.msra.mxu0 0
    %405 = vmatprep.subr.bf16.mxu0 0
    %406 = vmatpush1.bf16.msra.mxu0 0
    %407 = vmatprep.subr.bf16.mxu0 0
    %408 = vmatpush1.bf16.msra.mxu0 0
    %409 = vmatprep.subr.bf16.mxu0 0
    %410 = vmatpush1.bf16.msra.mxu0 0
    %411 = vmatprep.subr.bf16.mxu0 0
    %412 = vmatpush1.bf16.msra.mxu0 0
    %413 = vmatprep.subr.bf16.mxu0 0
    %414 = vmatpush1.bf16.msra.mxu0 0
    %415 = vmatprep.mubr.bf16.mxu0 0
    %416 = vmatmul.mubr.bf16.gmra.mrb[0].mxu0 %v125
    %v417 = vpop.f32.mrb[0].mxu0
    %v418 = vadd.f32 %v171, %v417
    %v419 = vpop.f32.mrb[0].mxu0
    %v420 = vadd.f32 %v175, %v419
    %v421 = vpop.f32.mrb[0].mxu0
    %v422 = vadd.f32 %v171, %v421
    %v423 = vpop.f32.mrb[0].mxu0
    %v424 = vadd.f32 %v175, %v423
    %425 = vdwg.mxu0
    %v426 = vmul.f32 %v375, 0.70710677
    %v427 = vmul.f32 %v377, 0.70710677
    %v428 = vmul.f32 %v418, 0.70710677
    %v429 = vmul.f32 %v420, 0.70710677
    %v430 = vmul.f32 %v379, 0.70710677
    %v431 = vmul.f32 %v381, 0.70710677
    %v432 = vmul.f32 %v422, 0.70710677
    %v433 = vmul.f32 %v424, 0.70710677
    %v434 = vand.u32 2147483647, %v426
    %v435 = vand.u32 2147483647, %v427
    %v436 = vand.u32 2147483647, %v428
    %v437 = vand.u32 2147483647, %v429
    %v438 = vand.u32 2147483647, %v430
    %v439 = vand.u32 2147483647, %v431
    %v440 = vand.u32 2147483647, %v432
    %v441 = vand.u32 2147483647, %v433
    %v442 = vmul.f32 %v434, 0.3275911
    %v443 = vmul.f32 %v435, 0.3275911
    %v444 = vmul.f32 %v436, 0.3275911
    %v445 = vmul.f32 %v437, 0.3275911
    %v446 = vmul.f32 %v438, 0.3275911
    %v447 = vmul.f32 %v439, 0.3275911
    %v448 = vmul.f32 %v440, 0.3275911
    %v449 = vmul.f32 %v441, 0.3275911
    %v450 = vadd.f32 %v442, 1.0
    %v451 = vadd.f32 %v443, 1.0
    %v452 = vadd.f32 %v444, 1.0
    %v453 = vadd.f32 %v445, 1.0
    %v454 = vadd.f32 %v446, 1.0
    %v455 = vadd.f32 %v447, 1.0
    %v456 = vadd.f32 %v448, 1.0
    %v457 = vadd.f32 %v449, 1.0
    %v458 = vrcp.pop %v450
    %v459 = vmul.f32 1.0, %v458
    %v460 = vrcp.pop %v451
    %v461 = vmul.f32 1.0, %v460
    %v462 = vrcp.pop %v452
    %v463 = vmul.f32 1.0, %v462
    %v464 = vrcp.pop %v453
    %v465 = vmul.f32 1.0, %v464
    %v466 = vrcp.pop %v454
    %v467 = vmul.f32 1.0, %v466
    %v468 = vrcp.pop %v455
    %v469 = vmul.f32 1.0, %v468
    %v470 = vrcp.pop %v456
    %v471 = vmul.f32 1.0, %v470
    %v472 = vrcp.pop %v457
    %v473 = vmul.f32 1.0, %v472
    %v474 = vmul.f32 %v459, 1.0614054
    %v475 = vmul.f32 %v461, 1.0614054
    %v476 = vmul.f32 %v463, 1.0614054
    %v477 = vmul.f32 %v465, 1.0614054
    %v478 = vmul.f32 %v467, 1.0614054
    %v479 = vmul.f32 %v469, 1.0614054
    %v480 = vmul.f32 %v471, 1.0614054
    %v481 = vmul.f32 %v473, 1.0614054
    %v482 = vadd.f32 %v474, -1.4531521
    %v483 = vadd.f32 %v475, -1.4531521
    %v484 = vadd.f32 %v476, -1.4531521
    %v485 = vadd.f32 %v477, -1.4531521
    %v486 = vadd.f32 %v478, -1.4531521
    %v487 = vadd.f32 %v479, -1.4531521
    %v488 = vadd.f32 %v480, -1.4531521
    %v489 = vadd.f32 %v481, -1.4531521
    %v490 = vmul.f32 %v459, %v482
    %v491 = vmul.f32 %v461, %v483
    %v492 = vmul.f32 %v463, %v484
    %v493 = vmul.f32 %v465, %v485
    %v494 = vmul.f32 %v467, %v486
    %v495 = vmul.f32 %v469, %v487
    %v496 = vmul.f32 %v471, %v488
    %v497 = vmul.f32 %v473, %v489
    %v498 = vadd.f32 %v490, 1.4214138
    %v499 = vadd.f32 %v491, 1.4214138
    %v500 = vadd.f32 %v492, 1.4214138
    %v501 = vadd.f32 %v493, 1.4214138
    %v502 = vadd.f32 %v494, 1.4214138
    %v503 = vadd.f32 %v495, 1.4214138
    %v504 = vadd.f32 %v496, 1.4214138
    %v505 = vadd.f32 %v497, 1.4214138
    %v506 = vmul.f32 %v459, %v498
    %v507 = vmul.f32 %v461, %v499
    %v508 = vmul.f32 %v463, %v500
    %v509 = vmul.f32 %v465, %v501
    %v510 = vmul.f32 %v467, %v502
    %v511 = vmul.f32 %v469, %v503
    %v512 = vmul.f32 %v471, %v504
    %v513 = vmul.f32 %v473, %v505
    %v514 = vadd.f32 %v506, -0.28449672
    %v515 = vadd.f32 %v507, -0.28449672
    %v516 = vadd.f32 %v508, -0.28449672
    %v517 = vadd.f32 %v509, -0.28449672
    %v518 = vadd.f32 %v510, -0.28449672
    %v519 = vadd.f32 %v511, -0.28449672
    %v520 = vadd.f32 %v512, -0.28449672
    %v521 = vadd.f32 %v513, -0.28449672
    %v522 = vmul.f32 %v459, %v514
    %v523 = vmul.f32 %v461, %v515
    %v524 = vmul.f32 %v463, %v516
    %v525 = vmul.f32 %v465, %v517
    %v526 = vmul.f32 %v467, %v518
    %v527 = vmul.f32 %v469, %v519
    %v528 = vmul.f32 %v471, %v520
    %v529 = vmul.f32 %v473, %v521
    %v530 = vadd.f32 %v522, 0.2548296
    %v531 = vadd.f32 %v523, 0.2548296
    %v532 = vadd.f32 %v524, 0.2548296
    %v533 = vadd.f32 %v525, 0.2548296
    %v534 = vadd.f32 %v526, 0.2548296
    %v535 = vadd.f32 %v527, 0.2548296
    %v536 = vadd.f32 %v528, 0.2548296
    %v537 = vadd.f32 %v529, 0.2548296
    %v538 = vmul.f32 %v459, %v530
    %v539 = vmul.f32 %v461, %v531
    %v540 = vmul.f32 %v463, %v532
    %v541 = vmul.f32 %v465, %v533
    %v542 = vmul.f32 %v467, %v534
    %v543 = vmul.f32 %v469, %v535
    %v544 = vmul.f32 %v471, %v536
    %v545 = vmul.f32 %v473, %v537
    %v546 = vsub.f32 0.0, %v434
    %v547 = vsub.f32 0.0, %v435
    %v548 = vsub.f32 0.0, %v436
    %v549 = vsub.f32 0.0, %v437
    %v550 = vsub.f32 0.0, %v438
    %v551 = vsub.f32 0.0, %v439
    %v552 = vsub.f32 0.0, %v440
    %v553 = vsub.f32 0.0, %v441
    %v554 = vmul.f32 %v546, %v434
    %v555 = vmul.f32 %v547, %v435
    %v556 = vmul.f32 %v548, %v436
    %v557 = vmul.f32 %v549, %v437
    %v558 = vmul.f32 %v550, %v438
    %v559 = vmul.f32 %v551, %v439
    %v560 = vmul.f32 %v552, %v440
    %v561 = vmul.f32 %v553, %v441
    %v562 = vmul.f32 %v554, 1.442695
    %v563 = vpow.pop %v562
    %v564 = vmul.f32 %v555, 1.442695
    %v565 = vpow.pop %v564
    %v566 = vmul.f32 %v556, 1.442695
    %v567 = vpow.pop %v566
    %v568 = vmul.f32 %v557, 1.442695
    %v569 = vpow.pop %v568
    %v570 = vmul.f32 %v558, 1.442695
    %v571 = vpow.pop %v570
    %v572 = vmul.f32 %v559, 1.442695
    %v573 = vpow.pop %v572
    %v574 = vmul.f32 %v560, 1.442695
    %v575 = vpow.pop %v574
    %v576 = vmul.f32 %v561, 1.442695
    %v577 = vpow.pop %v576
    %v578 = vmul.f32 %v538, %v563
    %v579 = vmul.f32 %v539, %v565
    %v580 = vmul.f32 %v540, %v567
    %v581 = vmul.f32 %v541, %v569
    %v582 = vmul.f32 %v542, %v571
    %v583 = vmul.f32 %v543, %v573
    %v584 = vmul.f32 %v544, %v575
    %v585 = vmul.f32 %v545, %v577
    %v586 = vsub.f32 1.0, %v578
    %v587 = vsub.f32 1.0, %v579
    %v588 = vsub.f32 1.0, %v580
    %v589 = vsub.f32 1.0, %v581
    %v590 = vsub.f32 1.0, %v582
    %v591 = vsub.f32 1.0, %v583
    %v592 = vsub.f32 1.0, %v584
    %v593 = vsub.f32 1.0, %v585
    %vm594 = vcmp.ge.f32.partialorder %v426, 0.0
    %vm595 = vcmp.ge.f32.partialorder %v427, 0.0
    %vm596 = vcmp.ge.f32.partialorder %v428, 0.0
    %vm597 = vcmp.ge.f32.partialorder %v429, 0.0
    %vm598 = vcmp.ge.f32.partialorder %v430, 0.0
    %vm599 = vcmp.ge.f32.partialorder %v431, 0.0
    %vm600 = vcmp.ge.f32.partialorder %v432, 0.0
    %vm601 = vcmp.ge.f32.partialorder %v433, 0.0
    %v602 = vsub.f32 0.0, %v586
    %v603 = vsub.f32 0.0, %v587
    %v604 = vsub.f32 0.0, %v588
    %v605 = vsub.f32 0.0, %v589
    %v606 = vsub.f32 0.0, %v590
    %v607 = vsub.f32 0.0, %v591
    %v608 = vsub.f32 0.0, %v592
    %v609 = vsub.f32 0.0, %v593
    %v610 = vsel %vm594, %v586, %v602
    %v611 = vsel %vm595, %v587, %v603
    %v612 = vsel %vm596, %v588, %v604
    %v613 = vsel %vm597, %v589, %v605
    %v614 = vsel %vm598, %v590, %v606
    %v615 = vsel %vm599, %v591, %v607
    %v616 = vsel %vm600, %v592, %v608
    %v617 = vsel %vm601, %v593, %v609
    %v618 = vmul.f32 %v375, 0.5
    %v619 = vmul.f32 %v377, 0.5
    %v620 = vmul.f32 %v418, 0.5
    %v621 = vmul.f32 %v420, 0.5
    %v622 = vmul.f32 %v379, 0.5
    %v623 = vmul.f32 %v381, 0.5
    %v624 = vmul.f32 %v422, 0.5
    %v625 = vmul.f32 %v424, 0.5
    %v626 = vadd.f32 %v610, 1.0
    %v627 = vadd.f32 %v611, 1.0
    %v628 = vadd.f32 %v612, 1.0
    %v629 = vadd.f32 %v613, 1.0
    %v630 = vadd.f32 %v614, 1.0
    %v631 = vadd.f32 %v615, 1.0
    %v632 = vadd.f32 %v616, 1.0
    %v633 = vadd.f32 %v617, 1.0
    %v634 = vmul.f32 %v618, %v626
    %v635 = vmul.f32 %v619, %v627
    %v636 = vmul.f32 %v620, %v628
    %v637 = vmul.f32 %v621, %v629
    %v638 = vmul.f32 %v622, %v630
    %v639 = vmul.f32 %v623, %v631
    %v640 = vmul.f32 %v624, %v632
    %v641 = vmul.f32 %v625, %v633
    %v642 = vld [vmem:[#allocation3] sm:$0xff]
    %v643 = vld [vmem:[#allocation3 + $0x8] sm:$0xff]
    %v644 = vpack.c.bf16 %v638, %v634
    %v645 = vpack.c.bf16 %v639, %v635
    %v646 = vpack.c.bf16 %v640, %v636
    %v647 = vpack.c.bf16 %v641, %v637
    %v648 = vld [vmem:[%s5] sm:$0xf]
    %v649 = vld [vmem:[%s5 + $0x4] sm:$0xf]
    %v650 = vld [vmem:[%s5 + $0x8] sm:$0xf]
    %v651 = vld [vmem:[%s5 + $0xc] sm:$0xf]
    %v652 = vld [vmem:[%s5 + $0x10] sm:$0xf]
    %v653 = vld [vmem:[%s5 + $0x14] sm:$0xf]
    %v654 = vld [vmem:[%s5 + $0x18] sm:$0xf]
    %v655 = vld [vmem:[%s5 + $0x1c] sm:$0xf]
    %v656 = vld [vmem:[%s5 + $0x20] sm:$0xf]
    %v657 = vld [vmem:[%s5 + $0x24] sm:$0xf]
    %v658 = vld [vmem:[%s5 + $0x28] sm:$0xf]
    %v659 = vld [vmem:[%s5 + $0x2c] sm:$0xf]
    %v660 = vld [vmem:[%s5 + $0x30] sm:$0xf]
    %v661 = vld [vmem:[%s5 + $0x34] sm:$0xf]
    %v662 = vld [vmem:[%s5 + $0x38] sm:$0xf]
    %v663 = vld [vmem:[%s5 + $0x3c] sm:$0xf]
    %v664 = vld [vmem:[%s5 + $0x40] sm:$0xf]
    %v665 = vld [vmem:[%s5 + $0x44] sm:$0xf]
    %v666 = vld [vmem:[%s5 + $0x48] sm:$0xf]
    %v667 = vld [vmem:[%s5 + $0x4c] sm:$0xf]
    %v668 = vld [vmem:[%s5 + $0x50] sm:$0xf]
    %v669 = vld [vmem:[%s5 + $0x54] sm:$0xf]
    %v670 = vld [vmem:[%s5 + $0x58] sm:$0xf]
    %v671 = vld [vmem:[%s5 + $0x5c] sm:$0xf]
    %v672 = vld [vmem:[%s5 + $0x60] sm:$0xf]
    %v673 = vld [vmem:[%s5 + $0x64] sm:$0xf]
    %v674 = vld [vmem:[%s5 + $0x68] sm:$0xf]
    %v675 = vld [vmem:[%s5 + $0x6c] sm:$0xf]
    %v676 = vld [vmem:[%s5 + $0x70] sm:$0xf]
    %v677 = vld [vmem:[%s5 + $0x74] sm:$0xf]
    %v678 = vld [vmem:[%s5 + $0x78] sm:$0xf]
    %v679 = vld [vmem:[%s5 + $0x7c] sm:$0xf]
    %v680 = vld [vmem:[%s5 + $0x80] sm:$0xf]
    %v681 = vld [vmem:[%s5 + $0x84] sm:$0xf]
    %v682 = vld [vmem:[%s5 + $0x88] sm:$0xf]
    %v683 = vld [vmem:[%s5 + $0x8c] sm:$0xf]
    %v684 = vld [vmem:[%s5 + $0x90] sm:$0xf]
    %v685 = vld [vmem:[%s5 + $0x94] sm:$0xf]
    %v686 = vld [vmem:[%s5 + $0x98] sm:$0xf]
    %v687 = vld [vmem:[%s5 + $0x9c] sm:$0xf]
    %v688 = vld [vmem:[%s5 + $0xa0] sm:$0xf]
    %v689 = vld [vmem:[%s5 + $0xa4] sm:$0xf]
    %v690 = vld [vmem:[%s5 + $0xa8] sm:$0xf]
    %v691 = vld [vmem:[%s5 + $0xac] sm:$0xf]
    %v692 = vld [vmem:[%s5 + $0xb0] sm:$0xf]
    %v693 = vld [vmem:[%s5 + $0xb4] sm:$0xf]
    %v694 = vld [vmem:[%s5 + $0xb8] sm:$0xf]
    %v695 = vld [vmem:[%s5 + $0xbc] sm:$0xf]
    %v696 = vld [vmem:[%s5 + $0xc0] sm:$0xf]
    %v697 = vld [vmem:[%s5 + $0xc4] sm:$0xf]
    %v698 = vld [vmem:[%s5 + $0xc8] sm:$0xf]
    %v699 = vld [vmem:[%s5 + $0xcc] sm:$0xf]
    %v700 = vld [vmem:[%s5 + $0xd0] sm:$0xf]
    %v701 = vld [vmem:[%s5 + $0xd4] sm:$0xf]
    %v702 = vld [vmem:[%s5 + $0xd8] sm:$0xf]
    %v703 = vld [vmem:[%s5 + $0xdc] sm:$0xf]
    %v704 = vld [vmem:[%s5 + $0xe0] sm:$0xf]
    %v705 = vld [vmem:[%s5 + $0xe4] sm:$0xf]
    %v706 = vld [vmem:[%s5 + $0xe8] sm:$0xf]
    %v707 = vld [vmem:[%s5 + $0xec] sm:$0xf]
    %v708 = vld [vmem:[%s5 + $0xf0] sm:$0xf]
    %v709 = vld [vmem:[%s5 + $0xf4] sm:$0xf]
    %v710 = vld [vmem:[%s5 + $0xf8] sm:$0xf]
    %v711 = vld [vmem:[%s5 + $0xfc] sm:$0xf]
    %v776 = vunpack.c.l.b16 %v648
    %v777 = vunpack.c.l.b16 %v649
    %v778 = vunpack.c.l.b16 %v650
    %v779 = vunpack.c.l.b16 %v651
    %v780 = vunpack.c.l.b16 %v652
    %v781 = vunpack.c.l.b16 %v653
    %v782 = vunpack.c.l.b16 %v654
    %v783 = vunpack.c.l.b16 %v655
    %v784 = vunpack.c.l.b16 %v656
    %v785 = vunpack.c.l.b16 %v657
    %v786 = vunpack.c.l.b16 %v658
    %v787 = vunpack.c.l.b16 %v659
    %v788 = vunpack.c.l.b16 %v660
    %v789 = vunpack.c.l.b16 %v661
    %v790 = vunpack.c.l.b16 %v662
    %v791 = vunpack.c.l.b16 %v663
    %v792 = vunpack.c.l.b16 %v664
    %v793 = vunpack.c.l.b16 %v665
    %v794 = vunpack.c.l.b16 %v666
    %v795 = vunpack.c.l.b16 %v667
    %v796 = vunpack.c.l.b16 %v668
    %v797 = vunpack.c.l.b16 %v669
    %v798 = vunpack.c.l.b16 %v670
    %v799 = vunpack.c.l.b16 %v671
    %v800 = vunpack.c.l.b16 %v672
    %v801 = vunpack.c.l.b16 %v673
    %v802 = vunpack.c.l.b16 %v674
    %v803 = vunpack.c.l.b16 %v675
    %v804 = vunpack.c.l.b16 %v676
    %v805 = vunpack.c.l.b16 %v677
    %v806 = vunpack.c.l.b16 %v678
    %v807 = vunpack.c.l.b16 %v679
    %v808 = vunpack.c.l.b16 %v680
    %v809 = vunpack.c.l.b16 %v681
    %v810 = vunpack.c.l.b16 %v682
    %v811 = vunpack.c.l.b16 %v683
    %v812 = vunpack.c.l.b16 %v684
    %v813 = vunpack.c.l.b16 %v685
    %v814 = vunpack.c.l.b16 %v686
    %v815 = vunpack.c.l.b16 %v687
    %v816 = vunpack.c.l.b16 %v688
    %v817 = vunpack.c.l.b16 %v689
    %v818 = vunpack.c.l.b16 %v690
    %v819 = vunpack.c.l.b16 %v691
    %v820 = vunpack.c.l.b16 %v692
    %v821 = vunpack.c.l.b16 %v693
    %v822 = vunpack.c.l.b16 %v694
    %v823 = vunpack.c.l.b16 %v695
    %v824 = vunpack.c.l.b16 %v696
    %v825 = vunpack.c.l.b16 %v697
    %v826 = vunpack.c.l.b16 %v698
    %v827 = vunpack.c.l.b16 %v699
    %v828 = vunpack.c.l.b16 %v700
    %v829 = vunpack.c.l.b16 %v701
    %v830 = vunpack.c.l.b16 %v702
    %v831 = vunpack.c.l.b16 %v703
    %v832 = vunpack.c.l.b16 %v704
    %v833 = vunpack.c.l.b16 %v705
    %v834 = vunpack.c.l.b16 %v706
    %v835 = vunpack.c.l.b16 %v707
    %v836 = vunpack.c.l.b16 %v708
    %v837 = vunpack.c.l.b16 %v709
    %v838 = vunpack.c.l.b16 %v710
    %v839 = vunpack.c.l.b16 %v711
    %v840 = vpack.c.b16 %v777, %v776
    %v841 = vpack.c.b16 %v779, %v778
    %v842 = vpack.c.b16 %v781, %v780
    %v843 = vpack.c.b16 %v783, %v782
    %v844 = vpack.c.b16 %v785, %v784
    %v845 = vpack.c.b16 %v787, %v786
    %v846 = vpack.c.b16 %v789, %v788
    %v847 = vpack.c.b16 %v791, %v790
    %v848 = vpack.c.b16 %v793, %v792
    %v849 = vpack.c.b16 %v795, %v794
    %v850 = vpack.c.b16 %v797, %v796
    %v851 = vpack.c.b16 %v799, %v798
    %v852 = vpack.c.b16 %v801, %v800
    %v853 = vpack.c.b16 %v803, %v802
    %v854 = vpack.c.b16 %v805, %v804
    %v855 = vpack.c.b16 %v807, %v806
    %v856 = vpack.c.b16 %v809, %v808
    %v857 = vpack.c.b16 %v811, %v810
    %v858 = vpack.c.b16 %v813, %v812
    %v859 = vpack.c.b16 %v815, %v814
    %v860 = vpack.c.b16 %v817, %v816
    %v861 = vpack.c.b16 %v819, %v818
    %v862 = vpack.c.b16 %v821, %v820
    %v863 = vpack.c.b16 %v823, %v822
    %v864 = vpack.c.b16 %v825, %v824
    %v865 = vpack.c.b16 %v827, %v826
    %v866 = vpack.c.b16 %v829, %v828
    %v867 = vpack.c.b16 %v831, %v830
    %v868 = vpack.c.b16 %v833, %v832
    %v869 = vpack.c.b16 %v835, %v834
    %v870 = vpack.c.b16 %v837, %v836
    %v871 = vpack.c.b16 %v839, %v838
    %904 = vmatprep.subr.bf16.mxu0 0
    %905 = vmatpush1.bf16.msra.mxu0 %v840
    %906 = vmatprep.subr.bf16.mxu0 0
    %907 = vmatpush1.bf16.msra.mxu0 %v841
    %908 = vmatprep.subr.bf16.mxu0 0
    %909 = vmatpush1.bf16.msra.mxu0 %v842
    %910 = vmatprep.subr.bf16.mxu0 0
    %911 = vmatpush1.bf16.msra.mxu0 %v843
    %912 = vmatprep.subr.bf16.mxu0 0
    %913 = vmatpush1.bf16.msra.mxu0 %v844
    %914 = vmatprep.subr.bf16.mxu0 0
    %915 = vmatpush1.bf16.msra.mxu0 %v845
    %916 = vmatprep.subr.bf16.mxu0 0
    %917 = vmatpush1.bf16.msra.mxu0 %v846
    %918 = vmatprep.subr.bf16.mxu0 0
    %919 = vmatpush1.bf16.msra.mxu0 %v847
    %920 = vmatprep.subr.bf16.mxu0 0
    %921 = vmatpush1.bf16.msra.mxu0 %v848
    %922 = vmatprep.subr.bf16.mxu0 0
    %923 = vmatpush1.bf16.msra.mxu0 %v849
    %924 = vmatprep.subr.bf16.mxu0 0
    %925 = vmatpush1.bf16.msra.mxu0 %v850
    %926 = vmatprep.subr.bf16.mxu0 0
    %927 = vmatpush1.bf16.msra.mxu0 %v851
    %928 = vmatprep.subr.bf16.mxu0 0
    %929 = vmatpush1.bf16.msra.mxu0 %v852
    %930 = vmatprep.subr.bf16.mxu0 0
    %931 = vmatpush1.bf16.msra.mxu0 %v853
    %932 = vmatprep.subr.bf16.mxu0 0
    %933 = vmatpush1.bf16.msra.mxu0 %v854
    %934 = vmatprep.subr.bf16.mxu0 0
    %935 = vmatpush1.bf16.msra.mxu0 %v855
    %936 = vmatprep.mubr.bf16.mxu0 %v645
    %937 = vmatmul.mubr.bf16.gmra.mrb[0].mxu0 %v644
    %v938 = vpop.f32.mrb[0].mxu0
    %v939 = vadd.f32 0.0, %v938
    %v940 = vpop.f32.mrb[0].mxu0
    %v941 = vpop.f32.mrb[0].mxu0
    %v942 = vadd.f32 0.0, %v941
    %v943 = vpop.f32.mrb[0].mxu0
    %944 = vdwg.mxu0
    %945 = vmatprep.subr.bf16.mxu0 0
    %946 = vmatpush1.bf16.msra.mxu0 %v856
    %947 = vmatprep.subr.bf16.mxu0 0
    %948 = vmatpush1.bf16.msra.mxu0 %v857
    %949 = vmatprep.subr.bf16.mxu0 0
    %950 = vmatpush1.bf16.msra.mxu0 %v858
    %951 = vmatprep.subr.bf16.mxu0 0
    %952 = vmatpush1.bf16.msra.mxu0 %v859
    %953 = vmatprep.subr.bf16.mxu0 0
    %954 = vmatpush1.bf16.msra.mxu0 %v860
    %955 = vmatprep.subr.bf16.mxu0 0
    %956 = vmatpush1.bf16.msra.mxu0 %v861
    %957 = vmatprep.subr.bf16.mxu0 0
    %958 = vmatpush1.bf16.msra.mxu0 %v862
    %959 = vmatprep.subr.bf16.mxu0 0
    %960 = vmatpush1.bf16.msra.mxu0 %v863
    %961 = vmatprep.subr.bf16.mxu0 0
    %962 = vmatpush1.bf16.msra.mxu0 %v864
    %963 = vmatprep.subr.bf16.mxu0 0
    %964 = vmatpush1.bf16.msra.mxu0 %v865
    %965 = vmatprep.subr.bf16.mxu0 0
    %966 = vmatpush1.bf16.msra.mxu0 %v866
    %967 = vmatprep.subr.bf16.mxu0 0
    %968 = vmatpush1.bf16.msra.mxu0 %v867
    %969 = vmatprep.subr.bf16.mxu0 0
    %970 = vmatpush1.bf16.msra.mxu0 %v868
    %971 = vmatprep.subr.bf16.mxu0 0
    %972 = vmatpush1.bf16.msra.mxu0 %v869
    %973 = vmatprep.subr.bf16.mxu0 0
    %974 = vmatpush1.bf16.msra.mxu0 %v870
    %975 = vmatprep.subr.bf16.mxu0 0
    %976 = vmatpush1.bf16.msra.mxu0 %v871
    %977 = vmatprep.mubr.bf16.mxu0 %v647
    %978 = vmatmul.mubr.bf16.gmra.mrb[0].mxu0 %v646
    %v979 = vpop.f32.mrb[0].mxu0
    %v980 = vadd.f32 %v939, %v979
    %v981 = vpop.f32.mrb[0].mxu0
    %v982 = vpop.f32.mrb[0].mxu0
    %v983 = vadd.f32 %v942, %v982
    %v984 = vpop.f32.mrb[0].mxu0
    %985 = vdwg.mxu0
    %v986 = vadd.f32 %v642, %v980
    %v987 = vadd.f32 %v643, %v983
    %988 = vst [vmem:[#allocation3] sm:$0xff] %v986
    %989 = vst [vmem:[#allocation3 + $0x8] sm:$0xff] %v987
    // Predicated region
    $region50: #{transformer_lm_forward.12} parent=1 // pred_check
      %p990 = pneg %p74
    $region51: #{transformer_lm_forward.12} parent=1 // pred_check_branch
      %992 = sbr.rel (%p990) target = $region53
    $region52: #{transformer_lm_forward.12} parent=1 // pred_region
      %v993 = vld [vmem:[#allocation3] sm:$0xff]
      %v994 = vld [vmem:[#allocation3 + $0x8] sm:$0xff]
      %v995 = vld [vmem:[#allocation9] sm:$0x1]
      %v997 = vlaneseq
      %v998 = vshrl.u32 %v997, 7
      %v999 = vsub.s32 0, %v998
      %v1000 = vrot.slane %v995, %v999
      %v1002 = vadd.f32 %v993, %v1000
      %v1003 = vadd.f32 %v994, %v1000
      %v1004 = vld [vmem:[%s0] sm:$0xff]
      %v1005 = vld [vmem:[%s0 + $0x8] sm:$0xff]
      %v1006 = vadd.f32 %v1002, %v1004
      %v1007 = vadd.f32 %v1003, %v1005
      %1008 = vst [vmem:[%s7] sm:$0xff] %v1006
      %1009 = vst [vmem:[%s7 + $0x8] sm:$0xff] %v1007
    $region53: #{transformer_lm_forward.12} parent=1 // pred_fallthru
      _
    // Predicated region
    $region54: #{transformer_lm_forward.12} parent=1 // pred_check
      _
    $region55: #{transformer_lm_forward.12} parent=1 // pred_check_branch
      %1011 = sbr.rel (0) target = $region57
    $region56: #{transformer_lm_forward.12} parent=1 // pred_region
      _
    $region57: #{transformer_lm_forward.12} parent=1 // pred_fallthru
      _
    // Predicated region
    $region58: #{transformer_lm_forward.12} parent=1 // pred_check
      _
    $region59: #{transformer_lm_forward.12} parent=1 // pred_check_branch
      %1013 = sbr.rel (0) target = $region61
    $region60: #{transformer_lm_forward.12} parent=1 // pred_region
      _
    $region61: #{transformer_lm_forward.12} parent=1 // pred_fallthru
      _
    %1014 = vsyncpa [#allocation5], 1
    %1015 = vsyncpa [#allocation7], 1
    %1016 = vsyncpa [#allocation10], 1

// kernel: transformer_lm_forward.15
$region0: #{transformer_lm_forward.15}
  #allocation0 [shape = 'u32[]', space=smem, size = 0x4, offset = 0x4, fixed_abs, tag = 'smem constant byte address 0x4 - core index']
  #allocation1 [shape = 'u32[144,128]{1,0:T(1,128)}', space=vmem, size = 0x12000, scoped, tag = 'internal scratch']
  #allocation2 [shape = 'f32[16,128]{1,0:T(8,128)}', space=vmem, size = 0x2000, scoped, tag = 'scratch operand']
  %s0 = inlined_call_operand.vmem [shape: bf16[16,128], index: 0, kind: input, shape index: {}]
  %s1 = inlined_call_operand.vmem [shape: bf16[128,128], index: 1, kind: input, shape index: {}]
  %s2 = inlined_call_operand.vmem [shape: f32[1,128], index: 2, kind: input, shape index: {}]
  %s3 = inlined_call_operand.vmem [shape: f32[1,128], index: 3, kind: input, shape index: {}]
  %s4 = inlined_call_operand.vmem [shape: f32[1,128], index: 4, kind: input, shape index: {}]
  %s5 = inlined_call_operand.vmem [shape: f32[16,128], index: 5, kind: input, shape index: {}]
  %s6 = inlined_call_operand.vmem [shape: f32[16,128], index: 6, kind: output, shape index: {}]
  %s7 = sld [smem:[#allocation0]]
  $region42: #{transformer_lm_forward.15} parent=0
    _
  %s9 = ssub.s32 1, %s7
  %s10 = scalar_select 0, %s9, %s7
  // Predicated region
  $region2: #{transformer_lm_forward.15} parent=0 // pred_check
    _
  $region3: #{transformer_lm_forward.15} parent=0 // pred_check_branch
    %12 = sbr.rel (0) target = $region5
  $region4: #{transformer_lm_forward.15} parent=0 // pred_region
    _
  $region5: #{transformer_lm_forward.15} parent=0 // pred_fallthru
    _
  // Predicated region
  $region6: #{transformer_lm_forward.15} parent=0 // pred_check
    _
  $region7: #{transformer_lm_forward.15} parent=0 // pred_check_branch
    %14 = sbr.rel (0) target = $region9
  $region8: #{transformer_lm_forward.15} parent=0 // pred_region
    _
  $region9: #{transformer_lm_forward.15} parent=0 // pred_fallthru
    _
  // Predicated region
  $region10: #{transformer_lm_forward.15} parent=0 // pred_check
    _
  $region11: #{transformer_lm_forward.15} parent=0 // pred_check_branch
    %16 = sbr.rel (0) target = $region13
  $region12: #{transformer_lm_forward.15} parent=0 // pred_region
    _
  $region13: #{transformer_lm_forward.15} parent=0 // pred_fallthru
    _
  // Predicated region
  $region14: #{transformer_lm_forward.15} parent=0 // pred_check
    _
  $region15: #{transformer_lm_forward.15} parent=0 // pred_check_branch
    %18 = sbr.rel (0) target = $region17
  $region16: #{transformer_lm_forward.15} parent=0 // pred_region
    _
  $region17: #{transformer_lm_forward.15} parent=0 // pred_fallthru
    _
  // Predicated region
  $region18: #{transformer_lm_forward.15} parent=0 // pred_check
    _
  $region19: #{transformer_lm_forward.15} parent=0 // pred_check_branch
    %20 = sbr.rel (0) target = $region21
  $region20: #{transformer_lm_forward.15} parent=0 // pred_region
    _
  $region21: #{transformer_lm_forward.15} parent=0 // pred_fallthru
    _
  // Predicated region
  $region22: #{transformer_lm_forward.15} parent=0 // pred_check
    _
  $region23: #{transformer_lm_forward.15} parent=0 // pred_check_branch
    %22 = sbr.rel (0) target = $region25
  $region24: #{transformer_lm_forward.15} parent=0 // pred_region
    _
  $region25: #{transformer_lm_forward.15} parent=0 // pred_fallthru
    _
  %p24 = scmp.eq.s32.totalorder 0, 0
  // Predicated region
  $region26: #{transformer_lm_forward.15} parent=0 // pred_check
    %p25 = pneg %p24
  $region27: #{transformer_lm_forward.15} parent=0 // pred_check_branch
    %27 = sbr.rel (%p25) target = $region29
  $region28: #{transformer_lm_forward.15} parent=0 // pred_region
    %28 = vst [vmem:[#allocation2] sm:$0xff] 0.0
    %29 = vst [vmem:[#allocation2 + $0x8] sm:$0xff] 0.0
  $region29: #{transformer_lm_forward.15} parent=0 // pred_fallthru
    _
  %v30 = vld [vmem:[#allocation2] sm:$0xff]
  %v31 = vld [vmem:[#allocation2 + $0x8] sm:$0xff]
  %v32 = vld [vmem:[%s0] sm:$0xf]
  %v33 = vld [vmem:[%s0 + $0x4] sm:$0xf]
  %v34 = vld [vmem:[%s1] sm:$0xf]
  %v35 = vld [vmem:[%s1 + $0x4] sm:$0xf]
  %v36 = vld [vmem:[%s1 + $0x8] sm:$0xf]
  %v37 = vld [vmem:[%s1 + $0xc] sm:$0xf]
  %v38 = vld [vmem:[%s1 + $0x10] sm:$0xf]
  %v39 = vld [vmem:[%s1 + $0x14] sm:$0xf]
  %v40 = vld [vmem:[%s1 + $0x18] sm:$0xf]
  %v41 = vld [vmem:[%s1 + $0x1c] sm:$0xf]
  %v42 = vld [vmem:[%s1 + $0x20] sm:$0xf]
  %v43 = vld [vmem:[%s1 + $0x24] sm:$0xf]
  %v44 = vld [vmem:[%s1 + $0x28] sm:$0xf]
  %v45 = vld [vmem:[%s1 + $0x2c] sm:$0xf]
  %v46 = vld [vmem:[%s1 + $0x30] sm:$0xf]
  %v47 = vld [vmem:[%s1 + $0x34] sm:$0xf]
  %v48 = vld [vmem:[%s1 + $0x38] sm:$0xf]
  %v49 = vld [vmem:[%s1 + $0x3c] sm:$0xf]
  %v52 = vunpack.c.l.b16 %v32
  %v53 = vunpack.c.l.b16 %v33
  %v54 = vpack.c.b16 %v53, %v52
  %v72 = vunpack.c.l.b16 %v34
  %v73 = vunpack.c.l.b16 %v35
  %v74 = vunpack.c.l.b16 %v36
  %v75 = vunpack.c.l.b16 %v37
  %v76 = vunpack.c.l.b16 %v38
  %v77 = vunpack.c.l.b16 %v39
  %v78 = vunpack.c.l.b16 %v40
  %v79 = vunpack.c.l.b16 %v41
  %v80 = vunpack.c.l.b16 %v42
  %v81 = vunpack.c.l.b16 %v43
  %v82 = vunpack.c.l.b16 %v44
  %v83 = vunpack.c.l.b16 %v45
  %v84 = vunpack.c.l.b16 %v46
  %v85 = vunpack.c.l.b16 %v47
  %v86 = vunpack.c.l.b16 %v48
  %v87 = vunpack.c.l.b16 %v49
  %v88 = vpack.c.b16 %v73, %v72
  %v89 = vpack.c.b16 %v75, %v74
  %v90 = vpack.c.b16 %v77, %v76
  %v91 = vpack.c.b16 %v79, %v78
  %v92 = vpack.c.b16 %v81, %v80
  %v93 = vpack.c.b16 %v83, %v82
  %v94 = vpack.c.b16 %v85, %v84
  %v95 = vpack.c.b16 %v87, %v86
  %104 = vmatprep.subr.bf16.mxu0 0
  %105 = vmatpush1.bf16.msra.mxu0 %v88
  %106 = vmatprep.subr.bf16.mxu0 0
  %107 = vmatpush1.bf16.msra.mxu0 %v89
  %108 = vmatprep.subr.bf16.mxu0 0
  %109 = vmatpush1.bf16.msra.mxu0 %v90
  %110 = vmatprep.subr.bf16.mxu0 0
  %111 = vmatpush1.bf16.msra.mxu0 %v91
  %112 = vmatprep.subr.bf16.mxu0 0
  %113 = vmatpush1.bf16.msra.mxu0 %v92
  %114 = vmatprep.subr.bf16.mxu0 0
  %115 = vmatpush1.bf16.msra.mxu0 %v93
  %116 = vmatprep.subr.bf16.mxu0 0
  %117 = vmatpush1.bf16.msra.mxu0 %v94
  %118 = vmatprep.subr.bf16.mxu0 0
  %119 = vmatpush1.bf16.msra.mxu0 %v95
  %120 = vmatprep.subr.bf16.mxu0 0
  %121 = vmatpush1.bf16.msra.mxu0 0
  %122 = vmatprep.subr.bf16.mxu0 0
  %123 = vmatpush1.bf16.msra.mxu0 0
  %124 = vmatprep.subr.bf16.mxu0 0
  %125 = vmatpush1.bf16.msra.mxu0 0
  %126 = vmatprep.subr.bf16.mxu0 0
  %127 = vmatpush1.bf16.msra.mxu0 0
  %128 = vmatprep.subr.bf16.mxu0 0
  %129 = vmatpush1.bf16.msra.mxu0 0
  %130 = vmatprep.subr.bf16.mxu0 0
  %131 = vmatpush1.bf16.msra.mxu0 0
  %132 = vmatprep.subr.bf16.mxu0 0
  %133 = vmatpush1.bf16.msra.mxu0 0
  %134 = vmatprep.subr.bf16.mxu0 0
  %135 = vmatpush1.bf16.msra.mxu0 0
  %136 = vmatprep.mubr.bf16.mxu0 0
  %137 = vmatmul.mubr.bf16.gmra.mrb[0].mxu0 %v54
  %v138 = vpop.f32.mrb[0].mxu0
  %v139 = vadd.f32 0.0, %v138
  %v140 = vpop.f32.mrb[0].mxu0
  %v141 = vpop.f32.mrb[0].mxu0
  %v142 = vadd.f32 0.0, %v141
  %v143 = vpop.f32.mrb[0].mxu0
  %144 = vdwg.mxu0
  %v145 = vadd.f32 %v30, %v139
  %v146 = vadd.f32 %v31, %v142
  %147 = vst [vmem:[#allocation2] sm:$0xff] %v145
  %148 = vst [vmem:[#allocation2 + $0x8] sm:$0xff] %v146
  // Predicated region
  $region30: #{transformer_lm_forward.15} parent=0 // pred_check
    %p149 = pneg %p24
  $region31: #{transformer_lm_forward.15} parent=0 // pred_check_branch
    %151 = sbr.rel (%p149) target = $region33
  $region32: #{transformer_lm_forward.15} parent=0 // pred_region
    %v152 = vld [vmem:[#allocation2] sm:$0xff]
    %v153 = vld [vmem:[#allocation2 + $0x8] sm:$0xff]
    %v154 = vld [vmem:[%s2] sm:$0x1]
    %v156 = vlaneseq
    %v157 = vshrl.u32 %v156, 7
    %v158 = vsub.s32 0, %v157
    %v159 = vrot.slane %v154, %v158
    %v161 = vadd.f32 %v152, %v159
    %v162 = vadd.f32 %v153, %v159
    %163 = vadd.xlane.f32.xlu0 %v161
    %v164 = vpop.xlane.xlu0 %163
    %165 = vadd.xlane.f32.xlu0 %v162
    %v166 = vpop.xlane.xlu0 %165
    %v167 = vrcp.pop 128.0
    %v168 = vmul.f32 %v164, %v167
    %v169 = vmul.f32 %v166, %v167
    %v170 = vsub.f32 %v161, %v168
    %v171 = vsub.f32 %v162, %v169
    %v172 = vmul.f32 %v170, %v170
    %v173 = vmul.f32 %v171, %v171
    %174 = vadd.xlane.f32.xlu0 %v172
    %v175 = vpop.xlane.xlu0 %174
    %176 = vadd.xlane.f32.xlu0 %v173
    %v177 = vpop.xlane.xlu0 %176
    %v178 = vmul.f32 %v175, %v167
    %v179 = vmul.f32 %v177, %v167
    %v180 = vadd.f32 %v178, 1e-05
    %v181 = vadd.f32 %v179, 1e-05
    %v182 = vrsqrt.pop %v180
    %v183 = vrsqrt.pop %v181
    %v184 = vld [vmem:[%s3] sm:$0x1]
    %v186 = vlaneseq
    %v187 = vshrl.u32 %v186, 7
    %v188 = vsub.s32 0, %v187
    %v189 = vrot.slane %v184, %v188
    %v191 = vmul.f32 %v182, %v189
    %v192 = vmul.f32 %v183, %v189
    %v193 = vmul.f32 %v170, %v191
    %v194 = vmul.f32 %v171, %v192
    %v195 = vld [vmem:[%s4] sm:$0x1]
    %v197 = vlaneseq
    %v198 = vshrl.u32 %v197, 7
    %v199 = vsub.s32 0, %v198
    %v200 = vrot.slane %v195, %v199
    %v202 = vadd.f32 %v193, %v200
    %v203 = vadd.f32 %v194, %v200
    %v204 = vld [vmem:[%s5] sm:$0xff]
    %v205 = vld [vmem:[%s5 + $0x8] sm:$0xff]
    %v206 = vadd.f32 %v202, %v204
    %v207 = vadd.f32 %v203, %v205
    %208 = vst [vmem:[%s6] sm:$0xff] %v206
    %209 = vst [vmem:[%s6 + $0x8] sm:$0xff] %v207
  $region33: #{transformer_lm_forward.15} parent=0 // pred_fallthru
    _
  // Predicated region
  $region34: #{transformer_lm_forward.15} parent=0 // pred_check
    _
  $region35: #{transformer_lm_forward.15} parent=0 // pred_check_branch
    %211 = sbr.rel (0) target = $region37
  $region36: #{transformer_lm_forward.15} parent=0 // pred_region
    _
  $region37: #{transformer_lm_forward.15} parent=0 // pred_fallthru
    _
  // Predicated region
  $region38: #{transformer_lm_forward.15} parent=0 // pred_check
    _
  $region39: #{transformer_lm_forward.15} parent=0 // pred_check_branch
    %213 = sbr.rel (0) target = $region41
  $region40: #{transformer_lm_forward.15} parent=0 // pred_region
    _
  $region41: #{transformer_lm_forward.15} parent=0 // pred_fallthru
    _

// kernel: transformer_lm_forward.14
$region0: #{transformer_lm_forward.14}
  #allocation0 [shape = 'u32[]', space=smem, size = 0x4, offset = 0x4, fixed_abs, tag = 'smem constant byte address 0x4 - core index']
  #allocation1 [shape = 'u32[144,128]{1,0:T(1,128)}', space=vmem, size = 0x12000, scoped, tag = 'internal scratch']
  %s0 = inlined_call_operand.vmem [shape: f32[4], index: 0, kind: input, shape index: {}]
  %s1 = inlined_call_operand.vmem [shape: f32[4], index: 1, kind: input, shape index: {}]
  %s2 = inlined_call_operand.vmem [shape: bf16[2,8,384], index: 2, kind: input, shape index: {}, may-alias: {2,3,4}]
  %s3 = inlined_call_operand.vmem [shape: bf16[2,8,384], index: 3, kind: input, shape index: {}, may-alias: {2,3,4}]
  %s4 = inlined_call_operand.vmem [shape: bf16[2,8,384], index: 4, kind: input, shape index: {}, may-alias: {2,3,4}]
  %s5 = inlined_call_operand.vmem [shape: bf16[2,8,128], index: 5, kind: output, shape index: {}]
  %s6 = sld [smem:[#allocation0]]
  $region61: #{transformer_lm_forward.14} parent=0
    _
  %s8 = ssub.s32 1, %s6
  %s9 = scalar_select 0, %s8, %s6
  $region1: #{transformer_lm_forward.14} parent=0
    #allocation2 [shape = 'u8[512]{0}', space=smem, size = 0x200, scoped, tag = 'input window, operand 0, single buffered']
    #allocation3 [shape = 's32[2]{0}', space=sflag, size = 0x8, scoped, tag = 'scoped memory for transformer_lm_forward.14']
    #allocation4 [shape = 'u8[512]{0}', space=smem, size = 0x200, scoped, tag = 'input window, operand 1, single buffered']
    #allocation5 [shape = 's32[1]{0}', space=sflag, size = 0x4, scoped, tag = 'scoped memory for transformer_lm_forward.14']
    %10 = vsyncpa [#allocation3], 0
    %11 = vsyncpa [#allocation5], 0
    loop: start=0, step=1, limit=4
    $region2: #{transformer_lm_forward.14} parent=1 // loop_pre_header
      _
    $region3: #{transformer_lm_forward.14} parent=1 // loop_header
      %s13 = sphi 0, %s17
      %p14 = scmp.ge.s32.totalorder %s13, 4
      %s20 = sphi 0, %s32
      %s21 = sphi 0, %s28
      %s22 = sphi 0, %s20
      %s23 = sphi 0, %s21
      %s24 = sphi 0, %s22
      %s25 = sphi 0, %s23
      %s33 = sphi 0, %s33
      %s35 = sphi 0, %s33
      %s36 = sphi 0, %s35
      %s50 = sphi 0, %s36
      %s54 = sphi 0, %s54
      %s56 = sphi 0, %s54
      %s57 = sphi 0, %s56
      %s71 = sphi 0, %s57
      %s79 = sphi 0, %s81
      %s82 = sphi 0, %s79
      %s83 = sphi 0, %s82
      %s99 = sphi 0, %s83
      %s105 = sphi 0, %s107
      %s108 = sphi 0, %s105
      %s109 = sphi 0, %s108
      %s125 = sphi 0, %s109
      %s131 = sphi 0, %s133
      %s134 = sphi 0, %s131
      %s135 = sphi 0, %s134
      %s151 = sphi 0, %s135
      %s159 = sphi 0, %s161
      %s162 = sphi 0, %s159
      %s163 = sphi 0, %s162
      %s179 = sphi 0, %s163
    $region4: #{transformer_lm_forward.14} parent=1 // loop_header_branch
      %16 = sbr.rel (%p14) target = $region8
    $region5: #{transformer_lm_forward.14} parent=1 // loop_body
      %s18 = ssub.s32 %s13, 1
      %s19 = ssub.s32 %s13, 2
      %s26 = sadd.s32 1, %s21
      %p27 = scmp.ge.s32.totalorder %s26, 1
      %s28 = scalar_select %p27, 0, %s26
      %s29 = sadd.s32 1, %s20
      %s30 = scalar_select %p27, %s29, %s20
      %p31 = scmp.ge.s32.totalorder %s30, 2
      %s32 = scalar_select %p31, 0, %s30
      %s34 = sadd.s32 %s33, 1
      %p37 = scmp.eq.s32.totalorder %s13, 1
      %p38 = scmp.ne.s32.totalorder %s33, %s35
      %p39 = scmp.eq.s32.totalorder %s13, 0
      %p40 = por %p38, %p39
      %p41 = scmp.ne.s32.totalorder %s33, %s35
      %p42 = scmp.eq.s32.totalorder %s18, 1
      %p43 = por %p41, %p42
      %p44 = scmp.ne.s32.totalorder %s35, %s36
      %p45 = scmp.eq.s32.totalorder %s18, 0
      %p46 = por %p44, %p45
      %p47 = scmp.ne.s32.totalorder %s35, %s36
      %p48 = scmp.eq.s32.totalorder %s19, 1
      %p49 = por %p47, %p48
      %p51 = scmp.ne.s32.totalorder %s36, %s50
      %p52 = scmp.eq.s32.totalorder %s19, 0
      %p53 = por %p51, %p52
      %s55 = sadd.s32 %s54, 1
      %p58 = scmp.eq.s32.totalorder %s13, 1
      %p59 = scmp.ne.s32.totalorder %s54, %s56
      %p60 = scmp.eq.s32.totalorder %s13, 0
      %p61 = por %p59, %p60
      %p62 = scmp.ne.s32.totalorder %s54, %s56
      %p63 = scmp.eq.s32.totalorder %s18, 1
      %p64 = por %p62, %p63
      %p65 = scmp.ne.s32.totalorder %s56, %s57
      %p66 = scmp.eq.s32.totalorder %s18, 0
      %p67 = por %p65, %p66
      %p68 = scmp.ne.s32.totalorder %s56, %s57
      %p69 = scmp.eq.s32.totalorder %s19, 1
      %p70 = por %p68, %p69
      %p72 = scmp.ne.s32.totalorder %s57, %s71
      %p73 = scmp.eq.s32.totalorder %s19, 0
      %p74 = por %p72, %p73
      %s75 = ssub.s32 %s20, %s32
      %s76 = ssub.s32 %s21, %s28
      %s77 = sor.u32 %s75, %s76
      %p78 = scmp.eq.s32.totalorder %s77, 0
      %s80 = sadd.s32 %s79, 1
      %s81 = scalar_select %p78, %s79, %s80
      %p84 = pneg %p78
      %p85 = scmp.eq.s32.totalorder %s13, 1
      %p86 = por %p84, %p85
      %p87 = scmp.ne.s32.totalorder %s79, %s82
      %p88 = scmp.eq.s32.totalorder %s13, 0
      %p89 = por %p87, %p88
      %p90 = scmp.ne.s32.totalorder %s79, %s82
      %p91 = scmp.eq.s32.totalorder %s18, 1
      %p92 = por %p90, %p91
      %p93 = scmp.ne.s32.totalorder %s82, %s83
      %p94 = scmp.eq.s32.totalorder %s18, 0
      %p95 = por %p93, %p94
      %p96 = scmp.ne.s32.totalorder %s82, %s83
      %p97 = scmp.eq.s32.totalorder %s19, 1
      %p98 = por %p96, %p97
      %p100 = scmp.ne.s32.totalorder %s83, %s99
      %p101 = scmp.eq.s32.totalorder %s19, 0
      %p102 = por %p100, %p101
      %s103 = ssub.s32 %s20, %s32
      %p104 = scmp.eq.s32.totalorder %s103, 0
      %s106 = sadd.s32 %s105, 1
      %s107 = scalar_select %p104, %s105, %s106
      %p110 = pneg %p104
      %p111 = scmp.eq.s32.totalorder %s13, 1
      %p112 = por %p110, %p111
      %p113 = scmp.ne.s32.totalorder %s105, %s108
      %p114 = scmp.eq.s32.totalorder %s13, 0
      %p115 = por %p113, %p114
      %p116 = scmp.ne.s32.totalorder %s105, %s108
      %p117 = scmp.eq.s32.totalorder %s18, 1
      %p118 = por %p116, %p117
      %p119 = scmp.ne.s32.totalorder %s108, %s109
      %p120 = scmp.eq.s32.totalorder %s18, 0
      %p121 = por %p119, %p120
      %p122 = scmp.ne.s32.totalorder %s108, %s109
      %p123 = scmp.eq.s32.totalorder %s19, 1
      %p124 = por %p122, %p123
      %p126 = scmp.ne.s32.totalorder %s109, %s125
      %p127 = scmp.eq.s32.totalorder %s19, 0
      %p128 = por %p126, %p127
      %s129 = ssub.s32 %s20, %s32
      %p130 = scmp.eq.s32.totalorder %s129, 0
      %s132 = sadd.s32 %s131, 1
      %s133 = scalar_select %p130, %s131, %s132
      %p136 = pneg %p130
      %p137 = scmp.eq.s32.totalorder %s13, 1
      %p138 = por %p136, %p137
      %p139 = scmp.ne.s32.totalorder %s131, %s134
      %p140 = scmp.eq.s32.totalorder %s13, 0
      %p141 = por %p139, %p140
      %p142 = scmp.ne.s32.totalorder %s131, %s134
      %p143 = scmp.eq.s32.totalorder %s18, 1
      %p144 = por %p142, %p143
      %p145 = scmp.ne.s32.totalorder %s134, %s135
      %p146 = scmp.eq.s32.totalorder %s18, 0
      %p147 = por %p145, %p146
      %p148 = scmp.ne.s32.totalorder %s134, %s135
      %p149 = scmp.eq.s32.totalorder %s19, 1
      %p150 = por %p148, %p149
      %p152 = scmp.ne.s32.totalorder %s135, %s151
      %p153 = scmp.eq.s32.totalorder %s19, 0
      %p154 = por %p152, %p153
      %s155 = ssub.s32 %s20, %s32
      %s156 = ssub.s32 %s21, %s28
      %s157 = sor.u32 %s155, %s156
      %p158 = scmp.eq.s32.totalorder %s157, 0
      %s160 = sadd.s32 %s159, 1
      %s161 = scalar_select %p158, %s159, %s160
      %p164 = pneg %p158
      %p165 = scmp.eq.s32.totalorder %s13, 1
      %p166 = por %p164, %p165
      %p167 = scmp.ne.s32.totalorder %s159, %s162
      %p168 = scmp.eq.s32.totalorder %s13, 0
      %p169 = por %p167, %p168
      %p170 = scmp.ne.s32.totalorder %s159, %s162
      %p171 = scmp.eq.s32.totalorder %s18, 1
      %p172 = por %p170, %p171
      %p173 = scmp.ne.s32.totalorder %s162, %s163
      %p174 = scmp.eq.s32.totalorder %s18, 0
      %p175 = por %p173, %p174
      %p176 = scmp.ne.s32.totalorder %s162, %s163
      %p177 = scmp.eq.s32.totalorder %s19, 1
      %p178 = por %p176, %p177
      %p180 = scmp.ne.s32.totalorder %s163, %s179
      %p181 = scmp.eq.s32.totalorder %s19, 0
      %p182 = por %p180, %p181
      %p183 = scmp.le.s32.totalorder 1, %s13
      %p184 = scmp.lt.s32.totalorder %s13, 3
      %p185 = pnand %p183, %p184
      %p186 = pneg %p185
      // Predicated region
      $region9: #{transformer_lm_forward.14} parent=5 // pred_check
        _
      $region10: #{transformer_lm_forward.14} parent=5 // pred_check_branch
        %188 = sbr.rel (%p185) target = $region12
      $region11: #{transformer_lm_forward.14} parent=5 // pred_region
        %s189 = ssub.s32 %s13, 1
        // Predicated region
        $region13: #{transformer_lm_forward.14} parent=11 // pred_check
          %p190 = pneg %p46
        $region14: #{transformer_lm_forward.14} parent=11 // pred_check_branch
          %192 = sbr.rel (%p190) target = $region16
        $region15: #{transformer_lm_forward.14} parent=11 // pred_region
          %s194 = ssub.s32 16, 16
          %195 = vsyncadd [#allocation3], %s194
          %s197 = sshll.u32 %s0, 4
          %s198 = int_to_ptr.vmem [resolvable:$true] %s197
          %200 = dma.vmem_to_smem %s198, 16, [#allocation2], [#allocation3]
        $region16: #{transformer_lm_forward.14} parent=11 // pred_fallthru
          _
        // Predicated region
        $region17: #{transformer_lm_forward.14} parent=11 // pred_check
          %p201 = pneg %p67
        $region18: #{transformer_lm_forward.14} parent=11 // pred_check_branch
          %203 = sbr.rel (%p201) target = $region20
        $region19: #{transformer_lm_forward.14} parent=11 // pred_region
          %s205 = ssub.s32 16, 16
          %206 = vsyncadd [#allocation5], %s205
          %s208 = sshll.u32 %s1, 4
          %s209 = int_to_ptr.vmem [resolvable:$true] %s208
          %211 = dma.vmem_to_smem %s209, 16, [#allocation4], [#allocation5]
        $region20: #{transformer_lm_forward.14} parent=11 // pred_fallthru
          _
      $region12: #{transformer_lm_forward.14} parent=5 // pred_fallthru
        _
      %p212 = scmp.lt.s32.totalorder %s13, 2
      // Predicated region
      $region21: #{transformer_lm_forward.14} parent=5 // pred_check
        %p213 = pneg %p212
      $region22: #{transformer_lm_forward.14} parent=5 // pred_check_branch
        %215 = sbr.rel (%p213) target = $region24
      $region23: #{transformer_lm_forward.14} parent=5 // pred_region
        // Predicated region
        $region25: #{transformer_lm_forward.14} parent=23 // pred_check
          %p216 = pneg %p89
        $region26: #{transformer_lm_forward.14} parent=23 // pred_check_branch
          %218 = sbr.rel (%p216) target = $region28
        $region27: #{transformer_lm_forward.14} parent=23 // pred_region
          %p219 = scmp.lt.s32.totalorder %s20, 1
          %s220 = scalar_select %p219, %s20, 1
          %p221 = scmp.lt.s32.totalorder %s21, 0
          %s222 = scalar_select %p221, %s21, 0
          %s223 = smul.addr %s222, 3
          %s224 = smul.addr %s220, 3
          %s225 = sadd.s32 %s223, %s224
          %s226 = smul.addr %s225, 4
          %s227 = scalar_lea.vmem %s2, %s226
        $region28: #{transformer_lm_forward.14} parent=23 // pred_fallthru
          _
        // Predicated region
        $region29: #{transformer_lm_forward.14} parent=23 // pred_check
          %p228 = pneg %p115
        $region30: #{transformer_lm_forward.14} parent=23 // pred_check_branch
          %230 = sbr.rel (%p228) target = $region32
        $region31: #{transformer_lm_forward.14} parent=23 // pred_region
          %p231 = scmp.lt.s32.totalorder %s20, 1
          %s232 = scalar_select %p231, %s20, 1
          %s233 = smul.addr %s232, 3
          %s234 = sadd.s32 1, %s233
          %s235 = smul.addr %s234, 4
          %s236 = scalar_lea.vmem %s3, %s235
        $region32: #{transformer_lm_forward.14} parent=23 // pred_fallthru
          _
        // Predicated region
        $region33: #{transformer_lm_forward.14} parent=23 // pred_check
          %p237 = pneg %p141
        $region34: #{transformer_lm_forward.14} parent=23 // pred_check_branch
          %239 = sbr.rel (%p237) target = $region36
        $region35: #{transformer_lm_forward.14} parent=23 // pred_region
          %p240 = scmp.lt.s32.totalorder %s20, 1
          %s241 = scalar_select %p240, %s20, 1
          %s242 = smul.addr %s241, 3
          %s243 = sadd.s32 2, %s242
          %s244 = smul.addr %s243, 4
          %s245 = scalar_lea.vmem %s4, %s244
        $region36: #{transformer_lm_forward.14} parent=23 // pred_fallthru
          _
      $region24: #{transformer_lm_forward.14} parent=5 // pred_fallthru
        _
      %p246 = scmp.le.s32.totalorder 1, %s13
      %p247 = scmp.lt.s32.totalorder %s13, 3
      %p248 = pnand %p246, %p247
      %p249 = pneg %p248
      // Predicated region
      $region37: #{transformer_lm_forward.14} parent=5 // pred_check
        _
      $region38: #{transformer_lm_forward.14} parent=5 // pred_check_branch
        %251 = sbr.rel (%p248) target = $region40
      $region39: #{transformer_lm_forward.14} parent=5 // pred_region
        %s252 = ssub.s32 %s13, 1
        // Predicated region
        $region41: #{transformer_lm_forward.14} parent=39 // pred_check
          %p253 = pneg %p46
        $region42: #{transformer_lm_forward.14} parent=39 // pred_check_branch
          %255 = sbr.rel (%p253) target = $region44
        $region43: #{transformer_lm_forward.14} parent=39 // pred_region
          %256 = dma.done [#allocation3], 16
        $region44: #{transformer_lm_forward.14} parent=39 // pred_fallthru
          _
        // Predicated region
        $region45: #{transformer_lm_forward.14} parent=39 // pred_check
          %p257 = pneg %p67
        $region46: #{transformer_lm_forward.14} parent=39 // pred_check_branch
          %259 = sbr.rel (%p257) target = $region48
        $region47: #{transformer_lm_forward.14} parent=39 // pred_region
          %260 = dma.done [#allocation5], 16
        $region48: #{transformer_lm_forward.14} parent=39 // pred_fallthru
          _
        %261 = sfence
        %p262 = pneg %p46
        %p263 = pneg %p43
        %p264 = pneg %p67
        %p265 = pneg %p64
        %p266 = scmp.lt.s32.totalorder %s22, 1
        %s267 = scalar_select %p266, %s22, 1
        %p268 = scmp.lt.s32.totalorder %s23, 0
        %s269 = scalar_select %p268, %s23, 0
        %s270 = smul.addr %s269, 3
        %s271 = smul.addr %s267, 3
        %s272 = sadd.s32 %s270, %s271
        %s273 = smul.addr %s272, 4
        %s274 = scalar_lea.vmem %s2, %s273
        %p275 = pneg %p95
        %p276 = pneg %p92
        %p277 = scmp.lt.s32.totalorder %s22, 1
        %s278 = scalar_select %p277, %s22, 1
        %s279 = smul.addr %s278, 3
        %s280 = sadd.s32 1, %s279
        %s281 = smul.addr %s280, 4
        %s282 = scalar_lea.vmem %s3, %s281
        %p283 = pneg %p121
        %p284 = pneg %p118
        %p285 = scmp.lt.s32.totalorder %s22, 1
        %s286 = scalar_select %p285, %s22, 1
        %s287 = smul.addr %s286, 3
        %s288 = sadd.s32 2, %s287
        %s289 = smul.addr %s288, 4
        %s290 = scalar_lea.vmem %s4, %s289
        %p291 = pneg %p147
        %p292 = pneg %p144
        %p293 = pneg %p175
        %p294 = pneg %p172
        %p295 = scmp.lt.s32.totalorder %s22, 1
        %s296 = scalar_select %p295, %s22, 1
        %p297 = scmp.lt.s32.totalorder %s23, 0
        %s298 = scalar_select %p297, %s23, 0
        %s299 = sadd.s32 %s298, %s296
        %s300 = smul.addr %s299, 4
        %s301 = scalar_lea.vmem %s5, %s300
        %p302 = scmp.lt.s32.totalorder %s22, 1
        %s303 = scalar_select %p302, %s22, 1
        %p304 = scmp.lt.s32.totalorder %s23, 0
        %s305 = scalar_select %p304, %s23, 0
        %s306 = smul.addr %s305, 3
        %s307 = smul.addr %s303, 3
        %s308 = sadd.s32 %s306, %s307
        %s309 = smul.addr %s308, 4
        %s310 = scalar_lea.vmem %s2, %s309
        %p311 = scmp.lt.s32.totalorder %s22, 1
        %s312 = scalar_select %p311, %s22, 1
        %s313 = smul.addr %s312, 3
        %s314 = sadd.s32 1, %s313
        %s315 = smul.addr %s314, 4
        %s316 = scalar_lea.vmem %s3, %s315
        %p317 = scmp.lt.s32.totalorder %s22, 1
        %s318 = scalar_select %p317, %s22, 1
        %s319 = smul.addr %s318, 3
        %s320 = sadd.s32 2, %s319
        %s321 = smul.addr %s320, 4
        %s322 = scalar_lea.vmem %s4, %s321
        %p323 = scmp.lt.s32.totalorder %s22, 1
        %s324 = scalar_select %p323, %s22, 1
        %p325 = scmp.lt.s32.totalorder %s23, 0
        %s326 = scalar_select %p325, %s23, 0
        %s327 = sadd.s32 %s326, %s324
        %s328 = smul.addr %s327, 4
        %s329 = scalar_lea.vmem %s5, %s328
        %v331 = vld [vmem:[%s310] sm:$0xf]
        %v332 = vld [vmem:[%s316] sm:$0xf]
        %v333 = vld [vmem:[%s322] sm:$0xf]
        %vm334 = vcmask 261120
        %v336 = vsel %vm334, %v331, 0
        %v339 = vsel %vm334, %v332, 0
        %341 = vmatprep.subr.bf16.mxu0 0
        %342 = vmatpush1.bf16.xpose.msra.mxu0 %v339
        %343 = vmatprep.subr.bf16.mxu0 0
        %344 = vmatpush1.bf16.xpose.msra.mxu0 0
        %345 = vmatprep.subr.bf16.mxu0 0
        %346 = vmatpush1.bf16.xpose.msra.mxu0 0
        %347 = vmatprep.subr.bf16.mxu0 0
        %348 = vmatpush1.bf16.xpose.msra.mxu0 0
        %349 = vmatprep.subr.bf16.mxu0 0
        %350 = vmatpush1.bf16.xpose.msra.mxu0 0
        %351 = vmatprep.subr.bf16.mxu0 0
        %352 = vmatpush1.bf16.xpose.msra.mxu0 0
        %353 = vmatprep.subr.bf16.mxu0 0
        %354 = vmatpush1.bf16.xpose.msra.mxu0 0
        %355 = vmatprep.subr.bf16.mxu0 0
        %356 = vmatpush1.bf16.xpose.msra.mxu0 0
        %357 = vmatprep.subr.bf16.mxu0 0
        %358 = vmatpush1.bf16.xpose.msra.mxu0 0
        %359 = vmatprep.subr.bf16.mxu0 0
        %360 = vmatpush1.bf16.xpose.msra.mxu0 0
        %361 = vmatprep.subr.bf16.mxu0 0
        %362 = vmatpush1.bf16.xpose.msra.mxu0 0
        %363 = vmatprep.subr.bf16.mxu0 0
        %364 = vmatpush1.bf16.xpose.msra.mxu0 0
        %365 = vmatprep.subr.bf16.mxu0 0
        %366 = vmatpush1.bf16.xpose.msra.mxu0 0
        %367 = vmatprep.subr.bf16.mxu0 0
        %368 = vmatpush1.bf16.xpose.msra.mxu0 0
        %369 = vmatprep.subr.bf16.mxu0 0
        %370 = vmatpush1.bf16.xpose.msra.mxu0 0
        %371 = vmatprep.subr.bf16.mxu0 0
        %372 = vmatpush1.bf16.xpose.msra.mxu0 0
        %373 = vmatprep.mubr.bf16.mxu0 0
        %374 = vmatmul.mubr.bf16.gmra.mrb[0].mxu0 %v336
        %v375 = vpop.f32.mrb[0].mxu0
        %v376 = vadd.f32 0.0, %v375
        %v377 = vpop.f32.mrb[0].mxu0
        %v378 = vpop.f32.mrb[0].mxu0
        %v379 = vpop.f32.mrb[0].mxu0
        %380 = vdwg.mxu0
        %vm381 = vcmask 64512
        %v382 = vsel %vm381, %v376, 0.0
        %383 = vadd.xlane.f32.xlu0 %v382
        %v384 = vpop.xlane.xlu0 %383
        %v385 = vmul.f32 %v384, 0.125
        %v386 = vmul.f32 %v376, %v376
        %v387 = vsel %vm381, %v386, 0.0
        %388 = vadd.xlane.f32.xlu0 %v387
        %v389 = vpop.xlane.xlu0 %388
        %v390 = vmul.f32 %v389, 0.125
        %v391 = vmul.f32 %v385, %v385
        %v392 = vsub.f32 %v390, %v391
        %v393 = vmax.f32 %v392, 0.0
        %v394 = vadd.f32 %v393, 1.28e-06
        %v395 = vrsqrt.pop %v394
        %v396 = vpack.c.bf16 %v376, %v376
        %v398 = vsel %vm381, %v396, 0
        %vm400 = vcmask 1043456
        %v402 = vsel %vm400, %v333, 0
        %404 = vmatprep.subr.bf16.mxu0 0
        %405 = vmatpush1.bf16.msra.mxu0 %v402
        %406 = vmatprep.subr.bf16.mxu0 0
        %407 = vmatpush1.bf16.msra.mxu0 0
        %408 = vmatprep.subr.bf16.mxu0 0
        %409 = vmatpush1.bf16.msra.mxu0 0
        %410 = vmatprep.subr.bf16.mxu0 0
        %411 = vmatpush1.bf16.msra.mxu0 0
        %412 = vmatprep.subr.bf16.mxu0 0
        %413 = vmatpush1.bf16.msra.mxu0 0
        %414 = vmatprep.subr.bf16.mxu0 0
        %415 = vmatpush1.bf16.msra.mxu0 0
        %416 = vmatprep.subr.bf16.mxu0 0
        %417 = vmatpush1.bf16.msra.mxu0 0
        %418 = vmatprep.subr.bf16.mxu0 0
        %419 = vmatpush1.bf16.msra.mxu0 0
        %420 = vmatprep.subr.bf16.mxu0 0
        %421 = vmatpush1.bf16.msra.mxu0 0
        %422 = vmatprep.subr.bf16.mxu0 0
        %423 = vmatpush1.bf16.msra.mxu0 0
        %424 = vmatprep.subr.bf16.mxu0 0
        %425 = vmatpush1.bf16.msra.mxu0 0
        %426 = vmatprep.subr.bf16.mxu0 0
        %427 = vmatpush1.bf16.msra.mxu0 0
        %428 = vmatprep.subr.bf16.mxu0 0
        %429 = vmatpush1.bf16.msra.mxu0 0
        %430 = vmatprep.subr.bf16.mxu0 0
        %431 = vmatpush1.bf16.msra.mxu0 0
        %432 = vmatprep.subr.bf16.mxu0 0
        %433 = vmatpush1.bf16.msra.mxu0 0
        %434 = vmatprep.subr.bf16.mxu0 0
        %435 = vmatpush1.bf16.msra.mxu0 0
        %436 = vmatprep.mubr.bf16.mxu0 0
        %437 = vmatmul.mubr.bf16.gmra.mrb[0].mxu0 %v398
        %v438 = vpop.f32.mrb[0].mxu0
        %v439 = vadd.f32 0.0, %v438
        %v440 = vpop.f32.mrb[0].mxu0
        %v441 = vpop.f32.mrb[0].mxu0
        %v442 = vpop.f32.mrb[0].mxu0
        %443 = vdwg.mxu0
        %v444 = vunpack.c.l.bf16 %v333
        %v445 = vsel %vm334, %v444, 0.0
        %v446 = vrot.slane %v445, 4
        %v447 = vadd.f32 %v445, %v446
        %v448 = vrot.slane %v447, 2
        %v449 = vadd.f32 %v447, %v448
        %v450 = vrot.slane %v449, 1
        %v451 = vadd.f32 %v449, %v450
        %s452 = sld [smem:[#allocation2]]
        %v453 = vstv %s452
        %v454 = vmul.f32 %v453, %v395
        %v455 = vmul.f32 %v385, %v451
        %v456 = vsub.f32 %v439, %v455
        %v457 = vmul.f32 %v454, %v456
        %s458 = sld [smem:[#allocation4]]
        %v459 = vstv %s458
        %v460 = vmul.f32 %v459, %v451
        %v461 = vadd.f32 %v457, %v460
        %v462 = vpack.c.bf16 %v461, %v461
        %v464 = vunpack.c.l.b16 %v331
        %v465 = vpack.c.b16 %v464, %v464
        %466 = vrot.lane.b32.xlu0 %v465, 96
        %v467 = vpop.permute.xlu0 %466
        %v469 = vunpack.c.l.b16 %v332
        %v470 = vpack.c.b16 %v469, %v469
        %471 = vrot.lane.b32.xlu0 %v470, 96
        %v472 = vpop.permute.xlu0 %471
        %v474 = vsel %vm334, %v467, 0
        %v477 = vsel %vm334, %v472, 0
        %479 = vmatprep.subr.bf16.mxu0 0
        %480 = vmatpush1.bf16.xpose.msra.mxu0 %v477
        %481 = vmatprep.subr.bf16.mxu0 0
        %482 = vmatpush1.bf16.xpose.msra.mxu0 0
        %483 = vmatprep.subr.bf16.mxu0 0
        %484 = vmatpush1.bf16.xpose.msra.mxu0 0
        %485 = vmatprep.subr.bf16.mxu0 0
        %486 = vmatpush1.bf16.xpose.msra.mxu0 0
        %487 = vmatprep.subr.bf16.mxu0 0
        %488 = vmatpush1.bf16.xpose.msra.mxu0 0
        %489 = vmatprep.subr.bf16.mxu0 0
        %490 = vmatpush1.bf16.xpose.msra.mxu0 0
        %491 = vmatprep.subr.bf16.mxu0 0
        %492 = vmatpush1.bf16.xpose.msra.mxu0 0
        %493 = vmatprep.subr.bf16.mxu0 0
        %494 = vmatpush1.bf16.xpose.msra.mxu0 0
        %495 = vmatprep.subr.bf16.mxu0 0
        %496 = vmatpush1.bf16.xpose.msra.mxu0 0
        %497 = vmatprep.subr.bf16.mxu0 0
        %498 = vmatpush1.bf16.xpose.msra.mxu0 0
        %499 = vmatprep.subr.bf16.mxu0 0
        %500 = vmatpush1.bf16.xpose.msra.mxu0 0
        %501 = vmatprep.subr.bf16.mxu0 0
        %502 = vmatpush1.bf16.xpose.msra.mxu0 0
        %503 = vmatprep.subr.bf16.mxu0 0
        %504 = vmatpush1.bf16.xpose.msra.mxu0 0
        %505 = vmatprep.subr.bf16.mxu0 0
        %506 = vmatpush1.bf16.xpose.msra.mxu0 0
        %507 = vmatprep.subr.bf16.mxu0 0
        %508 = vmatpush1.bf16.xpose.msra.mxu0 0
        %509 = vmatprep.subr.bf16.mxu0 0
        %510 = vmatpush1.bf16.xpose.msra.mxu0 0
        %511 = vmatprep.mubr.bf16.mxu0 0
        %512 = vmatmul.mubr.bf16.gmra.mrb[0].mxu0 %v474
        %v513 = vpop.f32.mrb[0].mxu0
        %v514 = vadd.f32 0.0, %v513
        %v515 = vpop.f32.mrb[0].mxu0
        %v516 = vpop.f32.mrb[0].mxu0
        %v517 = vpop.f32.mrb[0].mxu0
        %518 = vdwg.mxu0
        %v519 = vsel %vm381, %v514, 0.0
        %520 = vadd.xlane.f32.xlu0 %v519
        %v521 = vpop.xlane.xlu0 %520
        %v522 = vmul.f32 %v521, 0.125
        %v523 = vmul.f32 %v514, %v514
        %v524 = vsel %vm381, %v523, 0.0
        %525 = vadd.xlane.f32.xlu0 %v524
        %v526 = vpop.xlane.xlu0 %525
        %v527 = vmul.f32 %v526, 0.125
        %v528 = vmul.f32 %v522, %v522
        %v529 = vsub.f32 %v527, %v528
        %v530 = vmax.f32 %v529, 0.0
        %v531 = vadd.f32 %v530, 1.28e-06
        %v532 = vrsqrt.pop %v531
        %v533 = vpack.c.bf16 %v514, %v514
        %v535 = vunpack.c.l.b16 %v333
        %v536 = vpack.c.b16 %v535, %v535
        %537 = vrot.lane.b32.xlu0 %v536, 96
        %v538 = vpop.permute.xlu0 %537
        %v540 = vsel %vm381, %v533, 0
        %v543 = vsel %vm400, %v538, 0
        %545 = vmatprep.subr.bf16.mxu0 0
        %546 = vmatpush1.bf16.msra.mxu0 %v543
        %547 = vmatprep.subr.bf16.mxu0 0
        %548 = vmatpush1.bf16.msra.mxu0 0
        %549 = vmatprep.subr.bf16.mxu0 0
        %550 = vmatpush1.bf16.msra.mxu0 0
        %551 = vmatprep.subr.bf16.mxu0 0
        %552 = vmatpush1.bf16.msra.mxu0 0
        %553 = vmatprep.subr.bf16.mxu0 0
        %554 = vmatpush1.bf16.msra.mxu0 0
        %555 = vmatprep.subr.bf16.mxu0 0
        %556 = vmatpush1.bf16.msra.mxu0 0
        %557 = vmatprep.subr.bf16.mxu0 0
        %558 = vmatpush1.bf16.msra.mxu0 0
        %559 = vmatprep.subr.bf16.mxu0 0
        %560 = vmatpush1.bf16.msra.mxu0 0
        %561 = vmatprep.subr.bf16.mxu0 0
        %562 = vmatpush1.bf16.msra.mxu0 0
        %563 = vmatprep.subr.bf16.mxu0 0
        %564 = vmatpush1.bf16.msra.mxu0 0
        %565 = vmatprep.subr.bf16.mxu0 0
        %566 = vmatpush1.bf16.msra.mxu0 0
        %567 = vmatprep.subr.bf16.mxu0 0
        %568 = vmatpush1.bf16.msra.mxu0 0
        %569 = vmatprep.subr.bf16.mxu0 0
        %570 = vmatpush1.bf16.msra.mxu0 0
        %571 = vmatprep.subr.bf16.mxu0 0
        %572 = vmatpush1.bf16.msra.mxu0 0
        %573 = vmatprep.subr.bf16.mxu0 0
        %574 = vmatpush1.bf16.msra.mxu0 0
        %575 = vmatprep.subr.bf16.mxu0 0
        %576 = vmatpush1.bf16.msra.mxu0 0
        %577 = vmatprep.mubr.bf16.mxu0 0
        %578 = vmatmul.mubr.bf16.gmra.mrb[0].mxu0 %v540
        %v579 = vpop.f32.mrb[0].mxu0
        %v580 = vadd.f32 0.0, %v579
        %v581 = vpop.f32.mrb[0].mxu0
        %v582 = vpop.f32.mrb[0].mxu0
        %v583 = vpop.f32.mrb[0].mxu0
        %584 = vdwg.mxu0
        %vm585 = vcmask 523520
        %v586 = vsel %vm585, %v444, 0.0
        %v587 = vrot.slane %v586, 4
        %v588 = vadd.f32 %v586, %v587
        %v589 = vrot.slane %v588, 2
        %v590 = vadd.f32 %v588, %v589
        %v591 = vrot.slane %v590, 1
        %v592 = vadd.f32 %v590, %v591
        %s593 = sld [smem:[#allocation2 + $0x1]]
        %v594 = vstv %s593
        %v595 = vmul.f32 %v594, %v532
        %v596 = vmul.f32 %v522, %v592
        %598 = vrot.lane.b32.xlu0 %v596, 96
        %v599 = vpop.permute.xlu0 %598
        %v601 = vsub.f32 %v580, %v599
        %v602 = vmul.f32 %v595, %v601
        %s603 = sld [smem:[#allocation4 + $0x1]]
        %v604 = vstv %s603
        %v605 = vmul.f32 %v604, %v592
        %607 = vrot.lane.b32.xlu0 %v605, 96
        %v608 = vpop.permute.xlu0 %607
        %v610 = vadd.f32 %v602, %v608
        %v611 = vpack.c.bf16 %v610, %v610
        %612 = vrot.lane.b32.xlu0 %v465, 64
        %v613 = vpop.permute.xlu0 %612
        %614 = vrot.lane.b32.xlu0 %v470, 64
        %v615 = vpop.permute.xlu0 %614
        %v617 = vsel %vm334, %v613, 0
        %v620 = vsel %vm334, %v615, 0
        %622 = vmatprep.subr.bf16.mxu0 0
        %623 = vmatpush1.bf16.xpose.msra.mxu0 %v620
        %624 = vmatprep.subr.bf16.mxu0 0
        %625 = vmatpush1.bf16.xpose.msra.mxu0 0
        %626 = vmatprep.subr.bf16.mxu0 0
        %627 = vmatpush1.bf16.xpose.msra.mxu0 0
        %628 = vmatprep.subr.bf16.mxu0 0
        %629 = vmatpush1.bf16.xpose.msra.mxu0 0
        %630 = vmatprep.subr.bf16.mxu0 0
        %631 = vmatpush1.bf16.xpose.msra.mxu0 0
        %632 = vmatprep.subr.bf16.mxu0 0
        %633 = vmatpush1.bf16.xpose.msra.mxu0 0
        %634 = vmatprep.subr.bf16.mxu0 0
        %635 = vmatpush1.bf16.xpose.msra.mxu0 0
        %636 = vmatprep.subr.bf16.mxu0 0
        %637 = vmatpush1.bf16.xpose.msra.mxu0 0
        %638 = vmatprep.subr.bf16.mxu0 0
        %639 = vmatpush1.bf16.xpose.msra.mxu0 0
        %640 = vmatprep.subr.bf16.mxu0 0
        %641 = vmatpush1.bf16.xpose.msra.mxu0 0
        %642 = vmatprep.subr.bf16.mxu0 0
        %643 = vmatpush1.bf16.xpose.msra.mxu0 0
        %644 = vmatprep.subr.bf16.mxu0 0
        %645 = vmatpush1.bf16.xpose.msra.mxu0 0
        %646 = vmatprep.subr.bf16.mxu0 0
        %647 = vmatpush1.bf16.xpose.msra.mxu0 0
        %648 = vmatprep.subr.bf16.mxu0 0
        %649 = vmatpush1.bf16.xpose.msra.mxu0 0
        %650 = vmatprep.subr.bf16.mxu0 0
        %651 = vmatpush1.bf16.xpose.msra.mxu0 0
        %652 = vmatprep.subr.bf16.mxu0 0
        %653 = vmatpush1.bf16.xpose.msra.mxu0 0
        %654 = vmatprep.mubr.bf16.mxu0 0
        %655 = vmatmul.mubr.bf16.gmra.mrb[0].mxu0 %v617
        %v656 = vpop.f32.mrb[0].mxu0
        %v657 = vadd.f32 0.0, %v656
        %v658 = vpop.f32.mrb[0].mxu0
        %v659 = vpop.f32.mrb[0].mxu0
        %v660 = vpop.f32.mrb[0].mxu0
        %661 = vdwg.mxu0
        %v662 = vsel %vm381, %v657, 0.0
        %663 = vadd.xlane.f32.xlu0 %v662
        %v664 = vpop.xlane.xlu0 %663
        %v665 = vmul.f32 %v664, 0.125
        %v666 = vmul.f32 %v657, %v657
        %v667 = vsel %vm381, %v666, 0.0
        %668 = vadd.xlane.f32.xlu0 %v667
        %v669 = vpop.xlane.xlu0 %668
        %v670 = vmul.f32 %v669, 0.125
        %v671 = vmul.f32 %v665, %v665
        %v672 = vsub.f32 %v670, %v671
        %v673 = vmax.f32 %v672, 0.0
        %v674 = vadd.f32 %v673, 1.28e-06
        %v675 = vrsqrt.pop %v674
        %v676 = vpack.c.bf16 %v657, %v657
        %677 = vrot.lane.b32.xlu0 %v536, 64
        %v678 = vpop.permute.xlu0 %677
        %v680 = vsel %vm381, %v676, 0
        %v683 = vsel %vm400, %v678, 0
        %685 = vmatprep.subr.bf16.mxu0 0
        %686 = vmatpush1.bf16.msra.mxu0 %v683
        %687 = vmatprep.subr.bf16.mxu0 0
        %688 = vmatpush1.bf16.msra.mxu0 0
        %689 = vmatprep.subr.bf16.mxu0 0
        %690 = vmatpush1.bf16.msra.mxu0 0
        %691 = vmatprep.subr.bf16.mxu0 0
        %692 = vmatpush1.bf16.msra.mxu0 0
        %693 = vmatprep.subr.bf16.mxu0 0
        %694 = vmatpush1.bf16.msra.mxu0 0
        %695 = vmatprep.subr.bf16.mxu0 0
        %696 = vmatpush1.bf16.msra.mxu0 0
        %697 = vmatprep.subr.bf16.mxu0 0
        %698 = vmatpush1.bf16.msra.mxu0 0
        %699 = vmatprep.subr.bf16.mxu0 0
        %700 = vmatpush1.bf16.msra.mxu0 0
        %701 = vmatprep.subr.bf16.mxu0 0
        %702 = vmatpush1.bf16.msra.mxu0 0
        %703 = vmatprep.subr.bf16.mxu0 0
        %704 = vmatpush1.bf16.msra.mxu0 0
        %705 = vmatprep.subr.bf16.mxu0 0
        %706 = vmatpush1.bf16.msra.mxu0 0
        %707 = vmatprep.subr.bf16.mxu0 0
        %708 = vmatpush1.bf16.msra.mxu0 0
        %709 = vmatprep.subr.bf16.mxu0 0
        %710 = vmatpush1.bf16.msra.mxu0 0
        %711 = vmatprep.subr.bf16.mxu0 0
        %712 = vmatpush1.bf16.msra.mxu0 0
        %713 = vmatprep.subr.bf16.mxu0 0
        %714 = vmatpush1.bf16.msra.mxu0 0
        %715 = vmatprep.subr.bf16.mxu0 0
        %716 = vmatpush1.bf16.msra.mxu0 0
        %717 = vmatprep.mubr.bf16.mxu0 0
        %718 = vmatmul.mubr.bf16.gmra.mrb[0].mxu0 %v680
        %v719 = vpop.f32.mrb[0].mxu0
        %v720 = vadd.f32 0.0, %v719
        %v721 = vpop.f32.mrb[0].mxu0
        %v722 = vpop.f32.mrb[0].mxu0
        %v723 = vpop.f32.mrb[0].mxu0
        %724 = vdwg.mxu0
        %vm725 = vcmask 785920
        %v726 = vsel %vm725, %v444, 0.0
        %v727 = vrot.slane %v726, 4
        %v728 = vadd.f32 %v726, %v727
        %v729 = vrot.slane %v728, 2
        %v730 = vadd.f32 %v728, %v729
        %v731 = vrot.slane %v730, 1
        %v732 = vadd.f32 %v730, %v731
        %s733 = sld [smem:[#allocation2 + $0x2]]
        %v734 = vstv %s733
        %v735 = vmul.f32 %v734, %v675
        %v736 = vmul.f32 %v665, %v732
        %738 = vrot.lane.b32.xlu0 %v736, 64
        %v739 = vpop.permute.xlu0 %738
        %v741 = vsub.f32 %v720, %v739
        %v742 = vmul.f32 %v735, %v741
        %s743 = sld [smem:[#allocation4 + $0x2]]
        %v744 = vstv %s743
        %v745 = vmul.f32 %v744, %v732
        %747 = vrot.lane.b32.xlu0 %v745, 64
        %v748 = vpop.permute.xlu0 %747
        %v750 = vadd.f32 %v742, %v748
        %v751 = vpack.c.bf16 %v750, %v750
        %752 = vrot.lane.b32.xlu0 %v465, 32
        %v753 = vpop.permute.xlu0 %752
        %754 = vrot.lane.b32.xlu0 %v470, 32
        %v755 = vpop.permute.xlu0 %754
        %v757 = vsel %vm334, %v753, 0
        %v760 = vsel %vm334, %v755, 0
        %762 = vmatprep.subr.bf16.mxu0 0
        %763 = vmatpush1.bf16.xpose.msra.mxu0 %v760
        %764 = vmatprep.subr.bf16.mxu0 0
        %765 = vmatpush1.bf16.xpose.msra.mxu0 0
        %766 = vmatprep.subr.bf16.mxu0 0
        %767 = vmatpush1.bf16.xpose.msra.mxu0 0
        %768 = vmatprep.subr.bf16.mxu0 0
        %769 = vmatpush1.bf16.xpose.msra.mxu0 0
        %770 = vmatprep.subr.bf16.mxu0 0
        %771 = vmatpush1.bf16.xpose.msra.mxu0 0
        %772 = vmatprep.subr.bf16.mxu0 0
        %773 = vmatpush1.bf16.xpose.msra.mxu0 0
        %774 = vmatprep.subr.bf16.mxu0 0
        %775 = vmatpush1.bf16.xpose.msra.mxu0 0
        %776 = vmatprep.subr.bf16.mxu0 0
        %777 = vmatpush1.bf16.xpose.msra.mxu0 0
        %778 = vmatprep.subr.bf16.mxu0 0
        %779 = vmatpush1.bf16.xpose.msra.mxu0 0
        %780 = vmatprep.subr.bf16.mxu0 0
        %781 = vmatpush1.bf16.xpose.msra.mxu0 0
        %782 = vmatprep.subr.bf16.mxu0 0
        %783 = vmatpush1.bf16.xpose.msra.mxu0 0
        %784 = vmatprep.subr.bf16.mxu0 0
        %785 = vmatpush1.bf16.xpose.msra.mxu0 0
        %786 = vmatprep.subr.bf16.mxu0 0
        %787 = vmatpush1.bf16.xpose.msra.mxu0 0
        %788 = vmatprep.subr.bf16.mxu0 0
        %789 = vmatpush1.bf16.xpose.msra.mxu0 0
        %790 = vmatprep.subr.bf16.mxu0 0
        %791 = vmatpush1.bf16.xpose.msra.mxu0 0
        %792 = vmatprep.subr.bf16.mxu0 0
        %793 = vmatpush1.bf16.xpose.msra.mxu0 0
        %794 = vmatprep.mubr.bf16.mxu0 0
        %795 = vmatmul.mubr.bf16.gmra.mrb[0].mxu0 %v757
        %v796 = vpop.f32.mrb[0].mxu0
        %v797 = vadd.f32 0.0, %v796
        %v798 = vpop.f32.mrb[0].mxu0
        %v799 = vpop.f32.mrb[0].mxu0
        %v800 = vpop.f32.mrb[0].mxu0
        %801 = vdwg.mxu0
        %v802 = vsel %vm381, %v797, 0.0
        %803 = vadd.xlane.f32.xlu0 %v802
        %v804 = vpop.xlane.xlu0 %803
        %v805 = vmul.f32 %v804, 0.125
        %v806 = vmul.f32 %v797, %v797
        %v807 = vsel %vm381, %v806, 0.0
        %808 = vadd.xlane.f32.xlu0 %v807
        %v809 = vpop.xlane.xlu0 %808
        %v810 = vmul.f32 %v809, 0.125
        %v811 = vmul.f32 %v805, %v805
        %v812 = vsub.f32 %v810, %v811
        %v813 = vmax.f32 %v812, 0.0
        %v814 = vadd.f32 %v813, 1.28e-06
        %v815 = vrsqrt.pop %v814
        %v816 = vpack.c.bf16 %v797, %v797
        %817 = vrot.lane.b32.xlu0 %v536, 32
        %v818 = vpop.permute.xlu0 %817
        %v820 = vsel %vm381, %v816, 0
        %v823 = vsel %vm400, %v818, 0
        %825 = vmatprep.subr.bf16.mxu0 0
        %826 = vmatpush1.bf16.msra.mxu0 %v823
        %827 = vmatprep.subr.bf16.mxu0 0
        %828 = vmatpush1.bf16.msra.mxu0 0
        %829 = vmatprep.subr.bf16.mxu0 0
        %830 = vmatpush1.bf16.msra.mxu0 0
        %831 = vmatprep.subr.bf16.mxu0 0
        %832 = vmatpush1.bf16.msra.mxu0 0
        %833 = vmatprep.subr.bf16.mxu0 0
        %834 = vmatpush1.bf16.msra.mxu0 0
        %835 = vmatprep.subr.bf16.mxu0 0
        %836 = vmatpush1.bf16.msra.mxu0 0
        %837 = vmatprep.subr.bf16.mxu0 0
        %838 = vmatpush1.bf16.msra.mxu0 0
        %839 = vmatprep.subr.bf16.mxu0 0
        %840 = vmatpush1.bf16.msra.mxu0 0
        %841 = vmatprep.subr.bf16.mxu0 0
        %842 = vmatpush1.bf16.msra.mxu0 0
        %843 = vmatprep.subr.bf16.mxu0 0
        %844 = vmatpush1.bf16.msra.mxu0 0
        %845 = vmatprep.subr.bf16.mxu0 0
        %846 = vmatpush1.bf16.msra.mxu0 0
        %847 = vmatprep.subr.bf16.mxu0 0
        %848 = vmatpush1.bf16.msra.mxu0 0
        %849 = vmatprep.subr.bf16.mxu0 0
        %850 = vmatpush1.bf16.msra.mxu0 0
        %851 = vmatprep.subr.bf16.mxu0 0
        %852 = vmatpush1.bf16.msra.mxu0 0
        %853 = vmatprep.subr.bf16.mxu0 0
        %854 = vmatpush1.bf16.msra.mxu0 0
        %855 = vmatprep.subr.bf16.mxu0 0
        %856 = vmatpush1.bf16.msra.mxu0 0
        %857 = vmatprep.mubr.bf16.mxu0 0
        %858 = vmatmul.mubr.bf16.gmra.mrb[0].mxu0 %v820
        %v859 = vpop.f32.mrb[0].mxu0
        %v860 = vadd.f32 0.0, %v859
        %v861 = vpop.f32.mrb[0].mxu0
        %v862 = vpop.f32.mrb[0].mxu0
        %v863 = vpop.f32.mrb[0].mxu0
        %864 = vdwg.mxu0
        %vm865 = vcmask 1048320
        %v866 = vsel %vm865, %v444, 0.0
        %v867 = vrot.slane %v866, 4
        %v868 = vadd.f32 %v866, %v867
        %v869 = vrot.slane %v868, 2
        %v870 = vadd.f32 %v868, %v869
        %v871 = vrot.slane %v870, 1
        %v872 = vadd.f32 %v870, %v871
        %s873 = sld [smem:[#allocation2 + $0x3]]
        %v874 = vstv %s873
        %v875 = vmul.f32 %v874, %v815
        %v876 = vmul.f32 %v805, %v872
        %878 = vrot.lane.b32.xlu0 %v876, 32
        %v879 = vpop.permute.xlu0 %878
        %v881 = vsub.f32 %v860, %v879
        %v882 = vmul.f32 %v875, %v881
        %s883 = sld [smem:[#allocation4 + $0x3]]
        %v884 = vstv %s883
        %v885 = vmul.f32 %v884, %v872
        %887 = vrot.lane.b32.xlu0 %v885, 32
        %v888 = vpop.permute.xlu0 %887
        %v890 = vadd.f32 %v882, %v888
        %v891 = vpack.c.bf16 %v890, %v890
        %893 = vrot.lane.b32.xlu0 %v611, 32
        %v894 = vpop.permute.xlu0 %893
        %896 = vrot.lane.b32.xlu0 %v751, 64
        %v897 = vpop.permute.xlu0 %896
        %899 = vrot.lane.b32.xlu0 %v891, 96
        %v900 = vpop.permute.xlu0 %899
        %v903 = vsel %vm334, %v462, %v894
        %vm904 = vcmask 523264
        %v906 = vsel %vm904, %v903, %v897
        %vm907 = vcmask 785408
        %v909 = vsel %vm907, %v906, %v900
        %911 = vst [vmem:[%s329] sm:$0xf] %v909
        %p912 = scmp.lt.s32.totalorder %s22, 1
        %s913 = scalar_select %p912, %s22, 1
        %p914 = scmp.lt.s32.totalorder %s23, 0
        %s915 = scalar_select %p914, %s23, 0
        %s916 = sadd.s32 %s915, %s913
        %s917 = smul.addr %s916, 4
        %s918 = scalar_lea.vmem %s5, %s917
        // Predicated region
        $region49: #{transformer_lm_forward.14} parent=39 // pred_check
          %p919 = pneg %p172
        $region50: #{transformer_lm_forward.14} parent=39 // pred_check_branch
          %921 = sbr.rel (%p919) target = $region52
        $region51: #{transformer_lm_forward.14} parent=39 // pred_region
          _
        $region52: #{transformer_lm_forward.14} parent=39 // pred_fallthru
          _
      $region40: #{transformer_lm_forward.14} parent=5 // pred_fallthru
        _
      %p922 = scmp.le.s32.totalorder 2, %s13
      // Predicated region
      $region53: #{transformer_lm_forward.14} parent=5 // pred_check
        %p923 = pneg %p922
      $region54: #{transformer_lm_forward.14} parent=5 // pred_check_branch
        %925 = sbr.rel (%p923) target = $region56
      $region55: #{transformer_lm_forward.14} parent=5 // pred_region
        %s926 = ssub.s32 %s13, 2
        // Predicated region
        $region57: #{transformer_lm_forward.14} parent=55 // pred_check
          %p927 = pneg %p178
        $region58: #{transformer_lm_forward.14} parent=55 // pred_check_branch
          %929 = sbr.rel (%p927) target = $region60
        $region59: #{transformer_lm_forward.14} parent=55 // pred_region
          %p930 = scmp.lt.s32.totalorder %s24, 1
          %s931 = scalar_select %p930, %s24, 1
          %p932 = scmp.lt.s32.totalorder %s25, 0
          %s933 = scalar_select %p932, %s25, 0
          %s934 = sadd.s32 %s933, %s931
          %s935 = smul.addr %s934, 4
          %s936 = scalar_lea.vmem %s5, %s935
        $region60: #{transformer_lm_forward.14} parent=55 // pred_fallthru
          _
      $region56: #{transformer_lm_forward.14} parent=5 // pred_fallthru
        _
    $region6: #{transformer_lm_forward.14} parent=1 // loop_footer
      %s17 = sadd.s32 1, %s13
    $region7: #{transformer_lm_forward.14} parent=1 // loop_footer_branch
      %12 = sbr.rel target = $region3
    $region8: #{transformer_lm_forward.14} parent=1 // loop_exit
      _
    %937 = vsyncpa [#allocation3], 1
    %s938 = scalar_lea.sflag [#allocation3], 1
    %939 = vsyncpa %s938, 1
    %940 = vsyncpa [#allocation5], 1

// kernel: transformer_lm_forward.17
$region0: #{transformer_lm_forward.17}
  #allocation0 [shape = 'u32[]', space=smem, size = 0x4, offset = 0x4, fixed_abs, tag = 'smem constant byte address 0x4 - core index']
  #allocation1 [shape = 'u32[144,128]{1,0:T(1,128)}', space=vmem, size = 0x12000, scoped, tag = 'internal scratch']
  #allocation2 [shape = 'f32[16,256]{1,0:T(8,128)}', space=vmem, size = 0x4000, scoped, tag = 'scratch operand']
  %s0 = inlined_call_operand.vmem [shape: bf16[16,128], index: 0, kind: input, shape index: {}]
  %s1 = inlined_call_operand.vmem [shape: bf16[128,256], index: 1, kind: input, shape index: {}]
  %s2 = inlined_call_operand.vmem [shape: f32[1,256], index: 2, kind: input, shape index: {}]
  %s3 = inlined_call_operand.hbm [shape: f32[16,256], index: 3, kind: output, shape index: {}]
  %s4 = sld [smem:[#allocation0]]
  $region30: #{transformer_lm_forward.17} parent=0
    _
  %s6 = ssub.s32 1, %s4
  %s7 = scalar_select 0, %s6, %s4
  $region1: #{transformer_lm_forward.17} parent=0
    #allocation3 [shape = 'u8[16384]{0}', space=vmem, size = 0x4000, scoped, tag = 'output window, operand 0, single buffered']
    #allocation4 [shape = 's32[1]{0}', space=sflag, size = 0x4, scoped, tag = 'scoped memory for transformer_lm_forward.17']
    %8 = vsyncpa [#allocation4], 0
    // Predicated region
    $region2: #{transformer_lm_forward.17} parent=1 // pred_check
      _
    $region3: #{transformer_lm_forward.17} parent=1 // pred_check_branch
      %10 = sbr.rel (0) target = $region5
    $region4: #{transformer_lm_forward.17} parent=1 // pred_region
      _
    $region5: #{transformer_lm_forward.17} parent=1 // pred_fallthru
      _
    // Predicated region
    $region6: #{transformer_lm_forward.17} parent=1 // pred_check
      _
    $region7: #{transformer_lm_forward.17} parent=1 // pred_check_branch
      %12 = sbr.rel (0) target = $region9
    $region8: #{transformer_lm_forward.17} parent=1 // pred_region
      _
    $region9: #{transformer_lm_forward.17} parent=1 // pred_fallthru
      _
    // Predicated region
    $region10: #{transformer_lm_forward.17} parent=1 // pred_check
      _
    $region11: #{transformer_lm_forward.17} parent=1 // pred_check_branch
      %14 = sbr.rel (0) target = $region13
    $region12: #{transformer_lm_forward.17} parent=1 // pred_region
      _
    $region13: #{transformer_lm_forward.17} parent=1 // pred_fallthru
      _
    %p16 = scmp.eq.s32.totalorder 0, 0
    // Predicated region
    $region14: #{transformer_lm_forward.17} parent=1 // pred_check
      %p17 = pneg %p16
    $region15: #{transformer_lm_forward.17} parent=1 // pred_check_branch
      %19 = sbr.rel (%p17) target = $region17
    $region16: #{transformer_lm_forward.17} parent=1 // pred_region
      %20 = vst [vmem:[#allocation2] sm:$0xff] 0.0
      %21 = vst [vmem:[#allocation2 + $0x8] sm:$0xff] 0.0
      %22 = vst [vmem:[#allocation2 + $0x10] sm:$0xff] 0.0
      %23 = vst [vmem:[#allocation2 + $0x18] sm:$0xff] 0.0
    $region17: #{transformer_lm_forward.17} parent=1 // pred_fallthru
      _
    %v24 = vld [vmem:[#allocation2] sm:$0xff]
    %v25 = vld [vmem:[#allocation2 + $0x8] sm:$0xff]
    %v26 = vld [vmem:[#allocation2 + $0x10] sm:$0xff]
    %v27 = vld [vmem:[#allocation2 + $0x18] sm:$0xff]
    %v28 = vld [vmem:[%s0] sm:$0xf]
    %v29 = vld [vmem:[%s0 + $0x4] sm:$0xf]
    %v30 = vld [vmem:[%s1] sm:$0xff]
    %v31 = vld [vmem:[%s1 + $0x8] sm:$0xff]
    %v32 = vld [vmem:[%s1 + $0x10] sm:$0xff]
    %v33 = vld [vmem:[%s1 + $0x18] sm:$0xff]
    %v34 = vld [vmem:[%s1 + $0x20] sm:$0xff]
    %v35 = vld [vmem:[%s1 + $0x28] sm:$0xff]
    %v36 = vld [vmem:[%s1 + $0x30] sm:$0xff]
    %v37 = vld [vmem:[%s1 + $0x38] sm:$0xff]
    %v38 = vld [vmem:[%s1 + $0x40] sm:$0xff]
    %v39 = vld [vmem:[%s1 + $0x48] sm:$0xff]
    %v40 = vld [vmem:[%s1 + $0x50] sm:$0xff]
    %v41 = vld [vmem:[%s1 + $0x58] sm:$0xff]
    %v42 = vld [vmem:[%s1 + $0x60] sm:$0xff]
    %v43 = vld [vmem:[%s1 + $0x68] sm:$0xff]
    %v44 = vld [vmem:[%s1 + $0x70] sm:$0xff]
    %v45 = vld [vmem:[%s1 + $0x78] sm:$0xff]
    %v48 = vunpack.c.l.b16 %v28
    %v49 = vunpack.c.l.b16 %v29
    %v50 = vpack.c.b16 %v49, %v48
    %v68 = vunpack.c.l.b16 %v30
    %v69 = vunpack.c.h.b16 %v30
    %v70 = vunpack.c.l.b16 %v31
    %v71 = vunpack.c.h.b16 %v31
    %v72 = vunpack.c.l.b16 %v32
    %v73 = vunpack.c.h.b16 %v32
    %v74 = vunpack.c.l.b16 %v33
    %v75 = vunpack.c.h.b16 %v33
    %v76 = vunpack.c.l.b16 %v34
    %v77 = vunpack.c.h.b16 %v34
    %v78 = vunpack.c.l.b16 %v35
    %v79 = vunpack.c.h.b16 %v35
    %v80 = vunpack.c.l.b16 %v36
    %v81 = vunpack.c.h.b16 %v36
    %v82 = vunpack.c.l.b16 %v37
    %v83 = vunpack.c.h.b16 %v37
    %v84 = vunpack.c.l.b16 %v38
    %v85 = vunpack.c.h.b16 %v38
    %v86 = vunpack.c.l.b16 %v39
    %v87 = vunpack.c.h.b16 %v39
    %v88 = vunpack.c.l.b16 %v40
    %v89 = vunpack.c.h.b16 %v40
    %v90 = vunpack.c.l.b16 %v41
    %v91 = vunpack.c.h.b16 %v41
    %v92 = vunpack.c.l.b16 %v42
    %v93 = vunpack.c.h.b16 %v42
    %v94 = vunpack.c.l.b16 %v43
    %v95 = vunpack.c.h.b16 %v43
    %v96 = vunpack.c.l.b16 %v44
    %v97 = vunpack.c.h.b16 %v44
    %v98 = vunpack.c.l.b16 %v45
    %v99 = vunpack.c.h.b16 %v45
    %v100 = vpack.c.b16 %v70, %v68
    %v101 = vpack.c.b16 %v71, %v69
    %v102 = vpack.c.b16 %v74, %v72
    %v103 = vpack.c.b16 %v75, %v73
    %v104 = vpack.c.b16 %v78, %v76
    %v105 = vpack.c.b16 %v79, %v77
    %v106 = vpack.c.b16 %v82, %v80
    %v107 = vpack.c.b16 %v83, %v81
    %v108 = vpack.c.b16 %v86, %v84
    %v109 = vpack.c.b16 %v87, %v85
    %v110 = vpack.c.b16 %v90, %v88
    %v111 = vpack.c.b16 %v91, %v89
    %v112 = vpack.c.b16 %v94, %v92
    %v113 = vpack.c.b16 %v95, %v93
    %v114 = vpack.c.b16 %v98, %v96
    %v115 = vpack.c.b16 %v99, %v97
    %132 = vmatprep.subr.bf16.mxu0 %v101
    %133 = vmatpush1.bf16.msra.mxu0 %v100
    %134 = vmatprep.subr.bf16.mxu0 %v103
    %135 = vmatpush1.bf16.msra.mxu0 %v102
    %136 = vmatprep.subr.bf16.mxu0 %v105
    %137 = vmatpush1.bf16.msra.mxu0 %v104
    %138 = vmatprep.subr.bf16.mxu0 %v107
    %139 = vmatpush1.bf16.msra.mxu0 %v106
    %140 = vmatprep.subr.bf16.mxu0 %v109
    %141 = vmatpush1.bf16.msra.mxu0 %v108
    %142 = vmatprep.subr.bf16.mxu0 %v111
    %143 = vmatpush1.bf16.msra.mxu0 %v110
    %144 = vmatprep.subr.bf16.mxu0 %v113
    %145 = vmatpush1.bf16.msra.mxu0 %v112
    %146 = vmatprep.subr.bf16.mxu0 %v115
    %147 = vmatpush1.bf16.msra.mxu0 %v114
    %148 = vmatprep.subr.bf16.mxu0 0
    %149 = vmatpush1.bf16.msra.mxu0 0
    %150 = vmatprep.subr.bf16.mxu0 0
    %151 = vmatpush1.bf16.msra.mxu0 0
    %152 = vmatprep.subr.bf16.mxu0 0
    %153 = vmatpush1.bf16.msra.mxu0 0
    %154 = vmatprep.subr.bf16.mxu0 0
    %155 = vmatpush1.bf16.msra.mxu0 0
    %156 = vmatprep.subr.bf16.mxu0 0
    %157 = vmatpush1.bf16.msra.mxu0 0
    %158 = vmatprep.subr.bf16.mxu0 0
    %159 = vmatpush1.bf16.msra.mxu0 0
    %160 = vmatprep.subr.bf16.mxu0 0
    %161 = vmatpush1.bf16.msra.mxu0 0
    %162 = vmatprep.subr.bf16.mxu0 0
    %163 = vmatpush1.bf16.msra.mxu0 0
    %164 = vmatprep.mubr.bf16.mxu0 0
    %165 = vmatmul.mubr.bf16.gmra.mrb[0].mxu0 %v50
    %v166 = vpop.f32.mrb[0].mxu0
    %v167 = vadd.f32 0.0, %v166
    %v168 = vpop.f32.mrb[0].mxu0
    %v169 = vadd.f32 0.0, %v168
    %v170 = vpop.f32.mrb[0].mxu0
    %v171 = vadd.f32 0.0, %v170
    %v172 = vpop.f32.mrb[0].mxu0
    %v173 = vadd.f32 0.0, %v172
    %174 = vdwg.mxu0
    %v175 = vadd.f32 %v24, %v167
    %v176 = vadd.f32 %v25, %v169
    %v177 = vadd.f32 %v26, %v171
    %v178 = vadd.f32 %v27, %v173
    %179 = vst [vmem:[#allocation2] sm:$0xff] %v175
    %180 = vst [vmem:[#allocation2 + $0x8] sm:$0xff] %v176
    %181 = vst [vmem:[#allocation2 + $0x10] sm:$0xff] %v177
    %182 = vst [vmem:[#allocation2 + $0x18] sm:$0xff] %v178
    // Predicated region
    $region18: #{transformer_lm_forward.17} parent=1 // pred_check
      %p183 = pneg %p16
    $region19: #{transformer_lm_forward.17} parent=1 // pred_check_branch
      %185 = sbr.rel (%p183) target = $region21
    $region20: #{transformer_lm_forward.17} parent=1 // pred_region
      %v186 = vld [vmem:[#allocation2] sm:$0xff]
      %v187 = vld [vmem:[#allocation2 + $0x8] sm:$0xff]
      %v188 = vld [vmem:[#allocation2 + $0x10] sm:$0xff]
      %v189 = vld [vmem:[#allocation2 + $0x18] sm:$0xff]
      %v190 = vld [vmem:[%s2] sm:$0x3]
      %v192 = vlaneseq
      %v193 = vshrl.u32 %v192, 7
      %v194 = vsub.s32 0, %v193
      %v195 = vrot.slane %v190, %v194
      %v196 = vlaneseq
      %v197 = vshrl.u32 %v196, 7
      %v198 = vsub.s32 1, %v197
      %v199 = vrot.slane %v190, %v198
      %v202 = vadd.f32 %v186, %v195
      %v203 = vadd.f32 %v187, %v199
      %v204 = vadd.f32 %v188, %v195
      %v205 = vadd.f32 %v189, %v199
      %206 = vst [vmem:[#allocation3] sm:$0xff] %v202
      %207 = vst [vmem:[#allocation3 + $0x8] sm:$0xff] %v203
      %208 = vst [vmem:[#allocation3 + $0x10] sm:$0xff] %v204
      %209 = vst [vmem:[#allocation3 + $0x18] sm:$0xff] %v205
    $region21: #{transformer_lm_forward.17} parent=1 // pred_fallthru
      _
    // Predicated region
    $region22: #{transformer_lm_forward.17} parent=1 // pred_check
      _
    $region23: #{transformer_lm_forward.17} parent=1 // pred_check_branch
      %211 = sbr.rel (0) target = $region25
    $region24: #{transformer_lm_forward.17} parent=1 // pred_region
      %s213 = ssub.s32 512, 512
      %214 = vsyncadd [#allocation4], %s213
      %s215 = sshll.u32 [#allocation3], 4
      %s216 = int_to_ptr.vmem [resolvable:$true] %s215
      %221 = dma.vmem_to_hbm [thread:$0]  %s216, 512, %s3, [#allocation4], 256, 256, 16
    $region25: #{transformer_lm_forward.17} parent=1 // pred_fallthru
      _
    // Predicated region
    $region26: #{transformer_lm_forward.17} parent=1 // pred_check
      _
    $region27: #{transformer_lm_forward.17} parent=1 // pred_check_branch
      %223 = sbr.rel (0) target = $region29
    $region28: #{transformer_lm_forward.17} parent=1 // pred_region
      %224 = dma.done [#allocation4], 512
    $region29: #{transformer_lm_forward.17} parent=1 // pred_fallthru
      _
    %225 = vsyncpa [#allocation4], 1

// kernel: transformer_lm_forward.16
$region0: #{transformer_lm_forward.16}
  #allocation0 [shape = 'u32[]', space=smem, size = 0x4, offset = 0x4, fixed_abs, tag = 'smem constant byte address 0x4 - core index']
  #allocation1 [shape = 'u32[144,128]{1,0:T(1,128)}', space=vmem, size = 0x12000, scoped, tag = 'internal scratch']
  #allocation2 [shape = 'bf16[16,128]{1,0:T(16,128)(2,1)}', space=vmem, size = 0x1000, scoped, tag = 'scratch operand']
  #allocation3 [shape = 'f32[16,128]{1,0:T(8,128)}', space=vmem, size = 0x2000, scoped, tag = 'scratch operand']
  %s0 = inlined_call_operand.vmem [shape: f32[16,128], index: 0, kind: input, shape index: {}]
  %s1 = inlined_call_operand.vmem [shape: f32[1,128], index: 1, kind: input, shape index: {}]
  %s2 = inlined_call_operand.vmem [shape: f32[1,128], index: 2, kind: input, shape index: {}]
  %s3 = inlined_call_operand.vmem [shape: bf16[128,512], index: 3, kind: input, shape index: {}]
  %s4 = inlined_call_operand.vmem [shape: f32[1,512], index: 4, kind: input, shape index: {}]
  %s5 = inlined_call_operand.vmem [shape: bf16[512,128], index: 5, kind: input, shape index: {}]
  %s6 = inlined_call_operand.vmem [shape: f32[1,128], index: 6, kind: input, shape index: {}]
  %s7 = inlined_call_operand.vmem [shape: f32[16,128], index: 7, kind: output, shape index: {}]
  %s8 = sld [smem:[#allocation0]]
  $region46: #{transformer_lm_forward.16} parent=0
    _
  %s10 = ssub.s32 1, %s8
  %s11 = scalar_select 0, %s10, %s8
  // Predicated region
  $region2: #{transformer_lm_forward.16} parent=0 // pred_check
    _
  $region3: #{transformer_lm_forward.16} parent=0 // pred_check_branch
    %13 = sbr.rel (0) target = $region5
  $region4: #{transformer_lm_forward.16} parent=0 // pred_region
    _
  $region5: #{transformer_lm_forward.16} parent=0 // pred_fallthru
    _
  // Predicated region
  $region6: #{transformer_lm_forward.16} parent=0 // pred_check
    _
  $region7: #{transformer_lm_forward.16} parent=0 // pred_check_branch
    %15 = sbr.rel (0) target = $region9
  $region8: #{transformer_lm_forward.16} parent=0 // pred_region
    _
  $region9: #{transformer_lm_forward.16} parent=0 // pred_fallthru
    _
  // Predicated region
  $region10: #{transformer_lm_forward.16} parent=0 // pred_check
    _
  $region11: #{transformer_lm_forward.16} parent=0 // pred_check_branch
    %17 = sbr.rel (0) target = $region13
  $region12: #{transformer_lm_forward.16} parent=0 // pred_region
    _
  $region13: #{transformer_lm_forward.16} parent=0 // pred_fallthru
    _
  // Predicated region
  $region14: #{transformer_lm_forward.16} parent=0 // pred_check
    _
  $region15: #{transformer_lm_forward.16} parent=0 // pred_check_branch
    %19 = sbr.rel (0) target = $region17
  $region16: #{transformer_lm_forward.16} parent=0 // pred_region
    _
  $region17: #{transformer_lm_forward.16} parent=0 // pred_fallthru
    _
  // Predicated region
  $region18: #{transformer_lm_forward.16} parent=0 // pred_check
    _
  $region19: #{transformer_lm_forward.16} parent=0 // pred_check_branch
    %21 = sbr.rel (0) target = $region21
  $region20: #{transformer_lm_forward.16} parent=0 // pred_region
    _
  $region21: #{transformer_lm_forward.16} parent=0 // pred_fallthru
    _
  // Predicated region
  $region22: #{transformer_lm_forward.16} parent=0 // pred_check
    _
  $region23: #{transformer_lm_forward.16} parent=0 // pred_check_branch
    %23 = sbr.rel (0) target = $region25
  $region24: #{transformer_lm_forward.16} parent=0 // pred_region
    _
  $region25: #{transformer_lm_forward.16} parent=0 // pred_fallthru
    _
  // Predicated region
  $region26: #{transformer_lm_forward.16} parent=0 // pred_check
    _
  $region27: #{transformer_lm_forward.16} parent=0 // pred_check_branch
    %25 = sbr.rel (0) target = $region29
  $region28: #{transformer_lm_forward.16} parent=0 // pred_region
    _
  $region29: #{transformer_lm_forward.16} parent=0 // pred_fallthru
    _
  %p27 = scmp.eq.s32.totalorder 0, 0
  // Predicated region
  $region30: #{transformer_lm_forward.16} parent=0 // pred_check
    %p28 = pneg %p27
  $region31: #{transformer_lm_forward.16} parent=0 // pred_check_branch
    %30 = sbr.rel (%p28) target = $region33
  $region32: #{transformer_lm_forward.16} parent=0 // pred_region
    %v31 = vld [vmem:[%s0] sm:$0xff]
    %v32 = vld [vmem:[%s0 + $0x8] sm:$0xff]
    %33 = vadd.xlane.f32.xlu0 %v31
    %v34 = vpop.xlane.xlu0 %33
    %35 = vadd.xlane.f32.xlu0 %v32
    %v36 = vpop.xlane.xlu0 %35
    %v37 = vrcp.pop 128.0
    %v38 = vmul.f32 %v34, %v37
    %v39 = vmul.f32 %v36, %v37
    %v40 = vsub.f32 %v31, %v38
    %v41 = vsub.f32 %v32, %v39
    %v42 = vmul.f32 %v40, %v40
    %v43 = vmul.f32 %v41, %v41
    %44 = vadd.xlane.f32.xlu0 %v42
    %v45 = vpop.xlane.xlu0 %44
    %46 = vadd.xlane.f32.xlu0 %v43
    %v47 = vpop.xlane.xlu0 %46
    %v48 = vmul.f32 %v45, %v37
    %v49 = vmul.f32 %v47, %v37
    %v50 = vadd.f32 %v48, 1e-05
    %v51 = vadd.f32 %v49, 1e-05
    %v52 = vrsqrt.pop %v50
    %v53 = vrsqrt.pop %v51
    %v54 = vld [vmem:[%s1] sm:$0x1]
    %v56 = vlaneseq
    %v57 = vshrl.u32 %v56, 7
    %v58 = vsub.s32 0, %v57
    %v59 = vrot.slane %v54, %v58
    %v61 = vmul.f32 %v52, %v59
    %v62 = vmul.f32 %v53, %v59
    %v63 = vmul.f32 %v40, %v61
    %v64 = vmul.f32 %v41, %v62
    %v65 = vld [vmem:[%s2] sm:$0x1]
    %v67 = vlaneseq
    %v68 = vshrl.u32 %v67, 7
    %v69 = vsub.s32 0, %v68
    %v70 = vrot.slane %v65, %v69
    %v72 = vadd.f32 %v63, %v70
    %v73 = vadd.f32 %v64, %v70
    %v74 = vpack.c.bf16 %v73, %v72
    %75 = vst [vmem:[#allocation2] sm:$0xff] %v74
    %76 = vst [vmem:[#allocation3] sm:$0xff] 0.0
    %77 = vst [vmem:[#allocation3 + $0x8] sm:$0xff] 0.0
  $region33: #{transformer_lm_forward.16} parent=0 // pred_fallthru
    _
  %v78 = vld [vmem:[#allocation2] sm:$0xff]
  %v79 = vld [vmem:[%s3] sm:$0xff]
  %v80 = vld [vmem:[%s3 + $0x8] sm:$0xff]
  %v81 = vld [vmem:[%s3 + $0x10] sm:$0xff]
  %v82 = vld [vmem:[%s3 + $0x18] sm:$0xff]
  %v83 = vld [vmem:[%s3 + $0x20] sm:$0xff]
  %v84 = vld [vmem:[%s3 + $0x28] sm:$0xff]
  %v85 = vld [vmem:[%s3 + $0x30] sm:$0xff]
  %v86 = vld [vmem:[%s3 + $0x38] sm:$0xff]
  %v87 = vld [vmem:[%s3 + $0x40] sm:$0xff]
  %v88 = vld [vmem:[%s3 + $0x48] sm:$0xff]
  %v89 = vld [vmem:[%s3 + $0x50] sm:$0xff]
  %v90 = vld [vmem:[%s3 + $0x58] sm:$0xff]
  %v91 = vld [vmem:[%s3 + $0x60] sm:$0xff]
  %v92 = vld [vmem:[%s3 + $0x68] sm:$0xff]
  %v93 = vld [vmem:[%s3 + $0x70] sm:$0xff]
  %v94 = vld [vmem:[%s3 + $0x78] sm:$0xff]
  %v95 = vld [vmem:[%s3 + $0x80] sm:$0xff]
  %v96 = vld [vmem:[%s3 + $0x88] sm:$0xff]
  %v97 = vld [vmem:[%s3 + $0x90] sm:$0xff]
  %v98 = vld [vmem:[%s3 + $0x98] sm:$0xff]
  %v99 = vld [vmem:[%s3 + $0xa0] sm:$0xff]
  %v100 = vld [vmem:[%s3 + $0xa8] sm:$0xff]
  %v101 = vld [vmem:[%s3 + $0xb0] sm:$0xff]
  %v102 = vld [vmem:[%s3 + $0xb8] sm:$0xff]
  %v103 = vld [vmem:[%s3 + $0xc0] sm:$0xff]
  %v104 = vld [vmem:[%s3 + $0xc8] sm:$0xff]
  %v105 = vld [vmem:[%s3 + $0xd0] sm:$0xff]
  %v106 = vld [vmem:[%s3 + $0xd8] sm:$0xff]
  %v107 = vld [vmem:[%s3 + $0xe0] sm:$0xff]
  %v108 = vld [vmem:[%s3 + $0xe8] sm:$0xff]
  %v109 = vld [vmem:[%s3 + $0xf0] sm:$0xff]
  %v110 = vld [vmem:[%s3 + $0xf8] sm:$0xff]
  %v111 = vld [vmem:[%s4] sm:$0xf]
  %v113 = vlaneseq
  %v114 = vshrl.u32 %v113, 7
  %v115 = vsub.s32 0, %v114
  %v116 = vrot.slane %v111, %v115
  %v117 = vlaneseq
  %v118 = vshrl.u32 %v117, 7
  %v119 = vsub.s32 1, %v118
  %v120 = vrot.slane %v111, %v119
  %v121 = vlaneseq
  %v122 = vshrl.u32 %v121, 7
  %v123 = vsub.s32 2, %v122
  %v124 = vrot.slane %v111, %v123
  %v125 = vlaneseq
  %v126 = vshrl.u32 %v125, 7
  %v127 = vsub.s32 3, %v126
  %v128 = vrot.slane %v111, %v127
  %v165 = vunpack.c.l.b16 %v79
  %v166 = vunpack.c.h.b16 %v79
  %v167 = vunpack.c.l.b16 %v80
  %v168 = vunpack.c.h.b16 %v80
  %v169 = vunpack.c.l.b16 %v81
  %v170 = vunpack.c.h.b16 %v81
  %v171 = vunpack.c.l.b16 %v82
  %v172 = vunpack.c.h.b16 %v82
  %v173 = vunpack.c.l.b16 %v83
  %v174 = vunpack.c.h.b16 %v83
  %v175 = vunpack.c.l.b16 %v84
  %v176 = vunpack.c.h.b16 %v84
  %v177 = vunpack.c.l.b16 %v85
  %v178 = vunpack.c.h.b16 %v85
  %v179 = vunpack.c.l.b16 %v86
  %v180 = vunpack.c.h.b16 %v86
  %v181 = vunpack.c.l.b16 %v87
  %v182 = vunpack.c.h.b16 %v87
  %v183 = vunpack.c.l.b16 %v88
  %v184 = vunpack.c.h.b16 %v88
  %v185 = vunpack.c.l.b16 %v89
  %v186 = vunpack.c.h.b16 %v89
  %v187 = vunpack.c.l.b16 %v90
  %v188 = vunpack.c.h.b16 %v90
  %v189 = vunpack.c.l.b16 %v91
  %v190 = vunpack.c.h.b16 %v91
  %v191 = vunpack.c.l.b16 %v92
  %v192 = vunpack.c.h.b16 %v92
  %v193 = vunpack.c.l.b16 %v93
  %v194 = vunpack.c.h.b16 %v93
  %v195 = vunpack.c.l.b16 %v94
  %v196 = vunpack.c.h.b16 %v94
  %v197 = vunpack.c.l.b16 %v95
  %v198 = vunpack.c.h.b16 %v95
  %v199 = vunpack.c.l.b16 %v96
  %v200 = vunpack.c.h.b16 %v96
  %v201 = vunpack.c.l.b16 %v97
  %v202 = vunpack.c.h.b16 %v97
  %v203 = vunpack.c.l.b16 %v98
  %v204 = vunpack.c.h.b16 %v98
  %v205 = vunpack.c.l.b16 %v99
  %v206 = vunpack.c.h.b16 %v99
  %v207 = vunpack.c.l.b16 %v100
  %v208 = vunpack.c.h.b16 %v100
  %v209 = vunpack.c.l.b16 %v101
  %v210 = vunpack.c.h.b16 %v101
  %v211 = vunpack.c.l.b16 %v102
  %v212 = vunpack.c.h.b16 %v102
  %v213 = vunpack.c.l.b16 %v103
  %v214 = vunpack.c.h.b16 %v103
  %v215 = vunpack.c.l.b16 %v104
  %v216 = vunpack.c.h.b16 %v104
  %v217 = vunpack.c.l.b16 %v105
  %v218 = vunpack.c.h.b16 %v105
  %v219 = vunpack.c.l.b16 %v106
  %v220 = vunpack.c.h.b16 %v106
  %v221 = vunpack.c.l.b16 %v107
  %v222 = vunpack.c.h.b16 %v107
  %v223 = vunpack.c.l.b16 %v108
  %v224 = vunpack.c.h.b16 %v108
  %v225 = vunpack.c.l.b16 %v109
  %v226 = vunpack.c.h.b16 %v109
  %v227 = vunpack.c.l.b16 %v110
  %v228 = vunpack.c.h.b16 %v110
  %v229 = vpack.c.b16 %v169, %v165
  %v230 = vpack.c.b16 %v170, %v166
  %v231 = vpack.c.b16 %v171, %v167
  %v232 = vpack.c.b16 %v172, %v168
  %v233 = vpack.c.b16 %v177, %v173
  %v234 = vpack.c.b16 %v178, %v174
  %v235 = vpack.c.b16 %v179, %v175
  %v236 = vpack.c.b16 %v180, %v176
  %v237 = vpack.c.b16 %v185, %v181
  %v238 = vpack.c.b16 %v186, %v182
  %v239 = vpack.c.b16 %v187, %v183
  %v240 = vpack.c.b16 %v188, %v184
  %v241 = vpack.c.b16 %v193, %v189
  %v242 = vpack.c.b16 %v194, %v190
  %v243 = vpack.c.b16 %v195, %v191
  %v244 = vpack.c.b16 %v196, %v192
  %v245 = vpack.c.b16 %v201, %v197
  %v246 = vpack.c.b16 %v202, %v198
  %v247 = vpack.c.b16 %v203, %v199
  %v248 = vpack.c.b16 %v204, %v200
  %v249 = vpack.c.b16 %v209, %v205
  %v250 = vpack.c.b16 %v210, %v206
  %v251 = vpack.c.b16 %v211, %v207
  %v252 = vpack.c.b16 %v212, %v208
  %v253 = vpack.c.b16 %v217, %v213
  %v254 = vpack.c.b16 %v218, %v214
  %v255 = vpack.c.b16 %v219, %v215
  %v256 = vpack.c.b16 %v220, %v216
  %v257 = vpack.c.b16 %v225, %v221
  %v258 = vpack.c.b16 %v226, %v222
  %v259 = vpack.c.b16 %v227, %v223
  %v260 = vpack.c.b16 %v228, %v224
  %293 = vmatprep.subr.bf16.mxu0 %v230
  %294 = vmatpush1.bf16.msra.mxu0 %v229
  %295 = vmatprep.subr.bf16.mxu0 %v234
  %296 = vmatpush1.bf16.msra.mxu0 %v233
  %297 = vmatprep.subr.bf16.mxu0 %v238
  %298 = vmatpush1.bf16.msra.mxu0 %v237
  %299 = vmatprep.subr.bf16.mxu0 %v242
  %300 = vmatpush1.bf16.msra.mxu0 %v241
  %301 = vmatprep.subr.bf16.mxu0 %v246
  %302 = vmatpush1.bf16.msra.mxu0 %v245
  %303 = vmatprep.subr.bf16.mxu0 %v250
  %304 = vmatpush1.bf16.msra.mxu0 %v249
  %305 = vmatprep.subr.bf16.mxu0 %v254
  %306 = vmatpush1.bf16.msra.mxu0 %v253
  %307 = vmatprep.subr.bf16.mxu0 %v258
  %308 = vmatpush1.bf16.msra.mxu0 %v257
  %309 = vmatprep.subr.bf16.mxu0 0
  %310 = vmatpush1.bf16.msra.mxu0 0
  %311 = vmatprep.subr.bf16.mxu0 0
  %312 = vmatpush1.bf16.msra.mxu0 0
  %313 = vmatprep.subr.bf16.mxu0 0
  %314 = vmatpush1.bf16.msra.mxu0 0
  %315 = vmatprep.subr.bf16.mxu0 0
  %316 = vmatpush1.bf16.msra.mxu0 0
  %317 = vmatprep.subr.bf16.mxu0 0
  %318 = vmatpush1.bf16.msra.mxu0 0
  %319 = vmatprep.subr.bf16.mxu0 0
  %320 = vmatpush1.bf16.msra.mxu0 0
  %321 = vmatprep.subr.bf16.mxu0 0
  %322 = vmatpush1.bf16.msra.mxu0 0
  %323 = vmatprep.subr.bf16.mxu0 0
  %324 = vmatpush1.bf16.msra.mxu0 0
  %325 = vmatprep.mubr.bf16.mxu0 0
  %326 = vmatmul.mubr.bf16.gmra.mrb[0].mxu0 %v78
  %v327 = vpop.f32.mrb[0].mxu0
  %v328 = vadd.f32 %v116, %v327
  %v329 = vpop.f32.mrb[0].mxu0
  %v330 = vadd.f32 %v120, %v329
  %v331 = vpop.f32.mrb[0].mxu0
  %v332 = vadd.f32 %v116, %v331
  %v333 = vpop.f32.mrb[0].mxu0
  %v334 = vadd.f32 %v120, %v333
  %335 = vdwg.mxu0
  %336 = vmatprep.subr.bf16.mxu0 %v232
  %337 = vmatpush1.bf16.msra.mxu0 %v231
  %338 = vmatprep.subr.bf16.mxu0 %v236
  %339 = vmatpush1.bf16.msra.mxu0 %v235
  %340 = vmatprep.subr.bf16.mxu0 %v240
  %341 = vmatpush1.bf16.msra.mxu0 %v239
  %342 = vmatprep.subr.bf16.mxu0 %v244
  %343 = vmatpush1.bf16.msra.mxu0 %v243
  %344 = vmatprep.subr.bf16.mxu0 %v248
  %345 = vmatpush1.bf16.msra.mxu0 %v247
  %346 = vmatprep.subr.bf16.mxu0 %v252
  %347 = vmatpush1.bf16.msra.mxu0 %v251
  %348 = vmatprep.subr.bf16.mxu0 %v256
  %349 = vmatpush1.bf16.msra.mxu0 %v255
  %350 = vmatprep.subr.bf16.mxu0 %v260
  %351 = vmatpush1.bf16.msra.mxu0 %v259
  %352 = vmatprep.subr.bf16.mxu0 0
  %353 = vmatpush1.bf16.msra.mxu0 0
  %354 = vmatprep.subr.bf16.mxu0 0
  %355 = vmatpush1.bf16.msra.mxu0 0
  %356 = vmatprep.subr.bf16.mxu0 0
  %357 = vmatpush1.bf16.msra.mxu0 0
  %358 = vmatprep.subr.bf16.mxu0 0
  %359 = vmatpush1.bf16.msra.mxu0 0
  %360 = vmatprep.subr.bf16.mxu0 0
  %361 = vmatpush1.bf16.msra.mxu0 0
  %362 = vmatprep.subr.bf16.mxu0 0
  %363 = vmatpush1.bf16.msra.mxu0 0
  %364 = vmatprep.subr.bf16.mxu0 0
  %365 = vmatpush1.bf16.msra.mxu0 0
  %366 = vmatprep.subr.bf16.mxu0 0
  %367 = vmatpush1.bf16.msra.mxu0 0
  %368 = vmatprep.mubr.bf16.mxu0 0
  %369 = vmatmul.mubr.bf16.gmra.mrb[0].mxu0 %v78
  %v370 = vpop.f32.mrb[0].mxu0
  %v371 = vadd.f32 %v124, %v370
  %v372 = vpop.f32.mrb[0].mxu0
  %v373 = vadd.f32 %v128, %v372
  %v374 = vpop.f32.mrb[0].mxu0
  %v375 = vadd.f32 %v124, %v374
  %v376 = vpop.f32.mrb[0].mxu0
  %v377 = vadd.f32 %v128, %v376
  %378 = vdwg.mxu0
  %v379 = vmul.f32 %v328, 0.70710677
  %v380 = vmul.f32 %v330, 0.70710677
  %v381 = vmul.f32 %v371, 0.70710677
  %v382 = vmul.f32 %v373, 0.70710677
  %v383 = vmul.f32 %v332, 0.70710677
  %v384 = vmul.f32 %v334, 0.70710677
  %v385 = vmul.f32 %v375, 0.70710677
  %v386 = vmul.f32 %v377, 0.70710677
  %v387 = vand.u32 2147483647, %v379
  %v388 = vand.u32 2147483647, %v380
  %v389 = vand.u32 2147483647, %v381
  %v390 = vand.u32 2147483647, %v382
  %v391 = vand.u32 2147483647, %v383
  %v392 = vand.u32 2147483647, %v384
  %v393 = vand.u32 2147483647, %v385
  %v394 = vand.u32 2147483647, %v386
  %v395 = vmul.f32 %v387, 0.3275911
  %v396 = vmul.f32 %v388, 0.3275911
  %v397 = vmul.f32 %v389, 0.3275911
  %v398 = vmul.f32 %v390, 0.3275911
  %v399 = vmul.f32 %v391, 0.3275911
  %v400 = vmul.f32 %v392, 0.3275911
  %v401 = vmul.f32 %v393, 0.3275911
  %v402 = vmul.f32 %v394, 0.3275911
  %v403 = vadd.f32 %v395, 1.0
  %v404 = vadd.f32 %v396, 1.0
  %v405 = vadd.f32 %v397, 1.0
  %v406 = vadd.f32 %v398, 1.0
  %v407 = vadd.f32 %v399, 1.0
  %v408 = vadd.f32 %v400, 1.0
  %v409 = vadd.f32 %v401, 1.0
  %v410 = vadd.f32 %v402, 1.0
  %v411 = vrcp.pop %v403
  %v412 = vmul.f32 1.0, %v411
  %v413 = vrcp.pop %v404
  %v414 = vmul.f32 1.0, %v413
  %v415 = vrcp.pop %v405
  %v416 = vmul.f32 1.0, %v415
  %v417 = vrcp.pop %v406
  %v418 = vmul.f32 1.0, %v417
  %v419 = vrcp.pop %v407
  %v420 = vmul.f32 1.0, %v419
  %v421 = vrcp.pop %v408
  %v422 = vmul.f32 1.0, %v421
  %v423 = vrcp.pop %v409
  %v424 = vmul.f32 1.0, %v423
  %v425 = vrcp.pop %v410
  %v426 = vmul.f32 1.0, %v425
  %v427 = vmul.f32 %v412, 1.0614054
  %v428 = vmul.f32 %v414, 1.0614054
  %v429 = vmul.f32 %v416, 1.0614054
  %v430 = vmul.f32 %v418, 1.0614054
  %v431 = vmul.f32 %v420, 1.0614054
  %v432 = vmul.f32 %v422, 1.0614054
  %v433 = vmul.f32 %v424, 1.0614054
  %v434 = vmul.f32 %v426, 1.0614054
  %v435 = vadd.f32 %v427, -1.4531521
  %v436 = vadd.f32 %v428, -1.4531521
  %v437 = vadd.f32 %v429, -1.4531521
  %v438 = vadd.f32 %v430, -1.4531521
  %v439 = vadd.f32 %v431, -1.4531521
  %v440 = vadd.f32 %v432, -1.4531521
  %v441 = vadd.f32 %v433, -1.4531521
  %v442 = vadd.f32 %v434, -1.4531521
  %v443 = vmul.f32 %v412, %v435
  %v444 = vmul.f32 %v414, %v436
  %v445 = vmul.f32 %v416, %v437
  %v446 = vmul.f32 %v418, %v438
  %v447 = vmul.f32 %v420, %v439
  %v448 = vmul.f32 %v422, %v440
  %v449 = vmul.f32 %v424, %v441
  %v450 = vmul.f32 %v426, %v442
  %v451 = vadd.f32 %v443, 1.4214138
  %v452 = vadd.f32 %v444, 1.4214138
  %v453 = vadd.f32 %v445, 1.4214138
  %v454 = vadd.f32 %v446, 1.4214138
  %v455 = vadd.f32 %v447, 1.4214138
  %v456 = vadd.f32 %v448, 1.4214138
  %v457 = vadd.f32 %v449, 1.4214138
  %v458 = vadd.f32 %v450, 1.4214138
  %v459 = vmul.f32 %v412, %v451
  %v460 = vmul.f32 %v414, %v452
  %v461 = vmul.f32 %v416, %v453
  %v462 = vmul.f32 %v418, %v454
  %v463 = vmul.f32 %v420, %v455
  %v464 = vmul.f32 %v422, %v456
  %v465 = vmul.f32 %v424, %v457
  %v466 = vmul.f32 %v426, %v458
  %v467 = vadd.f32 %v459, -0.28449672
  %v468 = vadd.f32 %v460, -0.28449672
  %v469 = vadd.f32 %v461, -0.28449672
  %v470 = vadd.f32 %v462, -0.28449672
  %v471 = vadd.f32 %v463, -0.28449672
  %v472 = vadd.f32 %v464, -0.28449672
  %v473 = vadd.f32 %v465, -0.28449672
  %v474 = vadd.f32 %v466, -0.28449672
  %v475 = vmul.f32 %v412, %v467
  %v476 = vmul.f32 %v414, %v468
  %v477 = vmul.f32 %v416, %v469
  %v478 = vmul.f32 %v418, %v470
  %v479 = vmul.f32 %v420, %v471
  %v480 = vmul.f32 %v422, %v472
  %v481 = vmul.f32 %v424, %v473
  %v482 = vmul.f32 %v426, %v474
  %v483 = vadd.f32 %v475, 0.2548296
  %v484 = vadd.f32 %v476, 0.2548296
  %v485 = vadd.f32 %v477, 0.2548296
  %v486 = vadd.f32 %v478, 0.2548296
  %v487 = vadd.f32 %v479, 0.2548296
  %v488 = vadd.f32 %v480, 0.2548296
  %v489 = vadd.f32 %v481, 0.2548296
  %v490 = vadd.f32 %v482, 0.2548296
  %v491 = vmul.f32 %v412, %v483
  %v492 = vmul.f32 %v414, %v484
  %v493 = vmul.f32 %v416, %v485
  %v494 = vmul.f32 %v418, %v486
  %v495 = vmul.f32 %v420, %v487
  %v496 = vmul.f32 %v422, %v488
  %v497 = vmul.f32 %v424, %v489
  %v498 = vmul.f32 %v426, %v490
  %v499 = vsub.f32 0.0, %v387
  %v500 = vsub.f32 0.0, %v388
  %v501 = vsub.f32 0.0, %v389
  %v502 = vsub.f32 0.0, %v390
  %v503 = vsub.f32 0.0, %v391
  %v504 = vsub.f32 0.0, %v392
  %v505 = vsub.f32 0.0, %v393
  %v506 = vsub.f32 0.0, %v394
  %v507 = vmul.f32 %v499, %v387
  %v508 = vmul.f32 %v500, %v388
  %v509 = vmul.f32 %v501, %v389
  %v510 = vmul.f32 %v502, %v390
  %v511 = vmul.f32 %v503, %v391
  %v512 = vmul.f32 %v504, %v392
  %v513 = vmul.f32 %v505, %v393
  %v514 = vmul.f32 %v506, %v394
  %v515 = vmul.f32 %v507, 1.442695
  %v516 = vpow.pop %v515
  %v517 = vmul.f32 %v508, 1.442695
  %v518 = vpow.pop %v517
  %v519 = vmul.f32 %v509, 1.442695
  %v520 = vpow.pop %v519
  %v521 = vmul.f32 %v510, 1.442695
  %v522 = vpow.pop %v521
  %v523 = vmul.f32 %v511, 1.442695
  %v524 = vpow.pop %v523
  %v525 = vmul.f32 %v512, 1.442695
  %v526 = vpow.pop %v525
  %v527 = vmul.f32 %v513, 1.442695
  %v528 = vpow.pop %v527
  %v529 = vmul.f32 %v514, 1.442695
  %v530 = vpow.pop %v529
  %v531 = vmul.f32 %v491, %v516
  %v532 = vmul.f32 %v492, %v518
  %v533 = vmul.f32 %v493, %v520
  %v534 = vmul.f32 %v494, %v522
  %v535 = vmul.f32 %v495, %v524
  %v536 = vmul.f32 %v496, %v526
  %v537 = vmul.f32 %v497, %v528
  %v538 = vmul.f32 %v498, %v530
  %v539 = vsub.f32 1.0, %v531
  %v540 = vsub.f32 1.0, %v532
  %v541 = vsub.f32 1.0, %v533
  %v542 = vsub.f32 1.0, %v534
  %v543 = vsub.f32 1.0, %v535
  %v544 = vsub.f32 1.0, %v536
  %v545 = vsub.f32 1.0, %v537
  %v546 = vsub.f32 1.0, %v538
  %vm547 = vcmp.ge.f32.partialorder %v379, 0.0
  %vm548 = vcmp.ge.f32.partialorder %v380, 0.0
  %vm549 = vcmp.ge.f32.partialorder %v381, 0.0
  %vm550 = vcmp.ge.f32.partialorder %v382, 0.0
  %vm551 = vcmp.ge.f32.partialorder %v383, 0.0
  %vm552 = vcmp.ge.f32.partialorder %v384, 0.0
  %vm553 = vcmp.ge.f32.partialorder %v385, 0.0
  %vm554 = vcmp.ge.f32.partialorder %v386, 0.0
  %v555 = vsub.f32 0.0, %v539
  %v556 = vsub.f32 0.0, %v540
  %v557 = vsub.f32 0.0, %v541
  %v558 = vsub.f32 0.0, %v542
  %v559 = vsub.f32 0.0, %v543
  %v560 = vsub.f32 0.0, %v544
  %v561 = vsub.f32 0.0, %v545
  %v562 = vsub.f32 0.0, %v546
  %v563 = vsel %vm547, %v539, %v555
  %v564 = vsel %vm548, %v540, %v556
  %v565 = vsel %vm549, %v541, %v557
  %v566 = vsel %vm550, %v542, %v558
  %v567 = vsel %vm551, %v543, %v559
  %v568 = vsel %vm552, %v544, %v560
  %v569 = vsel %vm553, %v545, %v561
  %v570 = vsel %vm554, %v546, %v562
  %v571 = vmul.f32 %v328, 0.5
  %v572 = vmul.f32 %v330, 0.5
  %v573 = vmul.f32 %v371, 0.5
  %v574 = vmul.f32 %v373, 0.5
  %v575 = vmul.f32 %v332, 0.5
  %v576 = vmul.f32 %v334, 0.5
  %v577 = vmul.f32 %v375, 0.5
  %v578 = vmul.f32 %v377, 0.5
  %v579 = vadd.f32 %v563, 1.0
  %v580 = vadd.f32 %v564, 1.0
  %v581 = vadd.f32 %v565, 1.0
  %v582 = vadd.f32 %v566, 1.0
  %v583 = vadd.f32 %v567, 1.0
  %v584 = vadd.f32 %v568, 1.0
  %v585 = vadd.f32 %v569, 1.0
  %v586 = vadd.f32 %v570, 1.0
  %v587 = vmul.f32 %v571, %v579
  %v588 = vmul.f32 %v572, %v580
  %v589 = vmul.f32 %v573, %v581
  %v590 = vmul.f32 %v574, %v582
  %v591 = vmul.f32 %v575, %v583
  %v592 = vmul.f32 %v576, %v584
  %v593 = vmul.f32 %v577, %v585
  %v594 = vmul.f32 %v578, %v586
  %v595 = vld [vmem:[#allocation3] sm:$0xff]
  %v596 = vld [vmem:[#allocation3 + $0x8] sm:$0xff]
  %v597 = vpack.c.bf16 %v591, %v587
  %v598 = vpack.c.bf16 %v592, %v588
  %v599 = vpack.c.bf16 %v593, %v589
  %v600 = vpack.c.bf16 %v594, %v590
  %v601 = vld [vmem:[%s5] sm:$0xf]
  %v602 = vld [vmem:[%s5 + $0x4] sm:$0xf]
  %v603 = vld [vmem:[%s5 + $0x8] sm:$0xf]
  %v604 = vld [vmem:[%s5 + $0xc] sm:$0xf]
  %v605 = vld [vmem:[%s5 + $0x10] sm:$0xf]
  %v606 = vld [vmem:[%s5 + $0x14] sm:$0xf]
  %v607 = vld [vmem:[%s5 + $0x18] sm:$0xf]
  %v608 = vld [vmem:[%s5 + $0x1c] sm:$0xf]
  %v609 = vld [vmem:[%s5 + $0x20] sm:$0xf]
  %v610 = vld [vmem:[%s5 + $0x24] sm:$0xf]
  %v611 = vld [vmem:[%s5 + $0x28] sm:$0xf]
  %v612 = vld [vmem:[%s5 + $0x2c] sm:$0xf]
  %v613 = vld [vmem:[%s5 + $0x30] sm:$0xf]
  %v614 = vld [vmem:[%s5 + $0x34] sm:$0xf]
  %v615 = vld [vmem:[%s5 + $0x38] sm:$0xf]
  %v616 = vld [vmem:[%s5 + $0x3c] sm:$0xf]
  %v617 = vld [vmem:[%s5 + $0x40] sm:$0xf]
  %v618 = vld [vmem:[%s5 + $0x44] sm:$0xf]
  %v619 = vld [vmem:[%s5 + $0x48] sm:$0xf]
  %v620 = vld [vmem:[%s5 + $0x4c] sm:$0xf]
  %v621 = vld [vmem:[%s5 + $0x50] sm:$0xf]
  %v622 = vld [vmem:[%s5 + $0x54] sm:$0xf]
  %v623 = vld [vmem:[%s5 + $0x58] sm:$0xf]
  %v624 = vld [vmem:[%s5 + $0x5c] sm:$0xf]
  %v625 = vld [vmem:[%s5 + $0x60] sm:$0xf]
  %v626 = vld [vmem:[%s5 + $0x64] sm:$0xf]
  %v627 = vld [vmem:[%s5 + $0x68] sm:$0xf]
  %v628 = vld [vmem:[%s5 + $0x6c] sm:$0xf]
  %v629 = vld [vmem:[%s5 + $0x70] sm:$0xf]
  %v630 = vld [vmem:[%s5 + $0x74] sm:$0xf]
  %v631 = vld [vmem:[%s5 + $0x78] sm:$0xf]
  %v632 = vld [vmem:[%s5 + $0x7c] sm:$0xf]
  %v633 = vld [vmem:[%s5 + $0x80] sm:$0xf]
  %v634 = vld [vmem:[%s5 + $0x84] sm:$0xf]
  %v635 = vld [vmem:[%s5 + $0x88] sm:$0xf]
  %v636 = vld [vmem:[%s5 + $0x8c] sm:$0xf]
  %v637 = vld [vmem:[%s5 + $0x90] sm:$0xf]
  %v638 = vld [vmem:[%s5 + $0x94] sm:$0xf]
  %v639 = vld [vmem:[%s5 + $0x98] sm:$0xf]
  %v640 = vld [vmem:[%s5 + $0x9c] sm:$0xf]
  %v641 = vld [vmem:[%s5 + $0xa0] sm:$0xf]
  %v642 = vld [vmem:[%s5 + $0xa4] sm:$0xf]
  %v643 = vld [vmem:[%s5 + $0xa8] sm:$0xf]
  %v644 = vld [vmem:[%s5 + $0xac] sm:$0xf]
  %v645 = vld [vmem:[%s5 + $0xb0] sm:$0xf]
  %v646 = vld [vmem:[%s5 + $0xb4] sm:$0xf]
  %v647 = vld [vmem:[%s5 + $0xb8] sm:$0xf]
  %v648 = vld [vmem:[%s5 + $0xbc] sm:$0xf]
  %v649 = vld [vmem:[%s5 + $0xc0] sm:$0xf]
  %v650 = vld [vmem:[%s5 + $0xc4] sm:$0xf]
  %v651 = vld [vmem:[%s5 + $0xc8] sm:$0xf]
  %v652 = vld [vmem:[%s5 + $0xcc] sm:$0xf]
  %v653 = vld [vmem:[%s5 + $0xd0] sm:$0xf]
  %v654 = vld [vmem:[%s5 + $0xd4] sm:$0xf]
  %v655 = vld [vmem:[%s5 + $0xd8] sm:$0xf]
  %v656 = vld [vmem:[%s5 + $0xdc] sm:$0xf]
  %v657 = vld [vmem:[%s5 + $0xe0] sm:$0xf]
  %v658 = vld [vmem:[%s5 + $0xe4] sm:$0xf]
  %v659 = vld [vmem:[%s5 + $0xe8] sm:$0xf]
  %v660 = vld [vmem:[%s5 + $0xec] sm:$0xf]
  %v661 = vld [vmem:[%s5 + $0xf0] sm:$0xf]
  %v662 = vld [vmem:[%s5 + $0xf4] sm:$0xf]
  %v663 = vld [vmem:[%s5 + $0xf8] sm:$0xf]
  %v664 = vld [vmem:[%s5 + $0xfc] sm:$0xf]
  %v729 = vunpack.c.l.b16 %v601
  %v730 = vunpack.c.l.b16 %v602
  %v731 = vunpack.c.l.b16 %v603
  %v732 = vunpack.c.l.b16 %v604
  %v733 = vunpack.c.l.b16 %v605
  %v734 = vunpack.c.l.b16 %v606
  %v735 = vunpack.c.l.b16 %v607
  %v736 = vunpack.c.l.b16 %v608
  %v737 = vunpack.c.l.b16 %v609
  %v738 = vunpack.c.l.b16 %v610
  %v739 = vunpack.c.l.b16 %v611
  %v740 = vunpack.c.l.b16 %v612
  %v741 = vunpack.c.l.b16 %v613
  %v742 = vunpack.c.l.b16 %v614
  %v743 = vunpack.c.l.b16 %v615
  %v744 = vunpack.c.l.b16 %v616
  %v745 = vunpack.c.l.b16 %v617
  %v746 = vunpack.c.l.b16 %v618
  %v747 = vunpack.c.l.b16 %v619
  %v748 = vunpack.c.l.b16 %v620
  %v749 = vunpack.c.l.b16 %v621
  %v750 = vunpack.c.l.b16 %v622
  %v751 = vunpack.c.l.b16 %v623
  %v752 = vunpack.c.l.b16 %v624
  %v753 = vunpack.c.l.b16 %v625
  %v754 = vunpack.c.l.b16 %v626
  %v755 = vunpack.c.l.b16 %v627
  %v756 = vunpack.c.l.b16 %v628
  %v757 = vunpack.c.l.b16 %v629
  %v758 = vunpack.c.l.b16 %v630
  %v759 = vunpack.c.l.b16 %v631
  %v760 = vunpack.c.l.b16 %v632
  %v761 = vunpack.c.l.b16 %v633
  %v762 = vunpack.c.l.b16 %v634
  %v763 = vunpack.c.l.b16 %v635
  %v764 = vunpack.c.l.b16 %v636
  %v765 = vunpack.c.l.b16 %v637
  %v766 = vunpack.c.l.b16 %v638
  %v767 = vunpack.c.l.b16 %v639
  %v768 = vunpack.c.l.b16 %v640
  %v769 = vunpack.c.l.b16 %v641
  %v770 = vunpack.c.l.b16 %v642
  %v771 = vunpack.c.l.b16 %v643
  %v772 = vunpack.c.l.b16 %v644
  %v773 = vunpack.c.l.b16 %v645
  %v774 = vunpack.c.l.b16 %v646
  %v775 = vunpack.c.l.b16 %v647
  %v776 = vunpack.c.l.b16 %v648
  %v777 = vunpack.c.l.b16 %v649
  %v778 = vunpack.c.l.b16 %v650
  %v779 = vunpack.c.l.b16 %v651
  %v780 = vunpack.c.l.b16 %v652
  %v781 = vunpack.c.l.b16 %v653
  %v782 = vunpack.c.l.b16 %v654
  %v783 = vunpack.c.l.b16 %v655
  %v784 = vunpack.c.l.b16 %v656
  %v785 = vunpack.c.l.b16 %v657
  %v786 = vunpack.c.l.b16 %v658
  %v787 = vunpack.c.l.b16 %v659
  %v788 = vunpack.c.l.b16 %v660
  %v789 = vunpack.c.l.b16 %v661
  %v790 = vunpack.c.l.b16 %v662
  %v791 = vunpack.c.l.b16 %v663
  %v792 = vunpack.c.l.b16 %v664
  %v793 = vpack.c.b16 %v730, %v729
  %v794 = vpack.c.b16 %v732, %v731
  %v795 = vpack.c.b16 %v734, %v733
  %v796 = vpack.c.b16 %v736, %v735
  %v797 = vpack.c.b16 %v738, %v737
  %v798 = vpack.c.b16 %v740, %v739
  %v799 = vpack.c.b16 %v742, %v741
  %v800 = vpack.c.b16 %v744, %v743
  %v801 = vpack.c.b16 %v746, %v745
  %v802 = vpack.c.b16 %v748, %v747
  %v803 = vpack.c.b16 %v750, %v749
  %v804 = vpack.c.b16 %v752, %v751
  %v805 = vpack.c.b16 %v754, %v753
  %v806 = vpack.c.b16 %v756, %v755
  %v807 = vpack.c.b16 %v758, %v757
  %v808 = vpack.c.b16 %v760, %v759
  %v809 = vpack.c.b16 %v762, %v761
  %v810 = vpack.c.b16 %v764, %v763
  %v811 = vpack.c.b16 %v766, %v765
  %v812 = vpack.c.b16 %v768, %v767
  %v813 = vpack.c.b16 %v770, %v769
  %v814 = vpack.c.b16 %v772, %v771
  %v815 = vpack.c.b16 %v774, %v773
  %v816 = vpack.c.b16 %v776, %v775
  %v817 = vpack.c.b16 %v778, %v777
  %v818 = vpack.c.b16 %v780, %v779
  %v819 = vpack.c.b16 %v782, %v781
  %v820 = vpack.c.b16 %v784, %v783
  %v821 = vpack.c.b16 %v786, %v785
  %v822 = vpack.c.b16 %v788, %v787
  %v823 = vpack.c.b16 %v790, %v789
  %v824 = vpack.c.b16 %v792, %v791
  %857 = vmatprep.subr.bf16.mxu0 0
  %858 = vmatpush1.bf16.msra.mxu0 %v793
  %859 = vmatprep.subr.bf16.mxu0 0
  %860 = vmatpush1.bf16.msra.mxu0 %v794
  %861 = vmatprep.subr.bf16.mxu0 0
  %862 = vmatpush1.bf16.msra.mxu0 %v795
  %863 = vmatprep.subr.bf16.mxu0 0
  %864 = vmatpush1.bf16.msra.mxu0 %v796
  %865 = vmatprep.subr.bf16.mxu0 0
  %866 = vmatpush1.bf16.msra.mxu0 %v797
  %867 = vmatprep.subr.bf16.mxu0 0
  %868 = vmatpush1.bf16.msra.mxu0 %v798
  %869 = vmatprep.subr.bf16.mxu0 0
  %870 = vmatpush1.bf16.msra.mxu0 %v799
  %871 = vmatprep.subr.bf16.mxu0 0
  %872 = vmatpush1.bf16.msra.mxu0 %v800
  %873 = vmatprep.subr.bf16.mxu0 0
  %874 = vmatpush1.bf16.msra.mxu0 %v801
  %875 = vmatprep.subr.bf16.mxu0 0
  %876 = vmatpush1.bf16.msra.mxu0 %v802
  %877 = vmatprep.subr.bf16.mxu0 0
  %878 = vmatpush1.bf16.msra.mxu0 %v803
  %879 = vmatprep.subr.bf16.mxu0 0
  %880 = vmatpush1.bf16.msra.mxu0 %v804
  %881 = vmatprep.subr.bf16.mxu0 0
  %882 = vmatpush1.bf16.msra.mxu0 %v805
  %883 = vmatprep.subr.bf16.mxu0 0
  %884 = vmatpush1.bf16.msra.mxu0 %v806
  %885 = vmatprep.subr.bf16.mxu0 0
  %886 = vmatpush1.bf16.msra.mxu0 %v807
  %887 = vmatprep.subr.bf16.mxu0 0
  %888 = vmatpush1.bf16.msra.mxu0 %v808
  %889 = vmatprep.mubr.bf16.mxu0 %v598
  %890 = vmatmul.mubr.bf16.gmra.mrb[0].mxu0 %v597
  %v891 = vpop.f32.mrb[0].mxu0
  %v892 = vadd.f32 0.0, %v891
  %v893 = vpop.f32.mrb[0].mxu0
  %v894 = vpop.f32.mrb[0].mxu0
  %v895 = vadd.f32 0.0, %v894
  %v896 = vpop.f32.mrb[0].mxu0
  %897 = vdwg.mxu0
  %898 = vmatprep.subr.bf16.mxu0 0
  %899 = vmatpush1.bf16.msra.mxu0 %v809
  %900 = vmatprep.subr.bf16.mxu0 0
  %901 = vmatpush1.bf16.msra.mxu0 %v810
  %902 = vmatprep.subr.bf16.mxu0 0
  %903 = vmatpush1.bf16.msra.mxu0 %v811
  %904 = vmatprep.subr.bf16.mxu0 0
  %905 = vmatpush1.bf16.msra.mxu0 %v812
  %906 = vmatprep.subr.bf16.mxu0 0
  %907 = vmatpush1.bf16.msra.mxu0 %v813
  %908 = vmatprep.subr.bf16.mxu0 0
  %909 = vmatpush1.bf16.msra.mxu0 %v814
  %910 = vmatprep.subr.bf16.mxu0 0
  %911 = vmatpush1.bf16.msra.mxu0 %v815
  %912 = vmatprep.subr.bf16.mxu0 0
  %913 = vmatpush1.bf16.msra.mxu0 %v816
  %914 = vmatprep.subr.bf16.mxu0 0
  %915 = vmatpush1.bf16.msra.mxu0 %v817
  %916 = vmatprep.subr.bf16.mxu0 0
  %917 = vmatpush1.bf16.msra.mxu0 %v818
  %918 = vmatprep.subr.bf16.mxu0 0
  %919 = vmatpush1.bf16.msra.mxu0 %v819
  %920 = vmatprep.subr.bf16.mxu0 0
  %921 = vmatpush1.bf16.msra.mxu0 %v820
  %922 = vmatprep.subr.bf16.mxu0 0
  %923 = vmatpush1.bf16.msra.mxu0 %v821
  %924 = vmatprep.subr.bf16.mxu0 0
  %925 = vmatpush1.bf16.msra.mxu0 %v822
  %926 = vmatprep.subr.bf16.mxu0 0
  %927 = vmatpush1.bf16.msra.mxu0 %v823
  %928 = vmatprep.subr.bf16.mxu0 0
  %929 = vmatpush1.bf16.msra.mxu0 %v824
  %930 = vmatprep.mubr.bf16.mxu0 %v600
  %931 = vmatmul.mubr.bf16.gmra.mrb[0].mxu0 %v599
  %v932 = vpop.f32.mrb[0].mxu0
  %v933 = vadd.f32 %v892, %v932
  %v934 = vpop.f32.mrb[0].mxu0
  %v935 = vpop.f32.mrb[0].mxu0
  %v936 = vadd.f32 %v895, %v935
  %v937 = vpop.f32.mrb[0].mxu0
  %938 = vdwg.mxu0
  %v939 = vadd.f32 %v595, %v933
  %v940 = vadd.f32 %v596, %v936
  %941 = vst [vmem:[#allocation3] sm:$0xff] %v939
  %942 = vst [vmem:[#allocation3 + $0x8] sm:$0xff] %v940
  // Predicated region
  $region34: #{transformer_lm_forward.16} parent=0 // pred_check
    %p943 = pneg %p27
  $region35: #{transformer_lm_forward.16} parent=0 // pred_check_branch
    %945 = sbr.rel (%p943) target = $region37
  $region36: #{transformer_lm_forward.16} parent=0 // pred_region
    %v946 = vld [vmem:[#allocation3] sm:$0xff]
    %v947 = vld [vmem:[#allocation3 + $0x8] sm:$0xff]
    %v948 = vld [vmem:[%s6] sm:$0x1]
    %v950 = vlaneseq
    %v951 = vshrl.u32 %v950, 7
    %v952 = vsub.s32 0, %v951
    %v953 = vrot.slane %v948, %v952
    %v955 = vadd.f32 %v946, %v953
    %v956 = vadd.f32 %v947, %v953
    %v957 = vld [vmem:[%s0] sm:$0xff]
    %v958 = vld [vmem:[%s0 + $0x8] sm:$0xff]
    %v959 = vadd.f32 %v955, %v957
    %v960 = vadd.f32 %v956, %v958
    %961 = vst [vmem:[%s7] sm:$0xff] %v959
    %962 = vst [vmem:[%s7 + $0x8] sm:$0xff] %v960
  $region37: #{transformer_lm_forward.16} parent=0 // pred_fallthru
    _
  // Predicated region
  $region38: #{transformer_lm_forward.16} parent=0 // pred_check
    _
  $region39: #{transformer_lm_forward.16} parent=0 // pred_check_branch
    %964 = sbr.rel (0) target = $region41
  $region40: #{transformer_lm_forward.16} parent=0 // pred_region
    _
  $region41: #{transformer_lm_forward.16} parent=0 // pred_fallthru
    _
  // Predicated region
  $region42: #{transformer_lm_forward.16} parent=0 // pred_check
    _
  $region43: #{transformer_lm_forward.16} parent=0 // pred_check_branch
    %966 = sbr.rel (0) target = $region45
  $region44: #{transformer_lm_forward.16} parent=0 // pred_region
    _
  $region45: #{transformer_lm_forward.16} parent=0 // pred_fallthru
    _

</llo_original>
